<compile_context>
chip_gen: v7x
topology: tpu7x:2x2x1
jax: 0.10.0
libtpu: 0.0.40
codegen_flags: <defaults>
</compile_context>

<pallas_src>
import math

import jax
import jax.numpy as jnp
from jax.experimental import pallas as pl
from jax.experimental.pallas import tpu as pltpu

LANES = 128
_BN_EPS = 1e-5

# StarTree conv configuration: (out_channels, kernel, stride, pool)
_CONV_CFG = [
    (64, 5, 2, False),  # c1
    (16, 3, 1, False),  # c2
    (32, 3, 1, True),   # c3 (max pool)
    (24, 3, 1, False),  # c4
    (48, 3, 1, True),   # c5 (max pool)
    (32, 3, 1, False),  # c6
    (64, 3, 1, True),   # c7 (max pool)
    (40, 3, 1, False),  # c8
    (80, 2, 1, True),   # c9 (max pool, dropout=0.25 -> identity in eval)
]


def _round_up(x, m):
    return (x + m - 1) // m * m


def _conv_out(n, k, s, p):
    return (n + 2 * p - k) // s + 1


def build_plan(in_dim, n_status):
    """Static per-layer geometry (Python ints only)."""
    c, h, w = in_dim
    layers = []
    cin = c
    for (cout, k, s, pool) in _CONV_CFG:
        p = k // 2
        ho, wo = _conv_out(h, k, s, p), _conv_out(w, k, s, p)
        if pool:
            # TODO(synk): PyTorch MaxPool2d floors odd dims; not handled by the fused kernel.
            assert ho % 2 == 0 and wo % 2 == 0, "pool layers need even spatial dims"
        hout, wout = (ho // 2, wo // 2) if pool else (ho, wo)
        layers.append(dict(cin=cin, cout=cout, k=k, stride=s, pad=p,
                           hin=h, win=w, ho=ho, wo=wo, pool=pool))
        h, w, cin = hout, wout, cout
    flat = cin * h * w
    # TODO(synk): general final spatial maps / flat+status > 128 would need a wider
    # fc feature row; the StarTree config used here ends at 1x1 with 80+3 features.
    assert h == 1 and w == 1, "fused kernel assumes a 1x1 final spatial map"
    assert flat + n_status <= LANES
    assert all(ly["cin"] <= LANES and ly["cout"] <= LANES for ly in layers)
    return layers, flat


def _init_linear(key, fin, fout):
    k1, k2 = jax.random.split(key)
    bound = 1.0 / math.sqrt(fin)
    w = jax.random.uniform(k1, (fin, fout), jnp.float32, -bound, bound)
    b = jax.random.uniform(k2, (fout,), jnp.float32, -bound, bound)
    return w, b


def _init_params(key, layers, flat, n_status, n_out):
    keys = jax.random.split(key, len(layers) + 2)
    conv_w, conv_shift = [], []
    for idx, (ly, kk) in enumerate(zip(layers, keys[: len(layers)])):
        k1, k2 = jax.random.split(kk)
        k, cin, cout = ly["k"], ly["cin"], ly["cout"]
        bound = 1.0 / math.sqrt(cin * k * k)
        w = jax.random.uniform(k1, (k, k, cin, cout), jnp.float32, -bound, bound)
        b = jax.random.uniform(k2, (cout,), jnp.float32, -bound, bound)
        # BatchNorm2d at fresh init, eval mode: gamma=1, beta=0, mean=0, var=1.
        gamma = jnp.ones((cout,), jnp.float32)
        beta = jnp.zeros((cout,), jnp.float32)
        mean = jnp.zeros((cout,), jnp.float32)
        var = jnp.ones((cout,), jnp.float32)
        scale = gamma * jax.lax.rsqrt(var + _BN_EPS)
        w = w * scale                      # fold BN scale into the conv weights
        shift = (b - mean) * scale + beta  # remaining per-channel shift
        if idx == 0:
            # c1 consumed as an im2col GEMM: (k*k*cin -> pad to 128-mult, 128)
            kdim = k * k * cin
            wk = w.reshape(kdim, cout)
            wk = jnp.pad(wk, ((0, _round_up(kdim, LANES) - kdim), (0, LANES - cout)))
        else:
            # per-tap weights (k*k, cin, 128): Cout lane-padded, Cin kept true.
            wk = jnp.pad(w.reshape(k * k, cin, cout),
                         ((0, 0), (0, 0), (0, LANES - cout)))
        conv_w.append(wk.astype(jnp.bfloat16))
        conv_shift.append(jnp.pad(shift, (0, LANES - cout)).reshape(1, LANES))

    # fc1 rows are laid out as [NHWC-flattened conv features | status]; at a 1x1
    # spatial map this equals PyTorch's NCHW flatten order (row-permute otherwise).
    fin1 = flat + n_status
    w1, b1 = _init_linear(keys[-2], fin1, 50)
    w2, b2 = _init_linear(keys[-1], 50, n_out)
    return dict(
        conv_w=conv_w,
        conv_shift=conv_shift,
        fc1_w=jnp.pad(w1, ((0, LANES - fin1), (0, LANES - 50))).astype(jnp.bfloat16),
        fc1_b=jnp.pad(b1, (0, LANES - 50)).reshape(1, LANES),
        fc2_w=jnp.pad(w2, ((0, LANES - 50), (0, LANES - n_out))).astype(jnp.bfloat16),
        fc2_b=jnp.pad(b2, (0, LANES - n_out)).reshape(1, LANES),
    )


def _make_kernel(layers):
    """Build the fused per-image kernel + its VMEM scratch shapes."""
    L = len(layers)
    ly0 = layers[0]
    m0 = ly0["ho"] * ly0["wo"]                      # c1 GEMM rows per image

    # Padded input-buffer geometry for layers 1..L-1 (flat (Hp*Wp, 128) buffers).
    buf_hw = [(ly["hin"] + 2 * ly["pad"], ly["win"] + 2 * ly["pad"])
              for ly in layers[1:]]
    # Rows of conv output computed per layer (shifted-slice trick; junk rows dropped).
    ry = [hp * wp - (ly["k"] - 1) * wp - (ly["k"] - 1)
          for (hp, wp), ly in zip(buf_hw, layers[1:])]
    ry_max = max([m0] + ry)

    def kernel(*refs):
        a1 = refs[0]                                 # (m0, K1p) bf16 im2col of c1
        st = refs[1]                                 # (1, 1, 128) status, pre-placed
        w_refs = refs[2:2 + L]
        s_refs = refs[2 + L:2 + 2 * L]
        wf1, bf1, wf2, bf2 = refs[2 + 2 * L:2 + 2 * L + 4]
        o_ref = refs[2 + 2 * L + 4]
        ybuf = refs[2 + 2 * L + 5]                   # shared conv-output buffer
        bufs = refs[2 + 2 * L + 6:]                  # padded inputs of layers 1..L-1

        f32, bf16 = jnp.float32, jnp.bfloat16

        # Zero the padded activation buffers (border rows must stay exactly 0).
        for b in bufs:
            b[...] = jnp.zeros(b.shape, b.dtype)

        def emit(src_stride, ho, wo, pool, dst, dst_wp, dst_pad):
            """Copy (and optionally 2x2 max-pool) valid conv-output rows from ybuf
            into the next layer's zero-padded flat input buffer."""
            if pool:
                for hh in range(ho // 2):
                    for ww in range(wo // 2):
                        r0 = 2 * hh * src_stride + 2 * ww
                        r1 = r0 + src_stride
                        m = jnp.maximum(ybuf[r0:r0 + 2, :], ybuf[r1:r1 + 2, :])
                        m = jnp.max(m, axis=0, keepdims=True)
                        d = (hh + dst_pad) * dst_wp + (ww + dst_pad)
                        dst[d:d + 1, :] = m
            else:
                for hh in range(ho):
                    d = (hh + dst_pad) * dst_wp + dst_pad
                    src = hh * src_stride
                    dst[d:d + wo, :] = ybuf[src:src + wo, :]

        # ---- c1: stride-2 conv as a single im2col GEMM ------------------------
        acc = jnp.dot(a1[...], w_refs[0][...], preferred_element_type=f32)
        y = jnp.maximum(acc + s_refs[0][...], 0.0)
        ybuf[0:m0, :] = y
        emit(ly0["wo"], ly0["ho"], ly0["wo"], ly0["pool"],
             bufs[0], buf_hw[0][1], layers[1]["pad"])

        # ---- c2..c9: direct conv via k*k shifted-slice matmuls -----------------
        feat = None
        for i in range(1, L):
            ly = layers[i]
            hp, wp = buf_hw[i - 1]
            k, cin, r = ly["k"], ly["cin"], ry[i - 1]
            acc = None
            for di in range(k):
                for dj in range(k):
                    sh = di * wp + dj
                    x = bufs[i - 1][sh:sh + r, 0:cin].astype(bf16)
                    part = jnp.dot(x, w_refs[i][di * k + dj],
                                   preferred_element_type=f32)
                    acc = part if acc is None else acc + part
            y = jnp.maximum(acc + s_refs[i][...], 0.0)
            ybuf[0:r, :] = y
            if i < L - 1:
                emit(wp, ly["ho"], ly["wo"], ly["pool"],
                     bufs[i], buf_hw[i][1], layers[i + 1]["pad"])
            else:
                # Final layer -> single (1,128) feature row (1x1 spatial, asserted).
                if ly["pool"]:
                    m = jnp.maximum(ybuf[0:2, :], ybuf[wp:wp + 2, :])
                    feat = jnp.max(m, axis=0, keepdims=True)
                else:
                    feat = ybuf[0:1, :]

        # ---- ViewBlock + status concat + fc1 + fc2 -----------------------------
        # feat columns >= flat are exactly 0 and status was pre-placed at columns
        # [flat, flat+n_status) by the wrapper, so the concat is just an add.
        # TODO(synk): training-mode Dropout2d(0.25) in c9 is not modeled (eval identity).
        fc_in = feat + st[0]
        h1 = jnp.dot(fc_in.astype(bf16), wf1[...], preferred_element_type=f32)
        h1 = jnp.maximum(h1 + bf1[...], 0.0)
        out = jnp.dot(h1.astype(bf16), wf2[...], preferred_element_type=f32)
        o_ref[0] = (out + bf2[...]).astype(o_ref.dtype)

    scratch = [pltpu.VMEM((_round_up(ry_max, 8), LANES), jnp.float32)]
    for hp, wp in buf_hw:
        scratch.append(pltpu.VMEM((_round_up(hp * wp, 8), LANES), jnp.float32))
    return kernel, scratch


def make_startree(key, in_dim, n_status, n_out):
    layers, flat = build_plan(in_dim, n_status)
    params = _init_params(key, layers, flat, n_status, n_out)
    kernel, scratch_shapes = _make_kernel(layers)

    ly0 = layers[0]
    k0, s0, p0, cin0 = ly0["k"], ly0["stride"], ly0["pad"], ly0["cin"]
    ho0, wo0 = ly0["ho"], ly0["wo"]
    m0 = ho0 * wo0
    kdim0 = k0 * k0 * cin0
    kdim0_p = _round_up(kdim0, LANES)

    flops = 0
    for ly in layers:
        flops += 2 * ly["ho"] * ly["wo"] * ly["k"] * ly["k"] * ly["cin"] * ly["cout"]
    flops += 2 * 2 * LANES * LANES  # fc1 + fc2 (padded)

    def forward(params, x_nchw, status):
        n = x_nchw.shape[0]
        # --- c1 im2col (tiny; XLA fuses this into one small op feeding the kernel)
        x = jnp.transpose(x_nchw, (0, 2, 3, 1)).astype(jnp.float32)   # NCHW -> NHWC
        xp = jnp.pad(x, ((0, 0), (p0, p0), (p0, p0), (0, 0)))
        cols = [xp[:, di:di + s0 * ho0:s0, dj:dj + s0 * wo0:s0, :]
                for di in range(k0) for dj in range(k0)]
        a1 = jnp.stack(cols, axis=3).reshape(n * m0, kdim0)
        a1 = jnp.pad(a1, ((0, 0), (0, kdim0_p - kdim0))).astype(jnp.bfloat16)
        # --- status pre-placed at lane offset `flat` so in-kernel concat == add
        st = jnp.zeros((n, 1, LANES), jnp.float32)
        if n_status:
            st = st.at[:, 0, flat:flat + n_status].set(status.astype(jnp.float32))

        args = ([a1, st] + list(params["conv_w"]) + list(params["conv_shift"])
                + [params["fc1_w"], params["fc1_b"],
                   params["fc2_w"], params["fc2_b"]])

        in_specs = [
            pl.BlockSpec((m0, kdim0_p), lambda i: (i, 0)),        # a1, per image
            pl.BlockSpec((1, 1, LANES), lambda i: (i, 0, 0)),     # status, per image
            pl.BlockSpec(params["conv_w"][0].shape, lambda i: (0, 0)),
        ]
        for w_arr in params["conv_w"][1:]:
            in_specs.append(pl.BlockSpec(w_arr.shape, lambda i: (0, 0, 0)))
        for _ in params["conv_shift"]:
            in_specs.append(pl.BlockSpec((1, LANES), lambda i: (0, 0)))
        in_specs += [
            pl.BlockSpec(params["fc1_w"].shape, lambda i: (0, 0)),
            pl.BlockSpec((1, LANES), lambda i: (0, 0)),
            pl.BlockSpec(params["fc2_w"].shape, lambda i: (0, 0)),
            pl.BlockSpec((1, LANES), lambda i: (0, 0)),
        ]

        bytes_accessed = sum(int(v.size) * v.dtype.itemsize for v in args)
        bytes_accessed += n * LANES * 4

        out = pl.pallas_call(
            kernel,
            out_shape=jax.ShapeDtypeStruct((n, 1, LANES), jnp.float32),
            grid=(n,),
            in_specs=in_specs,
            out_specs=pl.BlockSpec((1, 1, LANES), lambda i: (i, 0, 0)),
            scratch_shapes=scratch_shapes,
            compiler_params=pltpu.CompilerParams(
                dimension_semantics=("parallel",)),
            cost_estimate=pl.CostEstimate(
                flops=n * flops, transcendentals=0,
                bytes_accessed=bytes_accessed),
        )(*args)
        return out[:, 0, :n_out]

    return params, forward


if __name__ == "__main__":
    batch = 2
    in_dim = [4, 16, 16]  # [C, H, W]
    n_status = 3
    n_out = 2

    root = jax.random.PRNGKey(0)
    kp, kx, ks = jax.random.split(root, 3)

    params, forward = make_startree(kp, in_dim, n_status, n_out)
    x = jax.random.normal(kx, (batch, in_dim[0], in_dim[1], in_dim[2]), jnp.float32)
    status = jax.random.normal(ks, (batch, n_status), jnp.float32)

    fwd = jax.jit(forward)
    out = jax.block_until_ready(fwd(params, x, status))
    assert out.shape == (batch, n_out), out.shape
    assert bool(jnp.all(jnp.isfinite(out)))
    print("KERNEL_OK")
</pallas_src>

<mosaic_0001>
module attributes {stable_mosaic.version = 11 : i64} {
  func.func @kernel(%arg0: i32, %arg1: memref<64x128xbf16, #tpu.memory_space<vmem>>, %arg2: memref<1x1x128xf32, #tpu.memory_space<vmem>>, %arg3: memref<128x128xbf16, #tpu.memory_space<vmem>>, %arg4: memref<9x64x128xbf16, #tpu.memory_space<vmem>>, %arg5: memref<9x16x128xbf16, #tpu.memory_space<vmem>>, %arg6: memref<9x32x128xbf16, #tpu.memory_space<vmem>>, %arg7: memref<9x24x128xbf16, #tpu.memory_space<vmem>>, %arg8: memref<9x48x128xbf16, #tpu.memory_space<vmem>>, %arg9: memref<9x32x128xbf16, #tpu.memory_space<vmem>>, %arg10: memref<9x64x128xbf16, #tpu.memory_space<vmem>>, %arg11: memref<4x40x128xbf16, #tpu.memory_space<vmem>>, %arg12: memref<1x128xf32, #tpu.memory_space<vmem>>, %arg13: memref<1x128xf32, #tpu.memory_space<vmem>>, %arg14: memref<1x128xf32, #tpu.memory_space<vmem>>, %arg15: memref<1x128xf32, #tpu.memory_space<vmem>>, %arg16: memref<1x128xf32, #tpu.memory_space<vmem>>, %arg17: memref<1x128xf32, #tpu.memory_space<vmem>>, %arg18: memref<1x128xf32, #tpu.memory_space<vmem>>, %arg19: memref<1x128xf32, #tpu.memory_space<vmem>>, %arg20: memref<1x128xf32, #tpu.memory_space<vmem>>, %arg21: memref<128x128xbf16, #tpu.memory_space<vmem>>, %arg22: memref<1x128xf32, #tpu.memory_space<vmem>>, %arg23: memref<128x128xbf16, #tpu.memory_space<vmem>>, %arg24: memref<1x128xf32, #tpu.memory_space<vmem>>, %arg25: memref<1x1x128xf32, #tpu.memory_space<vmem>>, %arg26: memref<80x128xf32, #tpu.memory_space<vmem>>, %arg27: memref<104x128xf32, #tpu.memory_space<vmem>>, %arg28: memref<104x128xf32, #tpu.memory_space<vmem>>, %arg29: memref<40x128xf32, #tpu.memory_space<vmem>>, %arg30: memref<40x128xf32, #tpu.memory_space<vmem>>, %arg31: memref<16x128xf32, #tpu.memory_space<vmem>>, %arg32: memref<16x128xf32, #tpu.memory_space<vmem>>, %arg33: memref<16x128xf32, #tpu.memory_space<vmem>>, %arg34: memref<16x128xf32, #tpu.memory_space<vmem>>) attributes {dimension_semantics = [#tpu.dimension_semantics<parallel>], iteration_bounds = array<i64: 2>, scalar_prefetch = 0 : i64, scratch_operands = 9 : i64, tpu.core_type = #tpu.core_type<tc>, window_params = [{transform_indices = @transform_0, window_bounds = array<i64: 64, 128>}, {transform_indices = @transform_1, window_bounds = array<i64: 1, 1, 128>}, {pipeline_mode = #tpu.pipeline_mode<synchronous>, transform_indices = @transform_2, window_bounds = array<i64: 128, 128>}, {pipeline_mode = #tpu.pipeline_mode<synchronous>, transform_indices = @transform_3, window_bounds = array<i64: 9, 64, 128>}, {pipeline_mode = #tpu.pipeline_mode<synchronous>, transform_indices = @transform_4, window_bounds = array<i64: 9, 16, 128>}, {pipeline_mode = #tpu.pipeline_mode<synchronous>, transform_indices = @transform_5, window_bounds = array<i64: 9, 32, 128>}, {pipeline_mode = #tpu.pipeline_mode<synchronous>, transform_indices = @transform_6, window_bounds = array<i64: 9, 24, 128>}, {pipeline_mode = #tpu.pipeline_mode<synchronous>, transform_indices = @transform_7, window_bounds = array<i64: 9, 48, 128>}, {pipeline_mode = #tpu.pipeline_mode<synchronous>, transform_indices = @transform_8, window_bounds = array<i64: 9, 32, 128>}, {pipeline_mode = #tpu.pipeline_mode<synchronous>, transform_indices = @transform_9, window_bounds = array<i64: 9, 64, 128>}, {pipeline_mode = #tpu.pipeline_mode<synchronous>, transform_indices = @transform_10, window_bounds = array<i64: 4, 40, 128>}, {pipeline_mode = #tpu.pipeline_mode<synchronous>, transform_indices = @transform_11, window_bounds = array<i64: 1, 128>}, {pipeline_mode = #tpu.pipeline_mode<synchronous>, transform_indices = @transform_12, window_bounds = array<i64: 1, 128>}, {pipeline_mode = #tpu.pipeline_mode<synchronous>, transform_indices = @transform_13, window_bounds = array<i64: 1, 128>}, {pipeline_mode = #tpu.pipeline_mode<synchronous>, transform_indices = @transform_14, window_bounds = array<i64: 1, 128>}, {pipeline_mode = #tpu.pipeline_mode<synchronous>, transform_indices = @transform_15, window_bounds = array<i64: 1, 128>}, {pipeline_mode = #tpu.pipeline_mode<synchronous>, transform_indices = @transform_16, window_bounds = array<i64: 1, 128>}, {pipeline_mode = #tpu.pipeline_mode<synchronous>, transform_indices = @transform_17, window_bounds = array<i64: 1, 128>}, {pipeline_mode = #tpu.pipeline_mode<synchronous>, transform_indices = @transform_18, window_bounds = array<i64: 1, 128>}, {pipeline_mode = #tpu.pipeline_mode<synchronous>, transform_indices = @transform_19, window_bounds = array<i64: 1, 128>}, {pipeline_mode = #tpu.pipeline_mode<synchronous>, transform_indices = @transform_20, window_bounds = array<i64: 128, 128>}, {pipeline_mode = #tpu.pipeline_mode<synchronous>, transform_indices = @transform_21, window_bounds = array<i64: 1, 128>}, {pipeline_mode = #tpu.pipeline_mode<synchronous>, transform_indices = @transform_22, window_bounds = array<i64: 128, 128>}, {pipeline_mode = #tpu.pipeline_mode<synchronous>, transform_indices = @transform_23, window_bounds = array<i64: 1, 128>}, {transform_indices = @transform_24, window_bounds = array<i64: 1, 1, 128>}]} {
    %cst = arith.constant 0.000000e+00 : f32
    %0 = vector.broadcast %cst : f32 to vector<104x128xf32>
    %c0 = arith.constant 0 : index
    %c0_0 = arith.constant 0 : index
    %1 = vector.load %arg27[%c0, %c0_0] : memref<104x128xf32, #tpu.memory_space<vmem>>, vector<104x128xf32>
    tpu.vector_store %arg27[%c0, %c0_0], %0 {strides = array<i32>} : memref<104x128xf32, #tpu.memory_space<vmem>>, vector<104x128xf32>,
    %cst_1 = arith.constant 0.000000e+00 : f32
    %2 = vector.broadcast %cst_1 : f32 to vector<104x128xf32>
    %c0_2 = arith.constant 0 : index
    %c0_3 = arith.constant 0 : index
    %3 = vector.load %arg28[%c0_2, %c0_3] : memref<104x128xf32, #tpu.memory_space<vmem>>, vector<104x128xf32>
    tpu.vector_store %arg28[%c0_2, %c0_3], %2 {strides = array<i32>} : memref<104x128xf32, #tpu.memory_space<vmem>>, vector<104x128xf32>,
    %cst_4 = arith.constant 0.000000e+00 : f32
    %4 = vector.broadcast %cst_4 : f32 to vector<40x128xf32>
    %c0_5 = arith.constant 0 : index
    %c0_6 = arith.constant 0 : index
    %5 = vector.load %arg29[%c0_5, %c0_6] : memref<40x128xf32, #tpu.memory_space<vmem>>, vector<40x128xf32>
    tpu.vector_store %arg29[%c0_5, %c0_6], %4 {strides = array<i32>} : memref<40x128xf32, #tpu.memory_space<vmem>>, vector<40x128xf32>,
    %cst_7 = arith.constant 0.000000e+00 : f32
    %6 = vector.broadcast %cst_7 : f32 to vector<40x128xf32>
    %c0_8 = arith.constant 0 : index
    %c0_9 = arith.constant 0 : index
    %7 = vector.load %arg30[%c0_8, %c0_9] : memref<40x128xf32, #tpu.memory_space<vmem>>, vector<40x128xf32>
    tpu.vector_store %arg30[%c0_8, %c0_9], %6 {strides = array<i32>} : memref<40x128xf32, #tpu.memory_space<vmem>>, vector<40x128xf32>,
    %cst_10 = arith.constant 0.000000e+00 : f32
    %8 = vector.broadcast %cst_10 : f32 to vector<16x128xf32>
    %c0_11 = arith.constant 0 : index
    %c0_12 = arith.constant 0 : index
    %9 = vector.load %arg31[%c0_11, %c0_12] : memref<16x128xf32, #tpu.memory_space<vmem>>, vector<16x128xf32>
    tpu.vector_store %arg31[%c0_11, %c0_12], %8 {strides = array<i32>} : memref<16x128xf32, #tpu.memory_space<vmem>>, vector<16x128xf32>,
    %cst_13 = arith.constant 0.000000e+00 : f32
    %10 = vector.broadcast %cst_13 : f32 to vector<16x128xf32>
    %c0_14 = arith.constant 0 : index
    %c0_15 = arith.constant 0 : index
    %11 = vector.load %arg32[%c0_14, %c0_15] : memref<16x128xf32, #tpu.memory_space<vmem>>, vector<16x128xf32>
    tpu.vector_store %arg32[%c0_14, %c0_15], %10 {strides = array<i32>} : memref<16x128xf32, #tpu.memory_space<vmem>>, vector<16x128xf32>,
    %cst_16 = arith.constant 0.000000e+00 : f32
    %12 = vector.broadcast %cst_16 : f32 to vector<16x128xf32>
    %c0_17 = arith.constant 0 : index
    %c0_18 = arith.constant 0 : index
    %13 = vector.load %arg33[%c0_17, %c0_18] : memref<16x128xf32, #tpu.memory_space<vmem>>, vector<16x128xf32>
    tpu.vector_store %arg33[%c0_17, %c0_18], %12 {strides = array<i32>} : memref<16x128xf32, #tpu.memory_space<vmem>>, vector<16x128xf32>,
    %cst_19 = arith.constant 0.000000e+00 : f32
    %14 = vector.broadcast %cst_19 : f32 to vector<16x128xf32>
    %c0_20 = arith.constant 0 : index
    %c0_21 = arith.constant 0 : index
    %15 = vector.load %arg34[%c0_20, %c0_21] : memref<16x128xf32, #tpu.memory_space<vmem>>, vector<16x128xf32>
    tpu.vector_store %arg34[%c0_20, %c0_21], %14 {strides = array<i32>} : memref<16x128xf32, #tpu.memory_space<vmem>>, vector<16x128xf32>,
    %c0_22 = arith.constant 0 : index
    %c0_23 = arith.constant 0 : index
    %16 = vector.load %arg1[%c0_22, %c0_23] : memref<64x128xbf16, #tpu.memory_space<vmem>>, vector<64x128xbf16>
    %c0_24 = arith.constant 0 : index
    %c0_25 = arith.constant 0 : index
    %17 = vector.load %arg3[%c0_24, %c0_25] : memref<128x128xbf16, #tpu.memory_space<vmem>>, vector<128x128xbf16>
    %cst_26 = arith.constant dense<0.000000e+00> : vector<64x128xf32>
    %18 = tpu.matmul %16, %17, %cst_26 {dimension_numbers = #tpu.dot_dimension_numbers<[1], [0], [0], [1], [0, 0, 1, 1], [], []>} : vector<64x128xbf16>, vector<128x128xbf16>, vector<64x128xf32> -> vector<64x128xf32>
    %c0_27 = arith.constant 0 : index
    %c0_28 = arith.constant 0 : index
    %19 = vector.load %arg12[%c0_27, %c0_28] : memref<1x128xf32, #tpu.memory_space<vmem>>, vector<1x128xf32>
    %20 = vector.broadcast %19 : vector<1x128xf32> to vector<64x128xf32>
    %21 = arith.addf %18, %20 : vector<64x128xf32>
    %cst_29 = arith.constant 0.000000e+00 : f32
    %22 = vector.broadcast %cst_29 : f32 to vector<64x128xf32>
    %23 = arith.maximumf %21, %22 : vector<64x128xf32>
    %c0_30 = arith.constant 0 : index
    %c0_31 = arith.constant 0 : index
    %24 = vector.load %arg26[%c0_30, %c0_31] : memref<80x128xf32, #tpu.memory_space<vmem>>, vector<64x128xf32>
    tpu.vector_store %arg26[%c0_30, %c0_31], %23 {strides = array<i32>} : memref<80x128xf32, #tpu.memory_space<vmem>>, vector<64x128xf32>,
    %c0_32 = arith.constant 0 : index
    %c0_33 = arith.constant 0 : index
    %25 = vector.load %arg26[%c0_32, %c0_33] : memref<80x128xf32, #tpu.memory_space<vmem>>, vector<8x128xf32>
    %c11 = arith.constant 11 : index
    %c0_34 = arith.constant 0 : index
    %26 = vector.load %arg27[%c11, %c0_34] : memref<104x128xf32, #tpu.memory_space<vmem>>, vector<8x128xf32>
    tpu.vector_store %arg27[%c11, %c0_34], %25 {strides = array<i32>} : memref<104x128xf32, #tpu.memory_space<vmem>>, vector<8x128xf32>,
    %c8 = arith.constant 8 : index
    %c0_35 = arith.constant 0 : index
    %27 = vector.load %arg26[%c8, %c0_35] : memref<80x128xf32, #tpu.memory_space<vmem>>, vector<8x128xf32>
    %c21 = arith.constant 21 : index
    %c0_36 = arith.constant 0 : index
    %28 = vector.load %arg27[%c21, %c0_36] : memref<104x128xf32, #tpu.memory_space<vmem>>, vector<8x128xf32>
    tpu.vector_store %arg27[%c21, %c0_36], %27 {strides = array<i32>} : memref<104x128xf32, #tpu.memory_space<vmem>>, vector<8x128xf32>,
    %c16 = arith.constant 16 : index
    %c0_37 = arith.constant 0 : index
    %29 = vector.load %arg26[%c16, %c0_37] : memref<80x128xf32, #tpu.memory_space<vmem>>, vector<8x128xf32>
    %c31 = arith.constant 31 : index
    %c0_38 = arith.constant 0 : index
    %30 = vector.load %arg27[%c31, %c0_38] : memref<104x128xf32, #tpu.memory_space<vmem>>, vector<8x128xf32>
    tpu.vector_store %arg27[%c31, %c0_38], %29 {strides = array<i32>} : memref<104x128xf32, #tpu.memory_space<vmem>>, vector<8x128xf32>,
    %c24 = arith.constant 24 : index
    %c0_39 = arith.constant 0 : index
    %31 = vector.load %arg26[%c24, %c0_39] : memref<80x128xf32, #tpu.memory_space<vmem>>, vector<8x128xf32>
    %c41 = arith.constant 41 : index
    %c0_40 = arith.constant 0 : index
    %32 = vector.load %arg27[%c41, %c0_40] : memref<104x128xf32, #tpu.memory_space<vmem>>, vector<8x128xf32>
    tpu.vector_store %arg27[%c41, %c0_40], %31 {strides = array<i32>} : memref<104x128xf32, #tpu.memory_space<vmem>>, vector<8x128xf32>,
    %c32 = arith.constant 32 : index
    %c0_41 = arith.constant 0 : index
    %33 = vector.load %arg26[%c32, %c0_41] : memref<80x128xf32, #tpu.memory_space<vmem>>, vector<8x128xf32>
    %c51 = arith.constant 51 : index
    %c0_42 = arith.constant 0 : index
    %34 = vector.load %arg27[%c51, %c0_42] : memref<104x128xf32, #tpu.memory_space<vmem>>, vector<8x128xf32>
    tpu.vector_store %arg27[%c51, %c0_42], %33 {strides = array<i32>} : memref<104x128xf32, #tpu.memory_space<vmem>>, vector<8x128xf32>,
    %c40 = arith.constant 40 : index
    %c0_43 = arith.constant 0 : index
    %35 = vector.load %arg26[%c40, %c0_43] : memref<80x128xf32, #tpu.memory_space<vmem>>, vector<8x128xf32>
    %c61 = arith.constant 61 : index
    %c0_44 = arith.constant 0 : index
    %36 = vector.load %arg27[%c61, %c0_44] : memref<104x128xf32, #tpu.memory_space<vmem>>, vector<8x128xf32>
    tpu.vector_store %arg27[%c61, %c0_44], %35 {strides = array<i32>} : memref<104x128xf32, #tpu.memory_space<vmem>>, vector<8x128xf32>,
    %c48 = arith.constant 48 : index
    %c0_45 = arith.constant 0 : index
    %37 = vector.load %arg26[%c48, %c0_45] : memref<80x128xf32, #tpu.memory_space<vmem>>, vector<8x128xf32>
    %c71 = arith.constant 71 : index
    %c0_46 = arith.constant 0 : index
    %38 = vector.load %arg27[%c71, %c0_46] : memref<104x128xf32, #tpu.memory_space<vmem>>, vector<8x128xf32>
    tpu.vector_store %arg27[%c71, %c0_46], %37 {strides = array<i32>} : memref<104x128xf32, #tpu.memory_space<vmem>>, vector<8x128xf32>,
    %c56 = arith.constant 56 : index
    %c0_47 = arith.constant 0 : index
    %39 = vector.load %arg26[%c56, %c0_47] : memref<80x128xf32, #tpu.memory_space<vmem>>, vector<8x128xf32>
    %c81 = arith.constant 81 : index
    %c0_48 = arith.constant 0 : index
    %40 = vector.load %arg27[%c81, %c0_48] : memref<104x128xf32, #tpu.memory_space<vmem>>, vector<8x128xf32>
    tpu.vector_store %arg27[%c81, %c0_48], %39 {strides = array<i32>} : memref<104x128xf32, #tpu.memory_space<vmem>>, vector<8x128xf32>,
    %c0_49 = arith.constant 0 : index
    %c0_50 = arith.constant 0 : index
    %41 = vector.load %arg27[%c0_49, %c0_50] : memref<104x128xf32, #tpu.memory_space<vmem>>, vector<78x64xf32>
    %42 = arith.truncf %41 : vector<78x64xf32> to vector<78x64xbf16>
    %c0_51 = arith.constant 0 : index
    %c0_52 = arith.constant 0 : index
    %c0_53 = arith.constant 0 : index
    %43 = vector.load %arg4[%c0_51, %c0_52, %c0_53] : memref<9x64x128xbf16, #tpu.memory_space<vmem>>, vector<1x64x128xbf16>
    %44 = vector.shape_cast %43 : vector<1x64x128xbf16> to vector<64x128xbf16>
    %cst_54 = arith.constant dense<0.000000e+00> : vector<78x128xf32>
    %45 = tpu.matmul %42, %44, %cst_54 {dimension_numbers = #tpu.dot_dimension_numbers<[1], [0], [0], [1], [0, 0, 1, 1], [], []>} : vector<78x64xbf16>, vector<64x128xbf16>, vector<78x128xf32> -> vector<78x128xf32>
    %c1 = arith.constant 1 : index
    %c0_55 = arith.constant 0 : index
    %46 = vector.load %arg27[%c1, %c0_55] : memref<104x128xf32, #tpu.memory_space<vmem>>, vector<78x64xf32>
    %47 = arith.truncf %46 : vector<78x64xf32> to vector<78x64xbf16>
    %c1_56 = arith.constant 1 : index
    %c0_57 = arith.constant 0 : index
    %c0_58 = arith.constant 0 : index
    %48 = vector.load %arg4[%c1_56, %c0_57, %c0_58] : memref<9x64x128xbf16, #tpu.memory_space<vmem>>, vector<1x64x128xbf16>
    %49 = vector.shape_cast %48 : vector<1x64x128xbf16> to vector<64x128xbf16>
    %cst_59 = arith.constant dense<0.000000e+00> : vector<78x128xf32>
    %50 = tpu.matmul %47, %49, %cst_59 {dimension_numbers = #tpu.dot_dimension_numbers<[1], [0], [0], [1], [0, 0, 1, 1], [], []>} : vector<78x64xbf16>, vector<64x128xbf16>, vector<78x128xf32> -> vector<78x128xf32>
    %51 = arith.addf %45, %50 : vector<78x128xf32>
    %c2 = arith.constant 2 : index
    %c0_60 = arith.constant 0 : index
    %52 = vector.load %arg27[%c2, %c0_60] : memref<104x128xf32, #tpu.memory_space<vmem>>, vector<78x64xf32>
    %53 = arith.truncf %52 : vector<78x64xf32> to vector<78x64xbf16>
    %c2_61 = arith.constant 2 : index
    %c0_62 = arith.constant 0 : index
    %c0_63 = arith.constant 0 : index
    %54 = vector.load %arg4[%c2_61, %c0_62, %c0_63] : memref<9x64x128xbf16, #tpu.memory_space<vmem>>, vector<1x64x128xbf16>
    %55 = vector.shape_cast %54 : vector<1x64x128xbf16> to vector<64x128xbf16>
    %cst_64 = arith.constant dense<0.000000e+00> : vector<78x128xf32>
    %56 = tpu.matmul %53, %55, %cst_64 {dimension_numbers = #tpu.dot_dimension_numbers<[1], [0], [0], [1], [0, 0, 1, 1], [], []>} : vector<78x64xbf16>, vector<64x128xbf16>, vector<78x128xf32> -> vector<78x128xf32>
    %57 = arith.addf %51, %56 : vector<78x128xf32>
    %c10 = arith.constant 10 : index
    %c0_65 = arith.constant 0 : index
    %58 = vector.load %arg27[%c10, %c0_65] : memref<104x128xf32, #tpu.memory_space<vmem>>, vector<78x64xf32>
    %59 = arith.truncf %58 : vector<78x64xf32> to vector<78x64xbf16>
    %c3 = arith.constant 3 : index
    %c0_66 = arith.constant 0 : index
    %c0_67 = arith.constant 0 : index
    %60 = vector.load %arg4[%c3, %c0_66, %c0_67] : memref<9x64x128xbf16, #tpu.memory_space<vmem>>, vector<1x64x128xbf16>
    %61 = vector.shape_cast %60 : vector<1x64x128xbf16> to vector<64x128xbf16>
    %cst_68 = arith.constant dense<0.000000e+00> : vector<78x128xf32>
    %62 = tpu.matmul %59, %61, %cst_68 {dimension_numbers = #tpu.dot_dimension_numbers<[1], [0], [0], [1], [0, 0, 1, 1], [], []>} : vector<78x64xbf16>, vector<64x128xbf16>, vector<78x128xf32> -> vector<78x128xf32>
    %63 = arith.addf %57, %62 : vector<78x128xf32>
    %c11_69 = arith.constant 11 : index
    %c0_70 = arith.constant 0 : index
    %64 = vector.load %arg27[%c11_69, %c0_70] : memref<104x128xf32, #tpu.memory_space<vmem>>, vector<78x64xf32>
    %65 = arith.truncf %64 : vector<78x64xf32> to vector<78x64xbf16>
    %c4 = arith.constant 4 : index
    %c0_71 = arith.constant 0 : index
    %c0_72 = arith.constant 0 : index
    %66 = vector.load %arg4[%c4, %c0_71, %c0_72] : memref<9x64x128xbf16, #tpu.memory_space<vmem>>, vector<1x64x128xbf16>
    %67 = vector.shape_cast %66 : vector<1x64x128xbf16> to vector<64x128xbf16>
    %cst_73 = arith.constant dense<0.000000e+00> : vector<78x128xf32>
    %68 = tpu.matmul %65, %67, %cst_73 {dimension_numbers = #tpu.dot_dimension_numbers<[1], [0], [0], [1], [0, 0, 1, 1], [], []>} : vector<78x64xbf16>, vector<64x128xbf16>, vector<78x128xf32> -> vector<78x128xf32>
    %69 = arith.addf %63, %68 : vector<78x128xf32>
    %c12 = arith.constant 12 : index
    %c0_74 = arith.constant 0 : index
    %70 = vector.load %arg27[%c12, %c0_74] : memref<104x128xf32, #tpu.memory_space<vmem>>, vector<78x64xf32>
    %71 = arith.truncf %70 : vector<78x64xf32> to vector<78x64xbf16>
    %c5 = arith.constant 5 : index
    %c0_75 = arith.constant 0 : index
    %c0_76 = arith.constant 0 : index
    %72 = vector.load %arg4[%c5, %c0_75, %c0_76] : memref<9x64x128xbf16, #tpu.memory_space<vmem>>, vector<1x64x128xbf16>
    %73 = vector.shape_cast %72 : vector<1x64x128xbf16> to vector<64x128xbf16>
    %cst_77 = arith.constant dense<0.000000e+00> : vector<78x128xf32>
    %74 = tpu.matmul %71, %73, %cst_77 {dimension_numbers = #tpu.dot_dimension_numbers<[1], [0], [0], [1], [0, 0, 1, 1], [], []>} : vector<78x64xbf16>, vector<64x128xbf16>, vector<78x128xf32> -> vector<78x128xf32>
    %75 = arith.addf %69, %74 : vector<78x128xf32>
    %c20 = arith.constant 20 : index
    %c0_78 = arith.constant 0 : index
    %76 = vector.load %arg27[%c20, %c0_78] : memref<104x128xf32, #tpu.memory_space<vmem>>, vector<78x64xf32>
    %77 = arith.truncf %76 : vector<78x64xf32> to vector<78x64xbf16>
    %c6 = arith.constant 6 : index
    %c0_79 = arith.constant 0 : index
    %c0_80 = arith.constant 0 : index
    %78 = vector.load %arg4[%c6, %c0_79, %c0_80] : memref<9x64x128xbf16, #tpu.memory_space<vmem>>, vector<1x64x128xbf16>
    %79 = vector.shape_cast %78 : vector<1x64x128xbf16> to vector<64x128xbf16>
    %cst_81 = arith.constant dense<0.000000e+00> : vector<78x128xf32>
    %80 = tpu.matmul %77, %79, %cst_81 {dimension_numbers = #tpu.dot_dimension_numbers<[1], [0], [0], [1], [0, 0, 1, 1], [], []>} : vector<78x64xbf16>, vector<64x128xbf16>, vector<78x128xf32> -> vector<78x128xf32>
    %81 = arith.addf %75, %80 : vector<78x128xf32>
    %c21_82 = arith.constant 21 : index
    %c0_83 = arith.constant 0 : index
    %82 = vector.load %arg27[%c21_82, %c0_83] : memref<104x128xf32, #tpu.memory_space<vmem>>, vector<78x64xf32>
    %83 = arith.truncf %82 : vector<78x64xf32> to vector<78x64xbf16>
    %c7 = arith.constant 7 : index
    %c0_84 = arith.constant 0 : index
    %c0_85 = arith.constant 0 : index
    %84 = vector.load %arg4[%c7, %c0_84, %c0_85] : memref<9x64x128xbf16, #tpu.memory_space<vmem>>, vector<1x64x128xbf16>
    %85 = vector.shape_cast %84 : vector<1x64x128xbf16> to vector<64x128xbf16>
    %cst_86 = arith.constant dense<0.000000e+00> : vector<78x128xf32>
    %86 = tpu.matmul %83, %85, %cst_86 {dimension_numbers = #tpu.dot_dimension_numbers<[1], [0], [0], [1], [0, 0, 1, 1], [], []>} : vector<78x64xbf16>, vector<64x128xbf16>, vector<78x128xf32> -> vector<78x128xf32>
    %87 = arith.addf %81, %86 : vector<78x128xf32>
    %c22 = arith.constant 22 : index
    %c0_87 = arith.constant 0 : index
    %88 = vector.load %arg27[%c22, %c0_87] : memref<104x128xf32, #tpu.memory_space<vmem>>, vector<78x64xf32>
    %89 = arith.truncf %88 : vector<78x64xf32> to vector<78x64xbf16>
    %c8_88 = arith.constant 8 : index
    %c0_89 = arith.constant 0 : index
    %c0_90 = arith.constant 0 : index
    %90 = vector.load %arg4[%c8_88, %c0_89, %c0_90] : memref<9x64x128xbf16, #tpu.memory_space<vmem>>, vector<1x64x128xbf16>
    %91 = vector.shape_cast %90 : vector<1x64x128xbf16> to vector<64x128xbf16>
    %cst_91 = arith.constant dense<0.000000e+00> : vector<78x128xf32>
    %92 = tpu.matmul %89, %91, %cst_91 {dimension_numbers = #tpu.dot_dimension_numbers<[1], [0], [0], [1], [0, 0, 1, 1], [], []>} : vector<78x64xbf16>, vector<64x128xbf16>, vector<78x128xf32> -> vector<78x128xf32>
    %93 = arith.addf %87, %92 : vector<78x128xf32>
    %c0_92 = arith.constant 0 : index
    %c0_93 = arith.constant 0 : index
    %94 = vector.load %arg13[%c0_92, %c0_93] : memref<1x128xf32, #tpu.memory_space<vmem>>, vector<1x128xf32>
    %95 = vector.broadcast %94 : vector<1x128xf32> to vector<78x128xf32>
    %96 = arith.addf %93, %95 : vector<78x128xf32>
    %cst_94 = arith.constant 0.000000e+00 : f32
    %97 = vector.broadcast %cst_94 : f32 to vector<78x128xf32>
    %98 = arith.maximumf %96, %97 : vector<78x128xf32>
    %c0_95 = arith.constant 0 : index
    %c0_96 = arith.constant 0 : index
    %99 = vector.load %arg26[%c0_95, %c0_96] : memref<80x128xf32, #tpu.memory_space<vmem>>, vector<78x128xf32>
    tpu.vector_store %arg26[%c0_95, %c0_96], %98 {strides = array<i32>} : memref<80x128xf32, #tpu.memory_space<vmem>>, vector<78x128xf32>,
    %c0_97 = arith.constant 0 : index
    %c0_98 = arith.constant 0 : index
    %100 = vector.load %arg26[%c0_97, %c0_98] : memref<80x128xf32, #tpu.memory_space<vmem>>, vector<8x128xf32>
    %c11_99 = arith.constant 11 : index
    %c0_100 = arith.constant 0 : index
    %101 = vector.load %arg28[%c11_99, %c0_100] : memref<104x128xf32, #tpu.memory_space<vmem>>, vector<8x128xf32>
    tpu.vector_store %arg28[%c11_99, %c0_100], %100 {strides = array<i32>} : memref<104x128xf32, #tpu.memory_space<vmem>>, vector<8x128xf32>,
    %c10_101 = arith.constant 10 : index
    %c0_102 = arith.constant 0 : index
    %102 = vector.load %arg26[%c10_101, %c0_102] : memref<80x128xf32, #tpu.memory_space<vmem>>, vector<8x128xf32>
    %c21_103 = arith.constant 21 : index
    %c0_104 = arith.constant 0 : index
    %103 = vector.load %arg28[%c21_103, %c0_104] : memref<104x128xf32, #tpu.memory_space<vmem>>, vector<8x128xf32>
    tpu.vector_store %arg28[%c21_103, %c0_104], %102 {strides = array<i32>} : memref<104x128xf32, #tpu.memory_space<vmem>>, vector<8x128xf32>,
    %c20_105 = arith.constant 20 : index
    %c0_106 = arith.constant 0 : index
    %104 = vector.load %arg26[%c20_105, %c0_106] : memref<80x128xf32, #tpu.memory_space<vmem>>, vector<8x128xf32>
    %c31_107 = arith.constant 31 : index
    %c0_108 = arith.constant 0 : index
    %105 = vector.load %arg28[%c31_107, %c0_108] : memref<104x128xf32, #tpu.memory_space<vmem>>, vector<8x128xf32>
    tpu.vector_store %arg28[%c31_107, %c0_108], %104 {strides = array<i32>} : memref<104x128xf32, #tpu.memory_space<vmem>>, vector<8x128xf32>,
    %c30 = arith.constant 30 : index
    %c0_109 = arith.constant 0 : index
    %106 = vector.load %arg26[%c30, %c0_109] : memref<80x128xf32, #tpu.memory_space<vmem>>, vector<8x128xf32>
    %c41_110 = arith.constant 41 : index
    %c0_111 = arith.constant 0 : index
    %107 = vector.load %arg28[%c41_110, %c0_111] : memref<104x128xf32, #tpu.memory_space<vmem>>, vector<8x128xf32>
    tpu.vector_store %arg28[%c41_110, %c0_111], %106 {strides = array<i32>} : memref<104x128xf32, #tpu.memory_space<vmem>>, vector<8x128xf32>,
    %c40_112 = arith.constant 40 : index
    %c0_113 = arith.constant 0 : index
    %108 = vector.load %arg26[%c40_112, %c0_113] : memref<80x128xf32, #tpu.memory_space<vmem>>, vector<8x128xf32>
    %c51_114 = arith.constant 51 : index
    %c0_115 = arith.constant 0 : index
    %109 = vector.load %arg28[%c51_114, %c0_115] : memref<104x128xf32, #tpu.memory_space<vmem>>, vector<8x128xf32>
    tpu.vector_store %arg28[%c51_114, %c0_115], %108 {strides = array<i32>} : memref<104x128xf32, #tpu.memory_space<vmem>>, vector<8x128xf32>,
    %c50 = arith.constant 50 : index
    %c0_116 = arith.constant 0 : index
    %110 = vector.load %arg26[%c50, %c0_116] : memref<80x128xf32, #tpu.memory_space<vmem>>, vector<8x128xf32>
    %c61_117 = arith.constant 61 : index
    %c0_118 = arith.constant 0 : index
    %111 = vector.load %arg28[%c61_117, %c0_118] : memref<104x128xf32, #tpu.memory_space<vmem>>, vector<8x128xf32>
    tpu.vector_store %arg28[%c61_117, %c0_118], %110 {strides = array<i32>} : memref<104x128xf32, #tpu.memory_space<vmem>>, vector<8x128xf32>,
    %c60 = arith.constant 60 : index
    %c0_119 = arith.constant 0 : index
    %112 = vector.load %arg26[%c60, %c0_119] : memref<80x128xf32, #tpu.memory_space<vmem>>, vector<8x128xf32>
    %c71_120 = arith.constant 71 : index
    %c0_121 = arith.constant 0 : index
    %113 = vector.load %arg28[%c71_120, %c0_121] : memref<104x128xf32, #tpu.memory_space<vmem>>, vector<8x128xf32>
    tpu.vector_store %arg28[%c71_120, %c0_121], %112 {strides = array<i32>} : memref<104x128xf32, #tpu.memory_space<vmem>>, vector<8x128xf32>,
    %c70 = arith.constant 70 : index
    %c0_122 = arith.constant 0 : index
    %114 = vector.load %arg26[%c70, %c0_122] : memref<80x128xf32, #tpu.memory_space<vmem>>, vector<8x128xf32>
    %c81_123 = arith.constant 81 : index
    %c0_124 = arith.constant 0 : index
    %115 = vector.load %arg28[%c81_123, %c0_124] : memref<104x128xf32, #tpu.memory_space<vmem>>, vector<8x128xf32>
    tpu.vector_store %arg28[%c81_123, %c0_124], %114 {strides = array<i32>} : memref<104x128xf32, #tpu.memory_space<vmem>>, vector<8x128xf32>,
    %c0_125 = arith.constant 0 : index
    %c0_126 = arith.constant 0 : index
    %116 = vector.load %arg28[%c0_125, %c0_126] : memref<104x128xf32, #tpu.memory_space<vmem>>, vector<78x16xf32>
    %117 = arith.truncf %116 : vector<78x16xf32> to vector<78x16xbf16>
    %c0_127 = arith.constant 0 : index
    %c0_128 = arith.constant 0 : index
    %c0_129 = arith.constant 0 : index
    %118 = vector.load %arg5[%c0_127, %c0_128, %c0_129] : memref<9x16x128xbf16, #tpu.memory_space<vmem>>, vector<1x16x128xbf16>
    %119 = vector.shape_cast %118 : vector<1x16x128xbf16> to vector<16x128xbf16>
    %cst_130 = arith.constant dense<0.000000e+00> : vector<78x128xf32>
    %120 = tpu.matmul %117, %119, %cst_130 {dimension_numbers = #tpu.dot_dimension_numbers<[1], [0], [0], [1], [0, 0, 1, 1], [], []>} : vector<78x16xbf16>, vector<16x128xbf16>, vector<78x128xf32> -> vector<78x128xf32>
    %c1_131 = arith.constant 1 : index
    %c0_132 = arith.constant 0 : index
    %121 = vector.load %arg28[%c1_131, %c0_132] : memref<104x128xf32, #tpu.memory_space<vmem>>, vector<78x16xf32>
    %122 = arith.truncf %121 : vector<78x16xf32> to vector<78x16xbf16>
    %c1_133 = arith.constant 1 : index
    %c0_134 = arith.constant 0 : index
    %c0_135 = arith.constant 0 : index
    %123 = vector.load %arg5[%c1_133, %c0_134, %c0_135] : memref<9x16x128xbf16, #tpu.memory_space<vmem>>, vector<1x16x128xbf16>
    %124 = vector.shape_cast %123 : vector<1x16x128xbf16> to vector<16x128xbf16>
    %cst_136 = arith.constant dense<0.000000e+00> : vector<78x128xf32>
    %125 = tpu.matmul %122, %124, %cst_136 {dimension_numbers = #tpu.dot_dimension_numbers<[1], [0], [0], [1], [0, 0, 1, 1], [], []>} : vector<78x16xbf16>, vector<16x128xbf16>, vector<78x128xf32> -> vector<78x128xf32>
    %126 = arith.addf %120, %125 : vector<78x128xf32>
    %c2_137 = arith.constant 2 : index
    %c0_138 = arith.constant 0 : index
    %127 = vector.load %arg28[%c2_137, %c0_138] : memref<104x128xf32, #tpu.memory_space<vmem>>, vector<78x16xf32>
    %128 = arith.truncf %127 : vector<78x16xf32> to vector<78x16xbf16>
    %c2_139 = arith.constant 2 : index
    %c0_140 = arith.constant 0 : index
    %c0_141 = arith.constant 0 : index
    %129 = vector.load %arg5[%c2_139, %c0_140, %c0_141] : memref<9x16x128xbf16, #tpu.memory_space<vmem>>, vector<1x16x128xbf16>
    %130 = vector.shape_cast %129 : vector<1x16x128xbf16> to vector<16x128xbf16>
    %cst_142 = arith.constant dense<0.000000e+00> : vector<78x128xf32>
    %131 = tpu.matmul %128, %130, %cst_142 {dimension_numbers = #tpu.dot_dimension_numbers<[1], [0], [0], [1], [0, 0, 1, 1], [], []>} : vector<78x16xbf16>, vector<16x128xbf16>, vector<78x128xf32> -> vector<78x128xf32>
    %132 = arith.addf %126, %131 : vector<78x128xf32>
    %c10_143 = arith.constant 10 : index
    %c0_144 = arith.constant 0 : index
    %133 = vector.load %arg28[%c10_143, %c0_144] : memref<104x128xf32, #tpu.memory_space<vmem>>, vector<78x16xf32>
    %134 = arith.truncf %133 : vector<78x16xf32> to vector<78x16xbf16>
    %c3_145 = arith.constant 3 : index
    %c0_146 = arith.constant 0 : index
    %c0_147 = arith.constant 0 : index
    %135 = vector.load %arg5[%c3_145, %c0_146, %c0_147] : memref<9x16x128xbf16, #tpu.memory_space<vmem>>, vector<1x16x128xbf16>
    %136 = vector.shape_cast %135 : vector<1x16x128xbf16> to vector<16x128xbf16>
    %cst_148 = arith.constant dense<0.000000e+00> : vector<78x128xf32>
    %137 = tpu.matmul %134, %136, %cst_148 {dimension_numbers = #tpu.dot_dimension_numbers<[1], [0], [0], [1], [0, 0, 1, 1], [], []>} : vector<78x16xbf16>, vector<16x128xbf16>, vector<78x128xf32> -> vector<78x128xf32>
    %138 = arith.addf %132, %137 : vector<78x128xf32>
    %c11_149 = arith.constant 11 : index
    %c0_150 = arith.constant 0 : index
    %139 = vector.load %arg28[%c11_149, %c0_150] : memref<104x128xf32, #tpu.memory_space<vmem>>, vector<78x16xf32>
    %140 = arith.truncf %139 : vector<78x16xf32> to vector<78x16xbf16>
    %c4_151 = arith.constant 4 : index
    %c0_152 = arith.constant 0 : index
    %c0_153 = arith.constant 0 : index
    %141 = vector.load %arg5[%c4_151, %c0_152, %c0_153] : memref<9x16x128xbf16, #tpu.memory_space<vmem>>, vector<1x16x128xbf16>
    %142 = vector.shape_cast %141 : vector<1x16x128xbf16> to vector<16x128xbf16>
    %cst_154 = arith.constant dense<0.000000e+00> : vector<78x128xf32>
    %143 = tpu.matmul %140, %142, %cst_154 {dimension_numbers = #tpu.dot_dimension_numbers<[1], [0], [0], [1], [0, 0, 1, 1], [], []>} : vector<78x16xbf16>, vector<16x128xbf16>, vector<78x128xf32> -> vector<78x128xf32>
    %144 = arith.addf %138, %143 : vector<78x128xf32>
    %c12_155 = arith.constant 12 : index
    %c0_156 = arith.constant 0 : index
    %145 = vector.load %arg28[%c12_155, %c0_156] : memref<104x128xf32, #tpu.memory_space<vmem>>, vector<78x16xf32>
    %146 = arith.truncf %145 : vector<78x16xf32> to vector<78x16xbf16>
    %c5_157 = arith.constant 5 : index
    %c0_158 = arith.constant 0 : index
    %c0_159 = arith.constant 0 : index
    %147 = vector.load %arg5[%c5_157, %c0_158, %c0_159] : memref<9x16x128xbf16, #tpu.memory_space<vmem>>, vector<1x16x128xbf16>
    %148 = vector.shape_cast %147 : vector<1x16x128xbf16> to vector<16x128xbf16>
    %cst_160 = arith.constant dense<0.000000e+00> : vector<78x128xf32>
    %149 = tpu.matmul %146, %148, %cst_160 {dimension_numbers = #tpu.dot_dimension_numbers<[1], [0], [0], [1], [0, 0, 1, 1], [], []>} : vector<78x16xbf16>, vector<16x128xbf16>, vector<78x128xf32> -> vector<78x128xf32>
    %150 = arith.addf %144, %149 : vector<78x128xf32>
    %c20_161 = arith.constant 20 : index
    %c0_162 = arith.constant 0 : index
    %151 = vector.load %arg28[%c20_161, %c0_162] : memref<104x128xf32, #tpu.memory_space<vmem>>, vector<78x16xf32>
    %152 = arith.truncf %151 : vector<78x16xf32> to vector<78x16xbf16>
    %c6_163 = arith.constant 6 : index
    %c0_164 = arith.constant 0 : index
    %c0_165 = arith.constant 0 : index
    %153 = vector.load %arg5[%c6_163, %c0_164, %c0_165] : memref<9x16x128xbf16, #tpu.memory_space<vmem>>, vector<1x16x128xbf16>
    %154 = vector.shape_cast %153 : vector<1x16x128xbf16> to vector<16x128xbf16>
    %cst_166 = arith.constant dense<0.000000e+00> : vector<78x128xf32>
    %155 = tpu.matmul %152, %154, %cst_166 {dimension_numbers = #tpu.dot_dimension_numbers<[1], [0], [0], [1], [0, 0, 1, 1], [], []>} : vector<78x16xbf16>, vector<16x128xbf16>, vector<78x128xf32> -> vector<78x128xf32>
    %156 = arith.addf %150, %155 : vector<78x128xf32>
    %c21_167 = arith.constant 21 : index
    %c0_168 = arith.constant 0 : index
    %157 = vector.load %arg28[%c21_167, %c0_168] : memref<104x128xf32, #tpu.memory_space<vmem>>, vector<78x16xf32>
    %158 = arith.truncf %157 : vector<78x16xf32> to vector<78x16xbf16>
    %c7_169 = arith.constant 7 : index
    %c0_170 = arith.constant 0 : index
    %c0_171 = arith.constant 0 : index
    %159 = vector.load %arg5[%c7_169, %c0_170, %c0_171] : memref<9x16x128xbf16, #tpu.memory_space<vmem>>, vector<1x16x128xbf16>
    %160 = vector.shape_cast %159 : vector<1x16x128xbf16> to vector<16x128xbf16>
    %cst_172 = arith.constant dense<0.000000e+00> : vector<78x128xf32>
    %161 = tpu.matmul %158, %160, %cst_172 {dimension_numbers = #tpu.dot_dimension_numbers<[1], [0], [0], [1], [0, 0, 1, 1], [], []>} : vector<78x16xbf16>, vector<16x128xbf16>, vector<78x128xf32> -> vector<78x128xf32>
    %162 = arith.addf %156, %161 : vector<78x128xf32>
    %c22_173 = arith.constant 22 : index
    %c0_174 = arith.constant 0 : index
    %163 = vector.load %arg28[%c22_173, %c0_174] : memref<104x128xf32, #tpu.memory_space<vmem>>, vector<78x16xf32>
    %164 = arith.truncf %163 : vector<78x16xf32> to vector<78x16xbf16>
    %c8_175 = arith.constant 8 : index
    %c0_176 = arith.constant 0 : index
    %c0_177 = arith.constant 0 : index
    %165 = vector.load %arg5[%c8_175, %c0_176, %c0_177] : memref<9x16x128xbf16, #tpu.memory_space<vmem>>, vector<1x16x128xbf16>
    %166 = vector.shape_cast %165 : vector<1x16x128xbf16> to vector<16x128xbf16>
    %cst_178 = arith.constant dense<0.000000e+00> : vector<78x128xf32>
    %167 = tpu.matmul %164, %166, %cst_178 {dimension_numbers = #tpu.dot_dimension_numbers<[1], [0], [0], [1], [0, 0, 1, 1], [], []>} : vector<78x16xbf16>, vector<16x128xbf16>, vector<78x128xf32> -> vector<78x128xf32>
    %168 = arith.addf %162, %167 : vector<78x128xf32>
    %c0_179 = arith.constant 0 : index
    %c0_180 = arith.constant 0 : index
    %169 = vector.load %arg14[%c0_179, %c0_180] : memref<1x128xf32, #tpu.memory_space<vmem>>, vector<1x128xf32>
    %170 = vector.broadcast %169 : vector<1x128xf32> to vector<78x128xf32>
    %171 = arith.addf %168, %170 : vector<78x128xf32>
    %cst_181 = arith.constant 0.000000e+00 : f32
    %172 = vector.broadcast %cst_181 : f32 to vector<78x128xf32>
    %173 = arith.maximumf %171, %172 : vector<78x128xf32>
    %c0_182 = arith.constant 0 : index
    %c0_183 = arith.constant 0 : index
    %174 = vector.load %arg26[%c0_182, %c0_183] : memref<80x128xf32, #tpu.memory_space<vmem>>, vector<78x128xf32>
    tpu.vector_store %arg26[%c0_182, %c0_183], %173 {strides = array<i32>} : memref<80x128xf32, #tpu.memory_space<vmem>>, vector<78x128xf32>,
    %c0_184 = arith.constant 0 : index
    %c0_185 = arith.constant 0 : index
    %175 = vector.load %arg26[%c0_184, %c0_185] : memref<80x128xf32, #tpu.memory_space<vmem>>, vector<2x128xf32>
    %c10_186 = arith.constant 10 : index
    %c0_187 = arith.constant 0 : index
    %176 = vector.load %arg26[%c10_186, %c0_187] : memref<80x128xf32, #tpu.memory_space<vmem>>, vector<2x128xf32>
    %177 = arith.maximumf %175, %176 : vector<2x128xf32>
    %cst_188 = arith.constant dense<0xFF800000> : vector<128xf32>
    %178 = vector.multi_reduction <maximumf>, %177, %cst_188 [0] : vector<2x128xf32> to vector<128xf32>
    %179 = vector.shape_cast %178 : vector<128xf32> to vector<1x128xf32>
    %c7_189 = arith.constant 7 : index
    %c0_190 = arith.constant 0 : index
    %180 = vector.load %arg29[%c7_189, %c0_190] : memref<40x128xf32, #tpu.memory_space<vmem>>, vector<1x128xf32>
    tpu.vector_store %arg29[%c7_189, %c0_190], %179 {strides = array<i32>} : memref<40x128xf32, #tpu.memory_space<vmem>>, vector<1x128xf32>,
    %c2_191 = arith.constant 2 : index
    %c0_192 = arith.constant 0 : index
    %181 = vector.load %arg26[%c2_191, %c0_192] : memref<80x128xf32, #tpu.memory_space<vmem>>, vector<2x128xf32>
    %c12_193 = arith.constant 12 : index
    %c0_194 = arith.constant 0 : index
    %182 = vector.load %arg26[%c12_193, %c0_194] : memref<80x128xf32, #tpu.memory_space<vmem>>, vector<2x128xf32>
    %183 = arith.maximumf %181, %182 : vector<2x128xf32>
    %cst_195 = arith.constant dense<0xFF800000> : vector<128xf32>
    %184 = vector.multi_reduction <maximumf>, %183, %cst_195 [0] : vector<2x128xf32> to vector<128xf32>
    %185 = vector.shape_cast %184 : vector<128xf32> to vector<1x128xf32>
    %c8_196 = arith.constant 8 : index
    %c0_197 = arith.constant 0 : index
    %186 = vector.load %arg29[%c8_196, %c0_197] : memref<40x128xf32, #tpu.memory_space<vmem>>, vector<1x128xf32>
    tpu.vector_store %arg29[%c8_196, %c0_197], %185 {strides = array<i32>} : memref<40x128xf32, #tpu.memory_space<vmem>>, vector<1x128xf32>,
    %c4_198 = arith.constant 4 : index
    %c0_199 = arith.constant 0 : index
    %187 = vector.load %arg26[%c4_198, %c0_199] : memref<80x128xf32, #tpu.memory_space<vmem>>, vector<2x128xf32>
    %c14 = arith.constant 14 : index
    %c0_200 = arith.constant 0 : index
    %188 = vector.load %arg26[%c14, %c0_200] : memref<80x128xf32, #tpu.memory_space<vmem>>, vector<2x128xf32>
    %189 = arith.maximumf %187, %188 : vector<2x128xf32>
    %cst_201 = arith.constant dense<0xFF800000> : vector<128xf32>
    %190 = vector.multi_reduction <maximumf>, %189, %cst_201 [0] : vector<2x128xf32> to vector<128xf32>
    %191 = vector.shape_cast %190 : vector<128xf32> to vector<1x128xf32>
    %c9 = arith.constant 9 : index
    %c0_202 = arith.constant 0 : index
    %192 = vector.load %arg29[%c9, %c0_202] : memref<40x128xf32, #tpu.memory_space<vmem>>, vector<1x128xf32>
    tpu.vector_store %arg29[%c9, %c0_202], %191 {strides = array<i32>} : memref<40x128xf32, #tpu.memory_space<vmem>>, vector<1x128xf32>,
    %c6_203 = arith.constant 6 : index
    %c0_204 = arith.constant 0 : index
    %193 = vector.load %arg26[%c6_203, %c0_204] : memref<80x128xf32, #tpu.memory_space<vmem>>, vector<2x128xf32>
    %c16_205 = arith.constant 16 : index
    %c0_206 = arith.constant 0 : index
    %194 = vector.load %arg26[%c16_205, %c0_206] : memref<80x128xf32, #tpu.memory_space<vmem>>, vector<2x128xf32>
    %195 = arith.maximumf %193, %194 : vector<2x128xf32>
    %cst_207 = arith.constant dense<0xFF800000> : vector<128xf32>
    %196 = vector.multi_reduction <maximumf>, %195, %cst_207 [0] : vector<2x128xf32> to vector<128xf32>
    %197 = vector.shape_cast %196 : vector<128xf32> to vector<1x128xf32>
    %c10_208 = arith.constant 10 : index
    %c0_209 = arith.constant 0 : index
    %198 = vector.load %arg29[%c10_208, %c0_209] : memref<40x128xf32, #tpu.memory_space<vmem>>, vector<1x128xf32>
    tpu.vector_store %arg29[%c10_208, %c0_209], %197 {strides = array<i32>} : memref<40x128xf32, #tpu.memory_space<vmem>>, vector<1x128xf32>,
    %c20_210 = arith.constant 20 : index
    %c0_211 = arith.constant 0 : index
    %199 = vector.load %arg26[%c20_210, %c0_211] : memref<80x128xf32, #tpu.memory_space<vmem>>, vector<2x128xf32>
    %c30_212 = arith.constant 30 : index
    %c0_213 = arith.constant 0 : index
    %200 = vector.load %arg26[%c30_212, %c0_213] : memref<80x128xf32, #tpu.memory_space<vmem>>, vector<2x128xf32>
    %201 = arith.maximumf %199, %200 : vector<2x128xf32>
    %cst_214 = arith.constant dense<0xFF800000> : vector<128xf32>
    %202 = vector.multi_reduction <maximumf>, %201, %cst_214 [0] : vector<2x128xf32> to vector<128xf32>
    %203 = vector.shape_cast %202 : vector<128xf32> to vector<1x128xf32>
    %c13 = arith.constant 13 : index
    %c0_215 = arith.constant 0 : index
    %204 = vector.load %arg29[%c13, %c0_215] : memref<40x128xf32, #tpu.memory_space<vmem>>, vector<1x128xf32>
    tpu.vector_store %arg29[%c13, %c0_215], %203 {strides = array<i32>} : memref<40x128xf32, #tpu.memory_space<vmem>>, vector<1x128xf32>,
    %c22_216 = arith.constant 22 : index
    %c0_217 = arith.constant 0 : index
    %205 = vector.load %arg26[%c22_216, %c0_217] : memref<80x128xf32, #tpu.memory_space<vmem>>, vector<2x128xf32>
    %c32_218 = arith.constant 32 : index
    %c0_219 = arith.constant 0 : index
    %206 = vector.load %arg26[%c32_218, %c0_219] : memref<80x128xf32, #tpu.memory_space<vmem>>, vector<2x128xf32>
    %207 = arith.maximumf %205, %206 : vector<2x128xf32>
    %cst_220 = arith.constant dense<0xFF800000> : vector<128xf32>
    %208 = vector.multi_reduction <maximumf>, %207, %cst_220 [0] : vector<2x128xf32> to vector<128xf32>
    %209 = vector.shape_cast %208 : vector<128xf32> to vector<1x128xf32>
    %c14_221 = arith.constant 14 : index
    %c0_222 = arith.constant 0 : index
    %210 = vector.load %arg29[%c14_221, %c0_222] : memref<40x128xf32, #tpu.memory_space<vmem>>, vector<1x128xf32>
    tpu.vector_store %arg29[%c14_221, %c0_222], %209 {strides = array<i32>} : memref<40x128xf32, #tpu.memory_space<vmem>>, vector<1x128xf32>,
    %c24_223 = arith.constant 24 : index
    %c0_224 = arith.constant 0 : index
    %211 = vector.load %arg26[%c24_223, %c0_224] : memref<80x128xf32, #tpu.memory_space<vmem>>, vector<2x128xf32>
    %c34 = arith.constant 34 : index
    %c0_225 = arith.constant 0 : index
    %212 = vector.load %arg26[%c34, %c0_225] : memref<80x128xf32, #tpu.memory_space<vmem>>, vector<2x128xf32>
    %213 = arith.maximumf %211, %212 : vector<2x128xf32>
    %cst_226 = arith.constant dense<0xFF800000> : vector<128xf32>
    %214 = vector.multi_reduction <maximumf>, %213, %cst_226 [0] : vector<2x128xf32> to vector<128xf32>
    %215 = vector.shape_cast %214 : vector<128xf32> to vector<1x128xf32>
    %c15 = arith.constant 15 : index
    %c0_227 = arith.constant 0 : index
    %216 = vector.load %arg29[%c15, %c0_227] : memref<40x128xf32, #tpu.memory_space<vmem>>, vector<1x128xf32>
    tpu.vector_store %arg29[%c15, %c0_227], %215 {strides = array<i32>} : memref<40x128xf32, #tpu.memory_space<vmem>>, vector<1x128xf32>,
    %c26 = arith.constant 26 : index
    %c0_228 = arith.constant 0 : index
    %217 = vector.load %arg26[%c26, %c0_228] : memref<80x128xf32, #tpu.memory_space<vmem>>, vector<2x128xf32>
    %c36 = arith.constant 36 : index
    %c0_229 = arith.constant 0 : index
    %218 = vector.load %arg26[%c36, %c0_229] : memref<80x128xf32, #tpu.memory_space<vmem>>, vector<2x128xf32>
    %219 = arith.maximumf %217, %218 : vector<2x128xf32>
    %cst_230 = arith.constant dense<0xFF800000> : vector<128xf32>
    %220 = vector.multi_reduction <maximumf>, %219, %cst_230 [0] : vector<2x128xf32> to vector<128xf32>
    %221 = vector.shape_cast %220 : vector<128xf32> to vector<1x128xf32>
    %c16_231 = arith.constant 16 : index
    %c0_232 = arith.constant 0 : index
    %222 = vector.load %arg29[%c16_231, %c0_232] : memref<40x128xf32, #tpu.memory_space<vmem>>, vector<1x128xf32>
    tpu.vector_store %arg29[%c16_231, %c0_232], %221 {strides = array<i32>} : memref<40x128xf32, #tpu.memory_space<vmem>>, vector<1x128xf32>,
    %c40_233 = arith.constant 40 : index
    %c0_234 = arith.constant 0 : index
    %223 = vector.load %arg26[%c40_233, %c0_234] : memref<80x128xf32, #tpu.memory_space<vmem>>, vector<2x128xf32>
    %c50_235 = arith.constant 50 : index
    %c0_236 = arith.constant 0 : index
    %224 = vector.load %arg26[%c50_235, %c0_236] : memref<80x128xf32, #tpu.memory_space<vmem>>, vector<2x128xf32>
    %225 = arith.maximumf %223, %224 : vector<2x128xf32>
    %cst_237 = arith.constant dense<0xFF800000> : vector<128xf32>
    %226 = vector.multi_reduction <maximumf>, %225, %cst_237 [0] : vector<2x128xf32> to vector<128xf32>
    %227 = vector.shape_cast %226 : vector<128xf32> to vector<1x128xf32>
    %c19 = arith.constant 19 : index
    %c0_238 = arith.constant 0 : index
    %228 = vector.load %arg29[%c19, %c0_238] : memref<40x128xf32, #tpu.memory_space<vmem>>, vector<1x128xf32>
    tpu.vector_store %arg29[%c19, %c0_238], %227 {strides = array<i32>} : memref<40x128xf32, #tpu.memory_space<vmem>>, vector<1x128xf32>,
    %c42 = arith.constant 42 : index
    %c0_239 = arith.constant 0 : index
    %229 = vector.load %arg26[%c42, %c0_239] : memref<80x128xf32, #tpu.memory_space<vmem>>, vector<2x128xf32>
    %c52 = arith.constant 52 : index
    %c0_240 = arith.constant 0 : index
    %230 = vector.load %arg26[%c52, %c0_240] : memref<80x128xf32, #tpu.memory_space<vmem>>, vector<2x128xf32>
    %231 = arith.maximumf %229, %230 : vector<2x128xf32>
    %cst_241 = arith.constant dense<0xFF800000> : vector<128xf32>
    %232 = vector.multi_reduction <maximumf>, %231, %cst_241 [0] : vector<2x128xf32> to vector<128xf32>
    %233 = vector.shape_cast %232 : vector<128xf32> to vector<1x128xf32>
    %c20_242 = arith.constant 20 : index
    %c0_243 = arith.constant 0 : index
    %234 = vector.load %arg29[%c20_242, %c0_243] : memref<40x128xf32, #tpu.memory_space<vmem>>, vector<1x128xf32>
    tpu.vector_store %arg29[%c20_242, %c0_243], %233 {strides = array<i32>} : memref<40x128xf32, #tpu.memory_space<vmem>>, vector<1x128xf32>,
    %c44 = arith.constant 44 : index
    %c0_244 = arith.constant 0 : index
    %235 = vector.load %arg26[%c44, %c0_244] : memref<80x128xf32, #tpu.memory_space<vmem>>, vector<2x128xf32>
    %c54 = arith.constant 54 : index
    %c0_245 = arith.constant 0 : index
    %236 = vector.load %arg26[%c54, %c0_245] : memref<80x128xf32, #tpu.memory_space<vmem>>, vector<2x128xf32>
    %237 = arith.maximumf %235, %236 : vector<2x128xf32>
    %cst_246 = arith.constant dense<0xFF800000> : vector<128xf32>
    %238 = vector.multi_reduction <maximumf>, %237, %cst_246 [0] : vector<2x128xf32> to vector<128xf32>
    %239 = vector.shape_cast %238 : vector<128xf32> to vector<1x128xf32>
    %c21_247 = arith.constant 21 : index
    %c0_248 = arith.constant 0 : index
    %240 = vector.load %arg29[%c21_247, %c0_248] : memref<40x128xf32, #tpu.memory_space<vmem>>, vector<1x128xf32>
    tpu.vector_store %arg29[%c21_247, %c0_248], %239 {strides = array<i32>} : memref<40x128xf32, #tpu.memory_space<vmem>>, vector<1x128xf32>,
    %c46 = arith.constant 46 : index
    %c0_249 = arith.constant 0 : index
    %241 = vector.load %arg26[%c46, %c0_249] : memref<80x128xf32, #tpu.memory_space<vmem>>, vector<2x128xf32>
    %c56_250 = arith.constant 56 : index
    %c0_251 = arith.constant 0 : index
    %242 = vector.load %arg26[%c56_250, %c0_251] : memref<80x128xf32, #tpu.memory_space<vmem>>, vector<2x128xf32>
    %243 = arith.maximumf %241, %242 : vector<2x128xf32>
    %cst_252 = arith.constant dense<0xFF800000> : vector<128xf32>
    %244 = vector.multi_reduction <maximumf>, %243, %cst_252 [0] : vector<2x128xf32> to vector<128xf32>
    %245 = vector.shape_cast %244 : vector<128xf32> to vector<1x128xf32>
    %c22_253 = arith.constant 22 : index
    %c0_254 = arith.constant 0 : index
    %246 = vector.load %arg29[%c22_253, %c0_254] : memref<40x128xf32, #tpu.memory_space<vmem>>, vector<1x128xf32>
    tpu.vector_store %arg29[%c22_253, %c0_254], %245 {strides = array<i32>} : memref<40x128xf32, #tpu.memory_space<vmem>>, vector<1x128xf32>,
    %c60_255 = arith.constant 60 : index
    %c0_256 = arith.constant 0 : index
    %247 = vector.load %arg26[%c60_255, %c0_256] : memref<80x128xf32, #tpu.memory_space<vmem>>, vector<2x128xf32>
    %c70_257 = arith.constant 70 : index
    %c0_258 = arith.constant 0 : index
    %248 = vector.load %arg26[%c70_257, %c0_258] : memref<80x128xf32, #tpu.memory_space<vmem>>, vector<2x128xf32>
    %249 = arith.maximumf %247, %248 : vector<2x128xf32>
    %cst_259 = arith.constant dense<0xFF800000> : vector<128xf32>
    %250 = vector.multi_reduction <maximumf>, %249, %cst_259 [0] : vector<2x128xf32> to vector<128xf32>
    %251 = vector.shape_cast %250 : vector<128xf32> to vector<1x128xf32>
    %c25 = arith.constant 25 : index
    %c0_260 = arith.constant 0 : index
    %252 = vector.load %arg29[%c25, %c0_260] : memref<40x128xf32, #tpu.memory_space<vmem>>, vector<1x128xf32>
    tpu.vector_store %arg29[%c25, %c0_260], %251 {strides = array<i32>} : memref<40x128xf32, #tpu.memory_space<vmem>>, vector<1x128xf32>,
    %c62 = arith.constant 62 : index
    %c0_261 = arith.constant 0 : index
    %253 = vector.load %arg26[%c62, %c0_261] : memref<80x128xf32, #tpu.memory_space<vmem>>, vector<2x128xf32>
    %c72 = arith.constant 72 : index
    %c0_262 = arith.constant 0 : index
    %254 = vector.load %arg26[%c72, %c0_262] : memref<80x128xf32, #tpu.memory_space<vmem>>, vector<2x128xf32>
    %255 = arith.maximumf %253, %254 : vector<2x128xf32>
    %cst_263 = arith.constant dense<0xFF800000> : vector<128xf32>
    %256 = vector.multi_reduction <maximumf>, %255, %cst_263 [0] : vector<2x128xf32> to vector<128xf32>
    %257 = vector.shape_cast %256 : vector<128xf32> to vector<1x128xf32>
    %c26_264 = arith.constant 26 : index
    %c0_265 = arith.constant 0 : index
    %258 = vector.load %arg29[%c26_264, %c0_265] : memref<40x128xf32, #tpu.memory_space<vmem>>, vector<1x128xf32>
    tpu.vector_store %arg29[%c26_264, %c0_265], %257 {strides = array<i32>} : memref<40x128xf32, #tpu.memory_space<vmem>>, vector<1x128xf32>,
    %c64 = arith.constant 64 : index
    %c0_266 = arith.constant 0 : index
    %259 = vector.load %arg26[%c64, %c0_266] : memref<80x128xf32, #tpu.memory_space<vmem>>, vector<2x128xf32>
    %c74 = arith.constant 74 : index
    %c0_267 = arith.constant 0 : index
    %260 = vector.load %arg26[%c74, %c0_267] : memref<80x128xf32, #tpu.memory_space<vmem>>, vector<2x128xf32>
    %261 = arith.maximumf %259, %260 : vector<2x128xf32>
    %cst_268 = arith.constant dense<0xFF800000> : vector<128xf32>
    %262 = vector.multi_reduction <maximumf>, %261, %cst_268 [0] : vector<2x128xf32> to vector<128xf32>
    %263 = vector.shape_cast %262 : vector<128xf32> to vector<1x128xf32>
    %c27 = arith.constant 27 : index
    %c0_269 = arith.constant 0 : index
    %264 = vector.load %arg29[%c27, %c0_269] : memref<40x128xf32, #tpu.memory_space<vmem>>, vector<1x128xf32>
    tpu.vector_store %arg29[%c27, %c0_269], %263 {strides = array<i32>} : memref<40x128xf32, #tpu.memory_space<vmem>>, vector<1x128xf32>,
    %c66 = arith.constant 66 : index
    %c0_270 = arith.constant 0 : index
    %265 = vector.load %arg26[%c66, %c0_270] : memref<80x128xf32, #tpu.memory_space<vmem>>, vector<2x128xf32>
    %c76 = arith.constant 76 : index
    %c0_271 = arith.constant 0 : index
    %266 = vector.load %arg26[%c76, %c0_271] : memref<80x128xf32, #tpu.memory_space<vmem>>, vector<2x128xf32>
    %267 = arith.maximumf %265, %266 : vector<2x128xf32>
    %cst_272 = arith.constant dense<0xFF800000> : vector<128xf32>
    %268 = vector.multi_reduction <maximumf>, %267, %cst_272 [0] : vector<2x128xf32> to vector<128xf32>
    %269 = vector.shape_cast %268 : vector<128xf32> to vector<1x128xf32>
    %c28 = arith.constant 28 : index
    %c0_273 = arith.constant 0 : index
    %270 = vector.load %arg29[%c28, %c0_273] : memref<40x128xf32, #tpu.memory_space<vmem>>, vector<1x128xf32>
    tpu.vector_store %arg29[%c28, %c0_273], %269 {strides = array<i32>} : memref<40x128xf32, #tpu.memory_space<vmem>>, vector<1x128xf32>,
    %c0_274 = arith.constant 0 : index
    %c0_275 = arith.constant 0 : index
    %271 = vector.load %arg29[%c0_274, %c0_275] : memref<40x128xf32, #tpu.memory_space<vmem>>, vector<22x32xf32>
    %272 = arith.truncf %271 : vector<22x32xf32> to vector<22x32xbf16>
    %c0_276 = arith.constant 0 : index
    %c0_277 = arith.constant 0 : index
    %c0_278 = arith.constant 0 : index
    %273 = vector.load %arg6[%c0_276, %c0_277, %c0_278] : memref<9x32x128xbf16, #tpu.memory_space<vmem>>, vector<1x32x128xbf16>
    %274 = vector.shape_cast %273 : vector<1x32x128xbf16> to vector<32x128xbf16>
    %cst_279 = arith.constant dense<0.000000e+00> : vector<22x128xf32>
    %275 = tpu.matmul %272, %274, %cst_279 {dimension_numbers = #tpu.dot_dimension_numbers<[1], [0], [0], [1], [0, 0, 1, 1], [], []>} : vector<22x32xbf16>, vector<32x128xbf16>, vector<22x128xf32> -> vector<22x128xf32>
    %c1_280 = arith.constant 1 : index
    %c0_281 = arith.constant 0 : index
    %276 = vector.load %arg29[%c1_280, %c0_281] : memref<40x128xf32, #tpu.memory_space<vmem>>, vector<22x32xf32>
    %277 = arith.truncf %276 : vector<22x32xf32> to vector<22x32xbf16>
    %c1_282 = arith.constant 1 : index
    %c0_283 = arith.constant 0 : index
    %c0_284 = arith.constant 0 : index
    %278 = vector.load %arg6[%c1_282, %c0_283, %c0_284] : memref<9x32x128xbf16, #tpu.memory_space<vmem>>, vector<1x32x128xbf16>
    %279 = vector.shape_cast %278 : vector<1x32x128xbf16> to vector<32x128xbf16>
    %cst_285 = arith.constant dense<0.000000e+00> : vector<22x128xf32>
    %280 = tpu.matmul %277, %279, %cst_285 {dimension_numbers = #tpu.dot_dimension_numbers<[1], [0], [0], [1], [0, 0, 1, 1], [], []>} : vector<22x32xbf16>, vector<32x128xbf16>, vector<22x128xf32> -> vector<22x128xf32>
    %281 = arith.addf %275, %280 : vector<22x128xf32>
    %c2_286 = arith.constant 2 : index
    %c0_287 = arith.constant 0 : index
    %282 = vector.load %arg29[%c2_286, %c0_287] : memref<40x128xf32, #tpu.memory_space<vmem>>, vector<22x32xf32>
    %283 = arith.truncf %282 : vector<22x32xf32> to vector<22x32xbf16>
    %c2_288 = arith.constant 2 : index
    %c0_289 = arith.constant 0 : index
    %c0_290 = arith.constant 0 : index
    %284 = vector.load %arg6[%c2_288, %c0_289, %c0_290] : memref<9x32x128xbf16, #tpu.memory_space<vmem>>, vector<1x32x128xbf16>
    %285 = vector.shape_cast %284 : vector<1x32x128xbf16> to vector<32x128xbf16>
    %cst_291 = arith.constant dense<0.000000e+00> : vector<22x128xf32>
    %286 = tpu.matmul %283, %285, %cst_291 {dimension_numbers = #tpu.dot_dimension_numbers<[1], [0], [0], [1], [0, 0, 1, 1], [], []>} : vector<22x32xbf16>, vector<32x128xbf16>, vector<22x128xf32> -> vector<22x128xf32>
    %287 = arith.addf %281, %286 : vector<22x128xf32>
    %c6_292 = arith.constant 6 : index
    %c0_293 = arith.constant 0 : index
    %288 = vector.load %arg29[%c6_292, %c0_293] : memref<40x128xf32, #tpu.memory_space<vmem>>, vector<22x32xf32>
    %289 = arith.truncf %288 : vector<22x32xf32> to vector<22x32xbf16>
    %c3_294 = arith.constant 3 : index
    %c0_295 = arith.constant 0 : index
    %c0_296 = arith.constant 0 : index
    %290 = vector.load %arg6[%c3_294, %c0_295, %c0_296] : memref<9x32x128xbf16, #tpu.memory_space<vmem>>, vector<1x32x128xbf16>
    %291 = vector.shape_cast %290 : vector<1x32x128xbf16> to vector<32x128xbf16>
    %cst_297 = arith.constant dense<0.000000e+00> : vector<22x128xf32>
    %292 = tpu.matmul %289, %291, %cst_297 {dimension_numbers = #tpu.dot_dimension_numbers<[1], [0], [0], [1], [0, 0, 1, 1], [], []>} : vector<22x32xbf16>, vector<32x128xbf16>, vector<22x128xf32> -> vector<22x128xf32>
    %293 = arith.addf %287, %292 : vector<22x128xf32>
    %c7_298 = arith.constant 7 : index
    %c0_299 = arith.constant 0 : index
    %294 = vector.load %arg29[%c7_298, %c0_299] : memref<40x128xf32, #tpu.memory_space<vmem>>, vector<22x32xf32>
    %295 = arith.truncf %294 : vector<22x32xf32> to vector<22x32xbf16>
    %c4_300 = arith.constant 4 : index
    %c0_301 = arith.constant 0 : index
    %c0_302 = arith.constant 0 : index
    %296 = vector.load %arg6[%c4_300, %c0_301, %c0_302] : memref<9x32x128xbf16, #tpu.memory_space<vmem>>, vector<1x32x128xbf16>
    %297 = vector.shape_cast %296 : vector<1x32x128xbf16> to vector<32x128xbf16>
    %cst_303 = arith.constant dense<0.000000e+00> : vector<22x128xf32>
    %298 = tpu.matmul %295, %297, %cst_303 {dimension_numbers = #tpu.dot_dimension_numbers<[1], [0], [0], [1], [0, 0, 1, 1], [], []>} : vector<22x32xbf16>, vector<32x128xbf16>, vector<22x128xf32> -> vector<22x128xf32>
    %299 = arith.addf %293, %298 : vector<22x128xf32>
    %c8_304 = arith.constant 8 : index
    %c0_305 = arith.constant 0 : index
    %300 = vector.load %arg29[%c8_304, %c0_305] : memref<40x128xf32, #tpu.memory_space<vmem>>, vector<22x32xf32>
    %301 = arith.truncf %300 : vector<22x32xf32> to vector<22x32xbf16>
    %c5_306 = arith.constant 5 : index
    %c0_307 = arith.constant 0 : index
    %c0_308 = arith.constant 0 : index
    %302 = vector.load %arg6[%c5_306, %c0_307, %c0_308] : memref<9x32x128xbf16, #tpu.memory_space<vmem>>, vector<1x32x128xbf16>
    %303 = vector.shape_cast %302 : vector<1x32x128xbf16> to vector<32x128xbf16>
    %cst_309 = arith.constant dense<0.000000e+00> : vector<22x128xf32>
    %304 = tpu.matmul %301, %303, %cst_309 {dimension_numbers = #tpu.dot_dimension_numbers<[1], [0], [0], [1], [0, 0, 1, 1], [], []>} : vector<22x32xbf16>, vector<32x128xbf16>, vector<22x128xf32> -> vector<22x128xf32>
    %305 = arith.addf %299, %304 : vector<22x128xf32>
    %c12_310 = arith.constant 12 : index
    %c0_311 = arith.constant 0 : index
    %306 = vector.load %arg29[%c12_310, %c0_311] : memref<40x128xf32, #tpu.memory_space<vmem>>, vector<22x32xf32>
    %307 = arith.truncf %306 : vector<22x32xf32> to vector<22x32xbf16>
    %c6_312 = arith.constant 6 : index
    %c0_313 = arith.constant 0 : index
    %c0_314 = arith.constant 0 : index
    %308 = vector.load %arg6[%c6_312, %c0_313, %c0_314] : memref<9x32x128xbf16, #tpu.memory_space<vmem>>, vector<1x32x128xbf16>
    %309 = vector.shape_cast %308 : vector<1x32x128xbf16> to vector<32x128xbf16>
    %cst_315 = arith.constant dense<0.000000e+00> : vector<22x128xf32>
    %310 = tpu.matmul %307, %309, %cst_315 {dimension_numbers = #tpu.dot_dimension_numbers<[1], [0], [0], [1], [0, 0, 1, 1], [], []>} : vector<22x32xbf16>, vector<32x128xbf16>, vector<22x128xf32> -> vector<22x128xf32>
    %311 = arith.addf %305, %310 : vector<22x128xf32>
    %c13_316 = arith.constant 13 : index
    %c0_317 = arith.constant 0 : index
    %312 = vector.load %arg29[%c13_316, %c0_317] : memref<40x128xf32, #tpu.memory_space<vmem>>, vector<22x32xf32>
    %313 = arith.truncf %312 : vector<22x32xf32> to vector<22x32xbf16>
    %c7_318 = arith.constant 7 : index
    %c0_319 = arith.constant 0 : index
    %c0_320 = arith.constant 0 : index
    %314 = vector.load %arg6[%c7_318, %c0_319, %c0_320] : memref<9x32x128xbf16, #tpu.memory_space<vmem>>, vector<1x32x128xbf16>
    %315 = vector.shape_cast %314 : vector<1x32x128xbf16> to vector<32x128xbf16>
    %cst_321 = arith.constant dense<0.000000e+00> : vector<22x128xf32>
    %316 = tpu.matmul %313, %315, %cst_321 {dimension_numbers = #tpu.dot_dimension_numbers<[1], [0], [0], [1], [0, 0, 1, 1], [], []>} : vector<22x32xbf16>, vector<32x128xbf16>, vector<22x128xf32> -> vector<22x128xf32>
    %317 = arith.addf %311, %316 : vector<22x128xf32>
    %c14_322 = arith.constant 14 : index
    %c0_323 = arith.constant 0 : index
    %318 = vector.load %arg29[%c14_322, %c0_323] : memref<40x128xf32, #tpu.memory_space<vmem>>, vector<22x32xf32>
    %319 = arith.truncf %318 : vector<22x32xf32> to vector<22x32xbf16>
    %c8_324 = arith.constant 8 : index
    %c0_325 = arith.constant 0 : index
    %c0_326 = arith.constant 0 : index
    %320 = vector.load %arg6[%c8_324, %c0_325, %c0_326] : memref<9x32x128xbf16, #tpu.memory_space<vmem>>, vector<1x32x128xbf16>
    %321 = vector.shape_cast %320 : vector<1x32x128xbf16> to vector<32x128xbf16>
    %cst_327 = arith.constant dense<0.000000e+00> : vector<22x128xf32>
    %322 = tpu.matmul %319, %321, %cst_327 {dimension_numbers = #tpu.dot_dimension_numbers<[1], [0], [0], [1], [0, 0, 1, 1], [], []>} : vector<22x32xbf16>, vector<32x128xbf16>, vector<22x128xf32> -> vector<22x128xf32>
    %323 = arith.addf %317, %322 : vector<22x128xf32>
    %c0_328 = arith.constant 0 : index
    %c0_329 = arith.constant 0 : index
    %324 = vector.load %arg15[%c0_328, %c0_329] : memref<1x128xf32, #tpu.memory_space<vmem>>, vector<1x128xf32>
    %325 = vector.broadcast %324 : vector<1x128xf32> to vector<22x128xf32>
    %326 = arith.addf %323, %325 : vector<22x128xf32>
    %cst_330 = arith.constant 0.000000e+00 : f32
    %327 = vector.broadcast %cst_330 : f32 to vector<22x128xf32>
    %328 = arith.maximumf %326, %327 : vector<22x128xf32>
    %c0_331 = arith.constant 0 : index
    %c0_332 = arith.constant 0 : index
    %329 = vector.load %arg26[%c0_331, %c0_332] : memref<80x128xf32, #tpu.memory_space<vmem>>, vector<22x128xf32>
    tpu.vector_store %arg26[%c0_331, %c0_332], %328 {strides = array<i32>} : memref<80x128xf32, #tpu.memory_space<vmem>>, vector<22x128xf32>,
    %c0_333 = arith.constant 0 : index
    %c0_334 = arith.constant 0 : index
    %330 = vector.load %arg26[%c0_333, %c0_334] : memref<80x128xf32, #tpu.memory_space<vmem>>, vector<4x128xf32>
    %c7_335 = arith.constant 7 : index
    %c0_336 = arith.constant 0 : index
    %331 = vector.load %arg30[%c7_335, %c0_336] : memref<40x128xf32, #tpu.memory_space<vmem>>, vector<4x128xf32>
    tpu.vector_store %arg30[%c7_335, %c0_336], %330 {strides = array<i32>} : memref<40x128xf32, #tpu.memory_space<vmem>>, vector<4x128xf32>,
    %c6_337 = arith.constant 6 : index
    %c0_338 = arith.constant 0 : index
    %332 = vector.load %arg26[%c6_337, %c0_338] : memref<80x128xf32, #tpu.memory_space<vmem>>, vector<4x128xf32>
    %c13_339 = arith.constant 13 : index
    %c0_340 = arith.constant 0 : index
    %333 = vector.load %arg30[%c13_339, %c0_340] : memref<40x128xf32, #tpu.memory_space<vmem>>, vector<4x128xf32>
    tpu.vector_store %arg30[%c13_339, %c0_340], %332 {strides = array<i32>} : memref<40x128xf32, #tpu.memory_space<vmem>>, vector<4x128xf32>,
    %c12_341 = arith.constant 12 : index
    %c0_342 = arith.constant 0 : index
    %334 = vector.load %arg26[%c12_341, %c0_342] : memref<80x128xf32, #tpu.memory_space<vmem>>, vector<4x128xf32>
    %c19_343 = arith.constant 19 : index
    %c0_344 = arith.constant 0 : index
    %335 = vector.load %arg30[%c19_343, %c0_344] : memref<40x128xf32, #tpu.memory_space<vmem>>, vector<4x128xf32>
    tpu.vector_store %arg30[%c19_343, %c0_344], %334 {strides = array<i32>} : memref<40x128xf32, #tpu.memory_space<vmem>>, vector<4x128xf32>,
    %c18 = arith.constant 18 : index
    %c0_345 = arith.constant 0 : index
    %336 = vector.load %arg26[%c18, %c0_345] : memref<80x128xf32, #tpu.memory_space<vmem>>, vector<4x128xf32>
    %c25_346 = arith.constant 25 : index
    %c0_347 = arith.constant 0 : index
    %337 = vector.load %arg30[%c25_346, %c0_347] : memref<40x128xf32, #tpu.memory_space<vmem>>, vector<4x128xf32>
    tpu.vector_store %arg30[%c25_346, %c0_347], %336 {strides = array<i32>} : memref<40x128xf32, #tpu.memory_space<vmem>>, vector<4x128xf32>,
    %c0_348 = arith.constant 0 : index
    %c0_349 = arith.constant 0 : index
    %338 = vector.load %arg30[%c0_348, %c0_349] : memref<40x128xf32, #tpu.memory_space<vmem>>, vector<22x24xf32>
    %339 = arith.truncf %338 : vector<22x24xf32> to vector<22x24xbf16>
    %c0_350 = arith.constant 0 : index
    %c0_351 = arith.constant 0 : index
    %c0_352 = arith.constant 0 : index
    %340 = vector.load %arg7[%c0_350, %c0_351, %c0_352] : memref<9x24x128xbf16, #tpu.memory_space<vmem>>, vector<1x24x128xbf16>
    %341 = vector.shape_cast %340 : vector<1x24x128xbf16> to vector<24x128xbf16>
    %cst_353 = arith.constant dense<0.000000e+00> : vector<22x128xf32>
    %342 = tpu.matmul %339, %341, %cst_353 {dimension_numbers = #tpu.dot_dimension_numbers<[1], [0], [0], [1], [0, 0, 1, 1], [], []>} : vector<22x24xbf16>, vector<24x128xbf16>, vector<22x128xf32> -> vector<22x128xf32>
    %c1_354 = arith.constant 1 : index
    %c0_355 = arith.constant 0 : index
    %343 = vector.load %arg30[%c1_354, %c0_355] : memref<40x128xf32, #tpu.memory_space<vmem>>, vector<22x24xf32>
    %344 = arith.truncf %343 : vector<22x24xf32> to vector<22x24xbf16>
    %c1_356 = arith.constant 1 : index
    %c0_357 = arith.constant 0 : index
    %c0_358 = arith.constant 0 : index
    %345 = vector.load %arg7[%c1_356, %c0_357, %c0_358] : memref<9x24x128xbf16, #tpu.memory_space<vmem>>, vector<1x24x128xbf16>
    %346 = vector.shape_cast %345 : vector<1x24x128xbf16> to vector<24x128xbf16>
    %cst_359 = arith.constant dense<0.000000e+00> : vector<22x128xf32>
    %347 = tpu.matmul %344, %346, %cst_359 {dimension_numbers = #tpu.dot_dimension_numbers<[1], [0], [0], [1], [0, 0, 1, 1], [], []>} : vector<22x24xbf16>, vector<24x128xbf16>, vector<22x128xf32> -> vector<22x128xf32>
    %348 = arith.addf %342, %347 : vector<22x128xf32>
    %c2_360 = arith.constant 2 : index
    %c0_361 = arith.constant 0 : index
    %349 = vector.load %arg30[%c2_360, %c0_361] : memref<40x128xf32, #tpu.memory_space<vmem>>, vector<22x24xf32>
    %350 = arith.truncf %349 : vector<22x24xf32> to vector<22x24xbf16>
    %c2_362 = arith.constant 2 : index
    %c0_363 = arith.constant 0 : index
    %c0_364 = arith.constant 0 : index
    %351 = vector.load %arg7[%c2_362, %c0_363, %c0_364] : memref<9x24x128xbf16, #tpu.memory_space<vmem>>, vector<1x24x128xbf16>
    %352 = vector.shape_cast %351 : vector<1x24x128xbf16> to vector<24x128xbf16>
    %cst_365 = arith.constant dense<0.000000e+00> : vector<22x128xf32>
    %353 = tpu.matmul %350, %352, %cst_365 {dimension_numbers = #tpu.dot_dimension_numbers<[1], [0], [0], [1], [0, 0, 1, 1], [], []>} : vector<22x24xbf16>, vector<24x128xbf16>, vector<22x128xf32> -> vector<22x128xf32>
    %354 = arith.addf %348, %353 : vector<22x128xf32>
    %c6_366 = arith.constant 6 : index
    %c0_367 = arith.constant 0 : index
    %355 = vector.load %arg30[%c6_366, %c0_367] : memref<40x128xf32, #tpu.memory_space<vmem>>, vector<22x24xf32>
    %356 = arith.truncf %355 : vector<22x24xf32> to vector<22x24xbf16>
    %c3_368 = arith.constant 3 : index
    %c0_369 = arith.constant 0 : index
    %c0_370 = arith.constant 0 : index
    %357 = vector.load %arg7[%c3_368, %c0_369, %c0_370] : memref<9x24x128xbf16, #tpu.memory_space<vmem>>, vector<1x24x128xbf16>
    %358 = vector.shape_cast %357 : vector<1x24x128xbf16> to vector<24x128xbf16>
    %cst_371 = arith.constant dense<0.000000e+00> : vector<22x128xf32>
    %359 = tpu.matmul %356, %358, %cst_371 {dimension_numbers = #tpu.dot_dimension_numbers<[1], [0], [0], [1], [0, 0, 1, 1], [], []>} : vector<22x24xbf16>, vector<24x128xbf16>, vector<22x128xf32> -> vector<22x128xf32>
    %360 = arith.addf %354, %359 : vector<22x128xf32>
    %c7_372 = arith.constant 7 : index
    %c0_373 = arith.constant 0 : index
    %361 = vector.load %arg30[%c7_372, %c0_373] : memref<40x128xf32, #tpu.memory_space<vmem>>, vector<22x24xf32>
    %362 = arith.truncf %361 : vector<22x24xf32> to vector<22x24xbf16>
    %c4_374 = arith.constant 4 : index
    %c0_375 = arith.constant 0 : index
    %c0_376 = arith.constant 0 : index
    %363 = vector.load %arg7[%c4_374, %c0_375, %c0_376] : memref<9x24x128xbf16, #tpu.memory_space<vmem>>, vector<1x24x128xbf16>
    %364 = vector.shape_cast %363 : vector<1x24x128xbf16> to vector<24x128xbf16>
    %cst_377 = arith.constant dense<0.000000e+00> : vector<22x128xf32>
    %365 = tpu.matmul %362, %364, %cst_377 {dimension_numbers = #tpu.dot_dimension_numbers<[1], [0], [0], [1], [0, 0, 1, 1], [], []>} : vector<22x24xbf16>, vector<24x128xbf16>, vector<22x128xf32> -> vector<22x128xf32>
    %366 = arith.addf %360, %365 : vector<22x128xf32>
    %c8_378 = arith.constant 8 : index
    %c0_379 = arith.constant 0 : index
    %367 = vector.load %arg30[%c8_378, %c0_379] : memref<40x128xf32, #tpu.memory_space<vmem>>, vector<22x24xf32>
    %368 = arith.truncf %367 : vector<22x24xf32> to vector<22x24xbf16>
    %c5_380 = arith.constant 5 : index
    %c0_381 = arith.constant 0 : index
    %c0_382 = arith.constant 0 : index
    %369 = vector.load %arg7[%c5_380, %c0_381, %c0_382] : memref<9x24x128xbf16, #tpu.memory_space<vmem>>, vector<1x24x128xbf16>
    %370 = vector.shape_cast %369 : vector<1x24x128xbf16> to vector<24x128xbf16>
    %cst_383 = arith.constant dense<0.000000e+00> : vector<22x128xf32>
    %371 = tpu.matmul %368, %370, %cst_383 {dimension_numbers = #tpu.dot_dimension_numbers<[1], [0], [0], [1], [0, 0, 1, 1], [], []>} : vector<22x24xbf16>, vector<24x128xbf16>, vector<22x128xf32> -> vector<22x128xf32>
    %372 = arith.addf %366, %371 : vector<22x128xf32>
    %c12_384 = arith.constant 12 : index
    %c0_385 = arith.constant 0 : index
    %373 = vector.load %arg30[%c12_384, %c0_385] : memref<40x128xf32, #tpu.memory_space<vmem>>, vector<22x24xf32>
    %374 = arith.truncf %373 : vector<22x24xf32> to vector<22x24xbf16>
    %c6_386 = arith.constant 6 : index
    %c0_387 = arith.constant 0 : index
    %c0_388 = arith.constant 0 : index
    %375 = vector.load %arg7[%c6_386, %c0_387, %c0_388] : memref<9x24x128xbf16, #tpu.memory_space<vmem>>, vector<1x24x128xbf16>
    %376 = vector.shape_cast %375 : vector<1x24x128xbf16> to vector<24x128xbf16>
    %cst_389 = arith.constant dense<0.000000e+00> : vector<22x128xf32>
    %377 = tpu.matmul %374, %376, %cst_389 {dimension_numbers = #tpu.dot_dimension_numbers<[1], [0], [0], [1], [0, 0, 1, 1], [], []>} : vector<22x24xbf16>, vector<24x128xbf16>, vector<22x128xf32> -> vector<22x128xf32>
    %378 = arith.addf %372, %377 : vector<22x128xf32>
    %c13_390 = arith.constant 13 : index
    %c0_391 = arith.constant 0 : index
    %379 = vector.load %arg30[%c13_390, %c0_391] : memref<40x128xf32, #tpu.memory_space<vmem>>, vector<22x24xf32>
    %380 = arith.truncf %379 : vector<22x24xf32> to vector<22x24xbf16>
    %c7_392 = arith.constant 7 : index
    %c0_393 = arith.constant 0 : index
    %c0_394 = arith.constant 0 : index
    %381 = vector.load %arg7[%c7_392, %c0_393, %c0_394] : memref<9x24x128xbf16, #tpu.memory_space<vmem>>, vector<1x24x128xbf16>
    %382 = vector.shape_cast %381 : vector<1x24x128xbf16> to vector<24x128xbf16>
    %cst_395 = arith.constant dense<0.000000e+00> : vector<22x128xf32>
    %383 = tpu.matmul %380, %382, %cst_395 {dimension_numbers = #tpu.dot_dimension_numbers<[1], [0], [0], [1], [0, 0, 1, 1], [], []>} : vector<22x24xbf16>, vector<24x128xbf16>, vector<22x128xf32> -> vector<22x128xf32>
    %384 = arith.addf %378, %383 : vector<22x128xf32>
    %c14_396 = arith.constant 14 : index
    %c0_397 = arith.constant 0 : index
    %385 = vector.load %arg30[%c14_396, %c0_397] : memref<40x128xf32, #tpu.memory_space<vmem>>, vector<22x24xf32>
    %386 = arith.truncf %385 : vector<22x24xf32> to vector<22x24xbf16>
    %c8_398 = arith.constant 8 : index
    %c0_399 = arith.constant 0 : index
    %c0_400 = arith.constant 0 : index
    %387 = vector.load %arg7[%c8_398, %c0_399, %c0_400] : memref<9x24x128xbf16, #tpu.memory_space<vmem>>, vector<1x24x128xbf16>
    %388 = vector.shape_cast %387 : vector<1x24x128xbf16> to vector<24x128xbf16>
    %cst_401 = arith.constant dense<0.000000e+00> : vector<22x128xf32>
    %389 = tpu.matmul %386, %388, %cst_401 {dimension_numbers = #tpu.dot_dimension_numbers<[1], [0], [0], [1], [0, 0, 1, 1], [], []>} : vector<22x24xbf16>, vector<24x128xbf16>, vector<22x128xf32> -> vector<22x128xf32>
    %390 = arith.addf %384, %389 : vector<22x128xf32>
    %c0_402 = arith.constant 0 : index
    %c0_403 = arith.constant 0 : index
    %391 = vector.load %arg16[%c0_402, %c0_403] : memref<1x128xf32, #tpu.memory_space<vmem>>, vector<1x128xf32>
    %392 = vector.broadcast %391 : vector<1x128xf32> to vector<22x128xf32>
    %393 = arith.addf %390, %392 : vector<22x128xf32>
    %cst_404 = arith.constant 0.000000e+00 : f32
    %394 = vector.broadcast %cst_404 : f32 to vector<22x128xf32>
    %395 = arith.maximumf %393, %394 : vector<22x128xf32>
    %c0_405 = arith.constant 0 : index
    %c0_406 = arith.constant 0 : index
    %396 = vector.load %arg26[%c0_405, %c0_406] : memref<80x128xf32, #tpu.memory_space<vmem>>, vector<22x128xf32>
    tpu.vector_store %arg26[%c0_405, %c0_406], %395 {strides = array<i32>} : memref<80x128xf32, #tpu.memory_space<vmem>>, vector<22x128xf32>,
    %c0_407 = arith.constant 0 : index
    %c0_408 = arith.constant 0 : index
    %397 = vector.load %arg26[%c0_407, %c0_408] : memref<80x128xf32, #tpu.memory_space<vmem>>, vector<2x128xf32>
    %c6_409 = arith.constant 6 : index
    %c0_410 = arith.constant 0 : index
    %398 = vector.load %arg26[%c6_409, %c0_410] : memref<80x128xf32, #tpu.memory_space<vmem>>, vector<2x128xf32>
    %399 = arith.maximumf %397, %398 : vector<2x128xf32>
    %cst_411 = arith.constant dense<0xFF800000> : vector<128xf32>
    %400 = vector.multi_reduction <maximumf>, %399, %cst_411 [0] : vector<2x128xf32> to vector<128xf32>
    %401 = vector.shape_cast %400 : vector<128xf32> to vector<1x128xf32>
    %c5_412 = arith.constant 5 : index
    %c0_413 = arith.constant 0 : index
    %402 = vector.load %arg31[%c5_412, %c0_413] : memref<16x128xf32, #tpu.memory_space<vmem>>, vector<1x128xf32>
    tpu.vector_store %arg31[%c5_412, %c0_413], %401 {strides = array<i32>} : memref<16x128xf32, #tpu.memory_space<vmem>>, vector<1x128xf32>,
    %c2_414 = arith.constant 2 : index
    %c0_415 = arith.constant 0 : index
    %403 = vector.load %arg26[%c2_414, %c0_415] : memref<80x128xf32, #tpu.memory_space<vmem>>, vector<2x128xf32>
    %c8_416 = arith.constant 8 : index
    %c0_417 = arith.constant 0 : index
    %404 = vector.load %arg26[%c8_416, %c0_417] : memref<80x128xf32, #tpu.memory_space<vmem>>, vector<2x128xf32>
    %405 = arith.maximumf %403, %404 : vector<2x128xf32>
    %cst_418 = arith.constant dense<0xFF800000> : vector<128xf32>
    %406 = vector.multi_reduction <maximumf>, %405, %cst_418 [0] : vector<2x128xf32> to vector<128xf32>
    %407 = vector.shape_cast %406 : vector<128xf32> to vector<1x128xf32>
    %c6_419 = arith.constant 6 : index
    %c0_420 = arith.constant 0 : index
    %408 = vector.load %arg31[%c6_419, %c0_420] : memref<16x128xf32, #tpu.memory_space<vmem>>, vector<1x128xf32>
    tpu.vector_store %arg31[%c6_419, %c0_420], %407 {strides = array<i32>} : memref<16x128xf32, #tpu.memory_space<vmem>>, vector<1x128xf32>,
    %c12_421 = arith.constant 12 : index
    %c0_422 = arith.constant 0 : index
    %409 = vector.load %arg26[%c12_421, %c0_422] : memref<80x128xf32, #tpu.memory_space<vmem>>, vector<2x128xf32>
    %c18_423 = arith.constant 18 : index
    %c0_424 = arith.constant 0 : index
    %410 = vector.load %arg26[%c18_423, %c0_424] : memref<80x128xf32, #tpu.memory_space<vmem>>, vector<2x128xf32>
    %411 = arith.maximumf %409, %410 : vector<2x128xf32>
    %cst_425 = arith.constant dense<0xFF800000> : vector<128xf32>
    %412 = vector.multi_reduction <maximumf>, %411, %cst_425 [0] : vector<2x128xf32> to vector<128xf32>
    %413 = vector.shape_cast %412 : vector<128xf32> to vector<1x128xf32>
    %c9_426 = arith.constant 9 : index
    %c0_427 = arith.constant 0 : index
    %414 = vector.load %arg31[%c9_426, %c0_427] : memref<16x128xf32, #tpu.memory_space<vmem>>, vector<1x128xf32>
    tpu.vector_store %arg31[%c9_426, %c0_427], %413 {strides = array<i32>} : memref<16x128xf32, #tpu.memory_space<vmem>>, vector<1x128xf32>,
    %c14_428 = arith.constant 14 : index
    %c0_429 = arith.constant 0 : index
    %415 = vector.load %arg26[%c14_428, %c0_429] : memref<80x128xf32, #tpu.memory_space<vmem>>, vector<2x128xf32>
    %c20_430 = arith.constant 20 : index
    %c0_431 = arith.constant 0 : index
    %416 = vector.load %arg26[%c20_430, %c0_431] : memref<80x128xf32, #tpu.memory_space<vmem>>, vector<2x128xf32>
    %417 = arith.maximumf %415, %416 : vector<2x128xf32>
    %cst_432 = arith.constant dense<0xFF800000> : vector<128xf32>
    %418 = vector.multi_reduction <maximumf>, %417, %cst_432 [0] : vector<2x128xf32> to vector<128xf32>
    %419 = vector.shape_cast %418 : vector<128xf32> to vector<1x128xf32>
    %c10_433 = arith.constant 10 : index
    %c0_434 = arith.constant 0 : index
    %420 = vector.load %arg31[%c10_433, %c0_434] : memref<16x128xf32, #tpu.memory_space<vmem>>, vector<1x128xf32>
    tpu.vector_store %arg31[%c10_433, %c0_434], %419 {strides = array<i32>} : memref<16x128xf32, #tpu.memory_space<vmem>>, vector<1x128xf32>,
    %c0_435 = arith.constant 0 : index
    %c0_436 = arith.constant 0 : index
    %421 = vector.load %arg31[%c0_435, %c0_436] : memref<16x128xf32, #tpu.memory_space<vmem>>, vector<6x48xf32>
    %422 = arith.truncf %421 : vector<6x48xf32> to vector<6x48xbf16>
    %c0_437 = arith.constant 0 : index
    %c0_438 = arith.constant 0 : index
    %c0_439 = arith.constant 0 : index
    %423 = vector.load %arg8[%c0_437, %c0_438, %c0_439] : memref<9x48x128xbf16, #tpu.memory_space<vmem>>, vector<1x48x128xbf16>
    %424 = vector.shape_cast %423 : vector<1x48x128xbf16> to vector<48x128xbf16>
    %cst_440 = arith.constant dense<0.000000e+00> : vector<6x128xf32>
    %425 = tpu.matmul %422, %424, %cst_440 {dimension_numbers = #tpu.dot_dimension_numbers<[1], [0], [0], [1], [0, 0, 1, 1], [], []>} : vector<6x48xbf16>, vector<48x128xbf16>, vector<6x128xf32> -> vector<6x128xf32>
    %c1_441 = arith.constant 1 : index
    %c0_442 = arith.constant 0 : index
    %426 = vector.load %arg31[%c1_441, %c0_442] : memref<16x128xf32, #tpu.memory_space<vmem>>, vector<6x48xf32>
    %427 = arith.truncf %426 : vector<6x48xf32> to vector<6x48xbf16>
    %c1_443 = arith.constant 1 : index
    %c0_444 = arith.constant 0 : index
    %c0_445 = arith.constant 0 : index
    %428 = vector.load %arg8[%c1_443, %c0_444, %c0_445] : memref<9x48x128xbf16, #tpu.memory_space<vmem>>, vector<1x48x128xbf16>
    %429 = vector.shape_cast %428 : vector<1x48x128xbf16> to vector<48x128xbf16>
    %cst_446 = arith.constant dense<0.000000e+00> : vector<6x128xf32>
    %430 = tpu.matmul %427, %429, %cst_446 {dimension_numbers = #tpu.dot_dimension_numbers<[1], [0], [0], [1], [0, 0, 1, 1], [], []>} : vector<6x48xbf16>, vector<48x128xbf16>, vector<6x128xf32> -> vector<6x128xf32>
    %431 = arith.addf %425, %430 : vector<6x128xf32>
    %c2_447 = arith.constant 2 : index
    %c0_448 = arith.constant 0 : index
    %432 = vector.load %arg31[%c2_447, %c0_448] : memref<16x128xf32, #tpu.memory_space<vmem>>, vector<6x48xf32>
    %433 = arith.truncf %432 : vector<6x48xf32> to vector<6x48xbf16>
    %c2_449 = arith.constant 2 : index
    %c0_450 = arith.constant 0 : index
    %c0_451 = arith.constant 0 : index
    %434 = vector.load %arg8[%c2_449, %c0_450, %c0_451] : memref<9x48x128xbf16, #tpu.memory_space<vmem>>, vector<1x48x128xbf16>
    %435 = vector.shape_cast %434 : vector<1x48x128xbf16> to vector<48x128xbf16>
    %cst_452 = arith.constant dense<0.000000e+00> : vector<6x128xf32>
    %436 = tpu.matmul %433, %435, %cst_452 {dimension_numbers = #tpu.dot_dimension_numbers<[1], [0], [0], [1], [0, 0, 1, 1], [], []>} : vector<6x48xbf16>, vector<48x128xbf16>, vector<6x128xf32> -> vector<6x128xf32>
    %437 = arith.addf %431, %436 : vector<6x128xf32>
    %c4_453 = arith.constant 4 : index
    %c0_454 = arith.constant 0 : index
    %438 = vector.load %arg31[%c4_453, %c0_454] : memref<16x128xf32, #tpu.memory_space<vmem>>, vector<6x48xf32>
    %439 = arith.truncf %438 : vector<6x48xf32> to vector<6x48xbf16>
    %c3_455 = arith.constant 3 : index
    %c0_456 = arith.constant 0 : index
    %c0_457 = arith.constant 0 : index
    %440 = vector.load %arg8[%c3_455, %c0_456, %c0_457] : memref<9x48x128xbf16, #tpu.memory_space<vmem>>, vector<1x48x128xbf16>
    %441 = vector.shape_cast %440 : vector<1x48x128xbf16> to vector<48x128xbf16>
    %cst_458 = arith.constant dense<0.000000e+00> : vector<6x128xf32>
    %442 = tpu.matmul %439, %441, %cst_458 {dimension_numbers = #tpu.dot_dimension_numbers<[1], [0], [0], [1], [0, 0, 1, 1], [], []>} : vector<6x48xbf16>, vector<48x128xbf16>, vector<6x128xf32> -> vector<6x128xf32>
    %443 = arith.addf %437, %442 : vector<6x128xf32>
    %c5_459 = arith.constant 5 : index
    %c0_460 = arith.constant 0 : index
    %444 = vector.load %arg31[%c5_459, %c0_460] : memref<16x128xf32, #tpu.memory_space<vmem>>, vector<6x48xf32>
    %445 = arith.truncf %444 : vector<6x48xf32> to vector<6x48xbf16>
    %c4_461 = arith.constant 4 : index
    %c0_462 = arith.constant 0 : index
    %c0_463 = arith.constant 0 : index
    %446 = vector.load %arg8[%c4_461, %c0_462, %c0_463] : memref<9x48x128xbf16, #tpu.memory_space<vmem>>, vector<1x48x128xbf16>
    %447 = vector.shape_cast %446 : vector<1x48x128xbf16> to vector<48x128xbf16>
    %cst_464 = arith.constant dense<0.000000e+00> : vector<6x128xf32>
    %448 = tpu.matmul %445, %447, %cst_464 {dimension_numbers = #tpu.dot_dimension_numbers<[1], [0], [0], [1], [0, 0, 1, 1], [], []>} : vector<6x48xbf16>, vector<48x128xbf16>, vector<6x128xf32> -> vector<6x128xf32>
    %449 = arith.addf %443, %448 : vector<6x128xf32>
    %c6_465 = arith.constant 6 : index
    %c0_466 = arith.constant 0 : index
    %450 = vector.load %arg31[%c6_465, %c0_466] : memref<16x128xf32, #tpu.memory_space<vmem>>, vector<6x48xf32>
    %451 = arith.truncf %450 : vector<6x48xf32> to vector<6x48xbf16>
    %c5_467 = arith.constant 5 : index
    %c0_468 = arith.constant 0 : index
    %c0_469 = arith.constant 0 : index
    %452 = vector.load %arg8[%c5_467, %c0_468, %c0_469] : memref<9x48x128xbf16, #tpu.memory_space<vmem>>, vector<1x48x128xbf16>
    %453 = vector.shape_cast %452 : vector<1x48x128xbf16> to vector<48x128xbf16>
    %cst_470 = arith.constant dense<0.000000e+00> : vector<6x128xf32>
    %454 = tpu.matmul %451, %453, %cst_470 {dimension_numbers = #tpu.dot_dimension_numbers<[1], [0], [0], [1], [0, 0, 1, 1], [], []>} : vector<6x48xbf16>, vector<48x128xbf16>, vector<6x128xf32> -> vector<6x128xf32>
    %455 = arith.addf %449, %454 : vector<6x128xf32>
    %c8_471 = arith.constant 8 : index
    %c0_472 = arith.constant 0 : index
    %456 = vector.load %arg31[%c8_471, %c0_472] : memref<16x128xf32, #tpu.memory_space<vmem>>, vector<6x48xf32>
    %457 = arith.truncf %456 : vector<6x48xf32> to vector<6x48xbf16>
    %c6_473 = arith.constant 6 : index
    %c0_474 = arith.constant 0 : index
    %c0_475 = arith.constant 0 : index
    %458 = vector.load %arg8[%c6_473, %c0_474, %c0_475] : memref<9x48x128xbf16, #tpu.memory_space<vmem>>, vector<1x48x128xbf16>
    %459 = vector.shape_cast %458 : vector<1x48x128xbf16> to vector<48x128xbf16>
    %cst_476 = arith.constant dense<0.000000e+00> : vector<6x128xf32>
    %460 = tpu.matmul %457, %459, %cst_476 {dimension_numbers = #tpu.dot_dimension_numbers<[1], [0], [0], [1], [0, 0, 1, 1], [], []>} : vector<6x48xbf16>, vector<48x128xbf16>, vector<6x128xf32> -> vector<6x128xf32>
    %461 = arith.addf %455, %460 : vector<6x128xf32>
    %c9_477 = arith.constant 9 : index
    %c0_478 = arith.constant 0 : index
    %462 = vector.load %arg31[%c9_477, %c0_478] : memref<16x128xf32, #tpu.memory_space<vmem>>, vector<6x48xf32>
    %463 = arith.truncf %462 : vector<6x48xf32> to vector<6x48xbf16>
    %c7_479 = arith.constant 7 : index
    %c0_480 = arith.constant 0 : index
    %c0_481 = arith.constant 0 : index
    %464 = vector.load %arg8[%c7_479, %c0_480, %c0_481] : memref<9x48x128xbf16, #tpu.memory_space<vmem>>, vector<1x48x128xbf16>
    %465 = vector.shape_cast %464 : vector<1x48x128xbf16> to vector<48x128xbf16>
    %cst_482 = arith.constant dense<0.000000e+00> : vector<6x128xf32>
    %466 = tpu.matmul %463, %465, %cst_482 {dimension_numbers = #tpu.dot_dimension_numbers<[1], [0], [0], [1], [0, 0, 1, 1], [], []>} : vector<6x48xbf16>, vector<48x128xbf16>, vector<6x128xf32> -> vector<6x128xf32>
    %467 = arith.addf %461, %466 : vector<6x128xf32>
    %c10_483 = arith.constant 10 : index
    %c0_484 = arith.constant 0 : index
    %468 = vector.load %arg31[%c10_483, %c0_484] : memref<16x128xf32, #tpu.memory_space<vmem>>, vector<6x48xf32>
    %469 = arith.truncf %468 : vector<6x48xf32> to vector<6x48xbf16>
    %c8_485 = arith.constant 8 : index
    %c0_486 = arith.constant 0 : index
    %c0_487 = arith.constant 0 : index
    %470 = vector.load %arg8[%c8_485, %c0_486, %c0_487] : memref<9x48x128xbf16, #tpu.memory_space<vmem>>, vector<1x48x128xbf16>
    %471 = vector.shape_cast %470 : vector<1x48x128xbf16> to vector<48x128xbf16>
    %cst_488 = arith.constant dense<0.000000e+00> : vector<6x128xf32>
    %472 = tpu.matmul %469, %471, %cst_488 {dimension_numbers = #tpu.dot_dimension_numbers<[1], [0], [0], [1], [0, 0, 1, 1], [], []>} : vector<6x48xbf16>, vector<48x128xbf16>, vector<6x128xf32> -> vector<6x128xf32>
    %473 = arith.addf %467, %472 : vector<6x128xf32>
    %c0_489 = arith.constant 0 : index
    %c0_490 = arith.constant 0 : index
    %474 = vector.load %arg17[%c0_489, %c0_490] : memref<1x128xf32, #tpu.memory_space<vmem>>, vector<1x128xf32>
    %475 = vector.broadcast %474 : vector<1x128xf32> to vector<6x128xf32>
    %476 = arith.addf %473, %475 : vector<6x128xf32>
    %cst_491 = arith.constant 0.000000e+00 : f32
    %477 = vector.broadcast %cst_491 : f32 to vector<6x128xf32>
    %478 = arith.maximumf %476, %477 : vector<6x128xf32>
    %c0_492 = arith.constant 0 : index
    %c0_493 = arith.constant 0 : index
    %479 = vector.load %arg26[%c0_492, %c0_493] : memref<80x128xf32, #tpu.memory_space<vmem>>, vector<6x128xf32>
    tpu.vector_store %arg26[%c0_492, %c0_493], %478 {strides = array<i32>} : memref<80x128xf32, #tpu.memory_space<vmem>>, vector<6x128xf32>,
    %c0_494 = arith.constant 0 : index
    %c0_495 = arith.constant 0 : index
    %480 = vector.load %arg26[%c0_494, %c0_495] : memref<80x128xf32, #tpu.memory_space<vmem>>, vector<2x128xf32>
    %c5_496 = arith.constant 5 : index
    %c0_497 = arith.constant 0 : index
    %481 = vector.load %arg32[%c5_496, %c0_497] : memref<16x128xf32, #tpu.memory_space<vmem>>, vector<2x128xf32>
    tpu.vector_store %arg32[%c5_496, %c0_497], %480 {strides = array<i32>} : memref<16x128xf32, #tpu.memory_space<vmem>>, vector<2x128xf32>,
    %c4_498 = arith.constant 4 : index
    %c0_499 = arith.constant 0 : index
    %482 = vector.load %arg26[%c4_498, %c0_499] : memref<80x128xf32, #tpu.memory_space<vmem>>, vector<2x128xf32>
    %c9_500 = arith.constant 9 : index
    %c0_501 = arith.constant 0 : index
    %483 = vector.load %arg32[%c9_500, %c0_501] : memref<16x128xf32, #tpu.memory_space<vmem>>, vector<2x128xf32>
    tpu.vector_store %arg32[%c9_500, %c0_501], %482 {strides = array<i32>} : memref<16x128xf32, #tpu.memory_space<vmem>>, vector<2x128xf32>,
    %c0_502 = arith.constant 0 : index
    %c0_503 = arith.constant 0 : index
    %484 = vector.load %arg32[%c0_502, %c0_503] : memref<16x128xf32, #tpu.memory_space<vmem>>, vector<6x32xf32>
    %485 = arith.truncf %484 : vector<6x32xf32> to vector<6x32xbf16>
    %c0_504 = arith.constant 0 : index
    %c0_505 = arith.constant 0 : index
    %c0_506 = arith.constant 0 : index
    %486 = vector.load %arg9[%c0_504, %c0_505, %c0_506] : memref<9x32x128xbf16, #tpu.memory_space<vmem>>, vector<1x32x128xbf16>
    %487 = vector.shape_cast %486 : vector<1x32x128xbf16> to vector<32x128xbf16>
    %cst_507 = arith.constant dense<0.000000e+00> : vector<6x128xf32>
    %488 = tpu.matmul %485, %487, %cst_507 {dimension_numbers = #tpu.dot_dimension_numbers<[1], [0], [0], [1], [0, 0, 1, 1], [], []>} : vector<6x32xbf16>, vector<32x128xbf16>, vector<6x128xf32> -> vector<6x128xf32>
    %c1_508 = arith.constant 1 : index
    %c0_509 = arith.constant 0 : index
    %489 = vector.load %arg32[%c1_508, %c0_509] : memref<16x128xf32, #tpu.memory_space<vmem>>, vector<6x32xf32>
    %490 = arith.truncf %489 : vector<6x32xf32> to vector<6x32xbf16>
    %c1_510 = arith.constant 1 : index
    %c0_511 = arith.constant 0 : index
    %c0_512 = arith.constant 0 : index
    %491 = vector.load %arg9[%c1_510, %c0_511, %c0_512] : memref<9x32x128xbf16, #tpu.memory_space<vmem>>, vector<1x32x128xbf16>
    %492 = vector.shape_cast %491 : vector<1x32x128xbf16> to vector<32x128xbf16>
    %cst_513 = arith.constant dense<0.000000e+00> : vector<6x128xf32>
    %493 = tpu.matmul %490, %492, %cst_513 {dimension_numbers = #tpu.dot_dimension_numbers<[1], [0], [0], [1], [0, 0, 1, 1], [], []>} : vector<6x32xbf16>, vector<32x128xbf16>, vector<6x128xf32> -> vector<6x128xf32>
    %494 = arith.addf %488, %493 : vector<6x128xf32>
    %c2_514 = arith.constant 2 : index
    %c0_515 = arith.constant 0 : index
    %495 = vector.load %arg32[%c2_514, %c0_515] : memref<16x128xf32, #tpu.memory_space<vmem>>, vector<6x32xf32>
    %496 = arith.truncf %495 : vector<6x32xf32> to vector<6x32xbf16>
    %c2_516 = arith.constant 2 : index
    %c0_517 = arith.constant 0 : index
    %c0_518 = arith.constant 0 : index
    %497 = vector.load %arg9[%c2_516, %c0_517, %c0_518] : memref<9x32x128xbf16, #tpu.memory_space<vmem>>, vector<1x32x128xbf16>
    %498 = vector.shape_cast %497 : vector<1x32x128xbf16> to vector<32x128xbf16>
    %cst_519 = arith.constant dense<0.000000e+00> : vector<6x128xf32>
    %499 = tpu.matmul %496, %498, %cst_519 {dimension_numbers = #tpu.dot_dimension_numbers<[1], [0], [0], [1], [0, 0, 1, 1], [], []>} : vector<6x32xbf16>, vector<32x128xbf16>, vector<6x128xf32> -> vector<6x128xf32>
    %500 = arith.addf %494, %499 : vector<6x128xf32>
    %c4_520 = arith.constant 4 : index
    %c0_521 = arith.constant 0 : index
    %501 = vector.load %arg32[%c4_520, %c0_521] : memref<16x128xf32, #tpu.memory_space<vmem>>, vector<6x32xf32>
    %502 = arith.truncf %501 : vector<6x32xf32> to vector<6x32xbf16>
    %c3_522 = arith.constant 3 : index
    %c0_523 = arith.constant 0 : index
    %c0_524 = arith.constant 0 : index
    %503 = vector.load %arg9[%c3_522, %c0_523, %c0_524] : memref<9x32x128xbf16, #tpu.memory_space<vmem>>, vector<1x32x128xbf16>
    %504 = vector.shape_cast %503 : vector<1x32x128xbf16> to vector<32x128xbf16>
    %cst_525 = arith.constant dense<0.000000e+00> : vector<6x128xf32>
    %505 = tpu.matmul %502, %504, %cst_525 {dimension_numbers = #tpu.dot_dimension_numbers<[1], [0], [0], [1], [0, 0, 1, 1], [], []>} : vector<6x32xbf16>, vector<32x128xbf16>, vector<6x128xf32> -> vector<6x128xf32>
    %506 = arith.addf %500, %505 : vector<6x128xf32>
    %c5_526 = arith.constant 5 : index
    %c0_527 = arith.constant 0 : index
    %507 = vector.load %arg32[%c5_526, %c0_527] : memref<16x128xf32, #tpu.memory_space<vmem>>, vector<6x32xf32>
    %508 = arith.truncf %507 : vector<6x32xf32> to vector<6x32xbf16>
    %c4_528 = arith.constant 4 : index
    %c0_529 = arith.constant 0 : index
    %c0_530 = arith.constant 0 : index
    %509 = vector.load %arg9[%c4_528, %c0_529, %c0_530] : memref<9x32x128xbf16, #tpu.memory_space<vmem>>, vector<1x32x128xbf16>
    %510 = vector.shape_cast %509 : vector<1x32x128xbf16> to vector<32x128xbf16>
    %cst_531 = arith.constant dense<0.000000e+00> : vector<6x128xf32>
    %511 = tpu.matmul %508, %510, %cst_531 {dimension_numbers = #tpu.dot_dimension_numbers<[1], [0], [0], [1], [0, 0, 1, 1], [], []>} : vector<6x32xbf16>, vector<32x128xbf16>, vector<6x128xf32> -> vector<6x128xf32>
    %512 = arith.addf %506, %511 : vector<6x128xf32>
    %c6_532 = arith.constant 6 : index
    %c0_533 = arith.constant 0 : index
    %513 = vector.load %arg32[%c6_532, %c0_533] : memref<16x128xf32, #tpu.memory_space<vmem>>, vector<6x32xf32>
    %514 = arith.truncf %513 : vector<6x32xf32> to vector<6x32xbf16>
    %c5_534 = arith.constant 5 : index
    %c0_535 = arith.constant 0 : index
    %c0_536 = arith.constant 0 : index
    %515 = vector.load %arg9[%c5_534, %c0_535, %c0_536] : memref<9x32x128xbf16, #tpu.memory_space<vmem>>, vector<1x32x128xbf16>
    %516 = vector.shape_cast %515 : vector<1x32x128xbf16> to vector<32x128xbf16>
    %cst_537 = arith.constant dense<0.000000e+00> : vector<6x128xf32>
    %517 = tpu.matmul %514, %516, %cst_537 {dimension_numbers = #tpu.dot_dimension_numbers<[1], [0], [0], [1], [0, 0, 1, 1], [], []>} : vector<6x32xbf16>, vector<32x128xbf16>, vector<6x128xf32> -> vector<6x128xf32>
    %518 = arith.addf %512, %517 : vector<6x128xf32>
    %c8_538 = arith.constant 8 : index
    %c0_539 = arith.constant 0 : index
    %519 = vector.load %arg32[%c8_538, %c0_539] : memref<16x128xf32, #tpu.memory_space<vmem>>, vector<6x32xf32>
    %520 = arith.truncf %519 : vector<6x32xf32> to vector<6x32xbf16>
    %c6_540 = arith.constant 6 : index
    %c0_541 = arith.constant 0 : index
    %c0_542 = arith.constant 0 : index
    %521 = vector.load %arg9[%c6_540, %c0_541, %c0_542] : memref<9x32x128xbf16, #tpu.memory_space<vmem>>, vector<1x32x128xbf16>
    %522 = vector.shape_cast %521 : vector<1x32x128xbf16> to vector<32x128xbf16>
    %cst_543 = arith.constant dense<0.000000e+00> : vector<6x128xf32>
    %523 = tpu.matmul %520, %522, %cst_543 {dimension_numbers = #tpu.dot_dimension_numbers<[1], [0], [0], [1], [0, 0, 1, 1], [], []>} : vector<6x32xbf16>, vector<32x128xbf16>, vector<6x128xf32> -> vector<6x128xf32>
    %524 = arith.addf %518, %523 : vector<6x128xf32>
    %c9_544 = arith.constant 9 : index
    %c0_545 = arith.constant 0 : index
    %525 = vector.load %arg32[%c9_544, %c0_545] : memref<16x128xf32, #tpu.memory_space<vmem>>, vector<6x32xf32>
    %526 = arith.truncf %525 : vector<6x32xf32> to vector<6x32xbf16>
    %c7_546 = arith.constant 7 : index
    %c0_547 = arith.constant 0 : index
    %c0_548 = arith.constant 0 : index
    %527 = vector.load %arg9[%c7_546, %c0_547, %c0_548] : memref<9x32x128xbf16, #tpu.memory_space<vmem>>, vector<1x32x128xbf16>
    %528 = vector.shape_cast %527 : vector<1x32x128xbf16> to vector<32x128xbf16>
    %cst_549 = arith.constant dense<0.000000e+00> : vector<6x128xf32>
    %529 = tpu.matmul %526, %528, %cst_549 {dimension_numbers = #tpu.dot_dimension_numbers<[1], [0], [0], [1], [0, 0, 1, 1], [], []>} : vector<6x32xbf16>, vector<32x128xbf16>, vector<6x128xf32> -> vector<6x128xf32>
    %530 = arith.addf %524, %529 : vector<6x128xf32>
    %c10_550 = arith.constant 10 : index
    %c0_551 = arith.constant 0 : index
    %531 = vector.load %arg32[%c10_550, %c0_551] : memref<16x128xf32, #tpu.memory_space<vmem>>, vector<6x32xf32>
    %532 = arith.truncf %531 : vector<6x32xf32> to vector<6x32xbf16>
    %c8_552 = arith.constant 8 : index
    %c0_553 = arith.constant 0 : index
    %c0_554 = arith.constant 0 : index
    %533 = vector.load %arg9[%c8_552, %c0_553, %c0_554] : memref<9x32x128xbf16, #tpu.memory_space<vmem>>, vector<1x32x128xbf16>
    %534 = vector.shape_cast %533 : vector<1x32x128xbf16> to vector<32x128xbf16>
    %cst_555 = arith.constant dense<0.000000e+00> : vector<6x128xf32>
    %535 = tpu.matmul %532, %534, %cst_555 {dimension_numbers = #tpu.dot_dimension_numbers<[1], [0], [0], [1], [0, 0, 1, 1], [], []>} : vector<6x32xbf16>, vector<32x128xbf16>, vector<6x128xf32> -> vector<6x128xf32>
    %536 = arith.addf %530, %535 : vector<6x128xf32>
    %c0_556 = arith.constant 0 : index
    %c0_557 = arith.constant 0 : index
    %537 = vector.load %arg18[%c0_556, %c0_557] : memref<1x128xf32, #tpu.memory_space<vmem>>, vector<1x128xf32>
    %538 = vector.broadcast %537 : vector<1x128xf32> to vector<6x128xf32>
    %539 = arith.addf %536, %538 : vector<6x128xf32>
    %cst_558 = arith.constant 0.000000e+00 : f32
    %540 = vector.broadcast %cst_558 : f32 to vector<6x128xf32>
    %541 = arith.maximumf %539, %540 : vector<6x128xf32>
    %c0_559 = arith.constant 0 : index
    %c0_560 = arith.constant 0 : index
    %542 = vector.load %arg26[%c0_559, %c0_560] : memref<80x128xf32, #tpu.memory_space<vmem>>, vector<6x128xf32>
    tpu.vector_store %arg26[%c0_559, %c0_560], %541 {strides = array<i32>} : memref<80x128xf32, #tpu.memory_space<vmem>>, vector<6x128xf32>,
    %c0_561 = arith.constant 0 : index
    %c0_562 = arith.constant 0 : index
    %543 = vector.load %arg26[%c0_561, %c0_562] : memref<80x128xf32, #tpu.memory_space<vmem>>, vector<2x128xf32>
    %c4_563 = arith.constant 4 : index
    %c0_564 = arith.constant 0 : index
    %544 = vector.load %arg26[%c4_563, %c0_564] : memref<80x128xf32, #tpu.memory_space<vmem>>, vector<2x128xf32>
    %545 = arith.maximumf %543, %544 : vector<2x128xf32>
    %cst_565 = arith.constant dense<0xFF800000> : vector<128xf32>
    %546 = vector.multi_reduction <maximumf>, %545, %cst_565 [0] : vector<2x128xf32> to vector<128xf32>
    %547 = vector.shape_cast %546 : vector<128xf32> to vector<1x128xf32>
    %c4_566 = arith.constant 4 : index
    %c0_567 = arith.constant 0 : index
    %548 = vector.load %arg33[%c4_566, %c0_567] : memref<16x128xf32, #tpu.memory_space<vmem>>, vector<1x128xf32>
    tpu.vector_store %arg33[%c4_566, %c0_567], %547 {strides = array<i32>} : memref<16x128xf32, #tpu.memory_space<vmem>>, vector<1x128xf32>,
    %c0_568 = arith.constant 0 : index
    %c0_569 = arith.constant 0 : index
    %549 = vector.load %arg33[%c0_568, %c0_569] : memref<16x128xf32, #tpu.memory_space<vmem>>, vector<1x64xf32>
    %550 = arith.truncf %549 : vector<1x64xf32> to vector<1x64xbf16>
    %c0_570 = arith.constant 0 : index
    %c0_571 = arith.constant 0 : index
    %c0_572 = arith.constant 0 : index
    %551 = vector.load %arg10[%c0_570, %c0_571, %c0_572] : memref<9x64x128xbf16, #tpu.memory_space<vmem>>, vector<1x64x128xbf16>
    %552 = vector.shape_cast %551 : vector<1x64x128xbf16> to vector<64x128xbf16>
    %cst_573 = arith.constant dense<0.000000e+00> : vector<1x128xf32>
    %553 = tpu.matmul %550, %552, %cst_573 {dimension_numbers = #tpu.dot_dimension_numbers<[1], [0], [0], [1], [0, 0, 1, 1], [], []>} : vector<1x64xbf16>, vector<64x128xbf16>, vector<1x128xf32> -> vector<1x128xf32>
    %c1_574 = arith.constant 1 : index
    %c0_575 = arith.constant 0 : index
    %554 = vector.load %arg33[%c1_574, %c0_575] : memref<16x128xf32, #tpu.memory_space<vmem>>, vector<1x64xf32>
    %555 = arith.truncf %554 : vector<1x64xf32> to vector<1x64xbf16>
    %c1_576 = arith.constant 1 : index
    %c0_577 = arith.constant 0 : index
    %c0_578 = arith.constant 0 : index
    %556 = vector.load %arg10[%c1_576, %c0_577, %c0_578] : memref<9x64x128xbf16, #tpu.memory_space<vmem>>, vector<1x64x128xbf16>
    %557 = vector.shape_cast %556 : vector<1x64x128xbf16> to vector<64x128xbf16>
    %cst_579 = arith.constant dense<0.000000e+00> : vector<1x128xf32>
    %558 = tpu.matmul %555, %557, %cst_579 {dimension_numbers = #tpu.dot_dimension_numbers<[1], [0], [0], [1], [0, 0, 1, 1], [], []>} : vector<1x64xbf16>, vector<64x128xbf16>, vector<1x128xf32> -> vector<1x128xf32>
    %559 = arith.addf %553, %558 : vector<1x128xf32>
    %c2_580 = arith.constant 2 : index
    %c0_581 = arith.constant 0 : index
    %560 = vector.load %arg33[%c2_580, %c0_581] : memref<16x128xf32, #tpu.memory_space<vmem>>, vector<1x64xf32>
    %561 = arith.truncf %560 : vector<1x64xf32> to vector<1x64xbf16>
    %c2_582 = arith.constant 2 : index
    %c0_583 = arith.constant 0 : index
    %c0_584 = arith.constant 0 : index
    %562 = vector.load %arg10[%c2_582, %c0_583, %c0_584] : memref<9x64x128xbf16, #tpu.memory_space<vmem>>, vector<1x64x128xbf16>
    %563 = vector.shape_cast %562 : vector<1x64x128xbf16> to vector<64x128xbf16>
    %cst_585 = arith.constant dense<0.000000e+00> : vector<1x128xf32>
    %564 = tpu.matmul %561, %563, %cst_585 {dimension_numbers = #tpu.dot_dimension_numbers<[1], [0], [0], [1], [0, 0, 1, 1], [], []>} : vector<1x64xbf16>, vector<64x128xbf16>, vector<1x128xf32> -> vector<1x128xf32>
    %565 = arith.addf %559, %564 : vector<1x128xf32>
    %c3_586 = arith.constant 3 : index
    %c0_587 = arith.constant 0 : index
    %566 = vector.load %arg33[%c3_586, %c0_587] : memref<16x128xf32, #tpu.memory_space<vmem>>, vector<1x64xf32>
    %567 = arith.truncf %566 : vector<1x64xf32> to vector<1x64xbf16>
    %c3_588 = arith.constant 3 : index
    %c0_589 = arith.constant 0 : index
    %c0_590 = arith.constant 0 : index
    %568 = vector.load %arg10[%c3_588, %c0_589, %c0_590] : memref<9x64x128xbf16, #tpu.memory_space<vmem>>, vector<1x64x128xbf16>
    %569 = vector.shape_cast %568 : vector<1x64x128xbf16> to vector<64x128xbf16>
    %cst_591 = arith.constant dense<0.000000e+00> : vector<1x128xf32>
    %570 = tpu.matmul %567, %569, %cst_591 {dimension_numbers = #tpu.dot_dimension_numbers<[1], [0], [0], [1], [0, 0, 1, 1], [], []>} : vector<1x64xbf16>, vector<64x128xbf16>, vector<1x128xf32> -> vector<1x128xf32>
    %571 = arith.addf %565, %570 : vector<1x128xf32>
    %c4_592 = arith.constant 4 : index
    %c0_593 = arith.constant 0 : index
    %572 = vector.load %arg33[%c4_592, %c0_593] : memref<16x128xf32, #tpu.memory_space<vmem>>, vector<1x64xf32>
    %573 = arith.truncf %572 : vector<1x64xf32> to vector<1x64xbf16>
    %c4_594 = arith.constant 4 : index
    %c0_595 = arith.constant 0 : index
    %c0_596 = arith.constant 0 : index
    %574 = vector.load %arg10[%c4_594, %c0_595, %c0_596] : memref<9x64x128xbf16, #tpu.memory_space<vmem>>, vector<1x64x128xbf16>
    %575 = vector.shape_cast %574 : vector<1x64x128xbf16> to vector<64x128xbf16>
    %cst_597 = arith.constant dense<0.000000e+00> : vector<1x128xf32>
    %576 = tpu.matmul %573, %575, %cst_597 {dimension_numbers = #tpu.dot_dimension_numbers<[1], [0], [0], [1], [0, 0, 1, 1], [], []>} : vector<1x64xbf16>, vector<64x128xbf16>, vector<1x128xf32> -> vector<1x128xf32>
    %577 = arith.addf %571, %576 : vector<1x128xf32>
    %c5_598 = arith.constant 5 : index
    %c0_599 = arith.constant 0 : index
    %578 = vector.load %arg33[%c5_598, %c0_599] : memref<16x128xf32, #tpu.memory_space<vmem>>, vector<1x64xf32>
    %579 = arith.truncf %578 : vector<1x64xf32> to vector<1x64xbf16>
    %c5_600 = arith.constant 5 : index
    %c0_601 = arith.constant 0 : index
    %c0_602 = arith.constant 0 : index
    %580 = vector.load %arg10[%c5_600, %c0_601, %c0_602] : memref<9x64x128xbf16, #tpu.memory_space<vmem>>, vector<1x64x128xbf16>
    %581 = vector.shape_cast %580 : vector<1x64x128xbf16> to vector<64x128xbf16>
    %cst_603 = arith.constant dense<0.000000e+00> : vector<1x128xf32>
    %582 = tpu.matmul %579, %581, %cst_603 {dimension_numbers = #tpu.dot_dimension_numbers<[1], [0], [0], [1], [0, 0, 1, 1], [], []>} : vector<1x64xbf16>, vector<64x128xbf16>, vector<1x128xf32> -> vector<1x128xf32>
    %583 = arith.addf %577, %582 : vector<1x128xf32>
    %c6_604 = arith.constant 6 : index
    %c0_605 = arith.constant 0 : index
    %584 = vector.load %arg33[%c6_604, %c0_605] : memref<16x128xf32, #tpu.memory_space<vmem>>, vector<1x64xf32>
    %585 = arith.truncf %584 : vector<1x64xf32> to vector<1x64xbf16>
    %c6_606 = arith.constant 6 : index
    %c0_607 = arith.constant 0 : index
    %c0_608 = arith.constant 0 : index
    %586 = vector.load %arg10[%c6_606, %c0_607, %c0_608] : memref<9x64x128xbf16, #tpu.memory_space<vmem>>, vector<1x64x128xbf16>
    %587 = vector.shape_cast %586 : vector<1x64x128xbf16> to vector<64x128xbf16>
    %cst_609 = arith.constant dense<0.000000e+00> : vector<1x128xf32>
    %588 = tpu.matmul %585, %587, %cst_609 {dimension_numbers = #tpu.dot_dimension_numbers<[1], [0], [0], [1], [0, 0, 1, 1], [], []>} : vector<1x64xbf16>, vector<64x128xbf16>, vector<1x128xf32> -> vector<1x128xf32>
    %589 = arith.addf %583, %588 : vector<1x128xf32>
    %c7_610 = arith.constant 7 : index
    %c0_611 = arith.constant 0 : index
    %590 = vector.load %arg33[%c7_610, %c0_611] : memref<16x128xf32, #tpu.memory_space<vmem>>, vector<1x64xf32>
    %591 = arith.truncf %590 : vector<1x64xf32> to vector<1x64xbf16>
    %c7_612 = arith.constant 7 : index
    %c0_613 = arith.constant 0 : index
    %c0_614 = arith.constant 0 : index
    %592 = vector.load %arg10[%c7_612, %c0_613, %c0_614] : memref<9x64x128xbf16, #tpu.memory_space<vmem>>, vector<1x64x128xbf16>
    %593 = vector.shape_cast %592 : vector<1x64x128xbf16> to vector<64x128xbf16>
    %cst_615 = arith.constant dense<0.000000e+00> : vector<1x128xf32>
    %594 = tpu.matmul %591, %593, %cst_615 {dimension_numbers = #tpu.dot_dimension_numbers<[1], [0], [0], [1], [0, 0, 1, 1], [], []>} : vector<1x64xbf16>, vector<64x128xbf16>, vector<1x128xf32> -> vector<1x128xf32>
    %595 = arith.addf %589, %594 : vector<1x128xf32>
    %c8_616 = arith.constant 8 : index
    %c0_617 = arith.constant 0 : index
    %596 = vector.load %arg33[%c8_616, %c0_617] : memref<16x128xf32, #tpu.memory_space<vmem>>, vector<1x64xf32>
    %597 = arith.truncf %596 : vector<1x64xf32> to vector<1x64xbf16>
    %c8_618 = arith.constant 8 : index
    %c0_619 = arith.constant 0 : index
    %c0_620 = arith.constant 0 : index
    %598 = vector.load %arg10[%c8_618, %c0_619, %c0_620] : memref<9x64x128xbf16, #tpu.memory_space<vmem>>, vector<1x64x128xbf16>
    %599 = vector.shape_cast %598 : vector<1x64x128xbf16> to vector<64x128xbf16>
    %cst_621 = arith.constant dense<0.000000e+00> : vector<1x128xf32>
    %600 = tpu.matmul %597, %599, %cst_621 {dimension_numbers = #tpu.dot_dimension_numbers<[1], [0], [0], [1], [0, 0, 1, 1], [], []>} : vector<1x64xbf16>, vector<64x128xbf16>, vector<1x128xf32> -> vector<1x128xf32>
    %601 = arith.addf %595, %600 : vector<1x128xf32>
    %c0_622 = arith.constant 0 : index
    %c0_623 = arith.constant 0 : index
    %602 = vector.load %arg19[%c0_622, %c0_623] : memref<1x128xf32, #tpu.memory_space<vmem>>, vector<1x128xf32>
    %603 = arith.addf %601, %602 : vector<1x128xf32>
    %cst_624 = arith.constant 0.000000e+00 : f32
    %604 = vector.broadcast %cst_624 : f32 to vector<1x128xf32>
    %605 = arith.maximumf %603, %604 : vector<1x128xf32>
    %c0_625 = arith.constant 0 : index
    %c0_626 = arith.constant 0 : index
    %606 = vector.load %arg26[%c0_625, %c0_626] : memref<80x128xf32, #tpu.memory_space<vmem>>, vector<1x128xf32>
    tpu.vector_store %arg26[%c0_625, %c0_626], %605 {strides = array<i32>} : memref<80x128xf32, #tpu.memory_space<vmem>>, vector<1x128xf32>,
    %c0_627 = arith.constant 0 : index
    %c0_628 = arith.constant 0 : index
    %607 = vector.load %arg26[%c0_627, %c0_628] : memref<80x128xf32, #tpu.memory_space<vmem>>, vector<1x128xf32>
    %c4_629 = arith.constant 4 : index
    %c0_630 = arith.constant 0 : index
    %608 = vector.load %arg34[%c4_629, %c0_630] : memref<16x128xf32, #tpu.memory_space<vmem>>, vector<1x128xf32>
    tpu.vector_store %arg34[%c4_629, %c0_630], %607 {strides = array<i32>} : memref<16x128xf32, #tpu.memory_space<vmem>>, vector<1x128xf32>,
    %c0_631 = arith.constant 0 : index
    %c0_632 = arith.constant 0 : index
    %609 = vector.load %arg34[%c0_631, %c0_632] : memref<16x128xf32, #tpu.memory_space<vmem>>, vector<5x40xf32>
    %610 = arith.truncf %609 : vector<5x40xf32> to vector<5x40xbf16>
    %c0_633 = arith.constant 0 : index
    %c0_634 = arith.constant 0 : index
    %c0_635 = arith.constant 0 : index
    %611 = vector.load %arg11[%c0_633, %c0_634, %c0_635] : memref<4x40x128xbf16, #tpu.memory_space<vmem>>, vector<1x40x128xbf16>
    %612 = vector.shape_cast %611 : vector<1x40x128xbf16> to vector<40x128xbf16>
    %cst_636 = arith.constant dense<0.000000e+00> : vector<5x128xf32>
    %613 = tpu.matmul %610, %612, %cst_636 {dimension_numbers = #tpu.dot_dimension_numbers<[1], [0], [0], [1], [0, 0, 1, 1], [], []>} : vector<5x40xbf16>, vector<40x128xbf16>, vector<5x128xf32> -> vector<5x128xf32>
    %c1_637 = arith.constant 1 : index
    %c0_638 = arith.constant 0 : index
    %614 = vector.load %arg34[%c1_637, %c0_638] : memref<16x128xf32, #tpu.memory_space<vmem>>, vector<5x40xf32>
    %615 = arith.truncf %614 : vector<5x40xf32> to vector<5x40xbf16>
    %c1_639 = arith.constant 1 : index
    %c0_640 = arith.constant 0 : index
    %c0_641 = arith.constant 0 : index
    %616 = vector.load %arg11[%c1_639, %c0_640, %c0_641] : memref<4x40x128xbf16, #tpu.memory_space<vmem>>, vector<1x40x128xbf16>
    %617 = vector.shape_cast %616 : vector<1x40x128xbf16> to vector<40x128xbf16>
    %cst_642 = arith.constant dense<0.000000e+00> : vector<5x128xf32>
    %618 = tpu.matmul %615, %617, %cst_642 {dimension_numbers = #tpu.dot_dimension_numbers<[1], [0], [0], [1], [0, 0, 1, 1], [], []>} : vector<5x40xbf16>, vector<40x128xbf16>, vector<5x128xf32> -> vector<5x128xf32>
    %619 = arith.addf %613, %618 : vector<5x128xf32>
    %c3_643 = arith.constant 3 : index
    %c0_644 = arith.constant 0 : index
    %620 = vector.load %arg34[%c3_643, %c0_644] : memref<16x128xf32, #tpu.memory_space<vmem>>, vector<5x40xf32>
    %621 = arith.truncf %620 : vector<5x40xf32> to vector<5x40xbf16>
    %c2_645 = arith.constant 2 : index
    %c0_646 = arith.constant 0 : index
    %c0_647 = arith.constant 0 : index
    %622 = vector.load %arg11[%c2_645, %c0_646, %c0_647] : memref<4x40x128xbf16, #tpu.memory_space<vmem>>, vector<1x40x128xbf16>
    %623 = vector.shape_cast %622 : vector<1x40x128xbf16> to vector<40x128xbf16>
    %cst_648 = arith.constant dense<0.000000e+00> : vector<5x128xf32>
    %624 = tpu.matmul %621, %623, %cst_648 {dimension_numbers = #tpu.dot_dimension_numbers<[1], [0], [0], [1], [0, 0, 1, 1], [], []>} : vector<5x40xbf16>, vector<40x128xbf16>, vector<5x128xf32> -> vector<5x128xf32>
    %625 = arith.addf %619, %624 : vector<5x128xf32>
    %c4_649 = arith.constant 4 : index
    %c0_650 = arith.constant 0 : index
    %626 = vector.load %arg34[%c4_649, %c0_650] : memref<16x128xf32, #tpu.memory_space<vmem>>, vector<5x40xf32>
    %627 = arith.truncf %626 : vector<5x40xf32> to vector<5x40xbf16>
    %c3_651 = arith.constant 3 : index
    %c0_652 = arith.constant 0 : index
    %c0_653 = arith.constant 0 : index
    %628 = vector.load %arg11[%c3_651, %c0_652, %c0_653] : memref<4x40x128xbf16, #tpu.memory_space<vmem>>, vector<1x40x128xbf16>
    %629 = vector.shape_cast %628 : vector<1x40x128xbf16> to vector<40x128xbf16>
    %cst_654 = arith.constant dense<0.000000e+00> : vector<5x128xf32>
    %630 = tpu.matmul %627, %629, %cst_654 {dimension_numbers = #tpu.dot_dimension_numbers<[1], [0], [0], [1], [0, 0, 1, 1], [], []>} : vector<5x40xbf16>, vector<40x128xbf16>, vector<5x128xf32> -> vector<5x128xf32>
    %631 = arith.addf %625, %630 : vector<5x128xf32>
    %c0_655 = arith.constant 0 : index
    %c0_656 = arith.constant 0 : index
    %632 = vector.load %arg20[%c0_655, %c0_656] : memref<1x128xf32, #tpu.memory_space<vmem>>, vector<1x128xf32>
    %633 = vector.broadcast %632 : vector<1x128xf32> to vector<5x128xf32>
    %634 = arith.addf %631, %633 : vector<5x128xf32>
    %cst_657 = arith.constant 0.000000e+00 : f32
    %635 = vector.broadcast %cst_657 : f32 to vector<5x128xf32>
    %636 = arith.maximumf %634, %635 : vector<5x128xf32>
    %c0_658 = arith.constant 0 : index
    %c0_659 = arith.constant 0 : index
    %637 = vector.load %arg26[%c0_658, %c0_659] : memref<80x128xf32, #tpu.memory_space<vmem>>, vector<5x128xf32>
    tpu.vector_store %arg26[%c0_658, %c0_659], %636 {strides = array<i32>} : memref<80x128xf32, #tpu.memory_space<vmem>>, vector<5x128xf32>,
    %c0_660 = arith.constant 0 : index
    %c0_661 = arith.constant 0 : index
    %638 = vector.load %arg26[%c0_660, %c0_661] : memref<80x128xf32, #tpu.memory_space<vmem>>, vector<2x128xf32>
    %c3_662 = arith.constant 3 : index
    %c0_663 = arith.constant 0 : index
    %639 = vector.load %arg26[%c3_662, %c0_663] : memref<80x128xf32, #tpu.memory_space<vmem>>, vector<2x128xf32>
    %640 = arith.maximumf %638, %639 : vector<2x128xf32>
    %cst_664 = arith.constant dense<0xFF800000> : vector<128xf32>
    %641 = vector.multi_reduction <maximumf>, %640, %cst_664 [0] : vector<2x128xf32> to vector<128xf32>
    %642 = vector.shape_cast %641 : vector<128xf32> to vector<1x128xf32>
    %c0_665 = arith.constant 0 : index
    %c0_666 = arith.constant 0 : index
    %c0_667 = arith.constant 0 : index
    %643 = vector.load %arg2[%c0_665, %c0_666, %c0_667] : memref<1x1x128xf32, #tpu.memory_space<vmem>>, vector<1x1x128xf32>
    %644 = vector.shape_cast %643 : vector<1x1x128xf32> to vector<1x128xf32>
    %645 = arith.addf %642, %644 : vector<1x128xf32>
    %646 = arith.truncf %645 : vector<1x128xf32> to vector<1x128xbf16>
    %c0_668 = arith.constant 0 : index
    %c0_669 = arith.constant 0 : index
    %647 = vector.load %arg21[%c0_668, %c0_669] : memref<128x128xbf16, #tpu.memory_space<vmem>>, vector<128x128xbf16>
    %cst_670 = arith.constant dense<0.000000e+00> : vector<1x128xf32>
    %648 = tpu.matmul %646, %647, %cst_670 {dimension_numbers = #tpu.dot_dimension_numbers<[1], [0], [0], [1], [0, 0, 1, 1], [], []>} : vector<1x128xbf16>, vector<128x128xbf16>, vector<1x128xf32> -> vector<1x128xf32>
    %c0_671 = arith.constant 0 : index
    %c0_672 = arith.constant 0 : index
    %649 = vector.load %arg22[%c0_671, %c0_672] : memref<1x128xf32, #tpu.memory_space<vmem>>, vector<1x128xf32>
    %650 = arith.addf %648, %649 : vector<1x128xf32>
    %cst_673 = arith.constant 0.000000e+00 : f32
    %651 = vector.broadcast %cst_673 : f32 to vector<1x128xf32>
    %652 = arith.maximumf %650, %651 : vector<1x128xf32>
    %653 = arith.truncf %652 : vector<1x128xf32> to vector<1x128xbf16>
    %c0_674 = arith.constant 0 : index
    %c0_675 = arith.constant 0 : index
    %654 = vector.load %arg23[%c0_674, %c0_675] : memref<128x128xbf16, #tpu.memory_space<vmem>>, vector<128x128xbf16>
    %cst_676 = arith.constant dense<0.000000e+00> : vector<1x128xf32>
    %655 = tpu.matmul %653, %654, %cst_676 {dimension_numbers = #tpu.dot_dimension_numbers<[1], [0], [0], [1], [0, 0, 1, 1], [], []>} : vector<1x128xbf16>, vector<128x128xbf16>, vector<1x128xf32> -> vector<1x128xf32>
    %c0_677 = arith.constant 0 : index
    %c0_678 = arith.constant 0 : index
    %656 = vector.load %arg24[%c0_677, %c0_678] : memref<1x128xf32, #tpu.memory_space<vmem>>, vector<1x128xf32>
    %657 = arith.addf %655, %656 : vector<1x128xf32>
    %c0_679 = arith.constant 0 : index
    %c0_680 = arith.constant 0 : index
    %c0_681 = arith.constant 0 : index
    %658 = vector.load %arg25[%c0_679, %c0_680, %c0_681] : memref<1x1x128xf32, #tpu.memory_space<vmem>>, vector<1x1x128xf32>
    %659 = vector.shape_cast %658 : vector<1x1x128xf32> to vector<1x128xf32>
    %660 = vector.shape_cast %657 : vector<1x128xf32> to vector<1x1x128xf32>
    tpu.vector_store %arg25[%c0_679, %c0_680, %c0_681], %660 {strides = array<i32>} : memref<1x1x128xf32, #tpu.memory_space<vmem>>, vector<1x1x128xf32>,
    return
  }
  func.func @transform_0(%arg0: i32) -> (i32, i32) {
    %c0_i32 = arith.constant 0 : i32
    %c0_i32_0 = arith.constant 0 : i32
    return %arg0, %c0_i32 : i32, i32
  }
  func.func @transform_1(%arg0: i32) -> (i32, i32, i32) {
    %c0_i32 = arith.constant 0 : i32
    %c0_i32_0 = arith.constant 0 : i32
    %c0_i32_1 = arith.constant 0 : i32
    return %arg0, %c0_i32, %c0_i32_0 : i32, i32, i32
  }
  func.func @transform_2(%arg0: i32) -> (i32, i32) {
    %c0_i32 = arith.constant 0 : i32
    %c0_i32_0 = arith.constant 0 : i32
    %c0_i32_1 = arith.constant 0 : i32
    return %c0_i32, %c0_i32_0 : i32, i32
  }
  func.func @transform_3(%arg0: i32) -> (i32, i32, i32) {
    %c0_i32 = arith.constant 0 : i32
    %c0_i32_0 = arith.constant 0 : i32
    %c0_i32_1 = arith.constant 0 : i32
    %c0_i32_2 = arith.constant 0 : i32
    return %c0_i32, %c0_i32_0, %c0_i32_1 : i32, i32, i32
  }
  func.func @transform_4(%arg0: i32) -> (i32, i32, i32) {
    %c0_i32 = arith.constant 0 : i32
    %c0_i32_0 = arith.constant 0 : i32
    %c0_i32_1 = arith.constant 0 : i32
    %c0_i32_2 = arith.constant 0 : i32
    return %c0_i32, %c0_i32_0, %c0_i32_1 : i32, i32, i32
  }
  func.func @transform_5(%arg0: i32) -> (i32, i32, i32) {
    %c0_i32 = arith.constant 0 : i32
    %c0_i32_0 = arith.constant 0 : i32
    %c0_i32_1 = arith.constant 0 : i32
    %c0_i32_2 = arith.constant 0 : i32
    return %c0_i32, %c0_i32_0, %c0_i32_1 : i32, i32, i32
  }
  func.func @transform_6(%arg0: i32) -> (i32, i32, i32) {
    %c0_i32 = arith.constant 0 : i32
    %c0_i32_0 = arith.constant 0 : i32
    %c0_i32_1 = arith.constant 0 : i32
    %c0_i32_2 = arith.constant 0 : i32
    return %c0_i32, %c0_i32_0, %c0_i32_1 : i32, i32, i32
  }
  func.func @transform_7(%arg0: i32) -> (i32, i32, i32) {
    %c0_i32 = arith.constant 0 : i32
    %c0_i32_0 = arith.constant 0 : i32
    %c0_i32_1 = arith.constant 0 : i32
    %c0_i32_2 = arith.constant 0 : i32
    return %c0_i32, %c0_i32_0, %c0_i32_1 : i32, i32, i32
  }
  func.func @transform_8(%arg0: i32) -> (i32, i32, i32) {
    %c0_i32 = arith.constant 0 : i32
    %c0_i32_0 = arith.constant 0 : i32
    %c0_i32_1 = arith.constant 0 : i32
    %c0_i32_2 = arith.constant 0 : i32
    return %c0_i32, %c0_i32_0, %c0_i32_1 : i32, i32, i32
  }
  func.func @transform_9(%arg0: i32) -> (i32, i32, i32) {
    %c0_i32 = arith.constant 0 : i32
    %c0_i32_0 = arith.constant 0 : i32
    %c0_i32_1 = arith.constant 0 : i32
    %c0_i32_2 = arith.constant 0 : i32
    return %c0_i32, %c0_i32_0, %c0_i32_1 : i32, i32, i32
  }
  func.func @transform_10(%arg0: i32) -> (i32, i32, i32) {
    %c0_i32 = arith.constant 0 : i32
    %c0_i32_0 = arith.constant 0 : i32
    %c0_i32_1 = arith.constant 0 : i32
    %c0_i32_2 = arith.constant 0 : i32
    return %c0_i32, %c0_i32_0, %c0_i32_1 : i32, i32, i32
  }
  func.func @transform_11(%arg0: i32) -> (i32, i32) {
    %c0_i32 = arith.constant 0 : i32
    %c0_i32_0 = arith.constant 0 : i32
    %c0_i32_1 = arith.constant 0 : i32
    return %c0_i32, %c0_i32_0 : i32, i32
  }
  func.func @transform_12(%arg0: i32) -> (i32, i32) {
    %c0_i32 = arith.constant 0 : i32
    %c0_i32_0 = arith.constant 0 : i32
    %c0_i32_1 = arith.constant 0 : i32
    return %c0_i32, %c0_i32_0 : i32, i32
  }
  func.func @transform_13(%arg0: i32) -> (i32, i32) {
    %c0_i32 = arith.constant 0 : i32
    %c0_i32_0 = arith.constant 0 : i32
    %c0_i32_1 = arith.constant 0 : i32
    return %c0_i32, %c0_i32_0 : i32, i32
  }
  func.func @transform_14(%arg0: i32) -> (i32, i32) {
    %c0_i32 = arith.constant 0 : i32
    %c0_i32_0 = arith.constant 0 : i32
    %c0_i32_1 = arith.constant 0 : i32
    return %c0_i32, %c0_i32_0 : i32, i32
  }
  func.func @transform_15(%arg0: i32) -> (i32, i32) {
    %c0_i32 = arith.constant 0 : i32
    %c0_i32_0 = arith.constant 0 : i32
    %c0_i32_1 = arith.constant 0 : i32
    return %c0_i32, %c0_i32_0 : i32, i32
  }
  func.func @transform_16(%arg0: i32) -> (i32, i32) {
    %c0_i32 = arith.constant 0 : i32
    %c0_i32_0 = arith.constant 0 : i32
    %c0_i32_1 = arith.constant 0 : i32
    return %c0_i32, %c0_i32_0 : i32, i32
  }
  func.func @transform_17(%arg0: i32) -> (i32, i32) {
    %c0_i32 = arith.constant 0 : i32
    %c0_i32_0 = arith.constant 0 : i32
    %c0_i32_1 = arith.constant 0 : i32
    return %c0_i32, %c0_i32_0 : i32, i32
  }
  func.func @transform_18(%arg0: i32) -> (i32, i32) {
    %c0_i32 = arith.constant 0 : i32
    %c0_i32_0 = arith.constant 0 : i32
    %c0_i32_1 = arith.constant 0 : i32
    return %c0_i32, %c0_i32_0 : i32, i32
  }
  func.func @transform_19(%arg0: i32) -> (i32, i32) {
    %c0_i32 = arith.constant 0 : i32
    %c0_i32_0 = arith.constant 0 : i32
    %c0_i32_1 = arith.constant 0 : i32
    return %c0_i32, %c0_i32_0 : i32, i32
  }
  func.func @transform_20(%arg0: i32) -> (i32, i32) {
    %c0_i32 = arith.constant 0 : i32
    %c0_i32_0 = arith.constant 0 : i32
    %c0_i32_1 = arith.constant 0 : i32
    return %c0_i32, %c0_i32_0 : i32, i32
  }
  func.func @transform_21(%arg0: i32) -> (i32, i32) {
    %c0_i32 = arith.constant 0 : i32
    %c0_i32_0 = arith.constant 0 : i32
    %c0_i32_1 = arith.constant 0 : i32
    return %c0_i32, %c0_i32_0 : i32, i32
  }
  func.func @transform_22(%arg0: i32) -> (i32, i32) {
    %c0_i32 = arith.constant 0 : i32
    %c0_i32_0 = arith.constant 0 : i32
    %c0_i32_1 = arith.constant 0 : i32
    return %c0_i32, %c0_i32_0 : i32, i32
  }
  func.func @transform_23(%arg0: i32) -> (i32, i32) {
    %c0_i32 = arith.constant 0 : i32
    %c0_i32_0 = arith.constant 0 : i32
    %c0_i32_1 = arith.constant 0 : i32
    return %c0_i32, %c0_i32_0 : i32, i32
  }
  func.func @transform_24(%arg0: i32) -> (i32, i32, i32) {
    %c0_i32 = arith.constant 0 : i32
    %c0_i32_0 = arith.constant 0 : i32
    %c0_i32_1 = arith.constant 0 : i32
    return %arg0, %c0_i32, %c0_i32_0 : i32, i32, i32
  }
}

</mosaic_0001>

<llo_original>
// kernel: forward.1
$region0: #{forward.1}
  #allocation0 [shape = 'u32[]', space=smem, size = 0x4, offset = 0x4, fixed_abs, tag = 'smem constant byte address 0x4 - core index']
  #allocation1 [shape = 'u32[144,128]{1,0:T(1,128)}', space=vmem, size = 0x12000, scoped, tag = 'internal scratch']
  #allocation2 [shape = 'f32[80,128]{1,0:T(8,128)}', space=vmem, size = 0xa000, scoped, tag = 'scratch operand']
  #allocation3 [shape = 'f32[104,128]{1,0:T(8,128)}', space=vmem, size = 0xd000, scoped, tag = 'scratch operand']
  #allocation4 [shape = 'f32[104,128]{1,0:T(8,128)}', space=vmem, size = 0xd000, scoped, tag = 'scratch operand']
  #allocation5 [shape = 'f32[40,128]{1,0:T(8,128)}', space=vmem, size = 0x5000, scoped, tag = 'scratch operand']
  #allocation6 [shape = 'f32[40,128]{1,0:T(8,128)}', space=vmem, size = 0x5000, scoped, tag = 'scratch operand']
  #allocation7 [shape = 'f32[16,128]{1,0:T(8,128)}', space=vmem, size = 0x2000, scoped, tag = 'scratch operand']
  #allocation8 [shape = 'f32[16,128]{1,0:T(8,128)}', space=vmem, size = 0x2000, scoped, tag = 'scratch operand']
  #allocation9 [shape = 'f32[16,128]{1,0:T(8,128)}', space=vmem, size = 0x2000, scoped, tag = 'scratch operand']
  #allocation10 [shape = 'f32[16,128]{1,0:T(8,128)}', space=vmem, size = 0x2000, scoped, tag = 'scratch operand']
  %s0 = inlined_call_operand.vmem [shape: bf16[128,128], index: 0, kind: input, shape index: {}]
  %s1 = inlined_call_operand.vmem [shape: f32[2,1,128], index: 1, kind: input, shape index: {}]
  %s2 = inlined_call_operand.vmem [shape: bf16[128,128], index: 2, kind: input, shape index: {}]
  %s3 = inlined_call_operand.vmem [shape: bf16[9,64,128], index: 3, kind: input, shape index: {}]
  %s4 = inlined_call_operand.vmem [shape: bf16[9,16,128], index: 4, kind: input, shape index: {}]
  %s5 = inlined_call_operand.vmem [shape: bf16[9,32,128], index: 5, kind: input, shape index: {}]
  %s6 = inlined_call_operand.vmem [shape: bf16[9,24,128], index: 6, kind: input, shape index: {}]
  %s7 = inlined_call_operand.vmem [shape: bf16[9,48,128], index: 7, kind: input, shape index: {}]
  %s8 = inlined_call_operand.vmem [shape: bf16[9,32,128], index: 8, kind: input, shape index: {}]
  %s9 = inlined_call_operand.vmem [shape: bf16[9,64,128], index: 9, kind: input, shape index: {}]
  %s10 = inlined_call_operand.vmem [shape: bf16[4,40,128], index: 10, kind: input, shape index: {}]
  %s11 = inlined_call_operand.vmem [shape: f32[1,128], index: 11, kind: input, shape index: {}]
  %s12 = inlined_call_operand.vmem [shape: f32[1,128], index: 12, kind: input, shape index: {}]
  %s13 = inlined_call_operand.vmem [shape: f32[1,128], index: 13, kind: input, shape index: {}]
  %s14 = inlined_call_operand.vmem [shape: f32[1,128], index: 14, kind: input, shape index: {}]
  %s15 = inlined_call_operand.vmem [shape: f32[1,128], index: 15, kind: input, shape index: {}]
  %s16 = inlined_call_operand.vmem [shape: f32[1,128], index: 16, kind: input, shape index: {}]
  %s17 = inlined_call_operand.vmem [shape: f32[1,128], index: 17, kind: input, shape index: {}]
  %s18 = inlined_call_operand.vmem [shape: f32[1,128], index: 18, kind: input, shape index: {}]
  %s19 = inlined_call_operand.vmem [shape: f32[1,128], index: 19, kind: input, shape index: {}]
  %s20 = inlined_call_operand.vmem [shape: bf16[128,128], index: 20, kind: input, shape index: {}]
  %s21 = inlined_call_operand.vmem [shape: f32[1,128], index: 21, kind: input, shape index: {}]
  %s22 = inlined_call_operand.vmem [shape: bf16[128,128], index: 22, kind: input, shape index: {}]
  %s23 = inlined_call_operand.vmem [shape: f32[1,128], index: 23, kind: input, shape index: {}]
  %s24 = inlined_call_operand.hbm [shape: f32[2,1,128], index: 24, kind: output, shape index: {}]
  %s25 = sld [smem:[#allocation0]]
  $region129: #{forward.1} parent=0
    _
  %s27 = ssub.s32 1, %s25
  %s28 = scalar_select 0, %s27, %s25
  $region1: #{forward.1} parent=0
    #allocation11 [shape = 'u8[1024]{0}', space=vmem, size = 0x400, scoped, tag = 'output window, operand 0']
    #allocation12 [shape = 's32[2]{0}', space=sflag, size = 0x8, scoped, tag = 'scoped memory for forward.1']
    %29 = vsyncpa [#allocation12], 0
    %s30 = scalar_lea.sflag [#allocation12], 1
    %31 = vsyncpa %s30, 0
    loop: start=0, step=1, limit=4
    $region2: #{forward.1} parent=1 // loop_pre_header
      _
    $region3: #{forward.1} parent=1 // loop_header
      %s33 = sphi 0, %s37
      %p34 = scmp.ge.s32.totalorder %s33, 4
      %s43 = sphi 0, %s45
      %s46 = sphi 0, %s43
      %s47 = sphi 0, %s46
      %s63 = sphi 0, %s47
      %s69 = sphi 0, %s71
      %s72 = sphi 0, %s69
      %s73 = sphi 0, %s72
      %s89 = sphi 0, %s73
      %s93 = sphi 0, %s93
      %s95 = sphi 0, %s93
      %s96 = sphi 0, %s95
      %s110 = sphi 0, %s96
      %s114 = sphi 0, %s114
      %s116 = sphi 0, %s114
      %s117 = sphi 0, %s116
      %s131 = sphi 0, %s117
      %s135 = sphi 0, %s135
      %s137 = sphi 0, %s135
      %s138 = sphi 0, %s137
      %s152 = sphi 0, %s138
      %s156 = sphi 0, %s156
      %s158 = sphi 0, %s156
      %s159 = sphi 0, %s158
      %s173 = sphi 0, %s159
      %s177 = sphi 0, %s177
      %s179 = sphi 0, %s177
      %s180 = sphi 0, %s179
      %s194 = sphi 0, %s180
      %s198 = sphi 0, %s198
      %s200 = sphi 0, %s198
      %s201 = sphi 0, %s200
      %s215 = sphi 0, %s201
      %s219 = sphi 0, %s219
      %s221 = sphi 0, %s219
      %s222 = sphi 0, %s221
      %s236 = sphi 0, %s222
      %s240 = sphi 0, %s240
      %s242 = sphi 0, %s240
      %s243 = sphi 0, %s242
      %s257 = sphi 0, %s243
      %s261 = sphi 0, %s261
      %s263 = sphi 0, %s261
      %s264 = sphi 0, %s263
      %s278 = sphi 0, %s264
      %s282 = sphi 0, %s282
      %s284 = sphi 0, %s282
      %s285 = sphi 0, %s284
      %s299 = sphi 0, %s285
      %s303 = sphi 0, %s303
      %s305 = sphi 0, %s303
      %s306 = sphi 0, %s305
      %s320 = sphi 0, %s306
      %s324 = sphi 0, %s324
      %s326 = sphi 0, %s324
      %s327 = sphi 0, %s326
      %s341 = sphi 0, %s327
      %s345 = sphi 0, %s345
      %s347 = sphi 0, %s345
      %s348 = sphi 0, %s347
      %s362 = sphi 0, %s348
      %s366 = sphi 0, %s366
      %s368 = sphi 0, %s366
      %s369 = sphi 0, %s368
      %s383 = sphi 0, %s369
      %s387 = sphi 0, %s387
      %s389 = sphi 0, %s387
      %s390 = sphi 0, %s389
      %s404 = sphi 0, %s390
      %s408 = sphi 0, %s408
      %s410 = sphi 0, %s408
      %s411 = sphi 0, %s410
      %s425 = sphi 0, %s411
      %s429 = sphi 0, %s429
      %s431 = sphi 0, %s429
      %s432 = sphi 0, %s431
      %s446 = sphi 0, %s432
      %s450 = sphi 0, %s450
      %s452 = sphi 0, %s450
      %s453 = sphi 0, %s452
      %s467 = sphi 0, %s453
      %s471 = sphi 0, %s471
      %s473 = sphi 0, %s471
      %s474 = sphi 0, %s473
      %s488 = sphi 0, %s474
      %s492 = sphi 0, %s492
      %s494 = sphi 0, %s492
      %s495 = sphi 0, %s494
      %s509 = sphi 0, %s495
      %s513 = sphi 0, %s513
      %s515 = sphi 0, %s513
      %s516 = sphi 0, %s515
      %s530 = sphi 0, %s516
      %s534 = sphi 0, %s534
      %s536 = sphi 0, %s534
      %s537 = sphi 0, %s536
      %s551 = sphi 0, %s537
      %s557 = sphi 0, %s559
      %s560 = sphi 0, %s557
      %s561 = sphi 0, %s560
      %s577 = sphi 0, %s561
    $region4: #{forward.1} parent=1 // loop_header_branch
      %36 = sbr.rel (%p34) target = $region8
    $region5: #{forward.1} parent=1 // loop_body
      %s38 = ssub.s32 %s33, 1
      %s39 = ssub.s32 %s33, 2
      %s40 = sadd.s32 %s33, 1
      %s41 = ssub.s32 %s33, %s40
      %p42 = scmp.eq.s32.totalorder %s41, 0
      %s44 = sadd.s32 %s43, 1
      %s45 = scalar_select %p42, %s43, %s44
      %p48 = pneg %p42
      %p49 = scmp.eq.s32.totalorder %s33, 1
      %p50 = por %p48, %p49
      %p51 = scmp.ne.s32.totalorder %s43, %s46
      %p52 = scmp.eq.s32.totalorder %s33, 0
      %p53 = por %p51, %p52
      %p54 = scmp.ne.s32.totalorder %s43, %s46
      %p55 = scmp.eq.s32.totalorder %s38, 1
      %p56 = por %p54, %p55
      %p57 = scmp.ne.s32.totalorder %s46, %s47
      %p58 = scmp.eq.s32.totalorder %s38, 0
      %p59 = por %p57, %p58
      %p60 = scmp.ne.s32.totalorder %s46, %s47
      %p61 = scmp.eq.s32.totalorder %s39, 1
      %p62 = por %p60, %p61
      %p64 = scmp.ne.s32.totalorder %s47, %s63
      %p65 = scmp.eq.s32.totalorder %s39, 0
      %p66 = por %p64, %p65
      %s67 = ssub.s32 %s33, %s40
      %p68 = scmp.eq.s32.totalorder %s67, 0
      %s70 = sadd.s32 %s69, 1
      %s71 = scalar_select %p68, %s69, %s70
      %p74 = pneg %p68
      %p75 = scmp.eq.s32.totalorder %s33, 1
      %p76 = por %p74, %p75
      %p77 = scmp.ne.s32.totalorder %s69, %s72
      %p78 = scmp.eq.s32.totalorder %s33, 0
      %p79 = por %p77, %p78
      %p80 = scmp.ne.s32.totalorder %s69, %s72
      %p81 = scmp.eq.s32.totalorder %s38, 1
      %p82 = por %p80, %p81
      %p83 = scmp.ne.s32.totalorder %s72, %s73
      %p84 = scmp.eq.s32.totalorder %s38, 0
      %p85 = por %p83, %p84
      %p86 = scmp.ne.s32.totalorder %s72, %s73
      %p87 = scmp.eq.s32.totalorder %s39, 1
      %p88 = por %p86, %p87
      %p90 = scmp.ne.s32.totalorder %s73, %s89
      %p91 = scmp.eq.s32.totalorder %s39, 0
      %p92 = por %p90, %p91
      %s94 = sadd.s32 %s93, 1
      %p97 = scmp.eq.s32.totalorder %s33, 1
      %p98 = scmp.ne.s32.totalorder %s93, %s95
      %p99 = scmp.eq.s32.totalorder %s33, 0
      %p100 = por %p98, %p99
      %p101 = scmp.ne.s32.totalorder %s93, %s95
      %p102 = scmp.eq.s32.totalorder %s38, 1
      %p103 = por %p101, %p102
      %p104 = scmp.ne.s32.totalorder %s95, %s96
      %p105 = scmp.eq.s32.totalorder %s38, 0
      %p106 = por %p104, %p105
      %p107 = scmp.ne.s32.totalorder %s95, %s96
      %p108 = scmp.eq.s32.totalorder %s39, 1
      %p109 = por %p107, %p108
      %p111 = scmp.ne.s32.totalorder %s96, %s110
      %p112 = scmp.eq.s32.totalorder %s39, 0
      %p113 = por %p111, %p112
      %s115 = sadd.s32 %s114, 1
      %p118 = scmp.eq.s32.totalorder %s33, 1
      %p119 = scmp.ne.s32.totalorder %s114, %s116
      %p120 = scmp.eq.s32.totalorder %s33, 0
      %p121 = por %p119, %p120
      %p122 = scmp.ne.s32.totalorder %s114, %s116
      %p123 = scmp.eq.s32.totalorder %s38, 1
      %p124 = por %p122, %p123
      %p125 = scmp.ne.s32.totalorder %s116, %s117
      %p126 = scmp.eq.s32.totalorder %s38, 0
      %p127 = por %p125, %p126
      %p128 = scmp.ne.s32.totalorder %s116, %s117
      %p129 = scmp.eq.s32.totalorder %s39, 1
      %p130 = por %p128, %p129
      %p132 = scmp.ne.s32.totalorder %s117, %s131
      %p133 = scmp.eq.s32.totalorder %s39, 0
      %p134 = por %p132, %p133
      %s136 = sadd.s32 %s135, 1
      %p139 = scmp.eq.s32.totalorder %s33, 1
      %p140 = scmp.ne.s32.totalorder %s135, %s137
      %p141 = scmp.eq.s32.totalorder %s33, 0
      %p142 = por %p140, %p141
      %p143 = scmp.ne.s32.totalorder %s135, %s137
      %p144 = scmp.eq.s32.totalorder %s38, 1
      %p145 = por %p143, %p144
      %p146 = scmp.ne.s32.totalorder %s137, %s138
      %p147 = scmp.eq.s32.totalorder %s38, 0
      %p148 = por %p146, %p147
      %p149 = scmp.ne.s32.totalorder %s137, %s138
      %p150 = scmp.eq.s32.totalorder %s39, 1
      %p151 = por %p149, %p150
      %p153 = scmp.ne.s32.totalorder %s138, %s152
      %p154 = scmp.eq.s32.totalorder %s39, 0
      %p155 = por %p153, %p154
      %s157 = sadd.s32 %s156, 1
      %p160 = scmp.eq.s32.totalorder %s33, 1
      %p161 = scmp.ne.s32.totalorder %s156, %s158
      %p162 = scmp.eq.s32.totalorder %s33, 0
      %p163 = por %p161, %p162
      %p164 = scmp.ne.s32.totalorder %s156, %s158
      %p165 = scmp.eq.s32.totalorder %s38, 1
      %p166 = por %p164, %p165
      %p167 = scmp.ne.s32.totalorder %s158, %s159
      %p168 = scmp.eq.s32.totalorder %s38, 0
      %p169 = por %p167, %p168
      %p170 = scmp.ne.s32.totalorder %s158, %s159
      %p171 = scmp.eq.s32.totalorder %s39, 1
      %p172 = por %p170, %p171
      %p174 = scmp.ne.s32.totalorder %s159, %s173
      %p175 = scmp.eq.s32.totalorder %s39, 0
      %p176 = por %p174, %p175
      %s178 = sadd.s32 %s177, 1
      %p181 = scmp.eq.s32.totalorder %s33, 1
      %p182 = scmp.ne.s32.totalorder %s177, %s179
      %p183 = scmp.eq.s32.totalorder %s33, 0
      %p184 = por %p182, %p183
      %p185 = scmp.ne.s32.totalorder %s177, %s179
      %p186 = scmp.eq.s32.totalorder %s38, 1
      %p187 = por %p185, %p186
      %p188 = scmp.ne.s32.totalorder %s179, %s180
      %p189 = scmp.eq.s32.totalorder %s38, 0
      %p190 = por %p188, %p189
      %p191 = scmp.ne.s32.totalorder %s179, %s180
      %p192 = scmp.eq.s32.totalorder %s39, 1
      %p193 = por %p191, %p192
      %p195 = scmp.ne.s32.totalorder %s180, %s194
      %p196 = scmp.eq.s32.totalorder %s39, 0
      %p197 = por %p195, %p196
      %s199 = sadd.s32 %s198, 1
      %p202 = scmp.eq.s32.totalorder %s33, 1
      %p203 = scmp.ne.s32.totalorder %s198, %s200
      %p204 = scmp.eq.s32.totalorder %s33, 0
      %p205 = por %p203, %p204
      %p206 = scmp.ne.s32.totalorder %s198, %s200
      %p207 = scmp.eq.s32.totalorder %s38, 1
      %p208 = por %p206, %p207
      %p209 = scmp.ne.s32.totalorder %s200, %s201
      %p210 = scmp.eq.s32.totalorder %s38, 0
      %p211 = por %p209, %p210
      %p212 = scmp.ne.s32.totalorder %s200, %s201
      %p213 = scmp.eq.s32.totalorder %s39, 1
      %p214 = por %p212, %p213
      %p216 = scmp.ne.s32.totalorder %s201, %s215
      %p217 = scmp.eq.s32.totalorder %s39, 0
      %p218 = por %p216, %p217
      %s220 = sadd.s32 %s219, 1
      %p223 = scmp.eq.s32.totalorder %s33, 1
      %p224 = scmp.ne.s32.totalorder %s219, %s221
      %p225 = scmp.eq.s32.totalorder %s33, 0
      %p226 = por %p224, %p225
      %p227 = scmp.ne.s32.totalorder %s219, %s221
      %p228 = scmp.eq.s32.totalorder %s38, 1
      %p229 = por %p227, %p228
      %p230 = scmp.ne.s32.totalorder %s221, %s222
      %p231 = scmp.eq.s32.totalorder %s38, 0
      %p232 = por %p230, %p231
      %p233 = scmp.ne.s32.totalorder %s221, %s222
      %p234 = scmp.eq.s32.totalorder %s39, 1
      %p235 = por %p233, %p234
      %p237 = scmp.ne.s32.totalorder %s222, %s236
      %p238 = scmp.eq.s32.totalorder %s39, 0
      %p239 = por %p237, %p238
      %s241 = sadd.s32 %s240, 1
      %p244 = scmp.eq.s32.totalorder %s33, 1
      %p245 = scmp.ne.s32.totalorder %s240, %s242
      %p246 = scmp.eq.s32.totalorder %s33, 0
      %p247 = por %p245, %p246
      %p248 = scmp.ne.s32.totalorder %s240, %s242
      %p249 = scmp.eq.s32.totalorder %s38, 1
      %p250 = por %p248, %p249
      %p251 = scmp.ne.s32.totalorder %s242, %s243
      %p252 = scmp.eq.s32.totalorder %s38, 0
      %p253 = por %p251, %p252
      %p254 = scmp.ne.s32.totalorder %s242, %s243
      %p255 = scmp.eq.s32.totalorder %s39, 1
      %p256 = por %p254, %p255
      %p258 = scmp.ne.s32.totalorder %s243, %s257
      %p259 = scmp.eq.s32.totalorder %s39, 0
      %p260 = por %p258, %p259
      %s262 = sadd.s32 %s261, 1
      %p265 = scmp.eq.s32.totalorder %s33, 1
      %p266 = scmp.ne.s32.totalorder %s261, %s263
      %p267 = scmp.eq.s32.totalorder %s33, 0
      %p268 = por %p266, %p267
      %p269 = scmp.ne.s32.totalorder %s261, %s263
      %p270 = scmp.eq.s32.totalorder %s38, 1
      %p271 = por %p269, %p270
      %p272 = scmp.ne.s32.totalorder %s263, %s264
      %p273 = scmp.eq.s32.totalorder %s38, 0
      %p274 = por %p272, %p273
      %p275 = scmp.ne.s32.totalorder %s263, %s264
      %p276 = scmp.eq.s32.totalorder %s39, 1
      %p277 = por %p275, %p276
      %p279 = scmp.ne.s32.totalorder %s264, %s278
      %p280 = scmp.eq.s32.totalorder %s39, 0
      %p281 = por %p279, %p280
      %s283 = sadd.s32 %s282, 1
      %p286 = scmp.eq.s32.totalorder %s33, 1
      %p287 = scmp.ne.s32.totalorder %s282, %s284
      %p288 = scmp.eq.s32.totalorder %s33, 0
      %p289 = por %p287, %p288
      %p290 = scmp.ne.s32.totalorder %s282, %s284
      %p291 = scmp.eq.s32.totalorder %s38, 1
      %p292 = por %p290, %p291
      %p293 = scmp.ne.s32.totalorder %s284, %s285
      %p294 = scmp.eq.s32.totalorder %s38, 0
      %p295 = por %p293, %p294
      %p296 = scmp.ne.s32.totalorder %s284, %s285
      %p297 = scmp.eq.s32.totalorder %s39, 1
      %p298 = por %p296, %p297
      %p300 = scmp.ne.s32.totalorder %s285, %s299
      %p301 = scmp.eq.s32.totalorder %s39, 0
      %p302 = por %p300, %p301
      %s304 = sadd.s32 %s303, 1
      %p307 = scmp.eq.s32.totalorder %s33, 1
      %p308 = scmp.ne.s32.totalorder %s303, %s305
      %p309 = scmp.eq.s32.totalorder %s33, 0
      %p310 = por %p308, %p309
      %p311 = scmp.ne.s32.totalorder %s303, %s305
      %p312 = scmp.eq.s32.totalorder %s38, 1
      %p313 = por %p311, %p312
      %p314 = scmp.ne.s32.totalorder %s305, %s306
      %p315 = scmp.eq.s32.totalorder %s38, 0
      %p316 = por %p314, %p315
      %p317 = scmp.ne.s32.totalorder %s305, %s306
      %p318 = scmp.eq.s32.totalorder %s39, 1
      %p319 = por %p317, %p318
      %p321 = scmp.ne.s32.totalorder %s306, %s320
      %p322 = scmp.eq.s32.totalorder %s39, 0
      %p323 = por %p321, %p322
      %s325 = sadd.s32 %s324, 1
      %p328 = scmp.eq.s32.totalorder %s33, 1
      %p329 = scmp.ne.s32.totalorder %s324, %s326
      %p330 = scmp.eq.s32.totalorder %s33, 0
      %p331 = por %p329, %p330
      %p332 = scmp.ne.s32.totalorder %s324, %s326
      %p333 = scmp.eq.s32.totalorder %s38, 1
      %p334 = por %p332, %p333
      %p335 = scmp.ne.s32.totalorder %s326, %s327
      %p336 = scmp.eq.s32.totalorder %s38, 0
      %p337 = por %p335, %p336
      %p338 = scmp.ne.s32.totalorder %s326, %s327
      %p339 = scmp.eq.s32.totalorder %s39, 1
      %p340 = por %p338, %p339
      %p342 = scmp.ne.s32.totalorder %s327, %s341
      %p343 = scmp.eq.s32.totalorder %s39, 0
      %p344 = por %p342, %p343
      %s346 = sadd.s32 %s345, 1
      %p349 = scmp.eq.s32.totalorder %s33, 1
      %p350 = scmp.ne.s32.totalorder %s345, %s347
      %p351 = scmp.eq.s32.totalorder %s33, 0
      %p352 = por %p350, %p351
      %p353 = scmp.ne.s32.totalorder %s345, %s347
      %p354 = scmp.eq.s32.totalorder %s38, 1
      %p355 = por %p353, %p354
      %p356 = scmp.ne.s32.totalorder %s347, %s348
      %p357 = scmp.eq.s32.totalorder %s38, 0
      %p358 = por %p356, %p357
      %p359 = scmp.ne.s32.totalorder %s347, %s348
      %p360 = scmp.eq.s32.totalorder %s39, 1
      %p361 = por %p359, %p360
      %p363 = scmp.ne.s32.totalorder %s348, %s362
      %p364 = scmp.eq.s32.totalorder %s39, 0
      %p365 = por %p363, %p364
      %s367 = sadd.s32 %s366, 1
      %p370 = scmp.eq.s32.totalorder %s33, 1
      %p371 = scmp.ne.s32.totalorder %s366, %s368
      %p372 = scmp.eq.s32.totalorder %s33, 0
      %p373 = por %p371, %p372
      %p374 = scmp.ne.s32.totalorder %s366, %s368
      %p375 = scmp.eq.s32.totalorder %s38, 1
      %p376 = por %p374, %p375
      %p377 = scmp.ne.s32.totalorder %s368, %s369
      %p378 = scmp.eq.s32.totalorder %s38, 0
      %p379 = por %p377, %p378
      %p380 = scmp.ne.s32.totalorder %s368, %s369
      %p381 = scmp.eq.s32.totalorder %s39, 1
      %p382 = por %p380, %p381
      %p384 = scmp.ne.s32.totalorder %s369, %s383
      %p385 = scmp.eq.s32.totalorder %s39, 0
      %p386 = por %p384, %p385
      %s388 = sadd.s32 %s387, 1
      %p391 = scmp.eq.s32.totalorder %s33, 1
      %p392 = scmp.ne.s32.totalorder %s387, %s389
      %p393 = scmp.eq.s32.totalorder %s33, 0
      %p394 = por %p392, %p393
      %p395 = scmp.ne.s32.totalorder %s387, %s389
      %p396 = scmp.eq.s32.totalorder %s38, 1
      %p397 = por %p395, %p396
      %p398 = scmp.ne.s32.totalorder %s389, %s390
      %p399 = scmp.eq.s32.totalorder %s38, 0
      %p400 = por %p398, %p399
      %p401 = scmp.ne.s32.totalorder %s389, %s390
      %p402 = scmp.eq.s32.totalorder %s39, 1
      %p403 = por %p401, %p402
      %p405 = scmp.ne.s32.totalorder %s390, %s404
      %p406 = scmp.eq.s32.totalorder %s39, 0
      %p407 = por %p405, %p406
      %s409 = sadd.s32 %s408, 1
      %p412 = scmp.eq.s32.totalorder %s33, 1
      %p413 = scmp.ne.s32.totalorder %s408, %s410
      %p414 = scmp.eq.s32.totalorder %s33, 0
      %p415 = por %p413, %p414
      %p416 = scmp.ne.s32.totalorder %s408, %s410
      %p417 = scmp.eq.s32.totalorder %s38, 1
      %p418 = por %p416, %p417
      %p419 = scmp.ne.s32.totalorder %s410, %s411
      %p420 = scmp.eq.s32.totalorder %s38, 0
      %p421 = por %p419, %p420
      %p422 = scmp.ne.s32.totalorder %s410, %s411
      %p423 = scmp.eq.s32.totalorder %s39, 1
      %p424 = por %p422, %p423
      %p426 = scmp.ne.s32.totalorder %s411, %s425
      %p427 = scmp.eq.s32.totalorder %s39, 0
      %p428 = por %p426, %p427
      %s430 = sadd.s32 %s429, 1
      %p433 = scmp.eq.s32.totalorder %s33, 1
      %p434 = scmp.ne.s32.totalorder %s429, %s431
      %p435 = scmp.eq.s32.totalorder %s33, 0
      %p436 = por %p434, %p435
      %p437 = scmp.ne.s32.totalorder %s429, %s431
      %p438 = scmp.eq.s32.totalorder %s38, 1
      %p439 = por %p437, %p438
      %p440 = scmp.ne.s32.totalorder %s431, %s432
      %p441 = scmp.eq.s32.totalorder %s38, 0
      %p442 = por %p440, %p441
      %p443 = scmp.ne.s32.totalorder %s431, %s432
      %p444 = scmp.eq.s32.totalorder %s39, 1
      %p445 = por %p443, %p444
      %p447 = scmp.ne.s32.totalorder %s432, %s446
      %p448 = scmp.eq.s32.totalorder %s39, 0
      %p449 = por %p447, %p448
      %s451 = sadd.s32 %s450, 1
      %p454 = scmp.eq.s32.totalorder %s33, 1
      %p455 = scmp.ne.s32.totalorder %s450, %s452
      %p456 = scmp.eq.s32.totalorder %s33, 0
      %p457 = por %p455, %p456
      %p458 = scmp.ne.s32.totalorder %s450, %s452
      %p459 = scmp.eq.s32.totalorder %s38, 1
      %p460 = por %p458, %p459
      %p461 = scmp.ne.s32.totalorder %s452, %s453
      %p462 = scmp.eq.s32.totalorder %s38, 0
      %p463 = por %p461, %p462
      %p464 = scmp.ne.s32.totalorder %s452, %s453
      %p465 = scmp.eq.s32.totalorder %s39, 1
      %p466 = por %p464, %p465
      %p468 = scmp.ne.s32.totalorder %s453, %s467
      %p469 = scmp.eq.s32.totalorder %s39, 0
      %p470 = por %p468, %p469
      %s472 = sadd.s32 %s471, 1
      %p475 = scmp.eq.s32.totalorder %s33, 1
      %p476 = scmp.ne.s32.totalorder %s471, %s473
      %p477 = scmp.eq.s32.totalorder %s33, 0
      %p478 = por %p476, %p477
      %p479 = scmp.ne.s32.totalorder %s471, %s473
      %p480 = scmp.eq.s32.totalorder %s38, 1
      %p481 = por %p479, %p480
      %p482 = scmp.ne.s32.totalorder %s473, %s474
      %p483 = scmp.eq.s32.totalorder %s38, 0
      %p484 = por %p482, %p483
      %p485 = scmp.ne.s32.totalorder %s473, %s474
      %p486 = scmp.eq.s32.totalorder %s39, 1
      %p487 = por %p485, %p486
      %p489 = scmp.ne.s32.totalorder %s474, %s488
      %p490 = scmp.eq.s32.totalorder %s39, 0
      %p491 = por %p489, %p490
      %s493 = sadd.s32 %s492, 1
      %p496 = scmp.eq.s32.totalorder %s33, 1
      %p497 = scmp.ne.s32.totalorder %s492, %s494
      %p498 = scmp.eq.s32.totalorder %s33, 0
      %p499 = por %p497, %p498
      %p500 = scmp.ne.s32.totalorder %s492, %s494
      %p501 = scmp.eq.s32.totalorder %s38, 1
      %p502 = por %p500, %p501
      %p503 = scmp.ne.s32.totalorder %s494, %s495
      %p504 = scmp.eq.s32.totalorder %s38, 0
      %p505 = por %p503, %p504
      %p506 = scmp.ne.s32.totalorder %s494, %s495
      %p507 = scmp.eq.s32.totalorder %s39, 1
      %p508 = por %p506, %p507
      %p510 = scmp.ne.s32.totalorder %s495, %s509
      %p511 = scmp.eq.s32.totalorder %s39, 0
      %p512 = por %p510, %p511
      %s514 = sadd.s32 %s513, 1
      %p517 = scmp.eq.s32.totalorder %s33, 1
      %p518 = scmp.ne.s32.totalorder %s513, %s515
      %p519 = scmp.eq.s32.totalorder %s33, 0
      %p520 = por %p518, %p519
      %p521 = scmp.ne.s32.totalorder %s513, %s515
      %p522 = scmp.eq.s32.totalorder %s38, 1
      %p523 = por %p521, %p522
      %p524 = scmp.ne.s32.totalorder %s515, %s516
      %p525 = scmp.eq.s32.totalorder %s38, 0
      %p526 = por %p524, %p525
      %p527 = scmp.ne.s32.totalorder %s515, %s516
      %p528 = scmp.eq.s32.totalorder %s39, 1
      %p529 = por %p527, %p528
      %p531 = scmp.ne.s32.totalorder %s516, %s530
      %p532 = scmp.eq.s32.totalorder %s39, 0
      %p533 = por %p531, %p532
      %s535 = sadd.s32 %s534, 1
      %p538 = scmp.eq.s32.totalorder %s33, 1
      %p539 = scmp.ne.s32.totalorder %s534, %s536
      %p540 = scmp.eq.s32.totalorder %s33, 0
      %p541 = por %p539, %p540
      %p542 = scmp.ne.s32.totalorder %s534, %s536
      %p543 = scmp.eq.s32.totalorder %s38, 1
      %p544 = por %p542, %p543
      %p545 = scmp.ne.s32.totalorder %s536, %s537
      %p546 = scmp.eq.s32.totalorder %s38, 0
      %p547 = por %p545, %p546
      %p548 = scmp.ne.s32.totalorder %s536, %s537
      %p549 = scmp.eq.s32.totalorder %s39, 1
      %p550 = por %p548, %p549
      %p552 = scmp.ne.s32.totalorder %s537, %s551
      %p553 = scmp.eq.s32.totalorder %s39, 0
      %p554 = por %p552, %p553
      %s555 = ssub.s32 %s33, %s40
      %p556 = scmp.eq.s32.totalorder %s555, 0
      %s558 = sadd.s32 %s557, 1
      %s559 = scalar_select %p556, %s557, %s558
      %p562 = pneg %p556
      %p563 = scmp.eq.s32.totalorder %s33, 1
      %p564 = por %p562, %p563
      %p565 = scmp.ne.s32.totalorder %s557, %s560
      %p566 = scmp.eq.s32.totalorder %s33, 0
      %p567 = por %p565, %p566
      %p568 = scmp.ne.s32.totalorder %s557, %s560
      %p569 = scmp.eq.s32.totalorder %s38, 1
      %p570 = por %p568, %p569
      %p571 = scmp.ne.s32.totalorder %s560, %s561
      %p572 = scmp.eq.s32.totalorder %s38, 0
      %p573 = por %p571, %p572
      %p574 = scmp.ne.s32.totalorder %s560, %s561
      %p575 = scmp.eq.s32.totalorder %s39, 1
      %p576 = por %p574, %p575
      %p578 = scmp.ne.s32.totalorder %s561, %s577
      %p579 = scmp.eq.s32.totalorder %s39, 0
      %p580 = por %p578, %p579
      %p581 = scmp.le.s32.totalorder 1, %s33
      %p582 = scmp.lt.s32.totalorder %s33, 3
      %p583 = pnand %p581, %p582
      %p584 = pneg %p583
      // Predicated region
      $region9: #{forward.1} parent=5 // pred_check
        _
      $region10: #{forward.1} parent=5 // pred_check_branch
        %586 = sbr.rel (%p583) target = $region12
      $region11: #{forward.1} parent=5 // pred_region
        %s587 = ssub.s32 %s33, 1
        // Predicated region
        $region13: #{forward.1} parent=11 // pred_check
          %p588 = pneg %p106
        $region14: #{forward.1} parent=11 // pred_check_branch
          %590 = sbr.rel (%p588) target = $region16
        $region15: #{forward.1} parent=11 // pred_region
          _
        $region16: #{forward.1} parent=11 // pred_fallthru
          _
        // Predicated region
        $region17: #{forward.1} parent=11 // pred_check
          %p591 = pneg %p127
        $region18: #{forward.1} parent=11 // pred_check_branch
          %593 = sbr.rel (%p591) target = $region20
        $region19: #{forward.1} parent=11 // pred_region
          _
        $region20: #{forward.1} parent=11 // pred_fallthru
          _
        // Predicated region
        $region21: #{forward.1} parent=11 // pred_check
          %p594 = pneg %p148
        $region22: #{forward.1} parent=11 // pred_check_branch
          %596 = sbr.rel (%p594) target = $region24
        $region23: #{forward.1} parent=11 // pred_region
          _
        $region24: #{forward.1} parent=11 // pred_fallthru
          _
        // Predicated region
        $region25: #{forward.1} parent=11 // pred_check
          %p597 = pneg %p169
        $region26: #{forward.1} parent=11 // pred_check_branch
          %599 = sbr.rel (%p597) target = $region28
        $region27: #{forward.1} parent=11 // pred_region
          _
        $region28: #{forward.1} parent=11 // pred_fallthru
          _
        // Predicated region
        $region29: #{forward.1} parent=11 // pred_check
          %p600 = pneg %p190
        $region30: #{forward.1} parent=11 // pred_check_branch
          %602 = sbr.rel (%p600) target = $region32
        $region31: #{forward.1} parent=11 // pred_region
          _
        $region32: #{forward.1} parent=11 // pred_fallthru
          _
        // Predicated region
        $region33: #{forward.1} parent=11 // pred_check
          %p603 = pneg %p211
        $region34: #{forward.1} parent=11 // pred_check_branch
          %605 = sbr.rel (%p603) target = $region36
        $region35: #{forward.1} parent=11 // pred_region
          _
        $region36: #{forward.1} parent=11 // pred_fallthru
          _
        // Predicated region
        $region37: #{forward.1} parent=11 // pred_check
          %p606 = pneg %p232
        $region38: #{forward.1} parent=11 // pred_check_branch
          %608 = sbr.rel (%p606) target = $region40
        $region39: #{forward.1} parent=11 // pred_region
          _
        $region40: #{forward.1} parent=11 // pred_fallthru
          _
        // Predicated region
        $region41: #{forward.1} parent=11 // pred_check
          %p609 = pneg %p253
        $region42: #{forward.1} parent=11 // pred_check_branch
          %611 = sbr.rel (%p609) target = $region44
        $region43: #{forward.1} parent=11 // pred_region
          _
        $region44: #{forward.1} parent=11 // pred_fallthru
          _
        // Predicated region
        $region45: #{forward.1} parent=11 // pred_check
          %p612 = pneg %p274
        $region46: #{forward.1} parent=11 // pred_check_branch
          %614 = sbr.rel (%p612) target = $region48
        $region47: #{forward.1} parent=11 // pred_region
          _
        $region48: #{forward.1} parent=11 // pred_fallthru
          _
        // Predicated region
        $region49: #{forward.1} parent=11 // pred_check
          %p615 = pneg %p295
        $region50: #{forward.1} parent=11 // pred_check_branch
          %617 = sbr.rel (%p615) target = $region52
        $region51: #{forward.1} parent=11 // pred_region
          _
        $region52: #{forward.1} parent=11 // pred_fallthru
          _
        // Predicated region
        $region53: #{forward.1} parent=11 // pred_check
          %p618 = pneg %p316
        $region54: #{forward.1} parent=11 // pred_check_branch
          %620 = sbr.rel (%p618) target = $region56
        $region55: #{forward.1} parent=11 // pred_region
          _
        $region56: #{forward.1} parent=11 // pred_fallthru
          _
        // Predicated region
        $region57: #{forward.1} parent=11 // pred_check
          %p621 = pneg %p337
        $region58: #{forward.1} parent=11 // pred_check_branch
          %623 = sbr.rel (%p621) target = $region60
        $region59: #{forward.1} parent=11 // pred_region
          _
        $region60: #{forward.1} parent=11 // pred_fallthru
          _
        // Predicated region
        $region61: #{forward.1} parent=11 // pred_check
          %p624 = pneg %p358
        $region62: #{forward.1} parent=11 // pred_check_branch
          %626 = sbr.rel (%p624) target = $region64
        $region63: #{forward.1} parent=11 // pred_region
          _
        $region64: #{forward.1} parent=11 // pred_fallthru
          _
        // Predicated region
        $region65: #{forward.1} parent=11 // pred_check
          %p627 = pneg %p379
        $region66: #{forward.1} parent=11 // pred_check_branch
          %629 = sbr.rel (%p627) target = $region68
        $region67: #{forward.1} parent=11 // pred_region
          _
        $region68: #{forward.1} parent=11 // pred_fallthru
          _
        // Predicated region
        $region69: #{forward.1} parent=11 // pred_check
          %p630 = pneg %p400
        $region70: #{forward.1} parent=11 // pred_check_branch
          %632 = sbr.rel (%p630) target = $region72
        $region71: #{forward.1} parent=11 // pred_region
          _
        $region72: #{forward.1} parent=11 // pred_fallthru
          _
        // Predicated region
        $region73: #{forward.1} parent=11 // pred_check
          %p633 = pneg %p421
        $region74: #{forward.1} parent=11 // pred_check_branch
          %635 = sbr.rel (%p633) target = $region76
        $region75: #{forward.1} parent=11 // pred_region
          _
        $region76: #{forward.1} parent=11 // pred_fallthru
          _
        // Predicated region
        $region77: #{forward.1} parent=11 // pred_check
          %p636 = pneg %p442
        $region78: #{forward.1} parent=11 // pred_check_branch
          %638 = sbr.rel (%p636) target = $region80
        $region79: #{forward.1} parent=11 // pred_region
          _
        $region80: #{forward.1} parent=11 // pred_fallthru
          _
        // Predicated region
        $region81: #{forward.1} parent=11 // pred_check
          %p639 = pneg %p463
        $region82: #{forward.1} parent=11 // pred_check_branch
          %641 = sbr.rel (%p639) target = $region84
        $region83: #{forward.1} parent=11 // pred_region
          _
        $region84: #{forward.1} parent=11 // pred_fallthru
          _
        // Predicated region
        $region85: #{forward.1} parent=11 // pred_check
          %p642 = pneg %p484
        $region86: #{forward.1} parent=11 // pred_check_branch
          %644 = sbr.rel (%p642) target = $region88
        $region87: #{forward.1} parent=11 // pred_region
          _
        $region88: #{forward.1} parent=11 // pred_fallthru
          _
        // Predicated region
        $region89: #{forward.1} parent=11 // pred_check
          %p645 = pneg %p505
        $region90: #{forward.1} parent=11 // pred_check_branch
          %647 = sbr.rel (%p645) target = $region92
        $region91: #{forward.1} parent=11 // pred_region
          _
        $region92: #{forward.1} parent=11 // pred_fallthru
          _
        // Predicated region
        $region93: #{forward.1} parent=11 // pred_check
          %p648 = pneg %p526
        $region94: #{forward.1} parent=11 // pred_check_branch
          %650 = sbr.rel (%p648) target = $region96
        $region95: #{forward.1} parent=11 // pred_region
          _
        $region96: #{forward.1} parent=11 // pred_fallthru
          _
        // Predicated region
        $region97: #{forward.1} parent=11 // pred_check
          %p651 = pneg %p547
        $region98: #{forward.1} parent=11 // pred_check_branch
          %653 = sbr.rel (%p651) target = $region100
        $region99: #{forward.1} parent=11 // pred_region
          _
        $region100: #{forward.1} parent=11 // pred_fallthru
          _
      $region12: #{forward.1} parent=5 // pred_fallthru
        _
      %p654 = scmp.lt.s32.totalorder %s33, 2
      // Predicated region
      $region101: #{forward.1} parent=5 // pred_check
        %p655 = pneg %p654
      $region102: #{forward.1} parent=5 // pred_check_branch
        %657 = sbr.rel (%p655) target = $region104
      $region103: #{forward.1} parent=5 // pred_region
        // Predicated region
        $region105: #{forward.1} parent=103 // pred_check
          %p658 = pneg %p53
        $region106: #{forward.1} parent=103 // pred_check_branch
          %660 = sbr.rel (%p658) target = $region108
        $region107: #{forward.1} parent=103 // pred_region
          %s661 = smul.u32 8, %s33
          %p662 = scmp.lt.s32.totalorder %s661, 15
          %s663 = scalar_select %p662, %s661, 15
          %s664 = smul.addr %s663, 4
          %s665 = scalar_lea.vmem %s0, %s664
          %s666 = smul.u32 8, %s33
        $region108: #{forward.1} parent=103 // pred_fallthru
          _
        // Predicated region
        $region109: #{forward.1} parent=103 // pred_check
          %p667 = pneg %p79
        $region110: #{forward.1} parent=103 // pred_check_branch
          %669 = sbr.rel (%p667) target = $region112
        $region111: #{forward.1} parent=103 // pred_region
          %p670 = scmp.lt.s32.totalorder %s33, 1
          %s671 = scalar_select %p670, %s33, 1
          %s672 = scalar_lea.vmem %s1, %s671
        $region112: #{forward.1} parent=103 // pred_fallthru
          _
      $region104: #{forward.1} parent=5 // pred_fallthru
        _
      %p673 = scmp.le.s32.totalorder 1, %s33
      %p674 = scmp.lt.s32.totalorder %s33, 3
      %p675 = pnand %p673, %p674
      %p676 = pneg %p675
      // Predicated region
      $region113: #{forward.1} parent=5 // pred_check
        _
      $region114: #{forward.1} parent=5 // pred_check_branch
        %678 = sbr.rel (%p675) target = $region116
      $region115: #{forward.1} parent=5 // pred_region
        %s679 = ssub.s32 %s33, 1
        %s680 = smul.u32 8, %s38
        %p681 = scmp.lt.s32.totalorder %s680, 15
        %s682 = scalar_select %p681, %s680, 15
        %s683 = smul.addr %s682, 4
        %s684 = scalar_lea.vmem %s0, %s683
        %p685 = pneg %p59
        %p686 = pneg %p56
        %p687 = scmp.lt.s32.totalorder %s38, 1
        %s688 = scalar_select %p687, %s38, 1
        %s689 = scalar_lea.vmem %s1, %s688
        %p690 = pneg %p85
        %p691 = pneg %p82
        %p692 = pneg %p106
        %p693 = pneg %p103
        %p694 = pneg %p127
        %p695 = pneg %p124
        %p696 = pneg %p148
        %p697 = pneg %p145
        %p698 = pneg %p169
        %p699 = pneg %p166
        %p700 = pneg %p190
        %p701 = pneg %p187
        %p702 = pneg %p211
        %p703 = pneg %p208
        %p704 = pneg %p232
        %p705 = pneg %p229
        %p706 = pneg %p253
        %p707 = pneg %p250
        %p708 = pneg %p274
        %p709 = pneg %p271
        %p710 = pneg %p295
        %p711 = pneg %p292
        %p712 = pneg %p316
        %p713 = pneg %p313
        %p714 = pneg %p337
        %p715 = pneg %p334
        %p716 = pneg %p358
        %p717 = pneg %p355
        %p718 = pneg %p379
        %p719 = pneg %p376
        %p720 = pneg %p400
        %p721 = pneg %p397
        %p722 = pneg %p421
        %p723 = pneg %p418
        %p724 = pneg %p442
        %p725 = pneg %p439
        %p726 = pneg %p463
        %p727 = pneg %p460
        %p728 = pneg %p484
        %p729 = pneg %p481
        %p730 = pneg %p505
        %p731 = pneg %p502
        %p732 = pneg %p526
        %p733 = pneg %p523
        %p734 = pneg %p547
        %p735 = pneg %p544
        %p736 = pneg %p573
        %p737 = pneg %p570
        %s738 = sand.u32 %s560, 1
        %s739 = scalar_lea.sflag [#allocation12], %s738
        %s740 = sand.u32 %s560, 1
        %s741 = scalar_lea.vmem [#allocation11], %s740
        %s742 = smul.u32 8, %s38
        %p743 = scmp.lt.s32.totalorder %s742, 15
        %s744 = scalar_select %p743, %s742, 15
        %s745 = smul.addr %s744, 4
        %s746 = scalar_lea.vmem %s0, %s745
        %s747 = smul.u32 8, %s38
        %p748 = scmp.lt.s32.totalorder %s38, 1
        %s749 = scalar_select %p748, %s38, 1
        %s750 = scalar_lea.vmem %s1, %s749
        %752 = vst [vmem:[#allocation3] sm:$0xff] 0.0
        %753 = vst [vmem:[#allocation3 + $0x8] sm:$0xff] 0.0
        %754 = vst [vmem:[#allocation3 + $0x10] sm:$0xff] 0.0
        %755 = vst [vmem:[#allocation3 + $0x18] sm:$0xff] 0.0
        %756 = vst [vmem:[#allocation3 + $0x20] sm:$0xff] 0.0
        %757 = vst [vmem:[#allocation3 + $0x28] sm:$0xff] 0.0
        %758 = vst [vmem:[#allocation3 + $0x30] sm:$0xff] 0.0
        %759 = vst [vmem:[#allocation3 + $0x38] sm:$0xff] 0.0
        %760 = vst [vmem:[#allocation3 + $0x40] sm:$0xff] 0.0
        %761 = vst [vmem:[#allocation3 + $0x48] sm:$0xff] 0.0
        %762 = vst [vmem:[#allocation3 + $0x50] sm:$0xff] 0.0
        %763 = vst [vmem:[#allocation3 + $0x58] sm:$0xff] 0.0
        %764 = vst [vmem:[#allocation3 + $0x60] sm:$0xff] 0.0
        %765 = vst [vmem:[#allocation4] sm:$0xff] 0.0
        %766 = vst [vmem:[#allocation4 + $0x8] sm:$0xff] 0.0
        %767 = vst [vmem:[#allocation4 + $0x10] sm:$0xff] 0.0
        %768 = vst [vmem:[#allocation4 + $0x18] sm:$0xff] 0.0
        %769 = vst [vmem:[#allocation4 + $0x20] sm:$0xff] 0.0
        %770 = vst [vmem:[#allocation4 + $0x28] sm:$0xff] 0.0
        %771 = vst [vmem:[#allocation4 + $0x30] sm:$0xff] 0.0
        %772 = vst [vmem:[#allocation4 + $0x38] sm:$0xff] 0.0
        %773 = vst [vmem:[#allocation4 + $0x40] sm:$0xff] 0.0
        %774 = vst [vmem:[#allocation4 + $0x48] sm:$0xff] 0.0
        %775 = vst [vmem:[#allocation4 + $0x50] sm:$0xff] 0.0
        %776 = vst [vmem:[#allocation4 + $0x58] sm:$0xff] 0.0
        %777 = vst [vmem:[#allocation4 + $0x60] sm:$0xff] 0.0
        %778 = vst [vmem:[#allocation5] sm:$0xff] 0.0
        %779 = vst [vmem:[#allocation5 + $0x8] sm:$0xff] 0.0
        %780 = vst [vmem:[#allocation5 + $0x10] sm:$0xff] 0.0
        %781 = vst [vmem:[#allocation5 + $0x18] sm:$0xff] 0.0
        %782 = vst [vmem:[#allocation5 + $0x20] sm:$0xff] 0.0
        %783 = vst [vmem:[#allocation6] sm:$0xff] 0.0
        %784 = vst [vmem:[#allocation6 + $0x8] sm:$0xff] 0.0
        %785 = vst [vmem:[#allocation6 + $0x10] sm:$0xff] 0.0
        %786 = vst [vmem:[#allocation6 + $0x18] sm:$0xff] 0.0
        %787 = vst [vmem:[#allocation6 + $0x20] sm:$0xff] 0.0
        %788 = vst [vmem:[#allocation7] sm:$0xff] 0.0
        %789 = vst [vmem:[#allocation7 + $0x8] sm:$0xff] 0.0
        %790 = vst [vmem:[#allocation8] sm:$0xff] 0.0
        %791 = vst [vmem:[#allocation8 + $0x8] sm:$0xff] 0.0
        %792 = vst [vmem:[#allocation9] sm:$0xff] 0.0
        %793 = vst [vmem:[#allocation9 + $0x8] sm:$0xff] 0.0
        %794 = vst [vmem:[#allocation10] sm:$0xff] 0.0
        %795 = vst [vmem:[#allocation10 + $0x8] sm:$0xff] 0.0
        %v796 = vld [vmem:[%s746] sm:$0xf]
        %v797 = vld [vmem:[%s746 + $0x4] sm:$0xf]
        %v798 = vld [vmem:[%s746 + $0x8] sm:$0xf]
        %v799 = vld [vmem:[%s746 + $0xc] sm:$0xf]
        %v800 = vld [vmem:[%s746 + $0x10] sm:$0xf]
        %v801 = vld [vmem:[%s746 + $0x14] sm:$0xf]
        %v802 = vld [vmem:[%s746 + $0x18] sm:$0xf]
        %v803 = vld [vmem:[%s746 + $0x1c] sm:$0xf]
        %v804 = vld [vmem:[%s2] sm:$0xf]
        %v805 = vld [vmem:[%s2 + $0x4] sm:$0xf]
        %v806 = vld [vmem:[%s2 + $0x8] sm:$0xf]
        %v807 = vld [vmem:[%s2 + $0xc] sm:$0xf]
        %v808 = vld [vmem:[%s2 + $0x10] sm:$0xf]
        %v809 = vld [vmem:[%s2 + $0x14] sm:$0xf]
        %v810 = vld [vmem:[%s2 + $0x18] sm:$0xf]
        %v811 = vld [vmem:[%s2 + $0x1c] sm:$0xf]
        %v812 = vld [vmem:[%s2 + $0x20] sm:$0xf]
        %v813 = vld [vmem:[%s2 + $0x24] sm:$0xf]
        %v814 = vld [vmem:[%s2 + $0x28] sm:$0xf]
        %v815 = vld [vmem:[%s2 + $0x2c] sm:$0xf]
        %v816 = vld [vmem:[%s2 + $0x30] sm:$0xf]
        %v817 = vld [vmem:[%s2 + $0x34] sm:$0xf]
        %v818 = vld [vmem:[%s2 + $0x38] sm:$0xf]
        %v819 = vld [vmem:[%s2 + $0x3c] sm:$0xf]
        %v820 = vld [vmem:[%s11] sm:$0x1]
        %v822 = vlaneseq
        %v823 = vshrl.u32 %v822, 7
        %v824 = vsub.s32 0, %v823
        %v825 = vrot.slane %v820, %v824
        %v835 = vunpack.c.l.b16 %v796
        %v836 = vunpack.c.l.b16 %v797
        %v837 = vunpack.c.l.b16 %v798
        %v838 = vunpack.c.l.b16 %v799
        %v839 = vunpack.c.l.b16 %v800
        %v840 = vunpack.c.l.b16 %v801
        %v841 = vunpack.c.l.b16 %v802
        %v842 = vunpack.c.l.b16 %v803
        %v843 = vpack.c.b16 %v836, %v835
        %v844 = vpack.c.b16 %v838, %v837
        %v845 = vpack.c.b16 %v840, %v839
        %v846 = vpack.c.b16 %v842, %v841
        %v867 = vunpack.c.l.b16 %v804
        %v868 = vunpack.c.l.b16 %v805
        %v869 = vunpack.c.l.b16 %v806
        %v870 = vunpack.c.l.b16 %v807
        %v871 = vunpack.c.l.b16 %v808
        %v872 = vunpack.c.l.b16 %v809
        %v873 = vunpack.c.l.b16 %v810
        %v874 = vunpack.c.l.b16 %v811
        %v875 = vunpack.c.l.b16 %v812
        %v876 = vunpack.c.l.b16 %v813
        %v877 = vunpack.c.l.b16 %v814
        %v878 = vunpack.c.l.b16 %v815
        %v879 = vunpack.c.l.b16 %v816
        %v880 = vunpack.c.l.b16 %v817
        %v881 = vunpack.c.l.b16 %v818
        %v882 = vunpack.c.l.b16 %v819
        %v883 = vpack.c.b16 %v868, %v867
        %v884 = vpack.c.b16 %v870, %v869
        %v885 = vpack.c.b16 %v872, %v871
        %v886 = vpack.c.b16 %v874, %v873
        %v887 = vpack.c.b16 %v876, %v875
        %v888 = vpack.c.b16 %v878, %v877
        %v889 = vpack.c.b16 %v880, %v879
        %v890 = vpack.c.b16 %v882, %v881
        %899 = vmatprep.subr.bf16.mxu0 0
        %900 = vmatpush1.bf16.msra.mxu0 %v883
        %901 = vmatprep.subr.bf16.mxu0 0
        %902 = vmatpush1.bf16.msra.mxu0 %v884
        %903 = vmatprep.subr.bf16.mxu0 0
        %904 = vmatpush1.bf16.msra.mxu0 %v885
        %905 = vmatprep.subr.bf16.mxu0 0
        %906 = vmatpush1.bf16.msra.mxu0 %v886
        %907 = vmatprep.subr.bf16.mxu0 0
        %908 = vmatpush1.bf16.msra.mxu0 %v887
        %909 = vmatprep.subr.bf16.mxu0 0
        %910 = vmatpush1.bf16.msra.mxu0 %v888
        %911 = vmatprep.subr.bf16.mxu0 0
        %912 = vmatpush1.bf16.msra.mxu0 %v889
        %913 = vmatprep.subr.bf16.mxu0 0
        %914 = vmatpush1.bf16.msra.mxu0 %v890
        %915 = vmatprep.subr.bf16.mxu0 0
        %916 = vmatpush1.bf16.msra.mxu0 0
        %917 = vmatprep.subr.bf16.mxu0 0
        %918 = vmatpush1.bf16.msra.mxu0 0
        %919 = vmatprep.subr.bf16.mxu0 0
        %920 = vmatpush1.bf16.msra.mxu0 0
        %921 = vmatprep.subr.bf16.mxu0 0
        %922 = vmatpush1.bf16.msra.mxu0 0
        %923 = vmatprep.subr.bf16.mxu0 0
        %924 = vmatpush1.bf16.msra.mxu0 0
        %925 = vmatprep.subr.bf16.mxu0 0
        %926 = vmatpush1.bf16.msra.mxu0 0
        %927 = vmatprep.subr.bf16.mxu0 0
        %928 = vmatpush1.bf16.msra.mxu0 0
        %929 = vmatprep.subr.bf16.mxu0 0
        %930 = vmatpush1.bf16.msra.mxu0 0
        %931 = vmatprep.mubr.bf16.mxu0 0
        %932 = vmatmul.mubr.bf16.gmra.mrb[0].mxu0 %v843
        %v933 = vpop.f32.mrb[0].mxu0
        %v934 = vadd.f32 %v825, %v933
        %v935 = vpop.f32.mrb[0].mxu0
        %v936 = vpop.f32.mrb[0].mxu0
        %v937 = vadd.f32 %v825, %v936
        %v938 = vpop.f32.mrb[0].mxu0
        %939 = vmatprep.mubr.bf16.mxu0 0
        %940 = vmatmul.mubr.bf16.gmra.mrb[0].mxu0 %v844
        %v941 = vpop.f32.mrb[0].mxu0
        %v942 = vadd.f32 %v825, %v941
        %v943 = vpop.f32.mrb[0].mxu0
        %v944 = vpop.f32.mrb[0].mxu0
        %v945 = vadd.f32 %v825, %v944
        %v946 = vpop.f32.mrb[0].mxu0
        %947 = vmatprep.mubr.bf16.mxu0 0
        %948 = vmatmul.mubr.bf16.gmra.mrb[0].mxu0 %v845
        %v949 = vpop.f32.mrb[0].mxu0
        %v950 = vadd.f32 %v825, %v949
        %v951 = vpop.f32.mrb[0].mxu0
        %v952 = vpop.f32.mrb[0].mxu0
        %v953 = vadd.f32 %v825, %v952
        %v954 = vpop.f32.mrb[0].mxu0
        %955 = vmatprep.mubr.bf16.mxu0 0
        %956 = vmatmul.mubr.bf16.gmra.mrb[0].mxu0 %v846
        %v957 = vpop.f32.mrb[0].mxu0
        %v958 = vadd.f32 %v825, %v957
        %v959 = vpop.f32.mrb[0].mxu0
        %v960 = vpop.f32.mrb[0].mxu0
        %v961 = vadd.f32 %v825, %v960
        %v962 = vpop.f32.mrb[0].mxu0
        %963 = vdwg.mxu0
        %v964 = vmax.f32 %v934, 0.0
        %v965 = vmax.f32 %v937, 0.0
        %v966 = vmax.f32 %v942, 0.0
        %v967 = vmax.f32 %v945, 0.0
        %v968 = vmax.f32 %v950, 0.0
        %v969 = vmax.f32 %v953, 0.0
        %v970 = vmax.f32 %v958, 0.0
        %v971 = vmax.f32 %v961, 0.0
        %972 = vst [vmem:[#allocation2] sm:$0xff] %v964
        %973 = vst [vmem:[#allocation2 + $0x8] sm:$0xff] %v965
        %974 = vst [vmem:[#allocation2 + $0x10] sm:$0xff] %v966
        %975 = vst [vmem:[#allocation2 + $0x18] sm:$0xff] %v967
        %976 = vst [vmem:[#allocation2 + $0x20] sm:$0xff] %v968
        %977 = vst [vmem:[#allocation2 + $0x28] sm:$0xff] %v969
        %978 = vst [vmem:[#allocation2 + $0x30] sm:$0xff] %v970
        %979 = vst [vmem:[#allocation2 + $0x38] sm:$0xff] %v971
        %v980 = vld [vmem:[#allocation2] sm:$0xff]
        %981 = vst [vmem:[#allocation3 + $0xb] sm:$0xff] %v980
        %v982 = vld [vmem:[#allocation2 + $0x8] sm:$0xff]
        %983 = vst [vmem:[#allocation3 + $0x15] sm:$0xff] %v982
        %v984 = vld [vmem:[#allocation2 + $0x10] sm:$0xff]
        %985 = vst [vmem:[#allocation3 + $0x1f] sm:$0xff] %v984
        %v986 = vld [vmem:[#allocation2 + $0x18] sm:$0xff]
        %987 = vst [vmem:[#allocation3 + $0x29] sm:$0xff] %v986
        %v988 = vld [vmem:[#allocation2 + $0x20] sm:$0xff]
        %989 = vst [vmem:[#allocation3 + $0x33] sm:$0xff] %v988
        %v990 = vld [vmem:[#allocation2 + $0x28] sm:$0xff]
        %991 = vst [vmem:[#allocation3 + $0x3d] sm:$0xff] %v990
        %v992 = vld [vmem:[#allocation2 + $0x30] sm:$0xff]
        %993 = vst [vmem:[#allocation3 + $0x47] sm:$0xff] %v992
        %v994 = vld [vmem:[#allocation2 + $0x38] sm:$0xff]
        %995 = vst [vmem:[#allocation3 + $0x51] sm:$0xff] %v994
        %v996 = vld [vmem:[#allocation3] sm:$0xff]
        %v997 = vld [vmem:[#allocation3 + $0x8] sm:$0xff]
        %v998 = vld [vmem:[#allocation3 + $0x10] sm:$0xff]
        %v999 = vld [vmem:[#allocation3 + $0x18] sm:$0xff]
        %v1000 = vld [vmem:[#allocation3 + $0x20] sm:$0xff]
        %v1001 = vld [vmem:[#allocation3 + $0x28] sm:$0xff]
        %v1002 = vld [vmem:[#allocation3 + $0x30] sm:$0xff]
        %v1003 = vld [vmem:[#allocation3 + $0x38] sm:$0xff]
        %v1004 = vld [vmem:[#allocation3 + $0x40] sm:$0xff]
        %v1005 = vld [vmem:[#allocation3 + $0x48] sm:$0x3f]
        %v1006 = vpack.c.bf16 %v997, %v996
        %v1007 = vpack.c.bf16 %v999, %v998
        %v1008 = vpack.c.bf16 %v1001, %v1000
        %v1009 = vpack.c.bf16 %v1003, %v1002
        %v1010 = vpack.c.bf16 %v1005, %v1004
        %v1011 = vld [vmem:[%s3] sm:$0xf]
        %v1012 = vld [vmem:[%s3 + $0x4] sm:$0xf]
        %v1013 = vld [vmem:[%s3 + $0x8] sm:$0xf]
        %v1014 = vld [vmem:[%s3 + $0xc] sm:$0xf]
        %v1015 = vld [vmem:[%s3 + $0x10] sm:$0xf]
        %v1016 = vld [vmem:[%s3 + $0x14] sm:$0xf]
        %v1017 = vld [vmem:[%s3 + $0x18] sm:$0xf]
        %v1018 = vld [vmem:[%s3 + $0x1c] sm:$0xf]
        %v1019 = vld [vmem:[#allocation3 + $0x1] sm:$0xff]
        %v1020 = vld [vmem:[#allocation3 + $0x9] sm:$0xff]
        %v1021 = vld [vmem:[#allocation3 + $0x11] sm:$0xff]
        %v1022 = vld [vmem:[#allocation3 + $0x19] sm:$0xff]
        %v1023 = vld [vmem:[#allocation3 + $0x21] sm:$0xff]
        %v1024 = vld [vmem:[#allocation3 + $0x29] sm:$0xff]
        %v1025 = vld [vmem:[#allocation3 + $0x31] sm:$0xff]
        %v1026 = vld [vmem:[#allocation3 + $0x39] sm:$0xff]
        %v1027 = vld [vmem:[#allocation3 + $0x41] sm:$0xff]
        %v1028 = vld [vmem:[#allocation3 + $0x49] sm:$0x3f]
        %v1029 = vpack.c.bf16 %v1020, %v1019
        %v1030 = vpack.c.bf16 %v1022, %v1021
        %v1031 = vpack.c.bf16 %v1024, %v1023
        %v1032 = vpack.c.bf16 %v1026, %v1025
        %v1033 = vpack.c.bf16 %v1028, %v1027
        %s1034 = scalar_lea.vmem %s3, 32
        %v1035 = vld [vmem:[%s1034] sm:$0xf]
        %v1036 = vld [vmem:[%s1034 + $0x4] sm:$0xf]
        %v1037 = vld [vmem:[%s1034 + $0x8] sm:$0xf]
        %v1038 = vld [vmem:[%s1034 + $0xc] sm:$0xf]
        %v1039 = vld [vmem:[%s1034 + $0x10] sm:$0xf]
        %v1040 = vld [vmem:[%s1034 + $0x14] sm:$0xf]
        %v1041 = vld [vmem:[%s1034 + $0x18] sm:$0xf]
        %v1042 = vld [vmem:[%s1034 + $0x1c] sm:$0xf]
        %v1051 = vunpack.c.l.b16 %v1035
        %v1052 = vunpack.c.l.b16 %v1036
        %v1053 = vunpack.c.l.b16 %v1037
        %v1054 = vunpack.c.l.b16 %v1038
        %v1055 = vunpack.c.l.b16 %v1039
        %v1056 = vunpack.c.l.b16 %v1040
        %v1057 = vunpack.c.l.b16 %v1041
        %v1058 = vunpack.c.l.b16 %v1042
        %v1059 = vpack.c.b16 %v1052, %v1051
        %v1060 = vpack.c.b16 %v1054, %v1053
        %v1061 = vpack.c.b16 %v1056, %v1055
        %v1062 = vpack.c.b16 %v1058, %v1057
        %vm1067 = vcmask 523264
        %v1069 = vsel %vm1067, %v1029, 0
        %v1072 = vsel %vm1067, %v1030, 0
        %v1075 = vsel %vm1067, %v1031, 0
        %v1078 = vsel %vm1067, %v1032, 0
        %v1081 = vsel %vm1067, %v1033, 0
        %1083 = vmatprep.subr.bf16.mxu0 0
        %1084 = vmatpush1.bf16.msra.mxu0 %v1059
        %1085 = vmatprep.subr.bf16.mxu0 0
        %1086 = vmatpush1.bf16.msra.mxu0 %v1060
        %1087 = vmatprep.subr.bf16.mxu0 0
        %1088 = vmatpush1.bf16.msra.mxu0 %v1061
        %1089 = vmatprep.subr.bf16.mxu0 0
        %1090 = vmatpush1.bf16.msra.mxu0 %v1062
        %1091 = vmatprep.subr.bf16.mxu0 0
        %1092 = vmatpush1.bf16.msra.mxu0 0
        %1093 = vmatprep.subr.bf16.mxu0 0
        %1094 = vmatpush1.bf16.msra.mxu0 0
        %1095 = vmatprep.subr.bf16.mxu0 0
        %1096 = vmatpush1.bf16.msra.mxu0 0
        %1097 = vmatprep.subr.bf16.mxu0 0
        %1098 = vmatpush1.bf16.msra.mxu0 0
        %1099 = vmatprep.subr.bf16.mxu0 0
        %1100 = vmatpush1.bf16.msra.mxu0 0
        %1101 = vmatprep.subr.bf16.mxu0 0
        %1102 = vmatpush1.bf16.msra.mxu0 0
        %1103 = vmatprep.subr.bf16.mxu0 0
        %1104 = vmatpush1.bf16.msra.mxu0 0
        %1105 = vmatprep.subr.bf16.mxu0 0
        %1106 = vmatpush1.bf16.msra.mxu0 0
        %1107 = vmatprep.subr.bf16.mxu0 0
        %1108 = vmatpush1.bf16.msra.mxu0 0
        %1109 = vmatprep.subr.bf16.mxu0 0
        %1110 = vmatpush1.bf16.msra.mxu0 0
        %1111 = vmatprep.subr.bf16.mxu0 0
        %1112 = vmatpush1.bf16.msra.mxu0 0
        %1113 = vmatprep.subr.bf16.mxu0 0
        %1114 = vmatpush1.bf16.msra.mxu0 0
        %1115 = vmatprep.mubr.bf16.mxu0 0
        %1116 = vmatmul.mubr.bf16.gmra.mrb[0].mxu0 %v1069
        %v1117 = vpop.f32.mrb[0].mxu0
        %v1118 = vadd.f32 0.0, %v1117
        %v1119 = vpop.f32.mrb[0].mxu0
        %v1120 = vpop.f32.mrb[0].mxu0
        %v1121 = vadd.f32 0.0, %v1120
        %v1122 = vpop.f32.mrb[0].mxu0
        %1123 = vmatprep.mubr.bf16.mxu0 0
        %1124 = vmatmul.mubr.bf16.gmra.mrb[0].mxu0 %v1072
        %v1125 = vpop.f32.mrb[0].mxu0
        %v1126 = vadd.f32 0.0, %v1125
        %v1127 = vpop.f32.mrb[0].mxu0
        %v1128 = vpop.f32.mrb[0].mxu0
        %v1129 = vadd.f32 0.0, %v1128
        %v1130 = vpop.f32.mrb[0].mxu0
        %1131 = vmatprep.mubr.bf16.mxu0 0
        %1132 = vmatmul.mubr.bf16.gmra.mrb[0].mxu0 %v1075
        %v1133 = vpop.f32.mrb[0].mxu0
        %v1134 = vadd.f32 0.0, %v1133
        %v1135 = vpop.f32.mrb[0].mxu0
        %v1136 = vpop.f32.mrb[0].mxu0
        %v1137 = vadd.f32 0.0, %v1136
        %v1138 = vpop.f32.mrb[0].mxu0
        %1139 = vmatprep.mubr.bf16.mxu0 0
        %1140 = vmatmul.mubr.bf16.gmra.mrb[0].mxu0 %v1078
        %v1141 = vpop.f32.mrb[0].mxu0
        %v1142 = vadd.f32 0.0, %v1141
        %v1143 = vpop.f32.mrb[0].mxu0
        %v1144 = vpop.f32.mrb[0].mxu0
        %v1145 = vadd.f32 0.0, %v1144
        %v1146 = vpop.f32.mrb[0].mxu0
        %1147 = vmatprep.mubr.bf16.mxu0 0
        %1148 = vmatmul.mubr.bf16.gmra.mrb[0].mxu0 %v1081
        %v1149 = vpop.f32.mrb[0].mxu0
        %v1150 = vadd.f32 0.0, %v1149
        %v1151 = vpop.f32.mrb[0].mxu0
        %v1152 = vpop.f32.mrb[0].mxu0
        %v1153 = vadd.f32 0.0, %v1152
        %v1154 = vpop.f32.mrb[0].mxu0
        %1155 = vdwg.mxu0
        %v1164 = vunpack.c.l.b16 %v1011
        %v1165 = vunpack.c.l.b16 %v1012
        %v1166 = vunpack.c.l.b16 %v1013
        %v1167 = vunpack.c.l.b16 %v1014
        %v1168 = vunpack.c.l.b16 %v1015
        %v1169 = vunpack.c.l.b16 %v1016
        %v1170 = vunpack.c.l.b16 %v1017
        %v1171 = vunpack.c.l.b16 %v1018
        %v1172 = vpack.c.b16 %v1165, %v1164
        %v1173 = vpack.c.b16 %v1167, %v1166
        %v1174 = vpack.c.b16 %v1169, %v1168
        %v1175 = vpack.c.b16 %v1171, %v1170
        %v1181 = vsel %vm1067, %v1006, 0
        %v1184 = vsel %vm1067, %v1007, 0
        %v1187 = vsel %vm1067, %v1008, 0
        %v1190 = vsel %vm1067, %v1009, 0
        %v1193 = vsel %vm1067, %v1010, 0
        %1195 = vmatprep.subr.bf16.mxu0 0
        %1196 = vmatpush1.bf16.msra.mxu0 %v1172
        %1197 = vmatprep.subr.bf16.mxu0 0
        %1198 = vmatpush1.bf16.msra.mxu0 %v1173
        %1199 = vmatprep.subr.bf16.mxu0 0
        %1200 = vmatpush1.bf16.msra.mxu0 %v1174
        %1201 = vmatprep.subr.bf16.mxu0 0
        %1202 = vmatpush1.bf16.msra.mxu0 %v1175
        %1203 = vmatprep.subr.bf16.mxu0 0
        %1204 = vmatpush1.bf16.msra.mxu0 0
        %1205 = vmatprep.subr.bf16.mxu0 0
        %1206 = vmatpush1.bf16.msra.mxu0 0
        %1207 = vmatprep.subr.bf16.mxu0 0
        %1208 = vmatpush1.bf16.msra.mxu0 0
        %1209 = vmatprep.subr.bf16.mxu0 0
        %1210 = vmatpush1.bf16.msra.mxu0 0
        %1211 = vmatprep.subr.bf16.mxu0 0
        %1212 = vmatpush1.bf16.msra.mxu0 0
        %1213 = vmatprep.subr.bf16.mxu0 0
        %1214 = vmatpush1.bf16.msra.mxu0 0
        %1215 = vmatprep.subr.bf16.mxu0 0
        %1216 = vmatpush1.bf16.msra.mxu0 0
        %1217 = vmatprep.subr.bf16.mxu0 0
        %1218 = vmatpush1.bf16.msra.mxu0 0
        %1219 = vmatprep.subr.bf16.mxu0 0
        %1220 = vmatpush1.bf16.msra.mxu0 0
        %1221 = vmatprep.subr.bf16.mxu0 0
        %1222 = vmatpush1.bf16.msra.mxu0 0
        %1223 = vmatprep.subr.bf16.mxu0 0
        %1224 = vmatpush1.bf16.msra.mxu0 0
        %1225 = vmatprep.subr.bf16.mxu0 0
        %1226 = vmatpush1.bf16.msra.mxu0 0
        %1227 = vmatprep.mubr.bf16.mxu0 0
        %1228 = vmatmul.mubr.bf16.gmra.mrb[0].mxu0 %v1181
        %v1229 = vpop.f32.mrb[0].mxu0
        %v1230 = vadd.f32 %v1118, %v1229
        %v1231 = vpop.f32.mrb[0].mxu0
        %v1232 = vpop.f32.mrb[0].mxu0
        %v1233 = vadd.f32 %v1121, %v1232
        %v1234 = vpop.f32.mrb[0].mxu0
        %1235 = vmatprep.mubr.bf16.mxu0 0
        %1236 = vmatmul.mubr.bf16.gmra.mrb[0].mxu0 %v1184
        %v1237 = vpop.f32.mrb[0].mxu0
        %v1238 = vadd.f32 %v1126, %v1237
        %v1239 = vpop.f32.mrb[0].mxu0
        %v1240 = vpop.f32.mrb[0].mxu0
        %v1241 = vadd.f32 %v1129, %v1240
        %v1242 = vpop.f32.mrb[0].mxu0
        %1243 = vmatprep.mubr.bf16.mxu0 0
        %1244 = vmatmul.mubr.bf16.gmra.mrb[0].mxu0 %v1187
        %v1245 = vpop.f32.mrb[0].mxu0
        %v1246 = vadd.f32 %v1134, %v1245
        %v1247 = vpop.f32.mrb[0].mxu0
        %v1248 = vpop.f32.mrb[0].mxu0
        %v1249 = vadd.f32 %v1137, %v1248
        %v1250 = vpop.f32.mrb[0].mxu0
        %1251 = vmatprep.mubr.bf16.mxu0 0
        %1252 = vmatmul.mubr.bf16.gmra.mrb[0].mxu0 %v1190
        %v1253 = vpop.f32.mrb[0].mxu0
        %v1254 = vadd.f32 %v1142, %v1253
        %v1255 = vpop.f32.mrb[0].mxu0
        %v1256 = vpop.f32.mrb[0].mxu0
        %v1257 = vadd.f32 %v1145, %v1256
        %v1258 = vpop.f32.mrb[0].mxu0
        %1259 = vmatprep.mubr.bf16.mxu0 0
        %1260 = vmatmul.mubr.bf16.gmra.mrb[0].mxu0 %v1193
        %v1261 = vpop.f32.mrb[0].mxu0
        %v1262 = vadd.f32 %v1150, %v1261
        %v1263 = vpop.f32.mrb[0].mxu0
        %v1264 = vpop.f32.mrb[0].mxu0
        %v1265 = vadd.f32 %v1153, %v1264
        %v1266 = vpop.f32.mrb[0].mxu0
        %1267 = vdwg.mxu0
        %v1268 = vld [vmem:[#allocation3 + $0x2] sm:$0xff]
        %v1269 = vld [vmem:[#allocation3 + $0xa] sm:$0xff]
        %v1270 = vld [vmem:[#allocation3 + $0x12] sm:$0xff]
        %v1271 = vld [vmem:[#allocation3 + $0x1a] sm:$0xff]
        %v1272 = vld [vmem:[#allocation3 + $0x22] sm:$0xff]
        %v1273 = vld [vmem:[#allocation3 + $0x2a] sm:$0xff]
        %v1274 = vld [vmem:[#allocation3 + $0x32] sm:$0xff]
        %v1275 = vld [vmem:[#allocation3 + $0x3a] sm:$0xff]
        %v1276 = vld [vmem:[#allocation3 + $0x42] sm:$0xff]
        %v1277 = vld [vmem:[#allocation3 + $0x4a] sm:$0x3f]
        %v1278 = vpack.c.bf16 %v1269, %v1268
        %v1279 = vpack.c.bf16 %v1271, %v1270
        %v1280 = vpack.c.bf16 %v1273, %v1272
        %v1281 = vpack.c.bf16 %v1275, %v1274
        %v1282 = vpack.c.bf16 %v1277, %v1276
        %s1283 = scalar_lea.vmem %s3, 64
        %v1284 = vld [vmem:[%s1283] sm:$0xf]
        %v1285 = vld [vmem:[%s1283 + $0x4] sm:$0xf]
        %v1286 = vld [vmem:[%s1283 + $0x8] sm:$0xf]
        %v1287 = vld [vmem:[%s1283 + $0xc] sm:$0xf]
        %v1288 = vld [vmem:[%s1283 + $0x10] sm:$0xf]
        %v1289 = vld [vmem:[%s1283 + $0x14] sm:$0xf]
        %v1290 = vld [vmem:[%s1283 + $0x18] sm:$0xf]
        %v1291 = vld [vmem:[%s1283 + $0x1c] sm:$0xf]
        %v1300 = vunpack.c.l.b16 %v1284
        %v1301 = vunpack.c.l.b16 %v1285
        %v1302 = vunpack.c.l.b16 %v1286
        %v1303 = vunpack.c.l.b16 %v1287
        %v1304 = vunpack.c.l.b16 %v1288
        %v1305 = vunpack.c.l.b16 %v1289
        %v1306 = vunpack.c.l.b16 %v1290
        %v1307 = vunpack.c.l.b16 %v1291
        %v1308 = vpack.c.b16 %v1301, %v1300
        %v1309 = vpack.c.b16 %v1303, %v1302
        %v1310 = vpack.c.b16 %v1305, %v1304
        %v1311 = vpack.c.b16 %v1307, %v1306
        %v1317 = vsel %vm1067, %v1278, 0
        %v1320 = vsel %vm1067, %v1279, 0
        %v1323 = vsel %vm1067, %v1280, 0
        %v1326 = vsel %vm1067, %v1281, 0
        %v1329 = vsel %vm1067, %v1282, 0
        %1331 = vmatprep.subr.bf16.mxu0 0
        %1332 = vmatpush1.bf16.msra.mxu0 %v1308
        %1333 = vmatprep.subr.bf16.mxu0 0
        %1334 = vmatpush1.bf16.msra.mxu0 %v1309
        %1335 = vmatprep.subr.bf16.mxu0 0
        %1336 = vmatpush1.bf16.msra.mxu0 %v1310
        %1337 = vmatprep.subr.bf16.mxu0 0
        %1338 = vmatpush1.bf16.msra.mxu0 %v1311
        %1339 = vmatprep.subr.bf16.mxu0 0
        %1340 = vmatpush1.bf16.msra.mxu0 0
        %1341 = vmatprep.subr.bf16.mxu0 0
        %1342 = vmatpush1.bf16.msra.mxu0 0
        %1343 = vmatprep.subr.bf16.mxu0 0
        %1344 = vmatpush1.bf16.msra.mxu0 0
        %1345 = vmatprep.subr.bf16.mxu0 0
        %1346 = vmatpush1.bf16.msra.mxu0 0
        %1347 = vmatprep.subr.bf16.mxu0 0
        %1348 = vmatpush1.bf16.msra.mxu0 0
        %1349 = vmatprep.subr.bf16.mxu0 0
        %1350 = vmatpush1.bf16.msra.mxu0 0
        %1351 = vmatprep.subr.bf16.mxu0 0
        %1352 = vmatpush1.bf16.msra.mxu0 0
        %1353 = vmatprep.subr.bf16.mxu0 0
        %1354 = vmatpush1.bf16.msra.mxu0 0
        %1355 = vmatprep.subr.bf16.mxu0 0
        %1356 = vmatpush1.bf16.msra.mxu0 0
        %1357 = vmatprep.subr.bf16.mxu0 0
        %1358 = vmatpush1.bf16.msra.mxu0 0
        %1359 = vmatprep.subr.bf16.mxu0 0
        %1360 = vmatpush1.bf16.msra.mxu0 0
        %1361 = vmatprep.subr.bf16.mxu0 0
        %1362 = vmatpush1.bf16.msra.mxu0 0
        %1363 = vmatprep.mubr.bf16.mxu0 0
        %1364 = vmatmul.mubr.bf16.gmra.mrb[0].mxu0 %v1317
        %v1365 = vpop.f32.mrb[0].mxu0
        %v1366 = vadd.f32 0.0, %v1365
        %v1367 = vpop.f32.mrb[0].mxu0
        %v1368 = vpop.f32.mrb[0].mxu0
        %v1369 = vadd.f32 0.0, %v1368
        %v1370 = vpop.f32.mrb[0].mxu0
        %1371 = vmatprep.mubr.bf16.mxu0 0
        %1372 = vmatmul.mubr.bf16.gmra.mrb[0].mxu0 %v1320
        %v1373 = vpop.f32.mrb[0].mxu0
        %v1374 = vadd.f32 0.0, %v1373
        %v1375 = vpop.f32.mrb[0].mxu0
        %v1376 = vpop.f32.mrb[0].mxu0
        %v1377 = vadd.f32 0.0, %v1376
        %v1378 = vpop.f32.mrb[0].mxu0
        %1379 = vmatprep.mubr.bf16.mxu0 0
        %1380 = vmatmul.mubr.bf16.gmra.mrb[0].mxu0 %v1323
        %v1381 = vpop.f32.mrb[0].mxu0
        %v1382 = vadd.f32 0.0, %v1381
        %v1383 = vpop.f32.mrb[0].mxu0
        %v1384 = vpop.f32.mrb[0].mxu0
        %v1385 = vadd.f32 0.0, %v1384
        %v1386 = vpop.f32.mrb[0].mxu0
        %1387 = vmatprep.mubr.bf16.mxu0 0
        %1388 = vmatmul.mubr.bf16.gmra.mrb[0].mxu0 %v1326
        %v1389 = vpop.f32.mrb[0].mxu0
        %v1390 = vadd.f32 0.0, %v1389
        %v1391 = vpop.f32.mrb[0].mxu0
        %v1392 = vpop.f32.mrb[0].mxu0
        %v1393 = vadd.f32 0.0, %v1392
        %v1394 = vpop.f32.mrb[0].mxu0
        %1395 = vmatprep.mubr.bf16.mxu0 0
        %1396 = vmatmul.mubr.bf16.gmra.mrb[0].mxu0 %v1329
        %v1397 = vpop.f32.mrb[0].mxu0
        %v1398 = vadd.f32 0.0, %v1397
        %v1399 = vpop.f32.mrb[0].mxu0
        %v1400 = vpop.f32.mrb[0].mxu0
        %v1401 = vadd.f32 0.0, %v1400
        %v1402 = vpop.f32.mrb[0].mxu0
        %1403 = vdwg.mxu0
        %v1404 = vadd.f32 %v1230, %v1366
        %v1405 = vadd.f32 %v1233, %v1369
        %v1406 = vadd.f32 %v1238, %v1374
        %v1407 = vadd.f32 %v1241, %v1377
        %v1408 = vadd.f32 %v1246, %v1382
        %v1409 = vadd.f32 %v1249, %v1385
        %v1410 = vadd.f32 %v1254, %v1390
        %v1411 = vadd.f32 %v1257, %v1393
        %v1412 = vadd.f32 %v1262, %v1398
        %v1413 = vadd.f32 %v1265, %v1401
        %v1414 = vld [vmem:[#allocation3 + $0xa] sm:$0xff]
        %v1415 = vld [vmem:[#allocation3 + $0x12] sm:$0xff]
        %v1416 = vld [vmem:[#allocation3 + $0x1a] sm:$0xff]
        %v1417 = vld [vmem:[#allocation3 + $0x22] sm:$0xff]
        %v1418 = vld [vmem:[#allocation3 + $0x2a] sm:$0xff]
        %v1419 = vld [vmem:[#allocation3 + $0x32] sm:$0xff]
        %v1420 = vld [vmem:[#allocation3 + $0x3a] sm:$0xff]
        %v1421 = vld [vmem:[#allocation3 + $0x42] sm:$0xff]
        %v1422 = vld [vmem:[#allocation3 + $0x4a] sm:$0xff]
        %v1423 = vld [vmem:[#allocation3 + $0x52] sm:$0x3f]
        %v1424 = vpack.c.bf16 %v1415, %v1414
        %v1425 = vpack.c.bf16 %v1417, %v1416
        %v1426 = vpack.c.bf16 %v1419, %v1418
        %v1427 = vpack.c.bf16 %v1421, %v1420
        %v1428 = vpack.c.bf16 %v1423, %v1422
        %s1429 = scalar_lea.vmem %s3, 96
        %v1430 = vld [vmem:[%s1429] sm:$0xf]
        %v1431 = vld [vmem:[%s1429 + $0x4] sm:$0xf]
        %v1432 = vld [vmem:[%s1429 + $0x8] sm:$0xf]
        %v1433 = vld [vmem:[%s1429 + $0xc] sm:$0xf]
        %v1434 = vld [vmem:[%s1429 + $0x10] sm:$0xf]
        %v1435 = vld [vmem:[%s1429 + $0x14] sm:$0xf]
        %v1436 = vld [vmem:[%s1429 + $0x18] sm:$0xf]
        %v1437 = vld [vmem:[%s1429 + $0x1c] sm:$0xf]
        %v1446 = vunpack.c.l.b16 %v1430
        %v1447 = vunpack.c.l.b16 %v1431
        %v1448 = vunpack.c.l.b16 %v1432
        %v1449 = vunpack.c.l.b16 %v1433
        %v1450 = vunpack.c.l.b16 %v1434
        %v1451 = vunpack.c.l.b16 %v1435
        %v1452 = vunpack.c.l.b16 %v1436
        %v1453 = vunpack.c.l.b16 %v1437
        %v1454 = vpack.c.b16 %v1447, %v1446
        %v1455 = vpack.c.b16 %v1449, %v1448
        %v1456 = vpack.c.b16 %v1451, %v1450
        %v1457 = vpack.c.b16 %v1453, %v1452
        %v1463 = vsel %vm1067, %v1424, 0
        %v1466 = vsel %vm1067, %v1425, 0
        %v1469 = vsel %vm1067, %v1426, 0
        %v1472 = vsel %vm1067, %v1427, 0
        %v1475 = vsel %vm1067, %v1428, 0
        %1477 = vmatprep.subr.bf16.mxu0 0
        %1478 = vmatpush1.bf16.msra.mxu0 %v1454
        %1479 = vmatprep.subr.bf16.mxu0 0
        %1480 = vmatpush1.bf16.msra.mxu0 %v1455
        %1481 = vmatprep.subr.bf16.mxu0 0
        %1482 = vmatpush1.bf16.msra.mxu0 %v1456
        %1483 = vmatprep.subr.bf16.mxu0 0
        %1484 = vmatpush1.bf16.msra.mxu0 %v1457
        %1485 = vmatprep.subr.bf16.mxu0 0
        %1486 = vmatpush1.bf16.msra.mxu0 0
        %1487 = vmatprep.subr.bf16.mxu0 0
        %1488 = vmatpush1.bf16.msra.mxu0 0
        %1489 = vmatprep.subr.bf16.mxu0 0
        %1490 = vmatpush1.bf16.msra.mxu0 0
        %1491 = vmatprep.subr.bf16.mxu0 0
        %1492 = vmatpush1.bf16.msra.mxu0 0
        %1493 = vmatprep.subr.bf16.mxu0 0
        %1494 = vmatpush1.bf16.msra.mxu0 0
        %1495 = vmatprep.subr.bf16.mxu0 0
        %1496 = vmatpush1.bf16.msra.mxu0 0
        %1497 = vmatprep.subr.bf16.mxu0 0
        %1498 = vmatpush1.bf16.msra.mxu0 0
        %1499 = vmatprep.subr.bf16.mxu0 0
        %1500 = vmatpush1.bf16.msra.mxu0 0
        %1501 = vmatprep.subr.bf16.mxu0 0
        %1502 = vmatpush1.bf16.msra.mxu0 0
        %1503 = vmatprep.subr.bf16.mxu0 0
        %1504 = vmatpush1.bf16.msra.mxu0 0
        %1505 = vmatprep.subr.bf16.mxu0 0
        %1506 = vmatpush1.bf16.msra.mxu0 0
        %1507 = vmatprep.subr.bf16.mxu0 0
        %1508 = vmatpush1.bf16.msra.mxu0 0
        %1509 = vmatprep.mubr.bf16.mxu0 0
        %1510 = vmatmul.mubr.bf16.gmra.mrb[0].mxu0 %v1463
        %v1511 = vpop.f32.mrb[0].mxu0
        %v1512 = vadd.f32 0.0, %v1511
        %v1513 = vpop.f32.mrb[0].mxu0
        %v1514 = vpop.f32.mrb[0].mxu0
        %v1515 = vadd.f32 0.0, %v1514
        %v1516 = vpop.f32.mrb[0].mxu0
        %1517 = vmatprep.mubr.bf16.mxu0 0
        %1518 = vmatmul.mubr.bf16.gmra.mrb[0].mxu0 %v1466
        %v1519 = vpop.f32.mrb[0].mxu0
        %v1520 = vadd.f32 0.0, %v1519
        %v1521 = vpop.f32.mrb[0].mxu0
        %v1522 = vpop.f32.mrb[0].mxu0
        %v1523 = vadd.f32 0.0, %v1522
        %v1524 = vpop.f32.mrb[0].mxu0
        %1525 = vmatprep.mubr.bf16.mxu0 0
        %1526 = vmatmul.mubr.bf16.gmra.mrb[0].mxu0 %v1469
        %v1527 = vpop.f32.mrb[0].mxu0
        %v1528 = vadd.f32 0.0, %v1527
        %v1529 = vpop.f32.mrb[0].mxu0
        %v1530 = vpop.f32.mrb[0].mxu0
        %v1531 = vadd.f32 0.0, %v1530
        %v1532 = vpop.f32.mrb[0].mxu0
        %1533 = vmatprep.mubr.bf16.mxu0 0
        %1534 = vmatmul.mubr.bf16.gmra.mrb[0].mxu0 %v1472
        %v1535 = vpop.f32.mrb[0].mxu0
        %v1536 = vadd.f32 0.0, %v1535
        %v1537 = vpop.f32.mrb[0].mxu0
        %v1538 = vpop.f32.mrb[0].mxu0
        %v1539 = vadd.f32 0.0, %v1538
        %v1540 = vpop.f32.mrb[0].mxu0
        %1541 = vmatprep.mubr.bf16.mxu0 0
        %1542 = vmatmul.mubr.bf16.gmra.mrb[0].mxu0 %v1475
        %v1543 = vpop.f32.mrb[0].mxu0
        %v1544 = vadd.f32 0.0, %v1543
        %v1545 = vpop.f32.mrb[0].mxu0
        %v1546 = vpop.f32.mrb[0].mxu0
        %v1547 = vadd.f32 0.0, %v1546
        %v1548 = vpop.f32.mrb[0].mxu0
        %1549 = vdwg.mxu0
        %v1550 = vadd.f32 %v1404, %v1512
        %v1551 = vadd.f32 %v1405, %v1515
        %v1552 = vadd.f32 %v1406, %v1520
        %v1553 = vadd.f32 %v1407, %v1523
        %v1554 = vadd.f32 %v1408, %v1528
        %v1555 = vadd.f32 %v1409, %v1531
        %v1556 = vadd.f32 %v1410, %v1536
        %v1557 = vadd.f32 %v1411, %v1539
        %v1558 = vadd.f32 %v1412, %v1544
        %v1559 = vadd.f32 %v1413, %v1547
        %v1560 = vld [vmem:[#allocation3 + $0xb] sm:$0xff]
        %v1561 = vld [vmem:[#allocation3 + $0x13] sm:$0xff]
        %v1562 = vld [vmem:[#allocation3 + $0x1b] sm:$0xff]
        %v1563 = vld [vmem:[#allocation3 + $0x23] sm:$0xff]
        %v1564 = vld [vmem:[#allocation3 + $0x2b] sm:$0xff]
        %v1565 = vld [vmem:[#allocation3 + $0x33] sm:$0xff]
        %v1566 = vld [vmem:[#allocation3 + $0x3b] sm:$0xff]
        %v1567 = vld [vmem:[#allocation3 + $0x43] sm:$0xff]
        %v1568 = vld [vmem:[#allocation3 + $0x4b] sm:$0xff]
        %v1569 = vld [vmem:[#allocation3 + $0x53] sm:$0x3f]
        %v1570 = vpack.c.bf16 %v1561, %v1560
        %v1571 = vpack.c.bf16 %v1563, %v1562
        %v1572 = vpack.c.bf16 %v1565, %v1564
        %v1573 = vpack.c.bf16 %v1567, %v1566
        %v1574 = vpack.c.bf16 %v1569, %v1568
        %s1575 = scalar_lea.vmem %s3, 128
        %v1576 = vld [vmem:[%s1575] sm:$0xf]
        %v1577 = vld [vmem:[%s1575 + $0x4] sm:$0xf]
        %v1578 = vld [vmem:[%s1575 + $0x8] sm:$0xf]
        %v1579 = vld [vmem:[%s1575 + $0xc] sm:$0xf]
        %v1580 = vld [vmem:[%s1575 + $0x10] sm:$0xf]
        %v1581 = vld [vmem:[%s1575 + $0x14] sm:$0xf]
        %v1582 = vld [vmem:[%s1575 + $0x18] sm:$0xf]
        %v1583 = vld [vmem:[%s1575 + $0x1c] sm:$0xf]
        %v1592 = vunpack.c.l.b16 %v1576
        %v1593 = vunpack.c.l.b16 %v1577
        %v1594 = vunpack.c.l.b16 %v1578
        %v1595 = vunpack.c.l.b16 %v1579
        %v1596 = vunpack.c.l.b16 %v1580
        %v1597 = vunpack.c.l.b16 %v1581
        %v1598 = vunpack.c.l.b16 %v1582
        %v1599 = vunpack.c.l.b16 %v1583
        %v1600 = vpack.c.b16 %v1593, %v1592
        %v1601 = vpack.c.b16 %v1595, %v1594
        %v1602 = vpack.c.b16 %v1597, %v1596
        %v1603 = vpack.c.b16 %v1599, %v1598
        %v1609 = vsel %vm1067, %v1570, 0
        %v1612 = vsel %vm1067, %v1571, 0
        %v1615 = vsel %vm1067, %v1572, 0
        %v1618 = vsel %vm1067, %v1573, 0
        %v1621 = vsel %vm1067, %v1574, 0
        %1623 = vmatprep.subr.bf16.mxu0 0
        %1624 = vmatpush1.bf16.msra.mxu0 %v1600
        %1625 = vmatprep.subr.bf16.mxu0 0
        %1626 = vmatpush1.bf16.msra.mxu0 %v1601
        %1627 = vmatprep.subr.bf16.mxu0 0
        %1628 = vmatpush1.bf16.msra.mxu0 %v1602
        %1629 = vmatprep.subr.bf16.mxu0 0
        %1630 = vmatpush1.bf16.msra.mxu0 %v1603
        %1631 = vmatprep.subr.bf16.mxu0 0
        %1632 = vmatpush1.bf16.msra.mxu0 0
        %1633 = vmatprep.subr.bf16.mxu0 0
        %1634 = vmatpush1.bf16.msra.mxu0 0
        %1635 = vmatprep.subr.bf16.mxu0 0
        %1636 = vmatpush1.bf16.msra.mxu0 0
        %1637 = vmatprep.subr.bf16.mxu0 0
        %1638 = vmatpush1.bf16.msra.mxu0 0
        %1639 = vmatprep.subr.bf16.mxu0 0
        %1640 = vmatpush1.bf16.msra.mxu0 0
        %1641 = vmatprep.subr.bf16.mxu0 0
        %1642 = vmatpush1.bf16.msra.mxu0 0
        %1643 = vmatprep.subr.bf16.mxu0 0
        %1644 = vmatpush1.bf16.msra.mxu0 0
        %1645 = vmatprep.subr.bf16.mxu0 0
        %1646 = vmatpush1.bf16.msra.mxu0 0
        %1647 = vmatprep.subr.bf16.mxu0 0
        %1648 = vmatpush1.bf16.msra.mxu0 0
        %1649 = vmatprep.subr.bf16.mxu0 0
        %1650 = vmatpush1.bf16.msra.mxu0 0
        %1651 = vmatprep.subr.bf16.mxu0 0
        %1652 = vmatpush1.bf16.msra.mxu0 0
        %1653 = vmatprep.subr.bf16.mxu0 0
        %1654 = vmatpush1.bf16.msra.mxu0 0
        %1655 = vmatprep.mubr.bf16.mxu0 0
        %1656 = vmatmul.mubr.bf16.gmra.mrb[0].mxu0 %v1609
        %v1657 = vpop.f32.mrb[0].mxu0
        %v1658 = vadd.f32 0.0, %v1657
        %v1659 = vpop.f32.mrb[0].mxu0
        %v1660 = vpop.f32.mrb[0].mxu0
        %v1661 = vadd.f32 0.0, %v1660
        %v1662 = vpop.f32.mrb[0].mxu0
        %1663 = vmatprep.mubr.bf16.mxu0 0
        %1664 = vmatmul.mubr.bf16.gmra.mrb[0].mxu0 %v1612
        %v1665 = vpop.f32.mrb[0].mxu0
        %v1666 = vadd.f32 0.0, %v1665
        %v1667 = vpop.f32.mrb[0].mxu0
        %v1668 = vpop.f32.mrb[0].mxu0
        %v1669 = vadd.f32 0.0, %v1668
        %v1670 = vpop.f32.mrb[0].mxu0
        %1671 = vmatprep.mubr.bf16.mxu0 0
        %1672 = vmatmul.mubr.bf16.gmra.mrb[0].mxu0 %v1615
        %v1673 = vpop.f32.mrb[0].mxu0
        %v1674 = vadd.f32 0.0, %v1673
        %v1675 = vpop.f32.mrb[0].mxu0
        %v1676 = vpop.f32.mrb[0].mxu0
        %v1677 = vadd.f32 0.0, %v1676
        %v1678 = vpop.f32.mrb[0].mxu0
        %1679 = vmatprep.mubr.bf16.mxu0 0
        %1680 = vmatmul.mubr.bf16.gmra.mrb[0].mxu0 %v1618
        %v1681 = vpop.f32.mrb[0].mxu0
        %v1682 = vadd.f32 0.0, %v1681
        %v1683 = vpop.f32.mrb[0].mxu0
        %v1684 = vpop.f32.mrb[0].mxu0
        %v1685 = vadd.f32 0.0, %v1684
        %v1686 = vpop.f32.mrb[0].mxu0
        %1687 = vmatprep.mubr.bf16.mxu0 0
        %1688 = vmatmul.mubr.bf16.gmra.mrb[0].mxu0 %v1621
        %v1689 = vpop.f32.mrb[0].mxu0
        %v1690 = vadd.f32 0.0, %v1689
        %v1691 = vpop.f32.mrb[0].mxu0
        %v1692 = vpop.f32.mrb[0].mxu0
        %v1693 = vadd.f32 0.0, %v1692
        %v1694 = vpop.f32.mrb[0].mxu0
        %1695 = vdwg.mxu0
        %v1696 = vadd.f32 %v1550, %v1658
        %v1697 = vadd.f32 %v1551, %v1661
        %v1698 = vadd.f32 %v1552, %v1666
        %v1699 = vadd.f32 %v1553, %v1669
        %v1700 = vadd.f32 %v1554, %v1674
        %v1701 = vadd.f32 %v1555, %v1677
        %v1702 = vadd.f32 %v1556, %v1682
        %v1703 = vadd.f32 %v1557, %v1685
        %v1704 = vadd.f32 %v1558, %v1690
        %v1705 = vadd.f32 %v1559, %v1693
        %v1706 = vld [vmem:[#allocation3 + $0xc] sm:$0xff]
        %v1707 = vld [vmem:[#allocation3 + $0x14] sm:$0xff]
        %v1708 = vld [vmem:[#allocation3 + $0x1c] sm:$0xff]
        %v1709 = vld [vmem:[#allocation3 + $0x24] sm:$0xff]
        %v1710 = vld [vmem:[#allocation3 + $0x2c] sm:$0xff]
        %v1711 = vld [vmem:[#allocation3 + $0x34] sm:$0xff]
        %v1712 = vld [vmem:[#allocation3 + $0x3c] sm:$0xff]
        %v1713 = vld [vmem:[#allocation3 + $0x44] sm:$0xff]
        %v1714 = vld [vmem:[#allocation3 + $0x4c] sm:$0xff]
        %v1715 = vld [vmem:[#allocation3 + $0x54] sm:$0x3f]
        %v1716 = vpack.c.bf16 %v1707, %v1706
        %v1717 = vpack.c.bf16 %v1709, %v1708
        %v1718 = vpack.c.bf16 %v1711, %v1710
        %v1719 = vpack.c.bf16 %v1713, %v1712
        %v1720 = vpack.c.bf16 %v1715, %v1714
        %s1721 = scalar_lea.vmem %s3, 160
        %v1722 = vld [vmem:[%s1721] sm:$0xf]
        %v1723 = vld [vmem:[%s1721 + $0x4] sm:$0xf]
        %v1724 = vld [vmem:[%s1721 + $0x8] sm:$0xf]
        %v1725 = vld [vmem:[%s1721 + $0xc] sm:$0xf]
        %v1726 = vld [vmem:[%s1721 + $0x10] sm:$0xf]
        %v1727 = vld [vmem:[%s1721 + $0x14] sm:$0xf]
        %v1728 = vld [vmem:[%s1721 + $0x18] sm:$0xf]
        %v1729 = vld [vmem:[%s1721 + $0x1c] sm:$0xf]
        %v1738 = vunpack.c.l.b16 %v1722
        %v1739 = vunpack.c.l.b16 %v1723
        %v1740 = vunpack.c.l.b16 %v1724
        %v1741 = vunpack.c.l.b16 %v1725
        %v1742 = vunpack.c.l.b16 %v1726
        %v1743 = vunpack.c.l.b16 %v1727
        %v1744 = vunpack.c.l.b16 %v1728
        %v1745 = vunpack.c.l.b16 %v1729
        %v1746 = vpack.c.b16 %v1739, %v1738
        %v1747 = vpack.c.b16 %v1741, %v1740
        %v1748 = vpack.c.b16 %v1743, %v1742
        %v1749 = vpack.c.b16 %v1745, %v1744
        %v1755 = vsel %vm1067, %v1716, 0
        %v1758 = vsel %vm1067, %v1717, 0
        %v1761 = vsel %vm1067, %v1718, 0
        %v1764 = vsel %vm1067, %v1719, 0
        %v1767 = vsel %vm1067, %v1720, 0
        %1769 = vmatprep.subr.bf16.mxu0 0
        %1770 = vmatpush1.bf16.msra.mxu0 %v1746
        %1771 = vmatprep.subr.bf16.mxu0 0
        %1772 = vmatpush1.bf16.msra.mxu0 %v1747
        %1773 = vmatprep.subr.bf16.mxu0 0
        %1774 = vmatpush1.bf16.msra.mxu0 %v1748
        %1775 = vmatprep.subr.bf16.mxu0 0
        %1776 = vmatpush1.bf16.msra.mxu0 %v1749
        %1777 = vmatprep.subr.bf16.mxu0 0
        %1778 = vmatpush1.bf16.msra.mxu0 0
        %1779 = vmatprep.subr.bf16.mxu0 0
        %1780 = vmatpush1.bf16.msra.mxu0 0
        %1781 = vmatprep.subr.bf16.mxu0 0
        %1782 = vmatpush1.bf16.msra.mxu0 0
        %1783 = vmatprep.subr.bf16.mxu0 0
        %1784 = vmatpush1.bf16.msra.mxu0 0
        %1785 = vmatprep.subr.bf16.mxu0 0
        %1786 = vmatpush1.bf16.msra.mxu0 0
        %1787 = vmatprep.subr.bf16.mxu0 0
        %1788 = vmatpush1.bf16.msra.mxu0 0
        %1789 = vmatprep.subr.bf16.mxu0 0
        %1790 = vmatpush1.bf16.msra.mxu0 0
        %1791 = vmatprep.subr.bf16.mxu0 0
        %1792 = vmatpush1.bf16.msra.mxu0 0
        %1793 = vmatprep.subr.bf16.mxu0 0
        %1794 = vmatpush1.bf16.msra.mxu0 0
        %1795 = vmatprep.subr.bf16.mxu0 0
        %1796 = vmatpush1.bf16.msra.mxu0 0
        %1797 = vmatprep.subr.bf16.mxu0 0
        %1798 = vmatpush1.bf16.msra.mxu0 0
        %1799 = vmatprep.subr.bf16.mxu0 0
        %1800 = vmatpush1.bf16.msra.mxu0 0
        %1801 = vmatprep.mubr.bf16.mxu0 0
        %1802 = vmatmul.mubr.bf16.gmra.mrb[0].mxu0 %v1755
        %v1803 = vpop.f32.mrb[0].mxu0
        %v1804 = vadd.f32 0.0, %v1803
        %v1805 = vpop.f32.mrb[0].mxu0
        %v1806 = vpop.f32.mrb[0].mxu0
        %v1807 = vadd.f32 0.0, %v1806
        %v1808 = vpop.f32.mrb[0].mxu0
        %1809 = vmatprep.mubr.bf16.mxu0 0
        %1810 = vmatmul.mubr.bf16.gmra.mrb[0].mxu0 %v1758
        %v1811 = vpop.f32.mrb[0].mxu0
        %v1812 = vadd.f32 0.0, %v1811
        %v1813 = vpop.f32.mrb[0].mxu0
        %v1814 = vpop.f32.mrb[0].mxu0
        %v1815 = vadd.f32 0.0, %v1814
        %v1816 = vpop.f32.mrb[0].mxu0
        %1817 = vmatprep.mubr.bf16.mxu0 0
        %1818 = vmatmul.mubr.bf16.gmra.mrb[0].mxu0 %v1761
        %v1819 = vpop.f32.mrb[0].mxu0
        %v1820 = vadd.f32 0.0, %v1819
        %v1821 = vpop.f32.mrb[0].mxu0
        %v1822 = vpop.f32.mrb[0].mxu0
        %v1823 = vadd.f32 0.0, %v1822
        %v1824 = vpop.f32.mrb[0].mxu0
        %1825 = vmatprep.mubr.bf16.mxu0 0
        %1826 = vmatmul.mubr.bf16.gmra.mrb[0].mxu0 %v1764
        %v1827 = vpop.f32.mrb[0].mxu0
        %v1828 = vadd.f32 0.0, %v1827
        %v1829 = vpop.f32.mrb[0].mxu0
        %v1830 = vpop.f32.mrb[0].mxu0
        %v1831 = vadd.f32 0.0, %v1830
        %v1832 = vpop.f32.mrb[0].mxu0
        %1833 = vmatprep.mubr.bf16.mxu0 0
        %1834 = vmatmul.mubr.bf16.gmra.mrb[0].mxu0 %v1767
        %v1835 = vpop.f32.mrb[0].mxu0
        %v1836 = vadd.f32 0.0, %v1835
        %v1837 = vpop.f32.mrb[0].mxu0
        %v1838 = vpop.f32.mrb[0].mxu0
        %v1839 = vadd.f32 0.0, %v1838
        %v1840 = vpop.f32.mrb[0].mxu0
        %1841 = vdwg.mxu0
        %v1842 = vadd.f32 %v1696, %v1804
        %v1843 = vadd.f32 %v1697, %v1807
        %v1844 = vadd.f32 %v1698, %v1812
        %v1845 = vadd.f32 %v1699, %v1815
        %v1846 = vadd.f32 %v1700, %v1820
        %v1847 = vadd.f32 %v1701, %v1823
        %v1848 = vadd.f32 %v1702, %v1828
        %v1849 = vadd.f32 %v1703, %v1831
        %v1850 = vadd.f32 %v1704, %v1836
        %v1851 = vadd.f32 %v1705, %v1839
        %v1852 = vld [vmem:[#allocation3 + $0x14] sm:$0xff]
        %v1853 = vld [vmem:[#allocation3 + $0x1c] sm:$0xff]
        %v1854 = vld [vmem:[#allocation3 + $0x24] sm:$0xff]
        %v1855 = vld [vmem:[#allocation3 + $0x2c] sm:$0xff]
        %v1856 = vld [vmem:[#allocation3 + $0x34] sm:$0xff]
        %v1857 = vld [vmem:[#allocation3 + $0x3c] sm:$0xff]
        %v1858 = vld [vmem:[#allocation3 + $0x44] sm:$0xff]
        %v1859 = vld [vmem:[#allocation3 + $0x4c] sm:$0xff]
        %v1860 = vld [vmem:[#allocation3 + $0x54] sm:$0xff]
        %v1861 = vld [vmem:[#allocation3 + $0x5c] sm:$0x3f]
        %v1862 = vpack.c.bf16 %v1853, %v1852
        %v1863 = vpack.c.bf16 %v1855, %v1854
        %v1864 = vpack.c.bf16 %v1857, %v1856
        %v1865 = vpack.c.bf16 %v1859, %v1858
        %v1866 = vpack.c.bf16 %v1861, %v1860
        %s1867 = scalar_lea.vmem %s3, 192
        %v1868 = vld [vmem:[%s1867] sm:$0xf]
        %v1869 = vld [vmem:[%s1867 + $0x4] sm:$0xf]
        %v1870 = vld [vmem:[%s1867 + $0x8] sm:$0xf]
        %v1871 = vld [vmem:[%s1867 + $0xc] sm:$0xf]
        %v1872 = vld [vmem:[%s1867 + $0x10] sm:$0xf]
        %v1873 = vld [vmem:[%s1867 + $0x14] sm:$0xf]
        %v1874 = vld [vmem:[%s1867 + $0x18] sm:$0xf]
        %v1875 = vld [vmem:[%s1867 + $0x1c] sm:$0xf]
        %v1884 = vunpack.c.l.b16 %v1868
        %v1885 = vunpack.c.l.b16 %v1869
        %v1886 = vunpack.c.l.b16 %v1870
        %v1887 = vunpack.c.l.b16 %v1871
        %v1888 = vunpack.c.l.b16 %v1872
        %v1889 = vunpack.c.l.b16 %v1873
        %v1890 = vunpack.c.l.b16 %v1874
        %v1891 = vunpack.c.l.b16 %v1875
        %v1892 = vpack.c.b16 %v1885, %v1884
        %v1893 = vpack.c.b16 %v1887, %v1886
        %v1894 = vpack.c.b16 %v1889, %v1888
        %v1895 = vpack.c.b16 %v1891, %v1890
        %v1901 = vsel %vm1067, %v1862, 0
        %v1904 = vsel %vm1067, %v1863, 0
        %v1907 = vsel %vm1067, %v1864, 0
        %v1910 = vsel %vm1067, %v1865, 0
        %v1913 = vsel %vm1067, %v1866, 0
        %1915 = vmatprep.subr.bf16.mxu0 0
        %1916 = vmatpush1.bf16.msra.mxu0 %v1892
        %1917 = vmatprep.subr.bf16.mxu0 0
        %1918 = vmatpush1.bf16.msra.mxu0 %v1893
        %1919 = vmatprep.subr.bf16.mxu0 0
        %1920 = vmatpush1.bf16.msra.mxu0 %v1894
        %1921 = vmatprep.subr.bf16.mxu0 0
        %1922 = vmatpush1.bf16.msra.mxu0 %v1895
        %1923 = vmatprep.subr.bf16.mxu0 0
        %1924 = vmatpush1.bf16.msra.mxu0 0
        %1925 = vmatprep.subr.bf16.mxu0 0
        %1926 = vmatpush1.bf16.msra.mxu0 0
        %1927 = vmatprep.subr.bf16.mxu0 0
        %1928 = vmatpush1.bf16.msra.mxu0 0
        %1929 = vmatprep.subr.bf16.mxu0 0
        %1930 = vmatpush1.bf16.msra.mxu0 0
        %1931 = vmatprep.subr.bf16.mxu0 0
        %1932 = vmatpush1.bf16.msra.mxu0 0
        %1933 = vmatprep.subr.bf16.mxu0 0
        %1934 = vmatpush1.bf16.msra.mxu0 0
        %1935 = vmatprep.subr.bf16.mxu0 0
        %1936 = vmatpush1.bf16.msra.mxu0 0
        %1937 = vmatprep.subr.bf16.mxu0 0
        %1938 = vmatpush1.bf16.msra.mxu0 0
        %1939 = vmatprep.subr.bf16.mxu0 0
        %1940 = vmatpush1.bf16.msra.mxu0 0
        %1941 = vmatprep.subr.bf16.mxu0 0
        %1942 = vmatpush1.bf16.msra.mxu0 0
        %1943 = vmatprep.subr.bf16.mxu0 0
        %1944 = vmatpush1.bf16.msra.mxu0 0
        %1945 = vmatprep.subr.bf16.mxu0 0
        %1946 = vmatpush1.bf16.msra.mxu0 0
        %1947 = vmatprep.mubr.bf16.mxu0 0
        %1948 = vmatmul.mubr.bf16.gmra.mrb[0].mxu0 %v1901
        %v1949 = vpop.f32.mrb[0].mxu0
        %v1950 = vadd.f32 0.0, %v1949
        %v1951 = vpop.f32.mrb[0].mxu0
        %v1952 = vpop.f32.mrb[0].mxu0
        %v1953 = vadd.f32 0.0, %v1952
        %v1954 = vpop.f32.mrb[0].mxu0
        %1955 = vmatprep.mubr.bf16.mxu0 0
        %1956 = vmatmul.mubr.bf16.gmra.mrb[0].mxu0 %v1904
        %v1957 = vpop.f32.mrb[0].mxu0
        %v1958 = vadd.f32 0.0, %v1957
        %v1959 = vpop.f32.mrb[0].mxu0
        %v1960 = vpop.f32.mrb[0].mxu0
        %v1961 = vadd.f32 0.0, %v1960
        %v1962 = vpop.f32.mrb[0].mxu0
        %1963 = vmatprep.mubr.bf16.mxu0 0
        %1964 = vmatmul.mubr.bf16.gmra.mrb[0].mxu0 %v1907
        %v1965 = vpop.f32.mrb[0].mxu0
        %v1966 = vadd.f32 0.0, %v1965
        %v1967 = vpop.f32.mrb[0].mxu0
        %v1968 = vpop.f32.mrb[0].mxu0
        %v1969 = vadd.f32 0.0, %v1968
        %v1970 = vpop.f32.mrb[0].mxu0
        %1971 = vmatprep.mubr.bf16.mxu0 0
        %1972 = vmatmul.mubr.bf16.gmra.mrb[0].mxu0 %v1910
        %v1973 = vpop.f32.mrb[0].mxu0
        %v1974 = vadd.f32 0.0, %v1973
        %v1975 = vpop.f32.mrb[0].mxu0
        %v1976 = vpop.f32.mrb[0].mxu0
        %v1977 = vadd.f32 0.0, %v1976
        %v1978 = vpop.f32.mrb[0].mxu0
        %1979 = vmatprep.mubr.bf16.mxu0 0
        %1980 = vmatmul.mubr.bf16.gmra.mrb[0].mxu0 %v1913
        %v1981 = vpop.f32.mrb[0].mxu0
        %v1982 = vadd.f32 0.0, %v1981
        %v1983 = vpop.f32.mrb[0].mxu0
        %v1984 = vpop.f32.mrb[0].mxu0
        %v1985 = vadd.f32 0.0, %v1984
        %v1986 = vpop.f32.mrb[0].mxu0
        %1987 = vdwg.mxu0
        %v1988 = vadd.f32 %v1842, %v1950
        %v1989 = vadd.f32 %v1843, %v1953
        %v1990 = vadd.f32 %v1844, %v1958
        %v1991 = vadd.f32 %v1845, %v1961
        %v1992 = vadd.f32 %v1846, %v1966
        %v1993 = vadd.f32 %v1847, %v1969
        %v1994 = vadd.f32 %v1848, %v1974
        %v1995 = vadd.f32 %v1849, %v1977
        %v1996 = vadd.f32 %v1850, %v1982
        %v1997 = vadd.f32 %v1851, %v1985
        %v1998 = vld [vmem:[#allocation3 + $0x15] sm:$0xff]
        %v1999 = vld [vmem:[#allocation3 + $0x1d] sm:$0xff]
        %v2000 = vld [vmem:[#allocation3 + $0x25] sm:$0xff]
        %v2001 = vld [vmem:[#allocation3 + $0x2d] sm:$0xff]
        %v2002 = vld [vmem:[#allocation3 + $0x35] sm:$0xff]
        %v2003 = vld [vmem:[#allocation3 + $0x3d] sm:$0xff]
        %v2004 = vld [vmem:[#allocation3 + $0x45] sm:$0xff]
        %v2005 = vld [vmem:[#allocation3 + $0x4d] sm:$0xff]
        %v2006 = vld [vmem:[#allocation3 + $0x55] sm:$0xff]
        %v2007 = vld [vmem:[#allocation3 + $0x5d] sm:$0x3f]
        %v2008 = vpack.c.bf16 %v1999, %v1998
        %v2009 = vpack.c.bf16 %v2001, %v2000
        %v2010 = vpack.c.bf16 %v2003, %v2002
        %v2011 = vpack.c.bf16 %v2005, %v2004
        %v2012 = vpack.c.bf16 %v2007, %v2006
        %s2013 = scalar_lea.vmem %s3, 224
        %v2014 = vld [vmem:[%s2013] sm:$0xf]
        %v2015 = vld [vmem:[%s2013 + $0x4] sm:$0xf]
        %v2016 = vld [vmem:[%s2013 + $0x8] sm:$0xf]
        %v2017 = vld [vmem:[%s2013 + $0xc] sm:$0xf]
        %v2018 = vld [vmem:[%s2013 + $0x10] sm:$0xf]
        %v2019 = vld [vmem:[%s2013 + $0x14] sm:$0xf]
        %v2020 = vld [vmem:[%s2013 + $0x18] sm:$0xf]
        %v2021 = vld [vmem:[%s2013 + $0x1c] sm:$0xf]
        %v2030 = vunpack.c.l.b16 %v2014
        %v2031 = vunpack.c.l.b16 %v2015
        %v2032 = vunpack.c.l.b16 %v2016
        %v2033 = vunpack.c.l.b16 %v2017
        %v2034 = vunpack.c.l.b16 %v2018
        %v2035 = vunpack.c.l.b16 %v2019
        %v2036 = vunpack.c.l.b16 %v2020
        %v2037 = vunpack.c.l.b16 %v2021
        %v2038 = vpack.c.b16 %v2031, %v2030
        %v2039 = vpack.c.b16 %v2033, %v2032
        %v2040 = vpack.c.b16 %v2035, %v2034
        %v2041 = vpack.c.b16 %v2037, %v2036
        %v2047 = vsel %vm1067, %v2008, 0
        %v2050 = vsel %vm1067, %v2009, 0
        %v2053 = vsel %vm1067, %v2010, 0
        %v2056 = vsel %vm1067, %v2011, 0
        %v2059 = vsel %vm1067, %v2012, 0
        %2061 = vmatprep.subr.bf16.mxu0 0
        %2062 = vmatpush1.bf16.msra.mxu0 %v2038
        %2063 = vmatprep.subr.bf16.mxu0 0
        %2064 = vmatpush1.bf16.msra.mxu0 %v2039
        %2065 = vmatprep.subr.bf16.mxu0 0
        %2066 = vmatpush1.bf16.msra.mxu0 %v2040
        %2067 = vmatprep.subr.bf16.mxu0 0
        %2068 = vmatpush1.bf16.msra.mxu0 %v2041
        %2069 = vmatprep.subr.bf16.mxu0 0
        %2070 = vmatpush1.bf16.msra.mxu0 0
        %2071 = vmatprep.subr.bf16.mxu0 0
        %2072 = vmatpush1.bf16.msra.mxu0 0
        %2073 = vmatprep.subr.bf16.mxu0 0
        %2074 = vmatpush1.bf16.msra.mxu0 0
        %2075 = vmatprep.subr.bf16.mxu0 0
        %2076 = vmatpush1.bf16.msra.mxu0 0
        %2077 = vmatprep.subr.bf16.mxu0 0
        %2078 = vmatpush1.bf16.msra.mxu0 0
        %2079 = vmatprep.subr.bf16.mxu0 0
        %2080 = vmatpush1.bf16.msra.mxu0 0
        %2081 = vmatprep.subr.bf16.mxu0 0
        %2082 = vmatpush1.bf16.msra.mxu0 0
        %2083 = vmatprep.subr.bf16.mxu0 0
        %2084 = vmatpush1.bf16.msra.mxu0 0
        %2085 = vmatprep.subr.bf16.mxu0 0
        %2086 = vmatpush1.bf16.msra.mxu0 0
        %2087 = vmatprep.subr.bf16.mxu0 0
        %2088 = vmatpush1.bf16.msra.mxu0 0
        %2089 = vmatprep.subr.bf16.mxu0 0
        %2090 = vmatpush1.bf16.msra.mxu0 0
        %2091 = vmatprep.subr.bf16.mxu0 0
        %2092 = vmatpush1.bf16.msra.mxu0 0
        %2093 = vmatprep.mubr.bf16.mxu0 0
        %2094 = vmatmul.mubr.bf16.gmra.mrb[0].mxu0 %v2047
        %v2095 = vpop.f32.mrb[0].mxu0
        %v2096 = vadd.f32 0.0, %v2095
        %v2097 = vpop.f32.mrb[0].mxu0
        %v2098 = vpop.f32.mrb[0].mxu0
        %v2099 = vadd.f32 0.0, %v2098
        %v2100 = vpop.f32.mrb[0].mxu0
        %2101 = vmatprep.mubr.bf16.mxu0 0
        %2102 = vmatmul.mubr.bf16.gmra.mrb[0].mxu0 %v2050
        %v2103 = vpop.f32.mrb[0].mxu0
        %v2104 = vadd.f32 0.0, %v2103
        %v2105 = vpop.f32.mrb[0].mxu0
        %v2106 = vpop.f32.mrb[0].mxu0
        %v2107 = vadd.f32 0.0, %v2106
        %v2108 = vpop.f32.mrb[0].mxu0
        %2109 = vmatprep.mubr.bf16.mxu0 0
        %2110 = vmatmul.mubr.bf16.gmra.mrb[0].mxu0 %v2053
        %v2111 = vpop.f32.mrb[0].mxu0
        %v2112 = vadd.f32 0.0, %v2111
        %v2113 = vpop.f32.mrb[0].mxu0
        %v2114 = vpop.f32.mrb[0].mxu0
        %v2115 = vadd.f32 0.0, %v2114
        %v2116 = vpop.f32.mrb[0].mxu0
        %2117 = vmatprep.mubr.bf16.mxu0 0
        %2118 = vmatmul.mubr.bf16.gmra.mrb[0].mxu0 %v2056
        %v2119 = vpop.f32.mrb[0].mxu0
        %v2120 = vadd.f32 0.0, %v2119
        %v2121 = vpop.f32.mrb[0].mxu0
        %v2122 = vpop.f32.mrb[0].mxu0
        %v2123 = vadd.f32 0.0, %v2122
        %v2124 = vpop.f32.mrb[0].mxu0
        %2125 = vmatprep.mubr.bf16.mxu0 0
        %2126 = vmatmul.mubr.bf16.gmra.mrb[0].mxu0 %v2059
        %v2127 = vpop.f32.mrb[0].mxu0
        %v2128 = vadd.f32 0.0, %v2127
        %v2129 = vpop.f32.mrb[0].mxu0
        %v2130 = vpop.f32.mrb[0].mxu0
        %v2131 = vadd.f32 0.0, %v2130
        %v2132 = vpop.f32.mrb[0].mxu0
        %2133 = vdwg.mxu0
        %v2134 = vadd.f32 %v1988, %v2096
        %v2135 = vadd.f32 %v1989, %v2099
        %v2136 = vadd.f32 %v1990, %v2104
        %v2137 = vadd.f32 %v1991, %v2107
        %v2138 = vadd.f32 %v1992, %v2112
        %v2139 = vadd.f32 %v1993, %v2115
        %v2140 = vadd.f32 %v1994, %v2120
        %v2141 = vadd.f32 %v1995, %v2123
        %v2142 = vadd.f32 %v1996, %v2128
        %v2143 = vadd.f32 %v1997, %v2131
        %v2144 = vld [vmem:[#allocation3 + $0x16] sm:$0xff]
        %v2145 = vld [vmem:[#allocation3 + $0x1e] sm:$0xff]
        %v2146 = vld [vmem:[#allocation3 + $0x26] sm:$0xff]
        %v2147 = vld [vmem:[#allocation3 + $0x2e] sm:$0xff]
        %v2148 = vld [vmem:[#allocation3 + $0x36] sm:$0xff]
        %v2149 = vld [vmem:[#allocation3 + $0x3e] sm:$0xff]
        %v2150 = vld [vmem:[#allocation3 + $0x46] sm:$0xff]
        %v2151 = vld [vmem:[#allocation3 + $0x4e] sm:$0xff]
        %v2152 = vld [vmem:[#allocation3 + $0x56] sm:$0xff]
        %v2153 = vld [vmem:[#allocation3 + $0x5e] sm:$0x3f]
        %v2154 = vpack.c.bf16 %v2145, %v2144
        %v2155 = vpack.c.bf16 %v2147, %v2146
        %v2156 = vpack.c.bf16 %v2149, %v2148
        %v2157 = vpack.c.bf16 %v2151, %v2150
        %v2158 = vpack.c.bf16 %v2153, %v2152
        %s2159 = scalar_lea.vmem %s3, 256
        %v2160 = vld [vmem:[%s2159] sm:$0xf]
        %v2161 = vld [vmem:[%s2159 + $0x4] sm:$0xf]
        %v2162 = vld [vmem:[%s2159 + $0x8] sm:$0xf]
        %v2163 = vld [vmem:[%s2159 + $0xc] sm:$0xf]
        %v2164 = vld [vmem:[%s2159 + $0x10] sm:$0xf]
        %v2165 = vld [vmem:[%s2159 + $0x14] sm:$0xf]
        %v2166 = vld [vmem:[%s2159 + $0x18] sm:$0xf]
        %v2167 = vld [vmem:[%s2159 + $0x1c] sm:$0xf]
        %v2176 = vunpack.c.l.b16 %v2160
        %v2177 = vunpack.c.l.b16 %v2161
        %v2178 = vunpack.c.l.b16 %v2162
        %v2179 = vunpack.c.l.b16 %v2163
        %v2180 = vunpack.c.l.b16 %v2164
        %v2181 = vunpack.c.l.b16 %v2165
        %v2182 = vunpack.c.l.b16 %v2166
        %v2183 = vunpack.c.l.b16 %v2167
        %v2184 = vpack.c.b16 %v2177, %v2176
        %v2185 = vpack.c.b16 %v2179, %v2178
        %v2186 = vpack.c.b16 %v2181, %v2180
        %v2187 = vpack.c.b16 %v2183, %v2182
        %v2193 = vsel %vm1067, %v2154, 0
        %v2196 = vsel %vm1067, %v2155, 0
        %v2199 = vsel %vm1067, %v2156, 0
        %v2202 = vsel %vm1067, %v2157, 0
        %v2205 = vsel %vm1067, %v2158, 0
        %2207 = vmatprep.subr.bf16.mxu0 0
        %2208 = vmatpush1.bf16.msra.mxu0 %v2184
        %2209 = vmatprep.subr.bf16.mxu0 0
        %2210 = vmatpush1.bf16.msra.mxu0 %v2185
        %2211 = vmatprep.subr.bf16.mxu0 0
        %2212 = vmatpush1.bf16.msra.mxu0 %v2186
        %2213 = vmatprep.subr.bf16.mxu0 0
        %2214 = vmatpush1.bf16.msra.mxu0 %v2187
        %2215 = vmatprep.subr.bf16.mxu0 0
        %2216 = vmatpush1.bf16.msra.mxu0 0
        %2217 = vmatprep.subr.bf16.mxu0 0
        %2218 = vmatpush1.bf16.msra.mxu0 0
        %2219 = vmatprep.subr.bf16.mxu0 0
        %2220 = vmatpush1.bf16.msra.mxu0 0
        %2221 = vmatprep.subr.bf16.mxu0 0
        %2222 = vmatpush1.bf16.msra.mxu0 0
        %2223 = vmatprep.subr.bf16.mxu0 0
        %2224 = vmatpush1.bf16.msra.mxu0 0
        %2225 = vmatprep.subr.bf16.mxu0 0
        %2226 = vmatpush1.bf16.msra.mxu0 0
        %2227 = vmatprep.subr.bf16.mxu0 0
        %2228 = vmatpush1.bf16.msra.mxu0 0
        %2229 = vmatprep.subr.bf16.mxu0 0
        %2230 = vmatpush1.bf16.msra.mxu0 0
        %2231 = vmatprep.subr.bf16.mxu0 0
        %2232 = vmatpush1.bf16.msra.mxu0 0
        %2233 = vmatprep.subr.bf16.mxu0 0
        %2234 = vmatpush1.bf16.msra.mxu0 0
        %2235 = vmatprep.subr.bf16.mxu0 0
        %2236 = vmatpush1.bf16.msra.mxu0 0
        %2237 = vmatprep.subr.bf16.mxu0 0
        %2238 = vmatpush1.bf16.msra.mxu0 0
        %2239 = vmatprep.mubr.bf16.mxu0 0
        %2240 = vmatmul.mubr.bf16.gmra.mrb[0].mxu0 %v2193
        %v2241 = vpop.f32.mrb[0].mxu0
        %v2242 = vadd.f32 0.0, %v2241
        %v2243 = vpop.f32.mrb[0].mxu0
        %v2244 = vpop.f32.mrb[0].mxu0
        %v2245 = vadd.f32 0.0, %v2244
        %v2246 = vpop.f32.mrb[0].mxu0
        %2247 = vmatprep.mubr.bf16.mxu0 0
        %2248 = vmatmul.mubr.bf16.gmra.mrb[0].mxu0 %v2196
        %v2249 = vpop.f32.mrb[0].mxu0
        %v2250 = vadd.f32 0.0, %v2249
        %v2251 = vpop.f32.mrb[0].mxu0
        %v2252 = vpop.f32.mrb[0].mxu0
        %v2253 = vadd.f32 0.0, %v2252
        %v2254 = vpop.f32.mrb[0].mxu0
        %2255 = vmatprep.mubr.bf16.mxu0 0
        %2256 = vmatmul.mubr.bf16.gmra.mrb[0].mxu0 %v2199
        %v2257 = vpop.f32.mrb[0].mxu0
        %v2258 = vadd.f32 0.0, %v2257
        %v2259 = vpop.f32.mrb[0].mxu0
        %v2260 = vpop.f32.mrb[0].mxu0
        %v2261 = vadd.f32 0.0, %v2260
        %v2262 = vpop.f32.mrb[0].mxu0
        %2263 = vmatprep.mubr.bf16.mxu0 0
        %2264 = vmatmul.mubr.bf16.gmra.mrb[0].mxu0 %v2202
        %v2265 = vpop.f32.mrb[0].mxu0
        %v2266 = vadd.f32 0.0, %v2265
        %v2267 = vpop.f32.mrb[0].mxu0
        %v2268 = vpop.f32.mrb[0].mxu0
        %v2269 = vadd.f32 0.0, %v2268
        %v2270 = vpop.f32.mrb[0].mxu0
        %2271 = vmatprep.mubr.bf16.mxu0 0
        %2272 = vmatmul.mubr.bf16.gmra.mrb[0].mxu0 %v2205
        %v2273 = vpop.f32.mrb[0].mxu0
        %v2274 = vadd.f32 0.0, %v2273
        %v2275 = vpop.f32.mrb[0].mxu0
        %v2276 = vpop.f32.mrb[0].mxu0
        %v2277 = vadd.f32 0.0, %v2276
        %v2278 = vpop.f32.mrb[0].mxu0
        %2279 = vdwg.mxu0
        %v2280 = vadd.f32 %v2134, %v2242
        %v2281 = vadd.f32 %v2135, %v2245
        %v2282 = vadd.f32 %v2136, %v2250
        %v2283 = vadd.f32 %v2137, %v2253
        %v2284 = vadd.f32 %v2138, %v2258
        %v2285 = vadd.f32 %v2139, %v2261
        %v2286 = vadd.f32 %v2140, %v2266
        %v2287 = vadd.f32 %v2141, %v2269
        %v2288 = vadd.f32 %v2142, %v2274
        %v2289 = vadd.f32 %v2143, %v2277
        %v2290 = vld [vmem:[%s12] sm:$0x1]
        %v2292 = vlaneseq
        %v2293 = vshrl.u32 %v2292, 7
        %v2294 = vsub.s32 0, %v2293
        %v2295 = vrot.slane %v2290, %v2294
        %v2297 = vadd.f32 %v2280, %v2295
        %v2298 = vadd.f32 %v2281, %v2295
        %v2299 = vadd.f32 %v2282, %v2295
        %v2300 = vadd.f32 %v2283, %v2295
        %v2301 = vadd.f32 %v2284, %v2295
        %v2302 = vadd.f32 %v2285, %v2295
        %v2303 = vadd.f32 %v2286, %v2295
        %v2304 = vadd.f32 %v2287, %v2295
        %v2305 = vadd.f32 %v2288, %v2295
        %v2306 = vadd.f32 %v2289, %v2295
        %v2307 = vmax.f32 %v2297, 0.0
        %v2308 = vmax.f32 %v2298, 0.0
        %v2309 = vmax.f32 %v2299, 0.0
        %v2310 = vmax.f32 %v2300, 0.0
        %v2311 = vmax.f32 %v2301, 0.0
        %v2312 = vmax.f32 %v2302, 0.0
        %v2313 = vmax.f32 %v2303, 0.0
        %v2314 = vmax.f32 %v2304, 0.0
        %v2315 = vmax.f32 %v2305, 0.0
        %v2316 = vmax.f32 %v2306, 0.0
        %2317 = vst [vmem:[#allocation2] sm:$0xff] %v2307
        %2318 = vst [vmem:[#allocation2 + $0x8] sm:$0xff] %v2308
        %2319 = vst [vmem:[#allocation2 + $0x10] sm:$0xff] %v2309
        %2320 = vst [vmem:[#allocation2 + $0x18] sm:$0xff] %v2310
        %2321 = vst [vmem:[#allocation2 + $0x20] sm:$0xff] %v2311
        %2322 = vst [vmem:[#allocation2 + $0x28] sm:$0xff] %v2312
        %2323 = vst [vmem:[#allocation2 + $0x30] sm:$0xff] %v2313
        %2324 = vst [vmem:[#allocation2 + $0x38] sm:$0xff] %v2314
        %2325 = vst [vmem:[#allocation2 + $0x40] sm:$0xff] %v2315
        %2326 = vst [vmem:[#allocation2 + $0x48] sm:$0x3f] %v2316
        %v2327 = vld [vmem:[#allocation2] sm:$0xff]
        %2328 = vst [vmem:[#allocation4 + $0xb] sm:$0xff] %v2327
        %v2329 = vld [vmem:[#allocation2 + $0xa] sm:$0xff]
        %2330 = vst [vmem:[#allocation4 + $0x15] sm:$0xff] %v2329
        %v2331 = vld [vmem:[#allocation2 + $0x14] sm:$0xff]
        %2332 = vst [vmem:[#allocation4 + $0x1f] sm:$0xff] %v2331
        %v2333 = vld [vmem:[#allocation2 + $0x1e] sm:$0xff]
        %2334 = vst [vmem:[#allocation4 + $0x29] sm:$0xff] %v2333
        %v2335 = vld [vmem:[#allocation2 + $0x28] sm:$0xff]
        %2336 = vst [vmem:[#allocation4 + $0x33] sm:$0xff] %v2335
        %v2337 = vld [vmem:[#allocation2 + $0x32] sm:$0xff]
        %2338 = vst [vmem:[#allocation4 + $0x3d] sm:$0xff] %v2337
        %v2339 = vld [vmem:[#allocation2 + $0x3c] sm:$0xff]
        %2340 = vst [vmem:[#allocation4 + $0x47] sm:$0xff] %v2339
        %v2341 = vld [vmem:[#allocation2 + $0x46] sm:$0xff]
        %2342 = vst [vmem:[#allocation4 + $0x51] sm:$0xff] %v2341
        %v2343 = vld [vmem:[#allocation4] sm:$0xff]
        %v2344 = vld [vmem:[#allocation4 + $0x8] sm:$0xff]
        %v2345 = vld [vmem:[#allocation4 + $0x10] sm:$0xff]
        %v2346 = vld [vmem:[#allocation4 + $0x18] sm:$0xff]
        %v2347 = vld [vmem:[#allocation4 + $0x20] sm:$0xff]
        %v2348 = vld [vmem:[#allocation4 + $0x28] sm:$0xff]
        %v2349 = vld [vmem:[#allocation4 + $0x30] sm:$0xff]
        %v2350 = vld [vmem:[#allocation4 + $0x38] sm:$0xff]
        %v2351 = vld [vmem:[#allocation4 + $0x40] sm:$0xff]
        %v2352 = vld [vmem:[#allocation4 + $0x48] sm:$0x3f]
        %v2353 = vpack.c.bf16 %v2344, %v2343
        %v2354 = vpack.c.bf16 %v2346, %v2345
        %v2355 = vpack.c.bf16 %v2348, %v2347
        %v2356 = vpack.c.bf16 %v2350, %v2349
        %v2357 = vpack.c.bf16 %v2352, %v2351
        %v2358 = vld [vmem:[%s4] sm:$0xf]
        %v2359 = vld [vmem:[%s4 + $0x4] sm:$0xf]
        %v2360 = vld [vmem:[#allocation4 + $0x1] sm:$0xff]
        %v2361 = vld [vmem:[#allocation4 + $0x9] sm:$0xff]
        %v2362 = vld [vmem:[#allocation4 + $0x11] sm:$0xff]
        %v2363 = vld [vmem:[#allocation4 + $0x19] sm:$0xff]
        %v2364 = vld [vmem:[#allocation4 + $0x21] sm:$0xff]
        %v2365 = vld [vmem:[#allocation4 + $0x29] sm:$0xff]
        %v2366 = vld [vmem:[#allocation4 + $0x31] sm:$0xff]
        %v2367 = vld [vmem:[#allocation4 + $0x39] sm:$0xff]
        %v2368 = vld [vmem:[#allocation4 + $0x41] sm:$0xff]
        %v2369 = vld [vmem:[#allocation4 + $0x49] sm:$0x3f]
        %v2370 = vpack.c.bf16 %v2361, %v2360
        %v2371 = vpack.c.bf16 %v2363, %v2362
        %v2372 = vpack.c.bf16 %v2365, %v2364
        %v2373 = vpack.c.bf16 %v2367, %v2366
        %v2374 = vpack.c.bf16 %v2369, %v2368
        %s2375 = scalar_lea.vmem %s4, 8
        %v2376 = vld [vmem:[%s2375] sm:$0xf]
        %v2377 = vld [vmem:[%s2375 + $0x4] sm:$0xf]
        %v2380 = vunpack.c.l.b16 %v2376
        %v2381 = vunpack.c.l.b16 %v2377
        %v2382 = vpack.c.b16 %v2381, %v2380
        %vm2384 = vcmask 130048
        %v2386 = vsel %vm2384, %v2370, 0
        %v2389 = vsel %vm2384, %v2371, 0
        %v2392 = vsel %vm2384, %v2372, 0
        %v2395 = vsel %vm2384, %v2373, 0
        %v2398 = vsel %vm2384, %v2374, 0
        %2400 = vmatprep.subr.bf16.mxu0 0
        %2401 = vmatpush1.bf16.msra.mxu0 %v2382
        %2402 = vmatprep.subr.bf16.mxu0 0
        %2403 = vmatpush1.bf16.msra.mxu0 0
        %2404 = vmatprep.subr.bf16.mxu0 0
        %2405 = vmatpush1.bf16.msra.mxu0 0
        %2406 = vmatprep.subr.bf16.mxu0 0
        %2407 = vmatpush1.bf16.msra.mxu0 0
        %2408 = vmatprep.subr.bf16.mxu0 0
        %2409 = vmatpush1.bf16.msra.mxu0 0
        %2410 = vmatprep.subr.bf16.mxu0 0
        %2411 = vmatpush1.bf16.msra.mxu0 0
        %2412 = vmatprep.subr.bf16.mxu0 0
        %2413 = vmatpush1.bf16.msra.mxu0 0
        %2414 = vmatprep.subr.bf16.mxu0 0
        %2415 = vmatpush1.bf16.msra.mxu0 0
        %2416 = vmatprep.subr.bf16.mxu0 0
        %2417 = vmatpush1.bf16.msra.mxu0 0
        %2418 = vmatprep.subr.bf16.mxu0 0
        %2419 = vmatpush1.bf16.msra.mxu0 0
        %2420 = vmatprep.subr.bf16.mxu0 0
        %2421 = vmatpush1.bf16.msra.mxu0 0
        %2422 = vmatprep.subr.bf16.mxu0 0
        %2423 = vmatpush1.bf16.msra.mxu0 0
        %2424 = vmatprep.subr.bf16.mxu0 0
        %2425 = vmatpush1.bf16.msra.mxu0 0
        %2426 = vmatprep.subr.bf16.mxu0 0
        %2427 = vmatpush1.bf16.msra.mxu0 0
        %2428 = vmatprep.subr.bf16.mxu0 0
        %2429 = vmatpush1.bf16.msra.mxu0 0
        %2430 = vmatprep.subr.bf16.mxu0 0
        %2431 = vmatpush1.bf16.msra.mxu0 0
        %2432 = vmatprep.mubr.bf16.mxu0 0
        %2433 = vmatmul.mubr.bf16.gmra.mrb[0].mxu0 %v2386
        %v2434 = vpop.f32.mrb[0].mxu0
        %v2435 = vadd.f32 0.0, %v2434
        %v2436 = vpop.f32.mrb[0].mxu0
        %v2437 = vpop.f32.mrb[0].mxu0
        %v2438 = vadd.f32 0.0, %v2437
        %v2439 = vpop.f32.mrb[0].mxu0
        %2440 = vmatprep.mubr.bf16.mxu0 0
        %2441 = vmatmul.mubr.bf16.gmra.mrb[0].mxu0 %v2389
        %v2442 = vpop.f32.mrb[0].mxu0
        %v2443 = vadd.f32 0.0, %v2442
        %v2444 = vpop.f32.mrb[0].mxu0
        %v2445 = vpop.f32.mrb[0].mxu0
        %v2446 = vadd.f32 0.0, %v2445
        %v2447 = vpop.f32.mrb[0].mxu0
        %2448 = vmatprep.mubr.bf16.mxu0 0
        %2449 = vmatmul.mubr.bf16.gmra.mrb[0].mxu0 %v2392
        %v2450 = vpop.f32.mrb[0].mxu0
        %v2451 = vadd.f32 0.0, %v2450
        %v2452 = vpop.f32.mrb[0].mxu0
        %v2453 = vpop.f32.mrb[0].mxu0
        %v2454 = vadd.f32 0.0, %v2453
        %v2455 = vpop.f32.mrb[0].mxu0
        %2456 = vmatprep.mubr.bf16.mxu0 0
        %2457 = vmatmul.mubr.bf16.gmra.mrb[0].mxu0 %v2395
        %v2458 = vpop.f32.mrb[0].mxu0
        %v2459 = vadd.f32 0.0, %v2458
        %v2460 = vpop.f32.mrb[0].mxu0
        %v2461 = vpop.f32.mrb[0].mxu0
        %v2462 = vadd.f32 0.0, %v2461
        %v2463 = vpop.f32.mrb[0].mxu0
        %2464 = vmatprep.mubr.bf16.mxu0 0
        %2465 = vmatmul.mubr.bf16.gmra.mrb[0].mxu0 %v2398
        %v2466 = vpop.f32.mrb[0].mxu0
        %v2467 = vadd.f32 0.0, %v2466
        %v2468 = vpop.f32.mrb[0].mxu0
        %v2469 = vpop.f32.mrb[0].mxu0
        %v2470 = vadd.f32 0.0, %v2469
        %v2471 = vpop.f32.mrb[0].mxu0
        %2472 = vdwg.mxu0
        %v2475 = vunpack.c.l.b16 %v2358
        %v2476 = vunpack.c.l.b16 %v2359
        %v2477 = vpack.c.b16 %v2476, %v2475
        %v2480 = vsel %vm2384, %v2353, 0
        %v2483 = vsel %vm2384, %v2354, 0
        %v2486 = vsel %vm2384, %v2355, 0
        %v2489 = vsel %vm2384, %v2356, 0
        %v2492 = vsel %vm2384, %v2357, 0
        %2494 = vmatprep.subr.bf16.mxu0 0
        %2495 = vmatpush1.bf16.msra.mxu0 %v2477
        %2496 = vmatprep.subr.bf16.mxu0 0
        %2497 = vmatpush1.bf16.msra.mxu0 0
        %2498 = vmatprep.subr.bf16.mxu0 0
        %2499 = vmatpush1.bf16.msra.mxu0 0
        %2500 = vmatprep.subr.bf16.mxu0 0
        %2501 = vmatpush1.bf16.msra.mxu0 0
        %2502 = vmatprep.subr.bf16.mxu0 0
        %2503 = vmatpush1.bf16.msra.mxu0 0
        %2504 = vmatprep.subr.bf16.mxu0 0
        %2505 = vmatpush1.bf16.msra.mxu0 0
        %2506 = vmatprep.subr.bf16.mxu0 0
        %2507 = vmatpush1.bf16.msra.mxu0 0
        %2508 = vmatprep.subr.bf16.mxu0 0
        %2509 = vmatpush1.bf16.msra.mxu0 0
        %2510 = vmatprep.subr.bf16.mxu0 0
        %2511 = vmatpush1.bf16.msra.mxu0 0
        %2512 = vmatprep.subr.bf16.mxu0 0
        %2513 = vmatpush1.bf16.msra.mxu0 0
        %2514 = vmatprep.subr.bf16.mxu0 0
        %2515 = vmatpush1.bf16.msra.mxu0 0
        %2516 = vmatprep.subr.bf16.mxu0 0
        %2517 = vmatpush1.bf16.msra.mxu0 0
        %2518 = vmatprep.subr.bf16.mxu0 0
        %2519 = vmatpush1.bf16.msra.mxu0 0
        %2520 = vmatprep.subr.bf16.mxu0 0
        %2521 = vmatpush1.bf16.msra.mxu0 0
        %2522 = vmatprep.subr.bf16.mxu0 0
        %2523 = vmatpush1.bf16.msra.mxu0 0
        %2524 = vmatprep.subr.bf16.mxu0 0
        %2525 = vmatpush1.bf16.msra.mxu0 0
        %2526 = vmatprep.mubr.bf16.mxu0 0
        %2527 = vmatmul.mubr.bf16.gmra.mrb[0].mxu0 %v2480
        %v2528 = vpop.f32.mrb[0].mxu0
        %v2529 = vadd.f32 %v2435, %v2528
        %v2530 = vpop.f32.mrb[0].mxu0
        %v2531 = vpop.f32.mrb[0].mxu0
        %v2532 = vadd.f32 %v2438, %v2531
        %v2533 = vpop.f32.mrb[0].mxu0
        %2534 = vmatprep.mubr.bf16.mxu0 0
        %2535 = vmatmul.mubr.bf16.gmra.mrb[0].mxu0 %v2483
        %v2536 = vpop.f32.mrb[0].mxu0
        %v2537 = vadd.f32 %v2443, %v2536
        %v2538 = vpop.f32.mrb[0].mxu0
        %v2539 = vpop.f32.mrb[0].mxu0
        %v2540 = vadd.f32 %v2446, %v2539
        %v2541 = vpop.f32.mrb[0].mxu0
        %2542 = vmatprep.mubr.bf16.mxu0 0
        %2543 = vmatmul.mubr.bf16.gmra.mrb[0].mxu0 %v2486
        %v2544 = vpop.f32.mrb[0].mxu0
        %v2545 = vadd.f32 %v2451, %v2544
        %v2546 = vpop.f32.mrb[0].mxu0
        %v2547 = vpop.f32.mrb[0].mxu0
        %v2548 = vadd.f32 %v2454, %v2547
        %v2549 = vpop.f32.mrb[0].mxu0
        %2550 = vmatprep.mubr.bf16.mxu0 0
        %2551 = vmatmul.mubr.bf16.gmra.mrb[0].mxu0 %v2489
        %v2552 = vpop.f32.mrb[0].mxu0
        %v2553 = vadd.f32 %v2459, %v2552
        %v2554 = vpop.f32.mrb[0].mxu0
        %v2555 = vpop.f32.mrb[0].mxu0
        %v2556 = vadd.f32 %v2462, %v2555
        %v2557 = vpop.f32.mrb[0].mxu0
        %2558 = vmatprep.mubr.bf16.mxu0 0
        %2559 = vmatmul.mubr.bf16.gmra.mrb[0].mxu0 %v2492
        %v2560 = vpop.f32.mrb[0].mxu0
        %v2561 = vadd.f32 %v2467, %v2560
        %v2562 = vpop.f32.mrb[0].mxu0
        %v2563 = vpop.f32.mrb[0].mxu0
        %v2564 = vadd.f32 %v2470, %v2563
        %v2565 = vpop.f32.mrb[0].mxu0
        %2566 = vdwg.mxu0
        %v2567 = vld [vmem:[#allocation4 + $0x2] sm:$0xff]
        %v2568 = vld [vmem:[#allocation4 + $0xa] sm:$0xff]
        %v2569 = vld [vmem:[#allocation4 + $0x12] sm:$0xff]
        %v2570 = vld [vmem:[#allocation4 + $0x1a] sm:$0xff]
        %v2571 = vld [vmem:[#allocation4 + $0x22] sm:$0xff]
        %v2572 = vld [vmem:[#allocation4 + $0x2a] sm:$0xff]
        %v2573 = vld [vmem:[#allocation4 + $0x32] sm:$0xff]
        %v2574 = vld [vmem:[#allocation4 + $0x3a] sm:$0xff]
        %v2575 = vld [vmem:[#allocation4 + $0x42] sm:$0xff]
        %v2576 = vld [vmem:[#allocation4 + $0x4a] sm:$0x3f]
        %v2577 = vpack.c.bf16 %v2568, %v2567
        %v2578 = vpack.c.bf16 %v2570, %v2569
        %v2579 = vpack.c.bf16 %v2572, %v2571
        %v2580 = vpack.c.bf16 %v2574, %v2573
        %v2581 = vpack.c.bf16 %v2576, %v2575
        %s2582 = scalar_lea.vmem %s4, 16
        %v2583 = vld [vmem:[%s2582] sm:$0xf]
        %v2584 = vld [vmem:[%s2582 + $0x4] sm:$0xf]
        %v2587 = vunpack.c.l.b16 %v2583
        %v2588 = vunpack.c.l.b16 %v2584
        %v2589 = vpack.c.b16 %v2588, %v2587
        %v2592 = vsel %vm2384, %v2577, 0
        %v2595 = vsel %vm2384, %v2578, 0
        %v2598 = vsel %vm2384, %v2579, 0
        %v2601 = vsel %vm2384, %v2580, 0
        %v2604 = vsel %vm2384, %v2581, 0
        %2606 = vmatprep.subr.bf16.mxu0 0
        %2607 = vmatpush1.bf16.msra.mxu0 %v2589
        %2608 = vmatprep.subr.bf16.mxu0 0
        %2609 = vmatpush1.bf16.msra.mxu0 0
        %2610 = vmatprep.subr.bf16.mxu0 0
        %2611 = vmatpush1.bf16.msra.mxu0 0
        %2612 = vmatprep.subr.bf16.mxu0 0
        %2613 = vmatpush1.bf16.msra.mxu0 0
        %2614 = vmatprep.subr.bf16.mxu0 0
        %2615 = vmatpush1.bf16.msra.mxu0 0
        %2616 = vmatprep.subr.bf16.mxu0 0
        %2617 = vmatpush1.bf16.msra.mxu0 0
        %2618 = vmatprep.subr.bf16.mxu0 0
        %2619 = vmatpush1.bf16.msra.mxu0 0
        %2620 = vmatprep.subr.bf16.mxu0 0
        %2621 = vmatpush1.bf16.msra.mxu0 0
        %2622 = vmatprep.subr.bf16.mxu0 0
        %2623 = vmatpush1.bf16.msra.mxu0 0
        %2624 = vmatprep.subr.bf16.mxu0 0
        %2625 = vmatpush1.bf16.msra.mxu0 0
        %2626 = vmatprep.subr.bf16.mxu0 0
        %2627 = vmatpush1.bf16.msra.mxu0 0
        %2628 = vmatprep.subr.bf16.mxu0 0
        %2629 = vmatpush1.bf16.msra.mxu0 0
        %2630 = vmatprep.subr.bf16.mxu0 0
        %2631 = vmatpush1.bf16.msra.mxu0 0
        %2632 = vmatprep.subr.bf16.mxu0 0
        %2633 = vmatpush1.bf16.msra.mxu0 0
        %2634 = vmatprep.subr.bf16.mxu0 0
        %2635 = vmatpush1.bf16.msra.mxu0 0
        %2636 = vmatprep.subr.bf16.mxu0 0
        %2637 = vmatpush1.bf16.msra.mxu0 0
        %2638 = vmatprep.mubr.bf16.mxu0 0
        %2639 = vmatmul.mubr.bf16.gmra.mrb[0].mxu0 %v2592
        %v2640 = vpop.f32.mrb[0].mxu0
        %v2641 = vadd.f32 0.0, %v2640
        %v2642 = vpop.f32.mrb[0].mxu0
        %v2643 = vpop.f32.mrb[0].mxu0
        %v2644 = vadd.f32 0.0, %v2643
        %v2645 = vpop.f32.mrb[0].mxu0
        %2646 = vmatprep.mubr.bf16.mxu0 0
        %2647 = vmatmul.mubr.bf16.gmra.mrb[0].mxu0 %v2595
        %v2648 = vpop.f32.mrb[0].mxu0
        %v2649 = vadd.f32 0.0, %v2648
        %v2650 = vpop.f32.mrb[0].mxu0
        %v2651 = vpop.f32.mrb[0].mxu0
        %v2652 = vadd.f32 0.0, %v2651
        %v2653 = vpop.f32.mrb[0].mxu0
        %2654 = vmatprep.mubr.bf16.mxu0 0
        %2655 = vmatmul.mubr.bf16.gmra.mrb[0].mxu0 %v2598
        %v2656 = vpop.f32.mrb[0].mxu0
        %v2657 = vadd.f32 0.0, %v2656
        %v2658 = vpop.f32.mrb[0].mxu0
        %v2659 = vpop.f32.mrb[0].mxu0
        %v2660 = vadd.f32 0.0, %v2659
        %v2661 = vpop.f32.mrb[0].mxu0
        %2662 = vmatprep.mubr.bf16.mxu0 0
        %2663 = vmatmul.mubr.bf16.gmra.mrb[0].mxu0 %v2601
        %v2664 = vpop.f32.mrb[0].mxu0
        %v2665 = vadd.f32 0.0, %v2664
        %v2666 = vpop.f32.mrb[0].mxu0
        %v2667 = vpop.f32.mrb[0].mxu0
        %v2668 = vadd.f32 0.0, %v2667
        %v2669 = vpop.f32.mrb[0].mxu0
        %2670 = vmatprep.mubr.bf16.mxu0 0
        %2671 = vmatmul.mubr.bf16.gmra.mrb[0].mxu0 %v2604
        %v2672 = vpop.f32.mrb[0].mxu0
        %v2673 = vadd.f32 0.0, %v2672
        %v2674 = vpop.f32.mrb[0].mxu0
        %v2675 = vpop.f32.mrb[0].mxu0
        %v2676 = vadd.f32 0.0, %v2675
        %v2677 = vpop.f32.mrb[0].mxu0
        %2678 = vdwg.mxu0
        %v2679 = vadd.f32 %v2529, %v2641
        %v2680 = vadd.f32 %v2532, %v2644
        %v2681 = vadd.f32 %v2537, %v2649
        %v2682 = vadd.f32 %v2540, %v2652
        %v2683 = vadd.f32 %v2545, %v2657
        %v2684 = vadd.f32 %v2548, %v2660
        %v2685 = vadd.f32 %v2553, %v2665
        %v2686 = vadd.f32 %v2556, %v2668
        %v2687 = vadd.f32 %v2561, %v2673
        %v2688 = vadd.f32 %v2564, %v2676
        %v2689 = vld [vmem:[#allocation4 + $0xa] sm:$0xff]
        %v2690 = vld [vmem:[#allocation4 + $0x12] sm:$0xff]
        %v2691 = vld [vmem:[#allocation4 + $0x1a] sm:$0xff]
        %v2692 = vld [vmem:[#allocation4 + $0x22] sm:$0xff]
        %v2693 = vld [vmem:[#allocation4 + $0x2a] sm:$0xff]
        %v2694 = vld [vmem:[#allocation4 + $0x32] sm:$0xff]
        %v2695 = vld [vmem:[#allocation4 + $0x3a] sm:$0xff]
        %v2696 = vld [vmem:[#allocation4 + $0x42] sm:$0xff]
        %v2697 = vld [vmem:[#allocation4 + $0x4a] sm:$0xff]
        %v2698 = vld [vmem:[#allocation4 + $0x52] sm:$0x3f]
        %v2699 = vpack.c.bf16 %v2690, %v2689
        %v2700 = vpack.c.bf16 %v2692, %v2691
        %v2701 = vpack.c.bf16 %v2694, %v2693
        %v2702 = vpack.c.bf16 %v2696, %v2695
        %v2703 = vpack.c.bf16 %v2698, %v2697
        %s2704 = scalar_lea.vmem %s4, 24
        %v2705 = vld [vmem:[%s2704] sm:$0xf]
        %v2706 = vld [vmem:[%s2704 + $0x4] sm:$0xf]
        %v2709 = vunpack.c.l.b16 %v2705
        %v2710 = vunpack.c.l.b16 %v2706
        %v2711 = vpack.c.b16 %v2710, %v2709
        %v2714 = vsel %vm2384, %v2699, 0
        %v2717 = vsel %vm2384, %v2700, 0
        %v2720 = vsel %vm2384, %v2701, 0
        %v2723 = vsel %vm2384, %v2702, 0
        %v2726 = vsel %vm2384, %v2703, 0
        %2728 = vmatprep.subr.bf16.mxu0 0
        %2729 = vmatpush1.bf16.msra.mxu0 %v2711
        %2730 = vmatprep.subr.bf16.mxu0 0
        %2731 = vmatpush1.bf16.msra.mxu0 0
        %2732 = vmatprep.subr.bf16.mxu0 0
        %2733 = vmatpush1.bf16.msra.mxu0 0
        %2734 = vmatprep.subr.bf16.mxu0 0
        %2735 = vmatpush1.bf16.msra.mxu0 0
        %2736 = vmatprep.subr.bf16.mxu0 0
        %2737 = vmatpush1.bf16.msra.mxu0 0
        %2738 = vmatprep.subr.bf16.mxu0 0
        %2739 = vmatpush1.bf16.msra.mxu0 0
        %2740 = vmatprep.subr.bf16.mxu0 0
        %2741 = vmatpush1.bf16.msra.mxu0 0
        %2742 = vmatprep.subr.bf16.mxu0 0
        %2743 = vmatpush1.bf16.msra.mxu0 0
        %2744 = vmatprep.subr.bf16.mxu0 0
        %2745 = vmatpush1.bf16.msra.mxu0 0
        %2746 = vmatprep.subr.bf16.mxu0 0
        %2747 = vmatpush1.bf16.msra.mxu0 0
        %2748 = vmatprep.subr.bf16.mxu0 0
        %2749 = vmatpush1.bf16.msra.mxu0 0
        %2750 = vmatprep.subr.bf16.mxu0 0
        %2751 = vmatpush1.bf16.msra.mxu0 0
        %2752 = vmatprep.subr.bf16.mxu0 0
        %2753 = vmatpush1.bf16.msra.mxu0 0
        %2754 = vmatprep.subr.bf16.mxu0 0
        %2755 = vmatpush1.bf16.msra.mxu0 0
        %2756 = vmatprep.subr.bf16.mxu0 0
        %2757 = vmatpush1.bf16.msra.mxu0 0
        %2758 = vmatprep.subr.bf16.mxu0 0
        %2759 = vmatpush1.bf16.msra.mxu0 0
        %2760 = vmatprep.mubr.bf16.mxu0 0
        %2761 = vmatmul.mubr.bf16.gmra.mrb[0].mxu0 %v2714
        %v2762 = vpop.f32.mrb[0].mxu0
        %v2763 = vadd.f32 0.0, %v2762
        %v2764 = vpop.f32.mrb[0].mxu0
        %v2765 = vpop.f32.mrb[0].mxu0
        %v2766 = vadd.f32 0.0, %v2765
        %v2767 = vpop.f32.mrb[0].mxu0
        %2768 = vmatprep.mubr.bf16.mxu0 0
        %2769 = vmatmul.mubr.bf16.gmra.mrb[0].mxu0 %v2717
        %v2770 = vpop.f32.mrb[0].mxu0
        %v2771 = vadd.f32 0.0, %v2770
        %v2772 = vpop.f32.mrb[0].mxu0
        %v2773 = vpop.f32.mrb[0].mxu0
        %v2774 = vadd.f32 0.0, %v2773
        %v2775 = vpop.f32.mrb[0].mxu0
        %2776 = vmatprep.mubr.bf16.mxu0 0
        %2777 = vmatmul.mubr.bf16.gmra.mrb[0].mxu0 %v2720
        %v2778 = vpop.f32.mrb[0].mxu0
        %v2779 = vadd.f32 0.0, %v2778
        %v2780 = vpop.f32.mrb[0].mxu0
        %v2781 = vpop.f32.mrb[0].mxu0
        %v2782 = vadd.f32 0.0, %v2781
        %v2783 = vpop.f32.mrb[0].mxu0
        %2784 = vmatprep.mubr.bf16.mxu0 0
        %2785 = vmatmul.mubr.bf16.gmra.mrb[0].mxu0 %v2723
        %v2786 = vpop.f32.mrb[0].mxu0
        %v2787 = vadd.f32 0.0, %v2786
        %v2788 = vpop.f32.mrb[0].mxu0
        %v2789 = vpop.f32.mrb[0].mxu0
        %v2790 = vadd.f32 0.0, %v2789
        %v2791 = vpop.f32.mrb[0].mxu0
        %2792 = vmatprep.mubr.bf16.mxu0 0
        %2793 = vmatmul.mubr.bf16.gmra.mrb[0].mxu0 %v2726
        %v2794 = vpop.f32.mrb[0].mxu0
        %v2795 = vadd.f32 0.0, %v2794
        %v2796 = vpop.f32.mrb[0].mxu0
        %v2797 = vpop.f32.mrb[0].mxu0
        %v2798 = vadd.f32 0.0, %v2797
        %v2799 = vpop.f32.mrb[0].mxu0
        %2800 = vdwg.mxu0
        %v2801 = vadd.f32 %v2679, %v2763
        %v2802 = vadd.f32 %v2680, %v2766
        %v2803 = vadd.f32 %v2681, %v2771
        %v2804 = vadd.f32 %v2682, %v2774
        %v2805 = vadd.f32 %v2683, %v2779
        %v2806 = vadd.f32 %v2684, %v2782
        %v2807 = vadd.f32 %v2685, %v2787
        %v2808 = vadd.f32 %v2686, %v2790
        %v2809 = vadd.f32 %v2687, %v2795
        %v2810 = vadd.f32 %v2688, %v2798
        %v2811 = vld [vmem:[#allocation4 + $0xb] sm:$0xff]
        %v2812 = vld [vmem:[#allocation4 + $0x13] sm:$0xff]
        %v2813 = vld [vmem:[#allocation4 + $0x1b] sm:$0xff]
        %v2814 = vld [vmem:[#allocation4 + $0x23] sm:$0xff]
        %v2815 = vld [vmem:[#allocation4 + $0x2b] sm:$0xff]
        %v2816 = vld [vmem:[#allocation4 + $0x33] sm:$0xff]
        %v2817 = vld [vmem:[#allocation4 + $0x3b] sm:$0xff]
        %v2818 = vld [vmem:[#allocation4 + $0x43] sm:$0xff]
        %v2819 = vld [vmem:[#allocation4 + $0x4b] sm:$0xff]
        %v2820 = vld [vmem:[#allocation4 + $0x53] sm:$0x3f]
        %v2821 = vpack.c.bf16 %v2812, %v2811
        %v2822 = vpack.c.bf16 %v2814, %v2813
        %v2823 = vpack.c.bf16 %v2816, %v2815
        %v2824 = vpack.c.bf16 %v2818, %v2817
        %v2825 = vpack.c.bf16 %v2820, %v2819
        %s2826 = scalar_lea.vmem %s4, 32
        %v2827 = vld [vmem:[%s2826] sm:$0xf]
        %v2828 = vld [vmem:[%s2826 + $0x4] sm:$0xf]
        %v2831 = vunpack.c.l.b16 %v2827
        %v2832 = vunpack.c.l.b16 %v2828
        %v2833 = vpack.c.b16 %v2832, %v2831
        %v2836 = vsel %vm2384, %v2821, 0
        %v2839 = vsel %vm2384, %v2822, 0
        %v2842 = vsel %vm2384, %v2823, 0
        %v2845 = vsel %vm2384, %v2824, 0
        %v2848 = vsel %vm2384, %v2825, 0
        %2850 = vmatprep.subr.bf16.mxu0 0
        %2851 = vmatpush1.bf16.msra.mxu0 %v2833
        %2852 = vmatprep.subr.bf16.mxu0 0
        %2853 = vmatpush1.bf16.msra.mxu0 0
        %2854 = vmatprep.subr.bf16.mxu0 0
        %2855 = vmatpush1.bf16.msra.mxu0 0
        %2856 = vmatprep.subr.bf16.mxu0 0
        %2857 = vmatpush1.bf16.msra.mxu0 0
        %2858 = vmatprep.subr.bf16.mxu0 0
        %2859 = vmatpush1.bf16.msra.mxu0 0
        %2860 = vmatprep.subr.bf16.mxu0 0
        %2861 = vmatpush1.bf16.msra.mxu0 0
        %2862 = vmatprep.subr.bf16.mxu0 0
        %2863 = vmatpush1.bf16.msra.mxu0 0
        %2864 = vmatprep.subr.bf16.mxu0 0
        %2865 = vmatpush1.bf16.msra.mxu0 0
        %2866 = vmatprep.subr.bf16.mxu0 0
        %2867 = vmatpush1.bf16.msra.mxu0 0
        %2868 = vmatprep.subr.bf16.mxu0 0
        %2869 = vmatpush1.bf16.msra.mxu0 0
        %2870 = vmatprep.subr.bf16.mxu0 0
        %2871 = vmatpush1.bf16.msra.mxu0 0
        %2872 = vmatprep.subr.bf16.mxu0 0
        %2873 = vmatpush1.bf16.msra.mxu0 0
        %2874 = vmatprep.subr.bf16.mxu0 0
        %2875 = vmatpush1.bf16.msra.mxu0 0
        %2876 = vmatprep.subr.bf16.mxu0 0
        %2877 = vmatpush1.bf16.msra.mxu0 0
        %2878 = vmatprep.subr.bf16.mxu0 0
        %2879 = vmatpush1.bf16.msra.mxu0 0
        %2880 = vmatprep.subr.bf16.mxu0 0
        %2881 = vmatpush1.bf16.msra.mxu0 0
        %2882 = vmatprep.mubr.bf16.mxu0 0
        %2883 = vmatmul.mubr.bf16.gmra.mrb[0].mxu0 %v2836
        %v2884 = vpop.f32.mrb[0].mxu0
        %v2885 = vadd.f32 0.0, %v2884
        %v2886 = vpop.f32.mrb[0].mxu0
        %v2887 = vpop.f32.mrb[0].mxu0
        %v2888 = vadd.f32 0.0, %v2887
        %v2889 = vpop.f32.mrb[0].mxu0
        %2890 = vmatprep.mubr.bf16.mxu0 0
        %2891 = vmatmul.mubr.bf16.gmra.mrb[0].mxu0 %v2839
        %v2892 = vpop.f32.mrb[0].mxu0
        %v2893 = vadd.f32 0.0, %v2892
        %v2894 = vpop.f32.mrb[0].mxu0
        %v2895 = vpop.f32.mrb[0].mxu0
        %v2896 = vadd.f32 0.0, %v2895
        %v2897 = vpop.f32.mrb[0].mxu0
        %2898 = vmatprep.mubr.bf16.mxu0 0
        %2899 = vmatmul.mubr.bf16.gmra.mrb[0].mxu0 %v2842
        %v2900 = vpop.f32.mrb[0].mxu0
        %v2901 = vadd.f32 0.0, %v2900
        %v2902 = vpop.f32.mrb[0].mxu0
        %v2903 = vpop.f32.mrb[0].mxu0
        %v2904 = vadd.f32 0.0, %v2903
        %v2905 = vpop.f32.mrb[0].mxu0
        %2906 = vmatprep.mubr.bf16.mxu0 0
        %2907 = vmatmul.mubr.bf16.gmra.mrb[0].mxu0 %v2845
        %v2908 = vpop.f32.mrb[0].mxu0
        %v2909 = vadd.f32 0.0, %v2908
        %v2910 = vpop.f32.mrb[0].mxu0
        %v2911 = vpop.f32.mrb[0].mxu0
        %v2912 = vadd.f32 0.0, %v2911
        %v2913 = vpop.f32.mrb[0].mxu0
        %2914 = vmatprep.mubr.bf16.mxu0 0
        %2915 = vmatmul.mubr.bf16.gmra.mrb[0].mxu0 %v2848
        %v2916 = vpop.f32.mrb[0].mxu0
        %v2917 = vadd.f32 0.0, %v2916
        %v2918 = vpop.f32.mrb[0].mxu0
        %v2919 = vpop.f32.mrb[0].mxu0
        %v2920 = vadd.f32 0.0, %v2919
        %v2921 = vpop.f32.mrb[0].mxu0
        %2922 = vdwg.mxu0
        %v2923 = vadd.f32 %v2801, %v2885
        %v2924 = vadd.f32 %v2802, %v2888
        %v2925 = vadd.f32 %v2803, %v2893
        %v2926 = vadd.f32 %v2804, %v2896
        %v2927 = vadd.f32 %v2805, %v2901
        %v2928 = vadd.f32 %v2806, %v2904
        %v2929 = vadd.f32 %v2807, %v2909
        %v2930 = vadd.f32 %v2808, %v2912
        %v2931 = vadd.f32 %v2809, %v2917
        %v2932 = vadd.f32 %v2810, %v2920
        %v2933 = vld [vmem:[#allocation4 + $0xc] sm:$0xff]
        %v2934 = vld [vmem:[#allocation4 + $0x14] sm:$0xff]
        %v2935 = vld [vmem:[#allocation4 + $0x1c] sm:$0xff]
        %v2936 = vld [vmem:[#allocation4 + $0x24] sm:$0xff]
        %v2937 = vld [vmem:[#allocation4 + $0x2c] sm:$0xff]
        %v2938 = vld [vmem:[#allocation4 + $0x34] sm:$0xff]
        %v2939 = vld [vmem:[#allocation4 + $0x3c] sm:$0xff]
        %v2940 = vld [vmem:[#allocation4 + $0x44] sm:$0xff]
        %v2941 = vld [vmem:[#allocation4 + $0x4c] sm:$0xff]
        %v2942 = vld [vmem:[#allocation4 + $0x54] sm:$0x3f]
        %v2943 = vpack.c.bf16 %v2934, %v2933
        %v2944 = vpack.c.bf16 %v2936, %v2935
        %v2945 = vpack.c.bf16 %v2938, %v2937
        %v2946 = vpack.c.bf16 %v2940, %v2939
        %v2947 = vpack.c.bf16 %v2942, %v2941
        %s2948 = scalar_lea.vmem %s4, 40
        %v2949 = vld [vmem:[%s2948] sm:$0xf]
        %v2950 = vld [vmem:[%s2948 + $0x4] sm:$0xf]
        %v2953 = vunpack.c.l.b16 %v2949
        %v2954 = vunpack.c.l.b16 %v2950
        %v2955 = vpack.c.b16 %v2954, %v2953
        %v2958 = vsel %vm2384, %v2943, 0
        %v2961 = vsel %vm2384, %v2944, 0
        %v2964 = vsel %vm2384, %v2945, 0
        %v2967 = vsel %vm2384, %v2946, 0
        %v2970 = vsel %vm2384, %v2947, 0
        %2972 = vmatprep.subr.bf16.mxu0 0
        %2973 = vmatpush1.bf16.msra.mxu0 %v2955
        %2974 = vmatprep.subr.bf16.mxu0 0
        %2975 = vmatpush1.bf16.msra.mxu0 0
        %2976 = vmatprep.subr.bf16.mxu0 0
        %2977 = vmatpush1.bf16.msra.mxu0 0
        %2978 = vmatprep.subr.bf16.mxu0 0
        %2979 = vmatpush1.bf16.msra.mxu0 0
        %2980 = vmatprep.subr.bf16.mxu0 0
        %2981 = vmatpush1.bf16.msra.mxu0 0
        %2982 = vmatprep.subr.bf16.mxu0 0
        %2983 = vmatpush1.bf16.msra.mxu0 0
        %2984 = vmatprep.subr.bf16.mxu0 0
        %2985 = vmatpush1.bf16.msra.mxu0 0
        %2986 = vmatprep.subr.bf16.mxu0 0
        %2987 = vmatpush1.bf16.msra.mxu0 0
        %2988 = vmatprep.subr.bf16.mxu0 0
        %2989 = vmatpush1.bf16.msra.mxu0 0
        %2990 = vmatprep.subr.bf16.mxu0 0
        %2991 = vmatpush1.bf16.msra.mxu0 0
        %2992 = vmatprep.subr.bf16.mxu0 0
        %2993 = vmatpush1.bf16.msra.mxu0 0
        %2994 = vmatprep.subr.bf16.mxu0 0
        %2995 = vmatpush1.bf16.msra.mxu0 0
        %2996 = vmatprep.subr.bf16.mxu0 0
        %2997 = vmatpush1.bf16.msra.mxu0 0
        %2998 = vmatprep.subr.bf16.mxu0 0
        %2999 = vmatpush1.bf16.msra.mxu0 0
        %3000 = vmatprep.subr.bf16.mxu0 0
        %3001 = vmatpush1.bf16.msra.mxu0 0
        %3002 = vmatprep.subr.bf16.mxu0 0
        %3003 = vmatpush1.bf16.msra.mxu0 0
        %3004 = vmatprep.mubr.bf16.mxu0 0
        %3005 = vmatmul.mubr.bf16.gmra.mrb[0].mxu0 %v2958
        %v3006 = vpop.f32.mrb[0].mxu0
        %v3007 = vadd.f32 0.0, %v3006
        %v3008 = vpop.f32.mrb[0].mxu0
        %v3009 = vpop.f32.mrb[0].mxu0
        %v3010 = vadd.f32 0.0, %v3009
        %v3011 = vpop.f32.mrb[0].mxu0
        %3012 = vmatprep.mubr.bf16.mxu0 0
        %3013 = vmatmul.mubr.bf16.gmra.mrb[0].mxu0 %v2961
        %v3014 = vpop.f32.mrb[0].mxu0
        %v3015 = vadd.f32 0.0, %v3014
        %v3016 = vpop.f32.mrb[0].mxu0
        %v3017 = vpop.f32.mrb[0].mxu0
        %v3018 = vadd.f32 0.0, %v3017
        %v3019 = vpop.f32.mrb[0].mxu0
        %3020 = vmatprep.mubr.bf16.mxu0 0
        %3021 = vmatmul.mubr.bf16.gmra.mrb[0].mxu0 %v2964
        %v3022 = vpop.f32.mrb[0].mxu0
        %v3023 = vadd.f32 0.0, %v3022
        %v3024 = vpop.f32.mrb[0].mxu0
        %v3025 = vpop.f32.mrb[0].mxu0
        %v3026 = vadd.f32 0.0, %v3025
        %v3027 = vpop.f32.mrb[0].mxu0
        %3028 = vmatprep.mubr.bf16.mxu0 0
        %3029 = vmatmul.mubr.bf16.gmra.mrb[0].mxu0 %v2967
        %v3030 = vpop.f32.mrb[0].mxu0
        %v3031 = vadd.f32 0.0, %v3030
        %v3032 = vpop.f32.mrb[0].mxu0
        %v3033 = vpop.f32.mrb[0].mxu0
        %v3034 = vadd.f32 0.0, %v3033
        %v3035 = vpop.f32.mrb[0].mxu0
        %3036 = vmatprep.mubr.bf16.mxu0 0
        %3037 = vmatmul.mubr.bf16.gmra.mrb[0].mxu0 %v2970
        %v3038 = vpop.f32.mrb[0].mxu0
        %v3039 = vadd.f32 0.0, %v3038
        %v3040 = vpop.f32.mrb[0].mxu0
        %v3041 = vpop.f32.mrb[0].mxu0
        %v3042 = vadd.f32 0.0, %v3041
        %v3043 = vpop.f32.mrb[0].mxu0
        %3044 = vdwg.mxu0
        %v3045 = vadd.f32 %v2923, %v3007
        %v3046 = vadd.f32 %v2924, %v3010
        %v3047 = vadd.f32 %v2925, %v3015
        %v3048 = vadd.f32 %v2926, %v3018
        %v3049 = vadd.f32 %v2927, %v3023
        %v3050 = vadd.f32 %v2928, %v3026
        %v3051 = vadd.f32 %v2929, %v3031
        %v3052 = vadd.f32 %v2930, %v3034
        %v3053 = vadd.f32 %v2931, %v3039
        %v3054 = vadd.f32 %v2932, %v3042
        %v3055 = vld [vmem:[#allocation4 + $0x14] sm:$0xff]
        %v3056 = vld [vmem:[#allocation4 + $0x1c] sm:$0xff]
        %v3057 = vld [vmem:[#allocation4 + $0x24] sm:$0xff]
        %v3058 = vld [vmem:[#allocation4 + $0x2c] sm:$0xff]
        %v3059 = vld [vmem:[#allocation4 + $0x34] sm:$0xff]
        %v3060 = vld [vmem:[#allocation4 + $0x3c] sm:$0xff]
        %v3061 = vld [vmem:[#allocation4 + $0x44] sm:$0xff]
        %v3062 = vld [vmem:[#allocation4 + $0x4c] sm:$0xff]
        %v3063 = vld [vmem:[#allocation4 + $0x54] sm:$0xff]
        %v3064 = vld [vmem:[#allocation4 + $0x5c] sm:$0x3f]
        %v3065 = vpack.c.bf16 %v3056, %v3055
        %v3066 = vpack.c.bf16 %v3058, %v3057
        %v3067 = vpack.c.bf16 %v3060, %v3059
        %v3068 = vpack.c.bf16 %v3062, %v3061
        %v3069 = vpack.c.bf16 %v3064, %v3063
        %s3070 = scalar_lea.vmem %s4, 48
        %v3071 = vld [vmem:[%s3070] sm:$0xf]
        %v3072 = vld [vmem:[%s3070 + $0x4] sm:$0xf]
        %v3075 = vunpack.c.l.b16 %v3071
        %v3076 = vunpack.c.l.b16 %v3072
        %v3077 = vpack.c.b16 %v3076, %v3075
        %v3080 = vsel %vm2384, %v3065, 0
        %v3083 = vsel %vm2384, %v3066, 0
        %v3086 = vsel %vm2384, %v3067, 0
        %v3089 = vsel %vm2384, %v3068, 0
        %v3092 = vsel %vm2384, %v3069, 0
        %3094 = vmatprep.subr.bf16.mxu0 0
        %3095 = vmatpush1.bf16.msra.mxu0 %v3077
        %3096 = vmatprep.subr.bf16.mxu0 0
        %3097 = vmatpush1.bf16.msra.mxu0 0
        %3098 = vmatprep.subr.bf16.mxu0 0
        %3099 = vmatpush1.bf16.msra.mxu0 0
        %3100 = vmatprep.subr.bf16.mxu0 0
        %3101 = vmatpush1.bf16.msra.mxu0 0
        %3102 = vmatprep.subr.bf16.mxu0 0
        %3103 = vmatpush1.bf16.msra.mxu0 0
        %3104 = vmatprep.subr.bf16.mxu0 0
        %3105 = vmatpush1.bf16.msra.mxu0 0
        %3106 = vmatprep.subr.bf16.mxu0 0
        %3107 = vmatpush1.bf16.msra.mxu0 0
        %3108 = vmatprep.subr.bf16.mxu0 0
        %3109 = vmatpush1.bf16.msra.mxu0 0
        %3110 = vmatprep.subr.bf16.mxu0 0
        %3111 = vmatpush1.bf16.msra.mxu0 0
        %3112 = vmatprep.subr.bf16.mxu0 0
        %3113 = vmatpush1.bf16.msra.mxu0 0
        %3114 = vmatprep.subr.bf16.mxu0 0
        %3115 = vmatpush1.bf16.msra.mxu0 0
        %3116 = vmatprep.subr.bf16.mxu0 0
        %3117 = vmatpush1.bf16.msra.mxu0 0
        %3118 = vmatprep.subr.bf16.mxu0 0
        %3119 = vmatpush1.bf16.msra.mxu0 0
        %3120 = vmatprep.subr.bf16.mxu0 0
        %3121 = vmatpush1.bf16.msra.mxu0 0
        %3122 = vmatprep.subr.bf16.mxu0 0
        %3123 = vmatpush1.bf16.msra.mxu0 0
        %3124 = vmatprep.subr.bf16.mxu0 0
        %3125 = vmatpush1.bf16.msra.mxu0 0
        %3126 = vmatprep.mubr.bf16.mxu0 0
        %3127 = vmatmul.mubr.bf16.gmra.mrb[0].mxu0 %v3080
        %v3128 = vpop.f32.mrb[0].mxu0
        %v3129 = vadd.f32 0.0, %v3128
        %v3130 = vpop.f32.mrb[0].mxu0
        %v3131 = vpop.f32.mrb[0].mxu0
        %v3132 = vadd.f32 0.0, %v3131
        %v3133 = vpop.f32.mrb[0].mxu0
        %3134 = vmatprep.mubr.bf16.mxu0 0
        %3135 = vmatmul.mubr.bf16.gmra.mrb[0].mxu0 %v3083
        %v3136 = vpop.f32.mrb[0].mxu0
        %v3137 = vadd.f32 0.0, %v3136
        %v3138 = vpop.f32.mrb[0].mxu0
        %v3139 = vpop.f32.mrb[0].mxu0
        %v3140 = vadd.f32 0.0, %v3139
        %v3141 = vpop.f32.mrb[0].mxu0
        %3142 = vmatprep.mubr.bf16.mxu0 0
        %3143 = vmatmul.mubr.bf16.gmra.mrb[0].mxu0 %v3086
        %v3144 = vpop.f32.mrb[0].mxu0
        %v3145 = vadd.f32 0.0, %v3144
        %v3146 = vpop.f32.mrb[0].mxu0
        %v3147 = vpop.f32.mrb[0].mxu0
        %v3148 = vadd.f32 0.0, %v3147
        %v3149 = vpop.f32.mrb[0].mxu0
        %3150 = vmatprep.mubr.bf16.mxu0 0
        %3151 = vmatmul.mubr.bf16.gmra.mrb[0].mxu0 %v3089
        %v3152 = vpop.f32.mrb[0].mxu0
        %v3153 = vadd.f32 0.0, %v3152
        %v3154 = vpop.f32.mrb[0].mxu0
        %v3155 = vpop.f32.mrb[0].mxu0
        %v3156 = vadd.f32 0.0, %v3155
        %v3157 = vpop.f32.mrb[0].mxu0
        %3158 = vmatprep.mubr.bf16.mxu0 0
        %3159 = vmatmul.mubr.bf16.gmra.mrb[0].mxu0 %v3092
        %v3160 = vpop.f32.mrb[0].mxu0
        %v3161 = vadd.f32 0.0, %v3160
        %v3162 = vpop.f32.mrb[0].mxu0
        %v3163 = vpop.f32.mrb[0].mxu0
        %v3164 = vadd.f32 0.0, %v3163
        %v3165 = vpop.f32.mrb[0].mxu0
        %3166 = vdwg.mxu0
        %v3167 = vadd.f32 %v3045, %v3129
        %v3168 = vadd.f32 %v3046, %v3132
        %v3169 = vadd.f32 %v3047, %v3137
        %v3170 = vadd.f32 %v3048, %v3140
        %v3171 = vadd.f32 %v3049, %v3145
        %v3172 = vadd.f32 %v3050, %v3148
        %v3173 = vadd.f32 %v3051, %v3153
        %v3174 = vadd.f32 %v3052, %v3156
        %v3175 = vadd.f32 %v3053, %v3161
        %v3176 = vadd.f32 %v3054, %v3164
        %v3177 = vld [vmem:[#allocation4 + $0x15] sm:$0xff]
        %v3178 = vld [vmem:[#allocation4 + $0x1d] sm:$0xff]
        %v3179 = vld [vmem:[#allocation4 + $0x25] sm:$0xff]
        %v3180 = vld [vmem:[#allocation4 + $0x2d] sm:$0xff]
        %v3181 = vld [vmem:[#allocation4 + $0x35] sm:$0xff]
        %v3182 = vld [vmem:[#allocation4 + $0x3d] sm:$0xff]
        %v3183 = vld [vmem:[#allocation4 + $0x45] sm:$0xff]
        %v3184 = vld [vmem:[#allocation4 + $0x4d] sm:$0xff]
        %v3185 = vld [vmem:[#allocation4 + $0x55] sm:$0xff]
        %v3186 = vld [vmem:[#allocation4 + $0x5d] sm:$0x3f]
        %v3187 = vpack.c.bf16 %v3178, %v3177
        %v3188 = vpack.c.bf16 %v3180, %v3179
        %v3189 = vpack.c.bf16 %v3182, %v3181
        %v3190 = vpack.c.bf16 %v3184, %v3183
        %v3191 = vpack.c.bf16 %v3186, %v3185
        %s3192 = scalar_lea.vmem %s4, 56
        %v3193 = vld [vmem:[%s3192] sm:$0xf]
        %v3194 = vld [vmem:[%s3192 + $0x4] sm:$0xf]
        %v3197 = vunpack.c.l.b16 %v3193
        %v3198 = vunpack.c.l.b16 %v3194
        %v3199 = vpack.c.b16 %v3198, %v3197
        %v3202 = vsel %vm2384, %v3187, 0
        %v3205 = vsel %vm2384, %v3188, 0
        %v3208 = vsel %vm2384, %v3189, 0
        %v3211 = vsel %vm2384, %v3190, 0
        %v3214 = vsel %vm2384, %v3191, 0
        %3216 = vmatprep.subr.bf16.mxu0 0
        %3217 = vmatpush1.bf16.msra.mxu0 %v3199
        %3218 = vmatprep.subr.bf16.mxu0 0
        %3219 = vmatpush1.bf16.msra.mxu0 0
        %3220 = vmatprep.subr.bf16.mxu0 0
        %3221 = vmatpush1.bf16.msra.mxu0 0
        %3222 = vmatprep.subr.bf16.mxu0 0
        %3223 = vmatpush1.bf16.msra.mxu0 0
        %3224 = vmatprep.subr.bf16.mxu0 0
        %3225 = vmatpush1.bf16.msra.mxu0 0
        %3226 = vmatprep.subr.bf16.mxu0 0
        %3227 = vmatpush1.bf16.msra.mxu0 0
        %3228 = vmatprep.subr.bf16.mxu0 0
        %3229 = vmatpush1.bf16.msra.mxu0 0
        %3230 = vmatprep.subr.bf16.mxu0 0
        %3231 = vmatpush1.bf16.msra.mxu0 0
        %3232 = vmatprep.subr.bf16.mxu0 0
        %3233 = vmatpush1.bf16.msra.mxu0 0
        %3234 = vmatprep.subr.bf16.mxu0 0
        %3235 = vmatpush1.bf16.msra.mxu0 0
        %3236 = vmatprep.subr.bf16.mxu0 0
        %3237 = vmatpush1.bf16.msra.mxu0 0
        %3238 = vmatprep.subr.bf16.mxu0 0
        %3239 = vmatpush1.bf16.msra.mxu0 0
        %3240 = vmatprep.subr.bf16.mxu0 0
        %3241 = vmatpush1.bf16.msra.mxu0 0
        %3242 = vmatprep.subr.bf16.mxu0 0
        %3243 = vmatpush1.bf16.msra.mxu0 0
        %3244 = vmatprep.subr.bf16.mxu0 0
        %3245 = vmatpush1.bf16.msra.mxu0 0
        %3246 = vmatprep.subr.bf16.mxu0 0
        %3247 = vmatpush1.bf16.msra.mxu0 0
        %3248 = vmatprep.mubr.bf16.mxu0 0
        %3249 = vmatmul.mubr.bf16.gmra.mrb[0].mxu0 %v3202
        %v3250 = vpop.f32.mrb[0].mxu0
        %v3251 = vadd.f32 0.0, %v3250
        %v3252 = vpop.f32.mrb[0].mxu0
        %v3253 = vpop.f32.mrb[0].mxu0
        %v3254 = vadd.f32 0.0, %v3253
        %v3255 = vpop.f32.mrb[0].mxu0
        %3256 = vmatprep.mubr.bf16.mxu0 0
        %3257 = vmatmul.mubr.bf16.gmra.mrb[0].mxu0 %v3205
        %v3258 = vpop.f32.mrb[0].mxu0
        %v3259 = vadd.f32 0.0, %v3258
        %v3260 = vpop.f32.mrb[0].mxu0
        %v3261 = vpop.f32.mrb[0].mxu0
        %v3262 = vadd.f32 0.0, %v3261
        %v3263 = vpop.f32.mrb[0].mxu0
        %3264 = vmatprep.mubr.bf16.mxu0 0
        %3265 = vmatmul.mubr.bf16.gmra.mrb[0].mxu0 %v3208
        %v3266 = vpop.f32.mrb[0].mxu0
        %v3267 = vadd.f32 0.0, %v3266
        %v3268 = vpop.f32.mrb[0].mxu0
        %v3269 = vpop.f32.mrb[0].mxu0
        %v3270 = vadd.f32 0.0, %v3269
        %v3271 = vpop.f32.mrb[0].mxu0
        %3272 = vmatprep.mubr.bf16.mxu0 0
        %3273 = vmatmul.mubr.bf16.gmra.mrb[0].mxu0 %v3211
        %v3274 = vpop.f32.mrb[0].mxu0
        %v3275 = vadd.f32 0.0, %v3274
        %v3276 = vpop.f32.mrb[0].mxu0
        %v3277 = vpop.f32.mrb[0].mxu0
        %v3278 = vadd.f32 0.0, %v3277
        %v3279 = vpop.f32.mrb[0].mxu0
        %3280 = vmatprep.mubr.bf16.mxu0 0
        %3281 = vmatmul.mubr.bf16.gmra.mrb[0].mxu0 %v3214
        %v3282 = vpop.f32.mrb[0].mxu0
        %v3283 = vadd.f32 0.0, %v3282
        %v3284 = vpop.f32.mrb[0].mxu0
        %v3285 = vpop.f32.mrb[0].mxu0
        %v3286 = vadd.f32 0.0, %v3285
        %v3287 = vpop.f32.mrb[0].mxu0
        %3288 = vdwg.mxu0
        %v3289 = vadd.f32 %v3167, %v3251
        %v3290 = vadd.f32 %v3168, %v3254
        %v3291 = vadd.f32 %v3169, %v3259
        %v3292 = vadd.f32 %v3170, %v3262
        %v3293 = vadd.f32 %v3171, %v3267
        %v3294 = vadd.f32 %v3172, %v3270
        %v3295 = vadd.f32 %v3173, %v3275
        %v3296 = vadd.f32 %v3174, %v3278
        %v3297 = vadd.f32 %v3175, %v3283
        %v3298 = vadd.f32 %v3176, %v3286
        %v3299 = vld [vmem:[#allocation4 + $0x16] sm:$0xff]
        %v3300 = vld [vmem:[#allocation4 + $0x1e] sm:$0xff]
        %v3301 = vld [vmem:[#allocation4 + $0x26] sm:$0xff]
        %v3302 = vld [vmem:[#allocation4 + $0x2e] sm:$0xff]
        %v3303 = vld [vmem:[#allocation4 + $0x36] sm:$0xff]
        %v3304 = vld [vmem:[#allocation4 + $0x3e] sm:$0xff]
        %v3305 = vld [vmem:[#allocation4 + $0x46] sm:$0xff]
        %v3306 = vld [vmem:[#allocation4 + $0x4e] sm:$0xff]
        %v3307 = vld [vmem:[#allocation4 + $0x56] sm:$0xff]
        %v3308 = vld [vmem:[#allocation4 + $0x5e] sm:$0x3f]
        %v3309 = vpack.c.bf16 %v3300, %v3299
        %v3310 = vpack.c.bf16 %v3302, %v3301
        %v3311 = vpack.c.bf16 %v3304, %v3303
        %v3312 = vpack.c.bf16 %v3306, %v3305
        %v3313 = vpack.c.bf16 %v3308, %v3307
        %s3314 = scalar_lea.vmem %s4, 64
        %v3315 = vld [vmem:[%s3314] sm:$0xf]
        %v3316 = vld [vmem:[%s3314 + $0x4] sm:$0xf]
        %v3319 = vunpack.c.l.b16 %v3315
        %v3320 = vunpack.c.l.b16 %v3316
        %v3321 = vpack.c.b16 %v3320, %v3319
        %v3324 = vsel %vm2384, %v3309, 0
        %v3327 = vsel %vm2384, %v3310, 0
        %v3330 = vsel %vm2384, %v3311, 0
        %v3333 = vsel %vm2384, %v3312, 0
        %v3336 = vsel %vm2384, %v3313, 0
        %3338 = vmatprep.subr.bf16.mxu0 0
        %3339 = vmatpush1.bf16.msra.mxu0 %v3321
        %3340 = vmatprep.subr.bf16.mxu0 0
        %3341 = vmatpush1.bf16.msra.mxu0 0
        %3342 = vmatprep.subr.bf16.mxu0 0
        %3343 = vmatpush1.bf16.msra.mxu0 0
        %3344 = vmatprep.subr.bf16.mxu0 0
        %3345 = vmatpush1.bf16.msra.mxu0 0
        %3346 = vmatprep.subr.bf16.mxu0 0
        %3347 = vmatpush1.bf16.msra.mxu0 0
        %3348 = vmatprep.subr.bf16.mxu0 0
        %3349 = vmatpush1.bf16.msra.mxu0 0
        %3350 = vmatprep.subr.bf16.mxu0 0
        %3351 = vmatpush1.bf16.msra.mxu0 0
        %3352 = vmatprep.subr.bf16.mxu0 0
        %3353 = vmatpush1.bf16.msra.mxu0 0
        %3354 = vmatprep.subr.bf16.mxu0 0
        %3355 = vmatpush1.bf16.msra.mxu0 0
        %3356 = vmatprep.subr.bf16.mxu0 0
        %3357 = vmatpush1.bf16.msra.mxu0 0
        %3358 = vmatprep.subr.bf16.mxu0 0
        %3359 = vmatpush1.bf16.msra.mxu0 0
        %3360 = vmatprep.subr.bf16.mxu0 0
        %3361 = vmatpush1.bf16.msra.mxu0 0
        %3362 = vmatprep.subr.bf16.mxu0 0
        %3363 = vmatpush1.bf16.msra.mxu0 0
        %3364 = vmatprep.subr.bf16.mxu0 0
        %3365 = vmatpush1.bf16.msra.mxu0 0
        %3366 = vmatprep.subr.bf16.mxu0 0
        %3367 = vmatpush1.bf16.msra.mxu0 0
        %3368 = vmatprep.subr.bf16.mxu0 0
        %3369 = vmatpush1.bf16.msra.mxu0 0
        %3370 = vmatprep.mubr.bf16.mxu0 0
        %3371 = vmatmul.mubr.bf16.gmra.mrb[0].mxu0 %v3324
        %v3372 = vpop.f32.mrb[0].mxu0
        %v3373 = vadd.f32 0.0, %v3372
        %v3374 = vpop.f32.mrb[0].mxu0
        %v3375 = vpop.f32.mrb[0].mxu0
        %v3376 = vadd.f32 0.0, %v3375
        %v3377 = vpop.f32.mrb[0].mxu0
        %3378 = vmatprep.mubr.bf16.mxu0 0
        %3379 = vmatmul.mubr.bf16.gmra.mrb[0].mxu0 %v3327
        %v3380 = vpop.f32.mrb[0].mxu0
        %v3381 = vadd.f32 0.0, %v3380
        %v3382 = vpop.f32.mrb[0].mxu0
        %v3383 = vpop.f32.mrb[0].mxu0
        %v3384 = vadd.f32 0.0, %v3383
        %v3385 = vpop.f32.mrb[0].mxu0
        %3386 = vmatprep.mubr.bf16.mxu0 0
        %3387 = vmatmul.mubr.bf16.gmra.mrb[0].mxu0 %v3330
        %v3388 = vpop.f32.mrb[0].mxu0
        %v3389 = vadd.f32 0.0, %v3388
        %v3390 = vpop.f32.mrb[0].mxu0
        %v3391 = vpop.f32.mrb[0].mxu0
        %v3392 = vadd.f32 0.0, %v3391
        %v3393 = vpop.f32.mrb[0].mxu0
        %3394 = vmatprep.mubr.bf16.mxu0 0
        %3395 = vmatmul.mubr.bf16.gmra.mrb[0].mxu0 %v3333
        %v3396 = vpop.f32.mrb[0].mxu0
        %v3397 = vadd.f32 0.0, %v3396
        %v3398 = vpop.f32.mrb[0].mxu0
        %v3399 = vpop.f32.mrb[0].mxu0
        %v3400 = vadd.f32 0.0, %v3399
        %v3401 = vpop.f32.mrb[0].mxu0
        %3402 = vmatprep.mubr.bf16.mxu0 0
        %3403 = vmatmul.mubr.bf16.gmra.mrb[0].mxu0 %v3336
        %v3404 = vpop.f32.mrb[0].mxu0
        %v3405 = vadd.f32 0.0, %v3404
        %v3406 = vpop.f32.mrb[0].mxu0
        %v3407 = vpop.f32.mrb[0].mxu0
        %v3408 = vadd.f32 0.0, %v3407
        %v3409 = vpop.f32.mrb[0].mxu0
        %3410 = vdwg.mxu0
        %v3411 = vadd.f32 %v3289, %v3373
        %v3412 = vadd.f32 %v3290, %v3376
        %v3413 = vadd.f32 %v3291, %v3381
        %v3414 = vadd.f32 %v3292, %v3384
        %v3415 = vadd.f32 %v3293, %v3389
        %v3416 = vadd.f32 %v3294, %v3392
        %v3417 = vadd.f32 %v3295, %v3397
        %v3418 = vadd.f32 %v3296, %v3400
        %v3419 = vadd.f32 %v3297, %v3405
        %v3420 = vadd.f32 %v3298, %v3408
        %v3421 = vld [vmem:[%s13] sm:$0x1]
        %v3423 = vlaneseq
        %v3424 = vshrl.u32 %v3423, 7
        %v3425 = vsub.s32 0, %v3424
        %v3426 = vrot.slane %v3421, %v3425
        %v3428 = vadd.f32 %v3411, %v3426
        %v3429 = vadd.f32 %v3412, %v3426
        %v3430 = vadd.f32 %v3413, %v3426
        %v3431 = vadd.f32 %v3414, %v3426
        %v3432 = vadd.f32 %v3415, %v3426
        %v3433 = vadd.f32 %v3416, %v3426
        %v3434 = vadd.f32 %v3417, %v3426
        %v3435 = vadd.f32 %v3418, %v3426
        %v3436 = vadd.f32 %v3419, %v3426
        %v3437 = vadd.f32 %v3420, %v3426
        %v3438 = vmax.f32 %v3428, 0.0
        %v3439 = vmax.f32 %v3429, 0.0
        %v3440 = vmax.f32 %v3430, 0.0
        %v3441 = vmax.f32 %v3431, 0.0
        %v3442 = vmax.f32 %v3432, 0.0
        %v3443 = vmax.f32 %v3433, 0.0
        %v3444 = vmax.f32 %v3434, 0.0
        %v3445 = vmax.f32 %v3435, 0.0
        %v3446 = vmax.f32 %v3436, 0.0
        %v3447 = vmax.f32 %v3437, 0.0
        %3448 = vst [vmem:[#allocation2] sm:$0xff] %v3438
        %3449 = vst [vmem:[#allocation2 + $0x8] sm:$0xff] %v3439
        %3450 = vst [vmem:[#allocation2 + $0x10] sm:$0xff] %v3440
        %3451 = vst [vmem:[#allocation2 + $0x18] sm:$0xff] %v3441
        %3452 = vst [vmem:[#allocation2 + $0x20] sm:$0xff] %v3442
        %3453 = vst [vmem:[#allocation2 + $0x28] sm:$0xff] %v3443
        %3454 = vst [vmem:[#allocation2 + $0x30] sm:$0xff] %v3444
        %3455 = vst [vmem:[#allocation2 + $0x38] sm:$0xff] %v3445
        %3456 = vst [vmem:[#allocation2 + $0x40] sm:$0xff] %v3446
        %3457 = vst [vmem:[#allocation2 + $0x48] sm:$0x3f] %v3447
        %v3458 = vld [vmem:[#allocation2] sm:$0x3]
        %v3459 = vld [vmem:[#allocation2 + $0xa] sm:$0x3]
        %v3460 = vmax.f32 %v3458, %v3459
        %vm3461 = vcmask 1041408
        %v3462 = vsel %vm3461, %v3460, -inf
        %v3463 = vrot.slane %v3462, 4
        %v3464 = vmax.f32 %v3462, %v3463
        %v3465 = vrot.slane %v3464, 2
        %v3466 = vmax.f32 %v3464, %v3465
        %v3467 = vrot.slane %v3466, 1
        %v3468 = vmax.f32 %v3466, %v3467
        %3469 = vst [vmem:[#allocation5 + $0x7] sm:$0x1] %v3468
        %v3470 = vld [vmem:[#allocation2 + $0x2] sm:$0x3]
        %v3471 = vld [vmem:[#allocation2 + $0xc] sm:$0x3]
        %v3472 = vmax.f32 %v3470, %v3471
        %v3473 = vsel %vm3461, %v3472, -inf
        %v3474 = vrot.slane %v3473, 4
        %v3475 = vmax.f32 %v3473, %v3474
        %v3476 = vrot.slane %v3475, 2
        %v3477 = vmax.f32 %v3475, %v3476
        %v3478 = vrot.slane %v3477, 1
        %v3479 = vmax.f32 %v3477, %v3478
        %3480 = vst [vmem:[#allocation5 + $0x8] sm:$0x1] %v3479
        %v3481 = vld [vmem:[#allocation2 + $0x4] sm:$0x3]
        %v3482 = vld [vmem:[#allocation2 + $0xe] sm:$0x3]
        %v3483 = vmax.f32 %v3481, %v3482
        %v3484 = vsel %vm3461, %v3483, -inf
        %v3485 = vrot.slane %v3484, 4
        %v3486 = vmax.f32 %v3484, %v3485
        %v3487 = vrot.slane %v3486, 2
        %v3488 = vmax.f32 %v3486, %v3487
        %v3489 = vrot.slane %v3488, 1
        %v3490 = vmax.f32 %v3488, %v3489
        %3491 = vst [vmem:[#allocation5 + $0x9] sm:$0x1] %v3490
        %v3492 = vld [vmem:[#allocation2 + $0x6] sm:$0x3]
        %v3493 = vld [vmem:[#allocation2 + $0x10] sm:$0x3]
        %v3494 = vmax.f32 %v3492, %v3493
        %v3495 = vsel %vm3461, %v3494, -inf
        %v3496 = vrot.slane %v3495, 4
        %v3497 = vmax.f32 %v3495, %v3496
        %v3498 = vrot.slane %v3497, 2
        %v3499 = vmax.f32 %v3497, %v3498
        %v3500 = vrot.slane %v3499, 1
        %v3501 = vmax.f32 %v3499, %v3500
        %3502 = vst [vmem:[#allocation5 + $0xa] sm:$0x1] %v3501
        %v3503 = vld [vmem:[#allocation2 + $0x14] sm:$0x3]
        %v3504 = vld [vmem:[#allocation2 + $0x1e] sm:$0x3]
        %v3505 = vmax.f32 %v3503, %v3504
        %v3506 = vsel %vm3461, %v3505, -inf
        %v3507 = vrot.slane %v3506, 4
        %v3508 = vmax.f32 %v3506, %v3507
        %v3509 = vrot.slane %v3508, 2
        %v3510 = vmax.f32 %v3508, %v3509
        %v3511 = vrot.slane %v3510, 1
        %v3512 = vmax.f32 %v3510, %v3511
        %3513 = vst [vmem:[#allocation5 + $0xd] sm:$0x1] %v3512
        %v3514 = vld [vmem:[#allocation2 + $0x16] sm:$0x3]
        %v3515 = vld [vmem:[#allocation2 + $0x20] sm:$0x3]
        %v3516 = vmax.f32 %v3514, %v3515
        %v3517 = vsel %vm3461, %v3516, -inf
        %v3518 = vrot.slane %v3517, 4
        %v3519 = vmax.f32 %v3517, %v3518
        %v3520 = vrot.slane %v3519, 2
        %v3521 = vmax.f32 %v3519, %v3520
        %v3522 = vrot.slane %v3521, 1
        %v3523 = vmax.f32 %v3521, %v3522
        %3524 = vst [vmem:[#allocation5 + $0xe] sm:$0x1] %v3523
        %v3525 = vld [vmem:[#allocation2 + $0x18] sm:$0x3]
        %v3526 = vld [vmem:[#allocation2 + $0x22] sm:$0x3]
        %v3527 = vmax.f32 %v3525, %v3526
        %v3528 = vsel %vm3461, %v3527, -inf
        %v3529 = vrot.slane %v3528, 4
        %v3530 = vmax.f32 %v3528, %v3529
        %v3531 = vrot.slane %v3530, 2
        %v3532 = vmax.f32 %v3530, %v3531
        %v3533 = vrot.slane %v3532, 1
        %v3534 = vmax.f32 %v3532, %v3533
        %3535 = vst [vmem:[#allocation5 + $0xf] sm:$0x1] %v3534
        %v3536 = vld [vmem:[#allocation2 + $0x1a] sm:$0x3]
        %v3537 = vld [vmem:[#allocation2 + $0x24] sm:$0x3]
        %v3538 = vmax.f32 %v3536, %v3537
        %v3539 = vsel %vm3461, %v3538, -inf
        %v3540 = vrot.slane %v3539, 4
        %v3541 = vmax.f32 %v3539, %v3540
        %v3542 = vrot.slane %v3541, 2
        %v3543 = vmax.f32 %v3541, %v3542
        %v3544 = vrot.slane %v3543, 1
        %v3545 = vmax.f32 %v3543, %v3544
        %3546 = vst [vmem:[#allocation5 + $0x10] sm:$0x1] %v3545
        %v3547 = vld [vmem:[#allocation2 + $0x28] sm:$0x3]
        %v3548 = vld [vmem:[#allocation2 + $0x32] sm:$0x3]
        %v3549 = vmax.f32 %v3547, %v3548
        %v3550 = vsel %vm3461, %v3549, -inf
        %v3551 = vrot.slane %v3550, 4
        %v3552 = vmax.f32 %v3550, %v3551
        %v3553 = vrot.slane %v3552, 2
        %v3554 = vmax.f32 %v3552, %v3553
        %v3555 = vrot.slane %v3554, 1
        %v3556 = vmax.f32 %v3554, %v3555
        %3557 = vst [vmem:[#allocation5 + $0x13] sm:$0x1] %v3556
        %v3558 = vld [vmem:[#allocation2 + $0x2a] sm:$0x3]
        %v3559 = vld [vmem:[#allocation2 + $0x34] sm:$0x3]
        %v3560 = vmax.f32 %v3558, %v3559
        %v3561 = vsel %vm3461, %v3560, -inf
        %v3562 = vrot.slane %v3561, 4
        %v3563 = vmax.f32 %v3561, %v3562
        %v3564 = vrot.slane %v3563, 2
        %v3565 = vmax.f32 %v3563, %v3564
        %v3566 = vrot.slane %v3565, 1
        %v3567 = vmax.f32 %v3565, %v3566
        %3568 = vst [vmem:[#allocation5 + $0x14] sm:$0x1] %v3567
        %v3569 = vld [vmem:[#allocation2 + $0x2c] sm:$0x3]
        %v3570 = vld [vmem:[#allocation2 + $0x36] sm:$0x3]
        %v3571 = vmax.f32 %v3569, %v3570
        %v3572 = vsel %vm3461, %v3571, -inf
        %v3573 = vrot.slane %v3572, 4
        %v3574 = vmax.f32 %v3572, %v3573
        %v3575 = vrot.slane %v3574, 2
        %v3576 = vmax.f32 %v3574, %v3575
        %v3577 = vrot.slane %v3576, 1
        %v3578 = vmax.f32 %v3576, %v3577
        %3579 = vst [vmem:[#allocation5 + $0x15] sm:$0x1] %v3578
        %v3580 = vld [vmem:[#allocation2 + $0x2e] sm:$0x3]
        %v3581 = vld [vmem:[#allocation2 + $0x38] sm:$0x3]
        %v3582 = vmax.f32 %v3580, %v3581
        %v3583 = vsel %vm3461, %v3582, -inf
        %v3584 = vrot.slane %v3583, 4
        %v3585 = vmax.f32 %v3583, %v3584
        %v3586 = vrot.slane %v3585, 2
        %v3587 = vmax.f32 %v3585, %v3586
        %v3588 = vrot.slane %v3587, 1
        %v3589 = vmax.f32 %v3587, %v3588
        %3590 = vst [vmem:[#allocation5 + $0x16] sm:$0x1] %v3589
        %v3591 = vld [vmem:[#allocation2 + $0x3c] sm:$0x3]
        %v3592 = vld [vmem:[#allocation2 + $0x46] sm:$0x3]
        %v3593 = vmax.f32 %v3591, %v3592
        %v3594 = vsel %vm3461, %v3593, -inf
        %v3595 = vrot.slane %v3594, 4
        %v3596 = vmax.f32 %v3594, %v3595
        %v3597 = vrot.slane %v3596, 2
        %v3598 = vmax.f32 %v3596, %v3597
        %v3599 = vrot.slane %v3598, 1
        %v3600 = vmax.f32 %v3598, %v3599
        %3601 = vst [vmem:[#allocation5 + $0x19] sm:$0x1] %v3600
        %v3602 = vld [vmem:[#allocation2 + $0x3e] sm:$0x3]
        %v3603 = vld [vmem:[#allocation2 + $0x48] sm:$0x3]
        %v3604 = vmax.f32 %v3602, %v3603
        %v3605 = vsel %vm3461, %v3604, -inf
        %v3606 = vrot.slane %v3605, 4
        %v3607 = vmax.f32 %v3605, %v3606
        %v3608 = vrot.slane %v3607, 2
        %v3609 = vmax.f32 %v3607, %v3608
        %v3610 = vrot.slane %v3609, 1
        %v3611 = vmax.f32 %v3609, %v3610
        %3612 = vst [vmem:[#allocation5 + $0x1a] sm:$0x1] %v3611
        %v3613 = vld [vmem:[#allocation2 + $0x40] sm:$0x3]
        %v3614 = vld [vmem:[#allocation2 + $0x4a] sm:$0x3]
        %v3615 = vmax.f32 %v3613, %v3614
        %v3616 = vsel %vm3461, %v3615, -inf
        %v3617 = vrot.slane %v3616, 4
        %v3618 = vmax.f32 %v3616, %v3617
        %v3619 = vrot.slane %v3618, 2
        %v3620 = vmax.f32 %v3618, %v3619
        %v3621 = vrot.slane %v3620, 1
        %v3622 = vmax.f32 %v3620, %v3621
        %3623 = vst [vmem:[#allocation5 + $0x1b] sm:$0x1] %v3622
        %v3624 = vld [vmem:[#allocation2 + $0x42] sm:$0x3]
        %v3625 = vld [vmem:[#allocation2 + $0x4c] sm:$0x3]
        %v3626 = vmax.f32 %v3624, %v3625
        %v3627 = vsel %vm3461, %v3626, -inf
        %v3628 = vrot.slane %v3627, 4
        %v3629 = vmax.f32 %v3627, %v3628
        %v3630 = vrot.slane %v3629, 2
        %v3631 = vmax.f32 %v3629, %v3630
        %v3632 = vrot.slane %v3631, 1
        %v3633 = vmax.f32 %v3631, %v3632
        %3634 = vst [vmem:[#allocation5 + $0x1c] sm:$0x1] %v3633
        %v3635 = vld [vmem:[#allocation5] sm:$0xff]
        %v3636 = vld [vmem:[#allocation5 + $0x8] sm:$0xff]
        %v3637 = vld [vmem:[#allocation5 + $0x10] sm:$0x3f]
        %v3638 = vpack.c.bf16 %v3636, %v3635
        %v3639 = vpack.c.bf16 %v3637, %v3637
        %v3640 = vld [vmem:[%s5] sm:$0xf]
        %v3641 = vld [vmem:[%s5 + $0x4] sm:$0xf]
        %v3642 = vld [vmem:[%s5 + $0x8] sm:$0xf]
        %v3643 = vld [vmem:[%s5 + $0xc] sm:$0xf]
        %v3644 = vld [vmem:[#allocation5 + $0x1] sm:$0xff]
        %v3645 = vld [vmem:[#allocation5 + $0x9] sm:$0xff]
        %v3646 = vld [vmem:[#allocation5 + $0x11] sm:$0x3f]
        %v3647 = vpack.c.bf16 %v3645, %v3644
        %v3648 = vpack.c.bf16 %v3646, %v3646
        %s3649 = scalar_lea.vmem %s5, 16
        %v3650 = vld [vmem:[%s3649] sm:$0xf]
        %v3651 = vld [vmem:[%s3649 + $0x4] sm:$0xf]
        %v3652 = vld [vmem:[%s3649 + $0x8] sm:$0xf]
        %v3653 = vld [vmem:[%s3649 + $0xc] sm:$0xf]
        %v3658 = vunpack.c.l.b16 %v3650
        %v3659 = vunpack.c.l.b16 %v3651
        %v3660 = vunpack.c.l.b16 %v3652
        %v3661 = vunpack.c.l.b16 %v3653
        %v3662 = vpack.c.b16 %v3659, %v3658
        %v3663 = vpack.c.b16 %v3661, %v3660
        %vm3666 = vcmask 261120
        %v3668 = vsel %vm3666, %v3647, 0
        %v3671 = vsel %vm3666, %v3648, 0
        %3673 = vmatprep.subr.bf16.mxu0 0
        %3674 = vmatpush1.bf16.msra.mxu0 %v3662
        %3675 = vmatprep.subr.bf16.mxu0 0
        %3676 = vmatpush1.bf16.msra.mxu0 %v3663
        %3677 = vmatprep.subr.bf16.mxu0 0
        %3678 = vmatpush1.bf16.msra.mxu0 0
        %3679 = vmatprep.subr.bf16.mxu0 0
        %3680 = vmatpush1.bf16.msra.mxu0 0
        %3681 = vmatprep.subr.bf16.mxu0 0
        %3682 = vmatpush1.bf16.msra.mxu0 0
        %3683 = vmatprep.subr.bf16.mxu0 0
        %3684 = vmatpush1.bf16.msra.mxu0 0
        %3685 = vmatprep.subr.bf16.mxu0 0
        %3686 = vmatpush1.bf16.msra.mxu0 0
        %3687 = vmatprep.subr.bf16.mxu0 0
        %3688 = vmatpush1.bf16.msra.mxu0 0
        %3689 = vmatprep.subr.bf16.mxu0 0
        %3690 = vmatpush1.bf16.msra.mxu0 0
        %3691 = vmatprep.subr.bf16.mxu0 0
        %3692 = vmatpush1.bf16.msra.mxu0 0
        %3693 = vmatprep.subr.bf16.mxu0 0
        %3694 = vmatpush1.bf16.msra.mxu0 0
        %3695 = vmatprep.subr.bf16.mxu0 0
        %3696 = vmatpush1.bf16.msra.mxu0 0
        %3697 = vmatprep.subr.bf16.mxu0 0
        %3698 = vmatpush1.bf16.msra.mxu0 0
        %3699 = vmatprep.subr.bf16.mxu0 0
        %3700 = vmatpush1.bf16.msra.mxu0 0
        %3701 = vmatprep.subr.bf16.mxu0 0
        %3702 = vmatpush1.bf16.msra.mxu0 0
        %3703 = vmatprep.subr.bf16.mxu0 0
        %3704 = vmatpush1.bf16.msra.mxu0 0
        %3705 = vmatprep.mubr.bf16.mxu0 0
        %3706 = vmatmul.mubr.bf16.gmra.mrb[0].mxu0 %v3668
        %v3707 = vpop.f32.mrb[0].mxu0
        %v3708 = vadd.f32 0.0, %v3707
        %v3709 = vpop.f32.mrb[0].mxu0
        %v3710 = vpop.f32.mrb[0].mxu0
        %v3711 = vadd.f32 0.0, %v3710
        %v3712 = vpop.f32.mrb[0].mxu0
        %3713 = vmatprep.mubr.bf16.mxu0 0
        %3714 = vmatmul.mubr.bf16.gmra.mrb[0].mxu0 %v3671
        %v3715 = vpop.f32.mrb[0].mxu0
        %v3716 = vadd.f32 0.0, %v3715
        %v3717 = vpop.f32.mrb[0].mxu0
        %v3718 = vpop.f32.mrb[0].mxu0
        %v3719 = vpop.f32.mrb[0].mxu0
        %3720 = vdwg.mxu0
        %v3725 = vunpack.c.l.b16 %v3640
        %v3726 = vunpack.c.l.b16 %v3641
        %v3727 = vunpack.c.l.b16 %v3642
        %v3728 = vunpack.c.l.b16 %v3643
        %v3729 = vpack.c.b16 %v3726, %v3725
        %v3730 = vpack.c.b16 %v3728, %v3727
        %v3734 = vsel %vm3666, %v3638, 0
        %v3737 = vsel %vm3666, %v3639, 0
        %3739 = vmatprep.subr.bf16.mxu0 0
        %3740 = vmatpush1.bf16.msra.mxu0 %v3729
        %3741 = vmatprep.subr.bf16.mxu0 0
        %3742 = vmatpush1.bf16.msra.mxu0 %v3730
        %3743 = vmatprep.subr.bf16.mxu0 0
        %3744 = vmatpush1.bf16.msra.mxu0 0
        %3745 = vmatprep.subr.bf16.mxu0 0
        %3746 = vmatpush1.bf16.msra.mxu0 0
        %3747 = vmatprep.subr.bf16.mxu0 0
        %3748 = vmatpush1.bf16.msra.mxu0 0
        %3749 = vmatprep.subr.bf16.mxu0 0
        %3750 = vmatpush1.bf16.msra.mxu0 0
        %3751 = vmatprep.subr.bf16.mxu0 0
        %3752 = vmatpush1.bf16.msra.mxu0 0
        %3753 = vmatprep.subr.bf16.mxu0 0
        %3754 = vmatpush1.bf16.msra.mxu0 0
        %3755 = vmatprep.subr.bf16.mxu0 0
        %3756 = vmatpush1.bf16.msra.mxu0 0
        %3757 = vmatprep.subr.bf16.mxu0 0
        %3758 = vmatpush1.bf16.msra.mxu0 0
        %3759 = vmatprep.subr.bf16.mxu0 0
        %3760 = vmatpush1.bf16.msra.mxu0 0
        %3761 = vmatprep.subr.bf16.mxu0 0
        %3762 = vmatpush1.bf16.msra.mxu0 0
        %3763 = vmatprep.subr.bf16.mxu0 0
        %3764 = vmatpush1.bf16.msra.mxu0 0
        %3765 = vmatprep.subr.bf16.mxu0 0
        %3766 = vmatpush1.bf16.msra.mxu0 0
        %3767 = vmatprep.subr.bf16.mxu0 0
        %3768 = vmatpush1.bf16.msra.mxu0 0
        %3769 = vmatprep.subr.bf16.mxu0 0
        %3770 = vmatpush1.bf16.msra.mxu0 0
        %3771 = vmatprep.mubr.bf16.mxu0 0
        %3772 = vmatmul.mubr.bf16.gmra.mrb[0].mxu0 %v3734
        %v3773 = vpop.f32.mrb[0].mxu0
        %v3774 = vadd.f32 %v3708, %v3773
        %v3775 = vpop.f32.mrb[0].mxu0
        %v3776 = vpop.f32.mrb[0].mxu0
        %v3777 = vadd.f32 %v3711, %v3776
        %v3778 = vpop.f32.mrb[0].mxu0
        %3779 = vmatprep.mubr.bf16.mxu0 0
        %3780 = vmatmul.mubr.bf16.gmra.mrb[0].mxu0 %v3737
        %v3781 = vpop.f32.mrb[0].mxu0
        %v3782 = vadd.f32 %v3716, %v3781
        %v3783 = vpop.f32.mrb[0].mxu0
        %v3784 = vpop.f32.mrb[0].mxu0
        %v3785 = vpop.f32.mrb[0].mxu0
        %3786 = vdwg.mxu0
        %v3787 = vld [vmem:[#allocation5 + $0x2] sm:$0xff]
        %v3788 = vld [vmem:[#allocation5 + $0xa] sm:$0xff]
        %v3789 = vld [vmem:[#allocation5 + $0x12] sm:$0x3f]
        %v3790 = vpack.c.bf16 %v3788, %v3787
        %v3791 = vpack.c.bf16 %v3789, %v3789
        %s3792 = scalar_lea.vmem %s5, 32
        %v3793 = vld [vmem:[%s3792] sm:$0xf]
        %v3794 = vld [vmem:[%s3792 + $0x4] sm:$0xf]
        %v3795 = vld [vmem:[%s3792 + $0x8] sm:$0xf]
        %v3796 = vld [vmem:[%s3792 + $0xc] sm:$0xf]
        %v3801 = vunpack.c.l.b16 %v3793
        %v3802 = vunpack.c.l.b16 %v3794
        %v3803 = vunpack.c.l.b16 %v3795
        %v3804 = vunpack.c.l.b16 %v3796
        %v3805 = vpack.c.b16 %v3802, %v3801
        %v3806 = vpack.c.b16 %v3804, %v3803
        %v3810 = vsel %vm3666, %v3790, 0
        %v3813 = vsel %vm3666, %v3791, 0
        %3815 = vmatprep.subr.bf16.mxu0 0
        %3816 = vmatpush1.bf16.msra.mxu0 %v3805
        %3817 = vmatprep.subr.bf16.mxu0 0
        %3818 = vmatpush1.bf16.msra.mxu0 %v3806
        %3819 = vmatprep.subr.bf16.mxu0 0
        %3820 = vmatpush1.bf16.msra.mxu0 0
        %3821 = vmatprep.subr.bf16.mxu0 0
        %3822 = vmatpush1.bf16.msra.mxu0 0
        %3823 = vmatprep.subr.bf16.mxu0 0
        %3824 = vmatpush1.bf16.msra.mxu0 0
        %3825 = vmatprep.subr.bf16.mxu0 0
        %3826 = vmatpush1.bf16.msra.mxu0 0
        %3827 = vmatprep.subr.bf16.mxu0 0
        %3828 = vmatpush1.bf16.msra.mxu0 0
        %3829 = vmatprep.subr.bf16.mxu0 0
        %3830 = vmatpush1.bf16.msra.mxu0 0
        %3831 = vmatprep.subr.bf16.mxu0 0
        %3832 = vmatpush1.bf16.msra.mxu0 0
        %3833 = vmatprep.subr.bf16.mxu0 0
        %3834 = vmatpush1.bf16.msra.mxu0 0
        %3835 = vmatprep.subr.bf16.mxu0 0
        %3836 = vmatpush1.bf16.msra.mxu0 0
        %3837 = vmatprep.subr.bf16.mxu0 0
        %3838 = vmatpush1.bf16.msra.mxu0 0
        %3839 = vmatprep.subr.bf16.mxu0 0
        %3840 = vmatpush1.bf16.msra.mxu0 0
        %3841 = vmatprep.subr.bf16.mxu0 0
        %3842 = vmatpush1.bf16.msra.mxu0 0
        %3843 = vmatprep.subr.bf16.mxu0 0
        %3844 = vmatpush1.bf16.msra.mxu0 0
        %3845 = vmatprep.subr.bf16.mxu0 0
        %3846 = vmatpush1.bf16.msra.mxu0 0
        %3847 = vmatprep.mubr.bf16.mxu0 0
        %3848 = vmatmul.mubr.bf16.gmra.mrb[0].mxu0 %v3810
        %v3849 = vpop.f32.mrb[0].mxu0
        %v3850 = vadd.f32 0.0, %v3849
        %v3851 = vpop.f32.mrb[0].mxu0
        %v3852 = vpop.f32.mrb[0].mxu0
        %v3853 = vadd.f32 0.0, %v3852
        %v3854 = vpop.f32.mrb[0].mxu0
        %3855 = vmatprep.mubr.bf16.mxu0 0
        %3856 = vmatmul.mubr.bf16.gmra.mrb[0].mxu0 %v3813
        %v3857 = vpop.f32.mrb[0].mxu0
        %v3858 = vadd.f32 0.0, %v3857
        %v3859 = vpop.f32.mrb[0].mxu0
        %v3860 = vpop.f32.mrb[0].mxu0
        %v3861 = vpop.f32.mrb[0].mxu0
        %3862 = vdwg.mxu0
        %v3863 = vadd.f32 %v3774, %v3850
        %v3864 = vadd.f32 %v3777, %v3853
        %v3865 = vadd.f32 %v3782, %v3858
        %v3866 = vld [vmem:[#allocation5 + $0x6] sm:$0xff]
        %v3867 = vld [vmem:[#allocation5 + $0xe] sm:$0xff]
        %v3868 = vld [vmem:[#allocation5 + $0x16] sm:$0x3f]
        %v3869 = vpack.c.bf16 %v3867, %v3866
        %v3870 = vpack.c.bf16 %v3868, %v3868
        %s3871 = scalar_lea.vmem %s5, 48
        %v3872 = vld [vmem:[%s3871] sm:$0xf]
        %v3873 = vld [vmem:[%s3871 + $0x4] sm:$0xf]
        %v3874 = vld [vmem:[%s3871 + $0x8] sm:$0xf]
        %v3875 = vld [vmem:[%s3871 + $0xc] sm:$0xf]
        %v3880 = vunpack.c.l.b16 %v3872
        %v3881 = vunpack.c.l.b16 %v3873
        %v3882 = vunpack.c.l.b16 %v3874
        %v3883 = vunpack.c.l.b16 %v3875
        %v3884 = vpack.c.b16 %v3881, %v3880
        %v3885 = vpack.c.b16 %v3883, %v3882
        %v3889 = vsel %vm3666, %v3869, 0
        %v3892 = vsel %vm3666, %v3870, 0
        %3894 = vmatprep.subr.bf16.mxu0 0
        %3895 = vmatpush1.bf16.msra.mxu0 %v3884
        %3896 = vmatprep.subr.bf16.mxu0 0
        %3897 = vmatpush1.bf16.msra.mxu0 %v3885
        %3898 = vmatprep.subr.bf16.mxu0 0
        %3899 = vmatpush1.bf16.msra.mxu0 0
        %3900 = vmatprep.subr.bf16.mxu0 0
        %3901 = vmatpush1.bf16.msra.mxu0 0
        %3902 = vmatprep.subr.bf16.mxu0 0
        %3903 = vmatpush1.bf16.msra.mxu0 0
        %3904 = vmatprep.subr.bf16.mxu0 0
        %3905 = vmatpush1.bf16.msra.mxu0 0
        %3906 = vmatprep.subr.bf16.mxu0 0
        %3907 = vmatpush1.bf16.msra.mxu0 0
        %3908 = vmatprep.subr.bf16.mxu0 0
        %3909 = vmatpush1.bf16.msra.mxu0 0
        %3910 = vmatprep.subr.bf16.mxu0 0
        %3911 = vmatpush1.bf16.msra.mxu0 0
        %3912 = vmatprep.subr.bf16.mxu0 0
        %3913 = vmatpush1.bf16.msra.mxu0 0
        %3914 = vmatprep.subr.bf16.mxu0 0
        %3915 = vmatpush1.bf16.msra.mxu0 0
        %3916 = vmatprep.subr.bf16.mxu0 0
        %3917 = vmatpush1.bf16.msra.mxu0 0
        %3918 = vmatprep.subr.bf16.mxu0 0
        %3919 = vmatpush1.bf16.msra.mxu0 0
        %3920 = vmatprep.subr.bf16.mxu0 0
        %3921 = vmatpush1.bf16.msra.mxu0 0
        %3922 = vmatprep.subr.bf16.mxu0 0
        %3923 = vmatpush1.bf16.msra.mxu0 0
        %3924 = vmatprep.subr.bf16.mxu0 0
        %3925 = vmatpush1.bf16.msra.mxu0 0
        %3926 = vmatprep.mubr.bf16.mxu0 0
        %3927 = vmatmul.mubr.bf16.gmra.mrb[0].mxu0 %v3889
        %v3928 = vpop.f32.mrb[0].mxu0
        %v3929 = vadd.f32 0.0, %v3928
        %v3930 = vpop.f32.mrb[0].mxu0
        %v3931 = vpop.f32.mrb[0].mxu0
        %v3932 = vadd.f32 0.0, %v3931
        %v3933 = vpop.f32.mrb[0].mxu0
        %3934 = vmatprep.mubr.bf16.mxu0 0
        %3935 = vmatmul.mubr.bf16.gmra.mrb[0].mxu0 %v3892
        %v3936 = vpop.f32.mrb[0].mxu0
        %v3937 = vadd.f32 0.0, %v3936
        %v3938 = vpop.f32.mrb[0].mxu0
        %v3939 = vpop.f32.mrb[0].mxu0
        %v3940 = vpop.f32.mrb[0].mxu0
        %3941 = vdwg.mxu0
        %v3942 = vadd.f32 %v3863, %v3929
        %v3943 = vadd.f32 %v3864, %v3932
        %v3944 = vadd.f32 %v3865, %v3937
        %v3945 = vld [vmem:[#allocation5 + $0x7] sm:$0xff]
        %v3946 = vld [vmem:[#allocation5 + $0xf] sm:$0xff]
        %v3947 = vld [vmem:[#allocation5 + $0x17] sm:$0x3f]
        %v3948 = vpack.c.bf16 %v3946, %v3945
        %v3949 = vpack.c.bf16 %v3947, %v3947
        %s3950 = scalar_lea.vmem %s5, 64
        %v3951 = vld [vmem:[%s3950] sm:$0xf]
        %v3952 = vld [vmem:[%s3950 + $0x4] sm:$0xf]
        %v3953 = vld [vmem:[%s3950 + $0x8] sm:$0xf]
        %v3954 = vld [vmem:[%s3950 + $0xc] sm:$0xf]
        %v3959 = vunpack.c.l.b16 %v3951
        %v3960 = vunpack.c.l.b16 %v3952
        %v3961 = vunpack.c.l.b16 %v3953
        %v3962 = vunpack.c.l.b16 %v3954
        %v3963 = vpack.c.b16 %v3960, %v3959
        %v3964 = vpack.c.b16 %v3962, %v3961
        %v3968 = vsel %vm3666, %v3948, 0
        %v3971 = vsel %vm3666, %v3949, 0
        %3973 = vmatprep.subr.bf16.mxu0 0
        %3974 = vmatpush1.bf16.msra.mxu0 %v3963
        %3975 = vmatprep.subr.bf16.mxu0 0
        %3976 = vmatpush1.bf16.msra.mxu0 %v3964
        %3977 = vmatprep.subr.bf16.mxu0 0
        %3978 = vmatpush1.bf16.msra.mxu0 0
        %3979 = vmatprep.subr.bf16.mxu0 0
        %3980 = vmatpush1.bf16.msra.mxu0 0
        %3981 = vmatprep.subr.bf16.mxu0 0
        %3982 = vmatpush1.bf16.msra.mxu0 0
        %3983 = vmatprep.subr.bf16.mxu0 0
        %3984 = vmatpush1.bf16.msra.mxu0 0
        %3985 = vmatprep.subr.bf16.mxu0 0
        %3986 = vmatpush1.bf16.msra.mxu0 0
        %3987 = vmatprep.subr.bf16.mxu0 0
        %3988 = vmatpush1.bf16.msra.mxu0 0
        %3989 = vmatprep.subr.bf16.mxu0 0
        %3990 = vmatpush1.bf16.msra.mxu0 0
        %3991 = vmatprep.subr.bf16.mxu0 0
        %3992 = vmatpush1.bf16.msra.mxu0 0
        %3993 = vmatprep.subr.bf16.mxu0 0
        %3994 = vmatpush1.bf16.msra.mxu0 0
        %3995 = vmatprep.subr.bf16.mxu0 0
        %3996 = vmatpush1.bf16.msra.mxu0 0
        %3997 = vmatprep.subr.bf16.mxu0 0
        %3998 = vmatpush1.bf16.msra.mxu0 0
        %3999 = vmatprep.subr.bf16.mxu0 0
        %4000 = vmatpush1.bf16.msra.mxu0 0
        %4001 = vmatprep.subr.bf16.mxu0 0
        %4002 = vmatpush1.bf16.msra.mxu0 0
        %4003 = vmatprep.subr.bf16.mxu0 0
        %4004 = vmatpush1.bf16.msra.mxu0 0
        %4005 = vmatprep.mubr.bf16.mxu0 0
        %4006 = vmatmul.mubr.bf16.gmra.mrb[0].mxu0 %v3968
        %v4007 = vpop.f32.mrb[0].mxu0
        %v4008 = vadd.f32 0.0, %v4007
        %v4009 = vpop.f32.mrb[0].mxu0
        %v4010 = vpop.f32.mrb[0].mxu0
        %v4011 = vadd.f32 0.0, %v4010
        %v4012 = vpop.f32.mrb[0].mxu0
        %4013 = vmatprep.mubr.bf16.mxu0 0
        %4014 = vmatmul.mubr.bf16.gmra.mrb[0].mxu0 %v3971
        %v4015 = vpop.f32.mrb[0].mxu0
        %v4016 = vadd.f32 0.0, %v4015
        %v4017 = vpop.f32.mrb[0].mxu0
        %v4018 = vpop.f32.mrb[0].mxu0
        %v4019 = vpop.f32.mrb[0].mxu0
        %4020 = vdwg.mxu0
        %v4021 = vadd.f32 %v3942, %v4008
        %v4022 = vadd.f32 %v3943, %v4011
        %v4023 = vadd.f32 %v3944, %v4016
        %v4024 = vld [vmem:[#allocation5 + $0x8] sm:$0xff]
        %v4025 = vld [vmem:[#allocation5 + $0x10] sm:$0xff]
        %v4026 = vld [vmem:[#allocation5 + $0x18] sm:$0x3f]
        %v4027 = vpack.c.bf16 %v4025, %v4024
        %v4028 = vpack.c.bf16 %v4026, %v4026
        %s4029 = scalar_lea.vmem %s5, 80
        %v4030 = vld [vmem:[%s4029] sm:$0xf]
        %v4031 = vld [vmem:[%s4029 + $0x4] sm:$0xf]
        %v4032 = vld [vmem:[%s4029 + $0x8] sm:$0xf]
        %v4033 = vld [vmem:[%s4029 + $0xc] sm:$0xf]
        %v4038 = vunpack.c.l.b16 %v4030
        %v4039 = vunpack.c.l.b16 %v4031
        %v4040 = vunpack.c.l.b16 %v4032
        %v4041 = vunpack.c.l.b16 %v4033
        %v4042 = vpack.c.b16 %v4039, %v4038
        %v4043 = vpack.c.b16 %v4041, %v4040
        %v4047 = vsel %vm3666, %v4027, 0
        %v4050 = vsel %vm3666, %v4028, 0
        %4052 = vmatprep.subr.bf16.mxu0 0
        %4053 = vmatpush1.bf16.msra.mxu0 %v4042
        %4054 = vmatprep.subr.bf16.mxu0 0
        %4055 = vmatpush1.bf16.msra.mxu0 %v4043
        %4056 = vmatprep.subr.bf16.mxu0 0
        %4057 = vmatpush1.bf16.msra.mxu0 0
        %4058 = vmatprep.subr.bf16.mxu0 0
        %4059 = vmatpush1.bf16.msra.mxu0 0
        %4060 = vmatprep.subr.bf16.mxu0 0
        %4061 = vmatpush1.bf16.msra.mxu0 0
        %4062 = vmatprep.subr.bf16.mxu0 0
        %4063 = vmatpush1.bf16.msra.mxu0 0
        %4064 = vmatprep.subr.bf16.mxu0 0
        %4065 = vmatpush1.bf16.msra.mxu0 0
        %4066 = vmatprep.subr.bf16.mxu0 0
        %4067 = vmatpush1.bf16.msra.mxu0 0
        %4068 = vmatprep.subr.bf16.mxu0 0
        %4069 = vmatpush1.bf16.msra.mxu0 0
        %4070 = vmatprep.subr.bf16.mxu0 0
        %4071 = vmatpush1.bf16.msra.mxu0 0
        %4072 = vmatprep.subr.bf16.mxu0 0
        %4073 = vmatpush1.bf16.msra.mxu0 0
        %4074 = vmatprep.subr.bf16.mxu0 0
        %4075 = vmatpush1.bf16.msra.mxu0 0
        %4076 = vmatprep.subr.bf16.mxu0 0
        %4077 = vmatpush1.bf16.msra.mxu0 0
        %4078 = vmatprep.subr.bf16.mxu0 0
        %4079 = vmatpush1.bf16.msra.mxu0 0
        %4080 = vmatprep.subr.bf16.mxu0 0
        %4081 = vmatpush1.bf16.msra.mxu0 0
        %4082 = vmatprep.subr.bf16.mxu0 0
        %4083 = vmatpush1.bf16.msra.mxu0 0
        %4084 = vmatprep.mubr.bf16.mxu0 0
        %4085 = vmatmul.mubr.bf16.gmra.mrb[0].mxu0 %v4047
        %v4086 = vpop.f32.mrb[0].mxu0
        %v4087 = vadd.f32 0.0, %v4086
        %v4088 = vpop.f32.mrb[0].mxu0
        %v4089 = vpop.f32.mrb[0].mxu0
        %v4090 = vadd.f32 0.0, %v4089
        %v4091 = vpop.f32.mrb[0].mxu0
        %4092 = vmatprep.mubr.bf16.mxu0 0
        %4093 = vmatmul.mubr.bf16.gmra.mrb[0].mxu0 %v4050
        %v4094 = vpop.f32.mrb[0].mxu0
        %v4095 = vadd.f32 0.0, %v4094
        %v4096 = vpop.f32.mrb[0].mxu0
        %v4097 = vpop.f32.mrb[0].mxu0
        %v4098 = vpop.f32.mrb[0].mxu0
        %4099 = vdwg.mxu0
        %v4100 = vadd.f32 %v4021, %v4087
        %v4101 = vadd.f32 %v4022, %v4090
        %v4102 = vadd.f32 %v4023, %v4095
        %v4103 = vld [vmem:[#allocation5 + $0xc] sm:$0xff]
        %v4104 = vld [vmem:[#allocation5 + $0x14] sm:$0xff]
        %v4105 = vld [vmem:[#allocation5 + $0x1c] sm:$0x3f]
        %v4106 = vpack.c.bf16 %v4104, %v4103
        %v4107 = vpack.c.bf16 %v4105, %v4105
        %s4108 = scalar_lea.vmem %s5, 96
        %v4109 = vld [vmem:[%s4108] sm:$0xf]
        %v4110 = vld [vmem:[%s4108 + $0x4] sm:$0xf]
        %v4111 = vld [vmem:[%s4108 + $0x8] sm:$0xf]
        %v4112 = vld [vmem:[%s4108 + $0xc] sm:$0xf]
        %v4117 = vunpack.c.l.b16 %v4109
        %v4118 = vunpack.c.l.b16 %v4110
        %v4119 = vunpack.c.l.b16 %v4111
        %v4120 = vunpack.c.l.b16 %v4112
        %v4121 = vpack.c.b16 %v4118, %v4117
        %v4122 = vpack.c.b16 %v4120, %v4119
        %v4126 = vsel %vm3666, %v4106, 0
        %v4129 = vsel %vm3666, %v4107, 0
        %4131 = vmatprep.subr.bf16.mxu0 0
        %4132 = vmatpush1.bf16.msra.mxu0 %v4121
        %4133 = vmatprep.subr.bf16.mxu0 0
        %4134 = vmatpush1.bf16.msra.mxu0 %v4122
        %4135 = vmatprep.subr.bf16.mxu0 0
        %4136 = vmatpush1.bf16.msra.mxu0 0
        %4137 = vmatprep.subr.bf16.mxu0 0
        %4138 = vmatpush1.bf16.msra.mxu0 0
        %4139 = vmatprep.subr.bf16.mxu0 0
        %4140 = vmatpush1.bf16.msra.mxu0 0
        %4141 = vmatprep.subr.bf16.mxu0 0
        %4142 = vmatpush1.bf16.msra.mxu0 0
        %4143 = vmatprep.subr.bf16.mxu0 0
        %4144 = vmatpush1.bf16.msra.mxu0 0
        %4145 = vmatprep.subr.bf16.mxu0 0
        %4146 = vmatpush1.bf16.msra.mxu0 0
        %4147 = vmatprep.subr.bf16.mxu0 0
        %4148 = vmatpush1.bf16.msra.mxu0 0
        %4149 = vmatprep.subr.bf16.mxu0 0
        %4150 = vmatpush1.bf16.msra.mxu0 0
        %4151 = vmatprep.subr.bf16.mxu0 0
        %4152 = vmatpush1.bf16.msra.mxu0 0
        %4153 = vmatprep.subr.bf16.mxu0 0
        %4154 = vmatpush1.bf16.msra.mxu0 0
        %4155 = vmatprep.subr.bf16.mxu0 0
        %4156 = vmatpush1.bf16.msra.mxu0 0
        %4157 = vmatprep.subr.bf16.mxu0 0
        %4158 = vmatpush1.bf16.msra.mxu0 0
        %4159 = vmatprep.subr.bf16.mxu0 0
        %4160 = vmatpush1.bf16.msra.mxu0 0
        %4161 = vmatprep.subr.bf16.mxu0 0
        %4162 = vmatpush1.bf16.msra.mxu0 0
        %4163 = vmatprep.mubr.bf16.mxu0 0
        %4164 = vmatmul.mubr.bf16.gmra.mrb[0].mxu0 %v4126
        %v4165 = vpop.f32.mrb[0].mxu0
        %v4166 = vadd.f32 0.0, %v4165
        %v4167 = vpop.f32.mrb[0].mxu0
        %v4168 = vpop.f32.mrb[0].mxu0
        %v4169 = vadd.f32 0.0, %v4168
        %v4170 = vpop.f32.mrb[0].mxu0
        %4171 = vmatprep.mubr.bf16.mxu0 0
        %4172 = vmatmul.mubr.bf16.gmra.mrb[0].mxu0 %v4129
        %v4173 = vpop.f32.mrb[0].mxu0
        %v4174 = vadd.f32 0.0, %v4173
        %v4175 = vpop.f32.mrb[0].mxu0
        %v4176 = vpop.f32.mrb[0].mxu0
        %v4177 = vpop.f32.mrb[0].mxu0
        %4178 = vdwg.mxu0
        %v4179 = vadd.f32 %v4100, %v4166
        %v4180 = vadd.f32 %v4101, %v4169
        %v4181 = vadd.f32 %v4102, %v4174
        %v4182 = vld [vmem:[#allocation5 + $0xd] sm:$0xff]
        %v4183 = vld [vmem:[#allocation5 + $0x15] sm:$0xff]
        %v4184 = vld [vmem:[#allocation5 + $0x1d] sm:$0x3f]
        %v4185 = vpack.c.bf16 %v4183, %v4182
        %v4186 = vpack.c.bf16 %v4184, %v4184
        %s4187 = scalar_lea.vmem %s5, 112
        %v4188 = vld [vmem:[%s4187] sm:$0xf]
        %v4189 = vld [vmem:[%s4187 + $0x4] sm:$0xf]
        %v4190 = vld [vmem:[%s4187 + $0x8] sm:$0xf]
        %v4191 = vld [vmem:[%s4187 + $0xc] sm:$0xf]
        %v4196 = vunpack.c.l.b16 %v4188
        %v4197 = vunpack.c.l.b16 %v4189
        %v4198 = vunpack.c.l.b16 %v4190
        %v4199 = vunpack.c.l.b16 %v4191
        %v4200 = vpack.c.b16 %v4197, %v4196
        %v4201 = vpack.c.b16 %v4199, %v4198
        %v4205 = vsel %vm3666, %v4185, 0
        %v4208 = vsel %vm3666, %v4186, 0
        %4210 = vmatprep.subr.bf16.mxu0 0
        %4211 = vmatpush1.bf16.msra.mxu0 %v4200
        %4212 = vmatprep.subr.bf16.mxu0 0
        %4213 = vmatpush1.bf16.msra.mxu0 %v4201
        %4214 = vmatprep.subr.bf16.mxu0 0
        %4215 = vmatpush1.bf16.msra.mxu0 0
        %4216 = vmatprep.subr.bf16.mxu0 0
        %4217 = vmatpush1.bf16.msra.mxu0 0
        %4218 = vmatprep.subr.bf16.mxu0 0
        %4219 = vmatpush1.bf16.msra.mxu0 0
        %4220 = vmatprep.subr.bf16.mxu0 0
        %4221 = vmatpush1.bf16.msra.mxu0 0
        %4222 = vmatprep.subr.bf16.mxu0 0
        %4223 = vmatpush1.bf16.msra.mxu0 0
        %4224 = vmatprep.subr.bf16.mxu0 0
        %4225 = vmatpush1.bf16.msra.mxu0 0
        %4226 = vmatprep.subr.bf16.mxu0 0
        %4227 = vmatpush1.bf16.msra.mxu0 0
        %4228 = vmatprep.subr.bf16.mxu0 0
        %4229 = vmatpush1.bf16.msra.mxu0 0
        %4230 = vmatprep.subr.bf16.mxu0 0
        %4231 = vmatpush1.bf16.msra.mxu0 0
        %4232 = vmatprep.subr.bf16.mxu0 0
        %4233 = vmatpush1.bf16.msra.mxu0 0
        %4234 = vmatprep.subr.bf16.mxu0 0
        %4235 = vmatpush1.bf16.msra.mxu0 0
        %4236 = vmatprep.subr.bf16.mxu0 0
        %4237 = vmatpush1.bf16.msra.mxu0 0
        %4238 = vmatprep.subr.bf16.mxu0 0
        %4239 = vmatpush1.bf16.msra.mxu0 0
        %4240 = vmatprep.subr.bf16.mxu0 0
        %4241 = vmatpush1.bf16.msra.mxu0 0
        %4242 = vmatprep.mubr.bf16.mxu0 0
        %4243 = vmatmul.mubr.bf16.gmra.mrb[0].mxu0 %v4205
        %v4244 = vpop.f32.mrb[0].mxu0
        %v4245 = vadd.f32 0.0, %v4244
        %v4246 = vpop.f32.mrb[0].mxu0
        %v4247 = vpop.f32.mrb[0].mxu0
        %v4248 = vadd.f32 0.0, %v4247
        %v4249 = vpop.f32.mrb[0].mxu0
        %4250 = vmatprep.mubr.bf16.mxu0 0
        %4251 = vmatmul.mubr.bf16.gmra.mrb[0].mxu0 %v4208
        %v4252 = vpop.f32.mrb[0].mxu0
        %v4253 = vadd.f32 0.0, %v4252
        %v4254 = vpop.f32.mrb[0].mxu0
        %v4255 = vpop.f32.mrb[0].mxu0
        %v4256 = vpop.f32.mrb[0].mxu0
        %4257 = vdwg.mxu0
        %v4258 = vadd.f32 %v4179, %v4245
        %v4259 = vadd.f32 %v4180, %v4248
        %v4260 = vadd.f32 %v4181, %v4253
        %v4261 = vld [vmem:[#allocation5 + $0xe] sm:$0xff]
        %v4262 = vld [vmem:[#allocation5 + $0x16] sm:$0xff]
        %v4263 = vld [vmem:[#allocation5 + $0x1e] sm:$0x3f]
        %v4264 = vpack.c.bf16 %v4262, %v4261
        %v4265 = vpack.c.bf16 %v4263, %v4263
        %s4266 = scalar_lea.vmem %s5, 128
        %v4267 = vld [vmem:[%s4266] sm:$0xf]
        %v4268 = vld [vmem:[%s4266 + $0x4] sm:$0xf]
        %v4269 = vld [vmem:[%s4266 + $0x8] sm:$0xf]
        %v4270 = vld [vmem:[%s4266 + $0xc] sm:$0xf]
        %v4275 = vunpack.c.l.b16 %v4267
        %v4276 = vunpack.c.l.b16 %v4268
        %v4277 = vunpack.c.l.b16 %v4269
        %v4278 = vunpack.c.l.b16 %v4270
        %v4279 = vpack.c.b16 %v4276, %v4275
        %v4280 = vpack.c.b16 %v4278, %v4277
        %v4284 = vsel %vm3666, %v4264, 0
        %v4287 = vsel %vm3666, %v4265, 0
        %4289 = vmatprep.subr.bf16.mxu0 0
        %4290 = vmatpush1.bf16.msra.mxu0 %v4279
        %4291 = vmatprep.subr.bf16.mxu0 0
        %4292 = vmatpush1.bf16.msra.mxu0 %v4280
        %4293 = vmatprep.subr.bf16.mxu0 0
        %4294 = vmatpush1.bf16.msra.mxu0 0
        %4295 = vmatprep.subr.bf16.mxu0 0
        %4296 = vmatpush1.bf16.msra.mxu0 0
        %4297 = vmatprep.subr.bf16.mxu0 0
        %4298 = vmatpush1.bf16.msra.mxu0 0
        %4299 = vmatprep.subr.bf16.mxu0 0
        %4300 = vmatpush1.bf16.msra.mxu0 0
        %4301 = vmatprep.subr.bf16.mxu0 0
        %4302 = vmatpush1.bf16.msra.mxu0 0
        %4303 = vmatprep.subr.bf16.mxu0 0
        %4304 = vmatpush1.bf16.msra.mxu0 0
        %4305 = vmatprep.subr.bf16.mxu0 0
        %4306 = vmatpush1.bf16.msra.mxu0 0
        %4307 = vmatprep.subr.bf16.mxu0 0
        %4308 = vmatpush1.bf16.msra.mxu0 0
        %4309 = vmatprep.subr.bf16.mxu0 0
        %4310 = vmatpush1.bf16.msra.mxu0 0
        %4311 = vmatprep.subr.bf16.mxu0 0
        %4312 = vmatpush1.bf16.msra.mxu0 0
        %4313 = vmatprep.subr.bf16.mxu0 0
        %4314 = vmatpush1.bf16.msra.mxu0 0
        %4315 = vmatprep.subr.bf16.mxu0 0
        %4316 = vmatpush1.bf16.msra.mxu0 0
        %4317 = vmatprep.subr.bf16.mxu0 0
        %4318 = vmatpush1.bf16.msra.mxu0 0
        %4319 = vmatprep.subr.bf16.mxu0 0
        %4320 = vmatpush1.bf16.msra.mxu0 0
        %4321 = vmatprep.mubr.bf16.mxu0 0
        %4322 = vmatmul.mubr.bf16.gmra.mrb[0].mxu0 %v4284
        %v4323 = vpop.f32.mrb[0].mxu0
        %v4324 = vadd.f32 0.0, %v4323
        %v4325 = vpop.f32.mrb[0].mxu0
        %v4326 = vpop.f32.mrb[0].mxu0
        %v4327 = vadd.f32 0.0, %v4326
        %v4328 = vpop.f32.mrb[0].mxu0
        %4329 = vmatprep.mubr.bf16.mxu0 0
        %4330 = vmatmul.mubr.bf16.gmra.mrb[0].mxu0 %v4287
        %v4331 = vpop.f32.mrb[0].mxu0
        %v4332 = vadd.f32 0.0, %v4331
        %v4333 = vpop.f32.mrb[0].mxu0
        %v4334 = vpop.f32.mrb[0].mxu0
        %v4335 = vpop.f32.mrb[0].mxu0
        %4336 = vdwg.mxu0
        %v4337 = vadd.f32 %v4258, %v4324
        %v4338 = vadd.f32 %v4259, %v4327
        %v4339 = vadd.f32 %v4260, %v4332
        %v4340 = vld [vmem:[%s14] sm:$0x1]
        %v4342 = vlaneseq
        %v4343 = vshrl.u32 %v4342, 7
        %v4344 = vsub.s32 0, %v4343
        %v4345 = vrot.slane %v4340, %v4344
        %v4347 = vadd.f32 %v4337, %v4345
        %v4348 = vadd.f32 %v4338, %v4345
        %v4349 = vadd.f32 %v4339, %v4345
        %v4350 = vmax.f32 %v4347, 0.0
        %v4351 = vmax.f32 %v4348, 0.0
        %v4352 = vmax.f32 %v4349, 0.0
        %4353 = vst [vmem:[#allocation2] sm:$0xff] %v4350
        %4354 = vst [vmem:[#allocation2 + $0x8] sm:$0xff] %v4351
        %4355 = vst [vmem:[#allocation2 + $0x10] sm:$0x3f] %v4352
        %v4356 = vld [vmem:[#allocation2] sm:$0xf]
        %4357 = vst [vmem:[#allocation6 + $0x7] sm:$0xf] %v4356
        %v4358 = vld [vmem:[#allocation2 + $0x6] sm:$0xf]
        %4359 = vst [vmem:[#allocation6 + $0xd] sm:$0xf] %v4358
        %v4360 = vld [vmem:[#allocation2 + $0xc] sm:$0xf]
        %4361 = vst [vmem:[#allocation6 + $0x13] sm:$0xf] %v4360
        %v4362 = vld [vmem:[#allocation2 + $0x12] sm:$0xf]
        %4363 = vst [vmem:[#allocation6 + $0x19] sm:$0xf] %v4362
        %v4364 = vld [vmem:[#allocation6] sm:$0xff]
        %v4365 = vld [vmem:[#allocation6 + $0x8] sm:$0xff]
        %v4366 = vld [vmem:[#allocation6 + $0x10] sm:$0x3f]
        %v4367 = vpack.c.bf16 %v4365, %v4364
        %v4368 = vpack.c.bf16 %v4366, %v4366
        %v4369 = vld [vmem:[%s6] sm:$0xf]
        %v4370 = vld [vmem:[%s6 + $0x4] sm:$0xf]
        %v4371 = vld [vmem:[%s6 + $0x8] sm:$0xf]
        %v4372 = vld [vmem:[#allocation6 + $0x1] sm:$0xff]
        %v4373 = vld [vmem:[#allocation6 + $0x9] sm:$0xff]
        %v4374 = vld [vmem:[#allocation6 + $0x11] sm:$0x3f]
        %v4375 = vpack.c.bf16 %v4373, %v4372
        %v4376 = vpack.c.bf16 %v4374, %v4374
        %s4377 = scalar_lea.vmem %s6, 12
        %v4378 = vld [vmem:[%s4377] sm:$0xf]
        %v4379 = vld [vmem:[%s4377 + $0x4] sm:$0xf]
        %v4380 = vld [vmem:[%s4377 + $0x8] sm:$0xf]
        %v4384 = vunpack.c.l.b16 %v4378
        %v4385 = vunpack.c.l.b16 %v4379
        %v4386 = vunpack.c.l.b16 %v4380
        %v4387 = vpack.c.b16 %v4385, %v4384
        %v4388 = vpack.c.b16 %v4386, %v4386
        %vm4390 = vcmask 195584
        %v4392 = vsel %vm4390, %v4375, 0
        %v4395 = vsel %vm4390, %v4376, 0
        %vm4397 = vcmask 1043456
        %v4399 = vsel %vm4397, %v4388, 0
        %4401 = vmatprep.subr.bf16.mxu0 0
        %4402 = vmatpush1.bf16.msra.mxu0 %v4387
        %4403 = vmatprep.subr.bf16.mxu0 0
        %4404 = vmatpush1.bf16.msra.mxu0 %v4399
        %4405 = vmatprep.subr.bf16.mxu0 0
        %4406 = vmatpush1.bf16.msra.mxu0 0
        %4407 = vmatprep.subr.bf16.mxu0 0
        %4408 = vmatpush1.bf16.msra.mxu0 0
        %4409 = vmatprep.subr.bf16.mxu0 0
        %4410 = vmatpush1.bf16.msra.mxu0 0
        %4411 = vmatprep.subr.bf16.mxu0 0
        %4412 = vmatpush1.bf16.msra.mxu0 0
        %4413 = vmatprep.subr.bf16.mxu0 0
        %4414 = vmatpush1.bf16.msra.mxu0 0
        %4415 = vmatprep.subr.bf16.mxu0 0
        %4416 = vmatpush1.bf16.msra.mxu0 0
        %4417 = vmatprep.subr.bf16.mxu0 0
        %4418 = vmatpush1.bf16.msra.mxu0 0
        %4419 = vmatprep.subr.bf16.mxu0 0
        %4420 = vmatpush1.bf16.msra.mxu0 0
        %4421 = vmatprep.subr.bf16.mxu0 0
        %4422 = vmatpush1.bf16.msra.mxu0 0
        %4423 = vmatprep.subr.bf16.mxu0 0
        %4424 = vmatpush1.bf16.msra.mxu0 0
        %4425 = vmatprep.subr.bf16.mxu0 0
        %4426 = vmatpush1.bf16.msra.mxu0 0
        %4427 = vmatprep.subr.bf16.mxu0 0
        %4428 = vmatpush1.bf16.msra.mxu0 0
        %4429 = vmatprep.subr.bf16.mxu0 0
        %4430 = vmatpush1.bf16.msra.mxu0 0
        %4431 = vmatprep.subr.bf16.mxu0 0
        %4432 = vmatpush1.bf16.msra.mxu0 0
        %4433 = vmatprep.mubr.bf16.mxu0 0
        %4434 = vmatmul.mubr.bf16.gmra.mrb[0].mxu0 %v4392
        %v4435 = vpop.f32.mrb[0].mxu0
        %v4436 = vadd.f32 0.0, %v4435
        %v4437 = vpop.f32.mrb[0].mxu0
        %v4438 = vpop.f32.mrb[0].mxu0
        %v4439 = vadd.f32 0.0, %v4438
        %v4440 = vpop.f32.mrb[0].mxu0
        %4441 = vmatprep.mubr.bf16.mxu0 0
        %4442 = vmatmul.mubr.bf16.gmra.mrb[0].mxu0 %v4395
        %v4443 = vpop.f32.mrb[0].mxu0
        %v4444 = vadd.f32 0.0, %v4443
        %v4445 = vpop.f32.mrb[0].mxu0
        %v4446 = vpop.f32.mrb[0].mxu0
        %v4447 = vpop.f32.mrb[0].mxu0
        %4448 = vdwg.mxu0
        %v4452 = vunpack.c.l.b16 %v4369
        %v4453 = vunpack.c.l.b16 %v4370
        %v4454 = vunpack.c.l.b16 %v4371
        %v4455 = vpack.c.b16 %v4453, %v4452
        %v4456 = vpack.c.b16 %v4454, %v4454
        %v4459 = vsel %vm4390, %v4367, 0
        %v4462 = vsel %vm4390, %v4368, 0
        %v4465 = vsel %vm4397, %v4456, 0
        %4467 = vmatprep.subr.bf16.mxu0 0
        %4468 = vmatpush1.bf16.msra.mxu0 %v4455
        %4469 = vmatprep.subr.bf16.mxu0 0
        %4470 = vmatpush1.bf16.msra.mxu0 %v4465
        %4471 = vmatprep.subr.bf16.mxu0 0
        %4472 = vmatpush1.bf16.msra.mxu0 0
        %4473 = vmatprep.subr.bf16.mxu0 0
        %4474 = vmatpush1.bf16.msra.mxu0 0
        %4475 = vmatprep.subr.bf16.mxu0 0
        %4476 = vmatpush1.bf16.msra.mxu0 0
        %4477 = vmatprep.subr.bf16.mxu0 0
        %4478 = vmatpush1.bf16.msra.mxu0 0
        %4479 = vmatprep.subr.bf16.mxu0 0
        %4480 = vmatpush1.bf16.msra.mxu0 0
        %4481 = vmatprep.subr.bf16.mxu0 0
        %4482 = vmatpush1.bf16.msra.mxu0 0
        %4483 = vmatprep.subr.bf16.mxu0 0
        %4484 = vmatpush1.bf16.msra.mxu0 0
        %4485 = vmatprep.subr.bf16.mxu0 0
        %4486 = vmatpush1.bf16.msra.mxu0 0
        %4487 = vmatprep.subr.bf16.mxu0 0
        %4488 = vmatpush1.bf16.msra.mxu0 0
        %4489 = vmatprep.subr.bf16.mxu0 0
        %4490 = vmatpush1.bf16.msra.mxu0 0
        %4491 = vmatprep.subr.bf16.mxu0 0
        %4492 = vmatpush1.bf16.msra.mxu0 0
        %4493 = vmatprep.subr.bf16.mxu0 0
        %4494 = vmatpush1.bf16.msra.mxu0 0
        %4495 = vmatprep.subr.bf16.mxu0 0
        %4496 = vmatpush1.bf16.msra.mxu0 0
        %4497 = vmatprep.subr.bf16.mxu0 0
        %4498 = vmatpush1.bf16.msra.mxu0 0
        %4499 = vmatprep.mubr.bf16.mxu0 0
        %4500 = vmatmul.mubr.bf16.gmra.mrb[0].mxu0 %v4459
        %v4501 = vpop.f32.mrb[0].mxu0
        %v4502 = vadd.f32 %v4436, %v4501
        %v4503 = vpop.f32.mrb[0].mxu0
        %v4504 = vpop.f32.mrb[0].mxu0
        %v4505 = vadd.f32 %v4439, %v4504
        %v4506 = vpop.f32.mrb[0].mxu0
        %4507 = vmatprep.mubr.bf16.mxu0 0
        %4508 = vmatmul.mubr.bf16.gmra.mrb[0].mxu0 %v4462
        %v4509 = vpop.f32.mrb[0].mxu0
        %v4510 = vadd.f32 %v4444, %v4509
        %v4511 = vpop.f32.mrb[0].mxu0
        %v4512 = vpop.f32.mrb[0].mxu0
        %v4513 = vpop.f32.mrb[0].mxu0
        %4514 = vdwg.mxu0
        %v4515 = vld [vmem:[#allocation6 + $0x2] sm:$0xff]
        %v4516 = vld [vmem:[#allocation6 + $0xa] sm:$0xff]
        %v4517 = vld [vmem:[#allocation6 + $0x12] sm:$0x3f]
        %v4518 = vpack.c.bf16 %v4516, %v4515
        %v4519 = vpack.c.bf16 %v4517, %v4517
        %s4520 = scalar_lea.vmem %s6, 24
        %v4521 = vld [vmem:[%s4520] sm:$0xf]
        %v4522 = vld [vmem:[%s4520 + $0x4] sm:$0xf]
        %v4523 = vld [vmem:[%s4520 + $0x8] sm:$0xf]
        %v4527 = vunpack.c.l.b16 %v4521
        %v4528 = vunpack.c.l.b16 %v4522
        %v4529 = vunpack.c.l.b16 %v4523
        %v4530 = vpack.c.b16 %v4528, %v4527
        %v4531 = vpack.c.b16 %v4529, %v4529
        %v4534 = vsel %vm4390, %v4518, 0
        %v4537 = vsel %vm4390, %v4519, 0
        %v4540 = vsel %vm4397, %v4531, 0
        %4542 = vmatprep.subr.bf16.mxu0 0
        %4543 = vmatpush1.bf16.msra.mxu0 %v4530
        %4544 = vmatprep.subr.bf16.mxu0 0
        %4545 = vmatpush1.bf16.msra.mxu0 %v4540
        %4546 = vmatprep.subr.bf16.mxu0 0
        %4547 = vmatpush1.bf16.msra.mxu0 0
        %4548 = vmatprep.subr.bf16.mxu0 0
        %4549 = vmatpush1.bf16.msra.mxu0 0
        %4550 = vmatprep.subr.bf16.mxu0 0
        %4551 = vmatpush1.bf16.msra.mxu0 0
        %4552 = vmatprep.subr.bf16.mxu0 0
        %4553 = vmatpush1.bf16.msra.mxu0 0
        %4554 = vmatprep.subr.bf16.mxu0 0
        %4555 = vmatpush1.bf16.msra.mxu0 0
        %4556 = vmatprep.subr.bf16.mxu0 0
        %4557 = vmatpush1.bf16.msra.mxu0 0
        %4558 = vmatprep.subr.bf16.mxu0 0
        %4559 = vmatpush1.bf16.msra.mxu0 0
        %4560 = vmatprep.subr.bf16.mxu0 0
        %4561 = vmatpush1.bf16.msra.mxu0 0
        %4562 = vmatprep.subr.bf16.mxu0 0
        %4563 = vmatpush1.bf16.msra.mxu0 0
        %4564 = vmatprep.subr.bf16.mxu0 0
        %4565 = vmatpush1.bf16.msra.mxu0 0
        %4566 = vmatprep.subr.bf16.mxu0 0
        %4567 = vmatpush1.bf16.msra.mxu0 0
        %4568 = vmatprep.subr.bf16.mxu0 0
        %4569 = vmatpush1.bf16.msra.mxu0 0
        %4570 = vmatprep.subr.bf16.mxu0 0
        %4571 = vmatpush1.bf16.msra.mxu0 0
        %4572 = vmatprep.subr.bf16.mxu0 0
        %4573 = vmatpush1.bf16.msra.mxu0 0
        %4574 = vmatprep.mubr.bf16.mxu0 0
        %4575 = vmatmul.mubr.bf16.gmra.mrb[0].mxu0 %v4534
        %v4576 = vpop.f32.mrb[0].mxu0
        %v4577 = vadd.f32 0.0, %v4576
        %v4578 = vpop.f32.mrb[0].mxu0
        %v4579 = vpop.f32.mrb[0].mxu0
        %v4580 = vadd.f32 0.0, %v4579
        %v4581 = vpop.f32.mrb[0].mxu0
        %4582 = vmatprep.mubr.bf16.mxu0 0
        %4583 = vmatmul.mubr.bf16.gmra.mrb[0].mxu0 %v4537
        %v4584 = vpop.f32.mrb[0].mxu0
        %v4585 = vadd.f32 0.0, %v4584
        %v4586 = vpop.f32.mrb[0].mxu0
        %v4587 = vpop.f32.mrb[0].mxu0
        %v4588 = vpop.f32.mrb[0].mxu0
        %4589 = vdwg.mxu0
        %v4590 = vadd.f32 %v4502, %v4577
        %v4591 = vadd.f32 %v4505, %v4580
        %v4592 = vadd.f32 %v4510, %v4585
        %v4593 = vld [vmem:[#allocation6 + $0x6] sm:$0xff]
        %v4594 = vld [vmem:[#allocation6 + $0xe] sm:$0xff]
        %v4595 = vld [vmem:[#allocation6 + $0x16] sm:$0x3f]
        %v4596 = vpack.c.bf16 %v4594, %v4593
        %v4597 = vpack.c.bf16 %v4595, %v4595
        %s4598 = scalar_lea.vmem %s6, 36
        %v4599 = vld [vmem:[%s4598] sm:$0xf]
        %v4600 = vld [vmem:[%s4598 + $0x4] sm:$0xf]
        %v4601 = vld [vmem:[%s4598 + $0x8] sm:$0xf]
        %v4605 = vunpack.c.l.b16 %v4599
        %v4606 = vunpack.c.l.b16 %v4600
        %v4607 = vunpack.c.l.b16 %v4601
        %v4608 = vpack.c.b16 %v4606, %v4605
        %v4609 = vpack.c.b16 %v4607, %v4607
        %v4612 = vsel %vm4390, %v4596, 0
        %v4615 = vsel %vm4390, %v4597, 0
        %v4618 = vsel %vm4397, %v4609, 0
        %4620 = vmatprep.subr.bf16.mxu0 0
        %4621 = vmatpush1.bf16.msra.mxu0 %v4608
        %4622 = vmatprep.subr.bf16.mxu0 0
        %4623 = vmatpush1.bf16.msra.mxu0 %v4618
        %4624 = vmatprep.subr.bf16.mxu0 0
        %4625 = vmatpush1.bf16.msra.mxu0 0
        %4626 = vmatprep.subr.bf16.mxu0 0
        %4627 = vmatpush1.bf16.msra.mxu0 0
        %4628 = vmatprep.subr.bf16.mxu0 0
        %4629 = vmatpush1.bf16.msra.mxu0 0
        %4630 = vmatprep.subr.bf16.mxu0 0
        %4631 = vmatpush1.bf16.msra.mxu0 0
        %4632 = vmatprep.subr.bf16.mxu0 0
        %4633 = vmatpush1.bf16.msra.mxu0 0
        %4634 = vmatprep.subr.bf16.mxu0 0
        %4635 = vmatpush1.bf16.msra.mxu0 0
        %4636 = vmatprep.subr.bf16.mxu0 0
        %4637 = vmatpush1.bf16.msra.mxu0 0
        %4638 = vmatprep.subr.bf16.mxu0 0
        %4639 = vmatpush1.bf16.msra.mxu0 0
        %4640 = vmatprep.subr.bf16.mxu0 0
        %4641 = vmatpush1.bf16.msra.mxu0 0
        %4642 = vmatprep.subr.bf16.mxu0 0
        %4643 = vmatpush1.bf16.msra.mxu0 0
        %4644 = vmatprep.subr.bf16.mxu0 0
        %4645 = vmatpush1.bf16.msra.mxu0 0
        %4646 = vmatprep.subr.bf16.mxu0 0
        %4647 = vmatpush1.bf16.msra.mxu0 0
        %4648 = vmatprep.subr.bf16.mxu0 0
        %4649 = vmatpush1.bf16.msra.mxu0 0
        %4650 = vmatprep.subr.bf16.mxu0 0
        %4651 = vmatpush1.bf16.msra.mxu0 0
        %4652 = vmatprep.mubr.bf16.mxu0 0
        %4653 = vmatmul.mubr.bf16.gmra.mrb[0].mxu0 %v4612
        %v4654 = vpop.f32.mrb[0].mxu0
        %v4655 = vadd.f32 0.0, %v4654
        %v4656 = vpop.f32.mrb[0].mxu0
        %v4657 = vpop.f32.mrb[0].mxu0
        %v4658 = vadd.f32 0.0, %v4657
        %v4659 = vpop.f32.mrb[0].mxu0
        %4660 = vmatprep.mubr.bf16.mxu0 0
        %4661 = vmatmul.mubr.bf16.gmra.mrb[0].mxu0 %v4615
        %v4662 = vpop.f32.mrb[0].mxu0
        %v4663 = vadd.f32 0.0, %v4662
        %v4664 = vpop.f32.mrb[0].mxu0
        %v4665 = vpop.f32.mrb[0].mxu0
        %v4666 = vpop.f32.mrb[0].mxu0
        %4667 = vdwg.mxu0
        %v4668 = vadd.f32 %v4590, %v4655
        %v4669 = vadd.f32 %v4591, %v4658
        %v4670 = vadd.f32 %v4592, %v4663
        %v4671 = vld [vmem:[#allocation6 + $0x7] sm:$0xff]
        %v4672 = vld [vmem:[#allocation6 + $0xf] sm:$0xff]
        %v4673 = vld [vmem:[#allocation6 + $0x17] sm:$0x3f]
        %v4674 = vpack.c.bf16 %v4672, %v4671
        %v4675 = vpack.c.bf16 %v4673, %v4673
        %s4676 = scalar_lea.vmem %s6, 48
        %v4677 = vld [vmem:[%s4676] sm:$0xf]
        %v4678 = vld [vmem:[%s4676 + $0x4] sm:$0xf]
        %v4679 = vld [vmem:[%s4676 + $0x8] sm:$0xf]
        %v4683 = vunpack.c.l.b16 %v4677
        %v4684 = vunpack.c.l.b16 %v4678
        %v4685 = vunpack.c.l.b16 %v4679
        %v4686 = vpack.c.b16 %v4684, %v4683
        %v4687 = vpack.c.b16 %v4685, %v4685
        %v4690 = vsel %vm4390, %v4674, 0
        %v4693 = vsel %vm4390, %v4675, 0
        %v4696 = vsel %vm4397, %v4687, 0
        %4698 = vmatprep.subr.bf16.mxu0 0
        %4699 = vmatpush1.bf16.msra.mxu0 %v4686
        %4700 = vmatprep.subr.bf16.mxu0 0
        %4701 = vmatpush1.bf16.msra.mxu0 %v4696
        %4702 = vmatprep.subr.bf16.mxu0 0
        %4703 = vmatpush1.bf16.msra.mxu0 0
        %4704 = vmatprep.subr.bf16.mxu0 0
        %4705 = vmatpush1.bf16.msra.mxu0 0
        %4706 = vmatprep.subr.bf16.mxu0 0
        %4707 = vmatpush1.bf16.msra.mxu0 0
        %4708 = vmatprep.subr.bf16.mxu0 0
        %4709 = vmatpush1.bf16.msra.mxu0 0
        %4710 = vmatprep.subr.bf16.mxu0 0
        %4711 = vmatpush1.bf16.msra.mxu0 0
        %4712 = vmatprep.subr.bf16.mxu0 0
        %4713 = vmatpush1.bf16.msra.mxu0 0
        %4714 = vmatprep.subr.bf16.mxu0 0
        %4715 = vmatpush1.bf16.msra.mxu0 0
        %4716 = vmatprep.subr.bf16.mxu0 0
        %4717 = vmatpush1.bf16.msra.mxu0 0
        %4718 = vmatprep.subr.bf16.mxu0 0
        %4719 = vmatpush1.bf16.msra.mxu0 0
        %4720 = vmatprep.subr.bf16.mxu0 0
        %4721 = vmatpush1.bf16.msra.mxu0 0
        %4722 = vmatprep.subr.bf16.mxu0 0
        %4723 = vmatpush1.bf16.msra.mxu0 0
        %4724 = vmatprep.subr.bf16.mxu0 0
        %4725 = vmatpush1.bf16.msra.mxu0 0
        %4726 = vmatprep.subr.bf16.mxu0 0
        %4727 = vmatpush1.bf16.msra.mxu0 0
        %4728 = vmatprep.subr.bf16.mxu0 0
        %4729 = vmatpush1.bf16.msra.mxu0 0
        %4730 = vmatprep.mubr.bf16.mxu0 0
        %4731 = vmatmul.mubr.bf16.gmra.mrb[0].mxu0 %v4690
        %v4732 = vpop.f32.mrb[0].mxu0
        %v4733 = vadd.f32 0.0, %v4732
        %v4734 = vpop.f32.mrb[0].mxu0
        %v4735 = vpop.f32.mrb[0].mxu0
        %v4736 = vadd.f32 0.0, %v4735
        %v4737 = vpop.f32.mrb[0].mxu0
        %4738 = vmatprep.mubr.bf16.mxu0 0
        %4739 = vmatmul.mubr.bf16.gmra.mrb[0].mxu0 %v4693
        %v4740 = vpop.f32.mrb[0].mxu0
        %v4741 = vadd.f32 0.0, %v4740
        %v4742 = vpop.f32.mrb[0].mxu0
        %v4743 = vpop.f32.mrb[0].mxu0
        %v4744 = vpop.f32.mrb[0].mxu0
        %4745 = vdwg.mxu0
        %v4746 = vadd.f32 %v4668, %v4733
        %v4747 = vadd.f32 %v4669, %v4736
        %v4748 = vadd.f32 %v4670, %v4741
        %v4749 = vld [vmem:[#allocation6 + $0x8] sm:$0xff]
        %v4750 = vld [vmem:[#allocation6 + $0x10] sm:$0xff]
        %v4751 = vld [vmem:[#allocation6 + $0x18] sm:$0x3f]
        %v4752 = vpack.c.bf16 %v4750, %v4749
        %v4753 = vpack.c.bf16 %v4751, %v4751
        %s4754 = scalar_lea.vmem %s6, 60
        %v4755 = vld [vmem:[%s4754] sm:$0xf]
        %v4756 = vld [vmem:[%s4754 + $0x4] sm:$0xf]
        %v4757 = vld [vmem:[%s4754 + $0x8] sm:$0xf]
        %v4761 = vunpack.c.l.b16 %v4755
        %v4762 = vunpack.c.l.b16 %v4756
        %v4763 = vunpack.c.l.b16 %v4757
        %v4764 = vpack.c.b16 %v4762, %v4761
        %v4765 = vpack.c.b16 %v4763, %v4763
        %v4768 = vsel %vm4390, %v4752, 0
        %v4771 = vsel %vm4390, %v4753, 0
        %v4774 = vsel %vm4397, %v4765, 0
        %4776 = vmatprep.subr.bf16.mxu0 0
        %4777 = vmatpush1.bf16.msra.mxu0 %v4764
        %4778 = vmatprep.subr.bf16.mxu0 0
        %4779 = vmatpush1.bf16.msra.mxu0 %v4774
        %4780 = vmatprep.subr.bf16.mxu0 0
        %4781 = vmatpush1.bf16.msra.mxu0 0
        %4782 = vmatprep.subr.bf16.mxu0 0
        %4783 = vmatpush1.bf16.msra.mxu0 0
        %4784 = vmatprep.subr.bf16.mxu0 0
        %4785 = vmatpush1.bf16.msra.mxu0 0
        %4786 = vmatprep.subr.bf16.mxu0 0
        %4787 = vmatpush1.bf16.msra.mxu0 0
        %4788 = vmatprep.subr.bf16.mxu0 0
        %4789 = vmatpush1.bf16.msra.mxu0 0
        %4790 = vmatprep.subr.bf16.mxu0 0
        %4791 = vmatpush1.bf16.msra.mxu0 0
        %4792 = vmatprep.subr.bf16.mxu0 0
        %4793 = vmatpush1.bf16.msra.mxu0 0
        %4794 = vmatprep.subr.bf16.mxu0 0
        %4795 = vmatpush1.bf16.msra.mxu0 0
        %4796 = vmatprep.subr.bf16.mxu0 0
        %4797 = vmatpush1.bf16.msra.mxu0 0
        %4798 = vmatprep.subr.bf16.mxu0 0
        %4799 = vmatpush1.bf16.msra.mxu0 0
        %4800 = vmatprep.subr.bf16.mxu0 0
        %4801 = vmatpush1.bf16.msra.mxu0 0
        %4802 = vmatprep.subr.bf16.mxu0 0
        %4803 = vmatpush1.bf16.msra.mxu0 0
        %4804 = vmatprep.subr.bf16.mxu0 0
        %4805 = vmatpush1.bf16.msra.mxu0 0
        %4806 = vmatprep.subr.bf16.mxu0 0
        %4807 = vmatpush1.bf16.msra.mxu0 0
        %4808 = vmatprep.mubr.bf16.mxu0 0
        %4809 = vmatmul.mubr.bf16.gmra.mrb[0].mxu0 %v4768
        %v4810 = vpop.f32.mrb[0].mxu0
        %v4811 = vadd.f32 0.0, %v4810
        %v4812 = vpop.f32.mrb[0].mxu0
        %v4813 = vpop.f32.mrb[0].mxu0
        %v4814 = vadd.f32 0.0, %v4813
        %v4815 = vpop.f32.mrb[0].mxu0
        %4816 = vmatprep.mubr.bf16.mxu0 0
        %4817 = vmatmul.mubr.bf16.gmra.mrb[0].mxu0 %v4771
        %v4818 = vpop.f32.mrb[0].mxu0
        %v4819 = vadd.f32 0.0, %v4818
        %v4820 = vpop.f32.mrb[0].mxu0
        %v4821 = vpop.f32.mrb[0].mxu0
        %v4822 = vpop.f32.mrb[0].mxu0
        %4823 = vdwg.mxu0
        %v4824 = vadd.f32 %v4746, %v4811
        %v4825 = vadd.f32 %v4747, %v4814
        %v4826 = vadd.f32 %v4748, %v4819
        %v4827 = vld [vmem:[#allocation6 + $0xc] sm:$0xff]
        %v4828 = vld [vmem:[#allocation6 + $0x14] sm:$0xff]
        %v4829 = vld [vmem:[#allocation6 + $0x1c] sm:$0x3f]
        %v4830 = vpack.c.bf16 %v4828, %v4827
        %v4831 = vpack.c.bf16 %v4829, %v4829
        %s4832 = scalar_lea.vmem %s6, 72
        %v4833 = vld [vmem:[%s4832] sm:$0xf]
        %v4834 = vld [vmem:[%s4832 + $0x4] sm:$0xf]
        %v4835 = vld [vmem:[%s4832 + $0x8] sm:$0xf]
        %v4839 = vunpack.c.l.b16 %v4833
        %v4840 = vunpack.c.l.b16 %v4834
        %v4841 = vunpack.c.l.b16 %v4835
        %v4842 = vpack.c.b16 %v4840, %v4839
        %v4843 = vpack.c.b16 %v4841, %v4841
        %v4846 = vsel %vm4390, %v4830, 0
        %v4849 = vsel %vm4390, %v4831, 0
        %v4852 = vsel %vm4397, %v4843, 0
        %4854 = vmatprep.subr.bf16.mxu0 0
        %4855 = vmatpush1.bf16.msra.mxu0 %v4842
        %4856 = vmatprep.subr.bf16.mxu0 0
        %4857 = vmatpush1.bf16.msra.mxu0 %v4852
        %4858 = vmatprep.subr.bf16.mxu0 0
        %4859 = vmatpush1.bf16.msra.mxu0 0
        %4860 = vmatprep.subr.bf16.mxu0 0
        %4861 = vmatpush1.bf16.msra.mxu0 0
        %4862 = vmatprep.subr.bf16.mxu0 0
        %4863 = vmatpush1.bf16.msra.mxu0 0
        %4864 = vmatprep.subr.bf16.mxu0 0
        %4865 = vmatpush1.bf16.msra.mxu0 0
        %4866 = vmatprep.subr.bf16.mxu0 0
        %4867 = vmatpush1.bf16.msra.mxu0 0
        %4868 = vmatprep.subr.bf16.mxu0 0
        %4869 = vmatpush1.bf16.msra.mxu0 0
        %4870 = vmatprep.subr.bf16.mxu0 0
        %4871 = vmatpush1.bf16.msra.mxu0 0
        %4872 = vmatprep.subr.bf16.mxu0 0
        %4873 = vmatpush1.bf16.msra.mxu0 0
        %4874 = vmatprep.subr.bf16.mxu0 0
        %4875 = vmatpush1.bf16.msra.mxu0 0
        %4876 = vmatprep.subr.bf16.mxu0 0
        %4877 = vmatpush1.bf16.msra.mxu0 0
        %4878 = vmatprep.subr.bf16.mxu0 0
        %4879 = vmatpush1.bf16.msra.mxu0 0
        %4880 = vmatprep.subr.bf16.mxu0 0
        %4881 = vmatpush1.bf16.msra.mxu0 0
        %4882 = vmatprep.subr.bf16.mxu0 0
        %4883 = vmatpush1.bf16.msra.mxu0 0
        %4884 = vmatprep.subr.bf16.mxu0 0
        %4885 = vmatpush1.bf16.msra.mxu0 0
        %4886 = vmatprep.mubr.bf16.mxu0 0
        %4887 = vmatmul.mubr.bf16.gmra.mrb[0].mxu0 %v4846
        %v4888 = vpop.f32.mrb[0].mxu0
        %v4889 = vadd.f32 0.0, %v4888
        %v4890 = vpop.f32.mrb[0].mxu0
        %v4891 = vpop.f32.mrb[0].mxu0
        %v4892 = vadd.f32 0.0, %v4891
        %v4893 = vpop.f32.mrb[0].mxu0
        %4894 = vmatprep.mubr.bf16.mxu0 0
        %4895 = vmatmul.mubr.bf16.gmra.mrb[0].mxu0 %v4849
        %v4896 = vpop.f32.mrb[0].mxu0
        %v4897 = vadd.f32 0.0, %v4896
        %v4898 = vpop.f32.mrb[0].mxu0
        %v4899 = vpop.f32.mrb[0].mxu0
        %v4900 = vpop.f32.mrb[0].mxu0
        %4901 = vdwg.mxu0
        %v4902 = vadd.f32 %v4824, %v4889
        %v4903 = vadd.f32 %v4825, %v4892
        %v4904 = vadd.f32 %v4826, %v4897
        %v4905 = vld [vmem:[#allocation6 + $0xd] sm:$0xff]
        %v4906 = vld [vmem:[#allocation6 + $0x15] sm:$0xff]
        %v4907 = vld [vmem:[#allocation6 + $0x1d] sm:$0x3f]
        %v4908 = vpack.c.bf16 %v4906, %v4905
        %v4909 = vpack.c.bf16 %v4907, %v4907
        %s4910 = scalar_lea.vmem %s6, 84
        %v4911 = vld [vmem:[%s4910] sm:$0xf]
        %v4912 = vld [vmem:[%s4910 + $0x4] sm:$0xf]
        %v4913 = vld [vmem:[%s4910 + $0x8] sm:$0xf]
        %v4917 = vunpack.c.l.b16 %v4911
        %v4918 = vunpack.c.l.b16 %v4912
        %v4919 = vunpack.c.l.b16 %v4913
        %v4920 = vpack.c.b16 %v4918, %v4917
        %v4921 = vpack.c.b16 %v4919, %v4919
        %v4924 = vsel %vm4390, %v4908, 0
        %v4927 = vsel %vm4390, %v4909, 0
        %v4930 = vsel %vm4397, %v4921, 0
        %4932 = vmatprep.subr.bf16.mxu0 0
        %4933 = vmatpush1.bf16.msra.mxu0 %v4920
        %4934 = vmatprep.subr.bf16.mxu0 0
        %4935 = vmatpush1.bf16.msra.mxu0 %v4930
        %4936 = vmatprep.subr.bf16.mxu0 0
        %4937 = vmatpush1.bf16.msra.mxu0 0
        %4938 = vmatprep.subr.bf16.mxu0 0
        %4939 = vmatpush1.bf16.msra.mxu0 0
        %4940 = vmatprep.subr.bf16.mxu0 0
        %4941 = vmatpush1.bf16.msra.mxu0 0
        %4942 = vmatprep.subr.bf16.mxu0 0
        %4943 = vmatpush1.bf16.msra.mxu0 0
        %4944 = vmatprep.subr.bf16.mxu0 0
        %4945 = vmatpush1.bf16.msra.mxu0 0
        %4946 = vmatprep.subr.bf16.mxu0 0
        %4947 = vmatpush1.bf16.msra.mxu0 0
        %4948 = vmatprep.subr.bf16.mxu0 0
        %4949 = vmatpush1.bf16.msra.mxu0 0
        %4950 = vmatprep.subr.bf16.mxu0 0
        %4951 = vmatpush1.bf16.msra.mxu0 0
        %4952 = vmatprep.subr.bf16.mxu0 0
        %4953 = vmatpush1.bf16.msra.mxu0 0
        %4954 = vmatprep.subr.bf16.mxu0 0
        %4955 = vmatpush1.bf16.msra.mxu0 0
        %4956 = vmatprep.subr.bf16.mxu0 0
        %4957 = vmatpush1.bf16.msra.mxu0 0
        %4958 = vmatprep.subr.bf16.mxu0 0
        %4959 = vmatpush1.bf16.msra.mxu0 0
        %4960 = vmatprep.subr.bf16.mxu0 0
        %4961 = vmatpush1.bf16.msra.mxu0 0
        %4962 = vmatprep.subr.bf16.mxu0 0
        %4963 = vmatpush1.bf16.msra.mxu0 0
        %4964 = vmatprep.mubr.bf16.mxu0 0
        %4965 = vmatmul.mubr.bf16.gmra.mrb[0].mxu0 %v4924
        %v4966 = vpop.f32.mrb[0].mxu0
        %v4967 = vadd.f32 0.0, %v4966
        %v4968 = vpop.f32.mrb[0].mxu0
        %v4969 = vpop.f32.mrb[0].mxu0
        %v4970 = vadd.f32 0.0, %v4969
        %v4971 = vpop.f32.mrb[0].mxu0
        %4972 = vmatprep.mubr.bf16.mxu0 0
        %4973 = vmatmul.mubr.bf16.gmra.mrb[0].mxu0 %v4927
        %v4974 = vpop.f32.mrb[0].mxu0
        %v4975 = vadd.f32 0.0, %v4974
        %v4976 = vpop.f32.mrb[0].mxu0
        %v4977 = vpop.f32.mrb[0].mxu0
        %v4978 = vpop.f32.mrb[0].mxu0
        %4979 = vdwg.mxu0
        %v4980 = vadd.f32 %v4902, %v4967
        %v4981 = vadd.f32 %v4903, %v4970
        %v4982 = vadd.f32 %v4904, %v4975
        %v4983 = vld [vmem:[#allocation6 + $0xe] sm:$0xff]
        %v4984 = vld [vmem:[#allocation6 + $0x16] sm:$0xff]
        %v4985 = vld [vmem:[#allocation6 + $0x1e] sm:$0x3f]
        %v4986 = vpack.c.bf16 %v4984, %v4983
        %v4987 = vpack.c.bf16 %v4985, %v4985
        %s4988 = scalar_lea.vmem %s6, 96
        %v4989 = vld [vmem:[%s4988] sm:$0xf]
        %v4990 = vld [vmem:[%s4988 + $0x4] sm:$0xf]
        %v4991 = vld [vmem:[%s4988 + $0x8] sm:$0xf]
        %v4995 = vunpack.c.l.b16 %v4989
        %v4996 = vunpack.c.l.b16 %v4990
        %v4997 = vunpack.c.l.b16 %v4991
        %v4998 = vpack.c.b16 %v4996, %v4995
        %v4999 = vpack.c.b16 %v4997, %v4997
        %v5002 = vsel %vm4390, %v4986, 0
        %v5005 = vsel %vm4390, %v4987, 0
        %v5008 = vsel %vm4397, %v4999, 0
        %5010 = vmatprep.subr.bf16.mxu0 0
        %5011 = vmatpush1.bf16.msra.mxu0 %v4998
        %5012 = vmatprep.subr.bf16.mxu0 0
        %5013 = vmatpush1.bf16.msra.mxu0 %v5008
        %5014 = vmatprep.subr.bf16.mxu0 0
        %5015 = vmatpush1.bf16.msra.mxu0 0
        %5016 = vmatprep.subr.bf16.mxu0 0
        %5017 = vmatpush1.bf16.msra.mxu0 0
        %5018 = vmatprep.subr.bf16.mxu0 0
        %5019 = vmatpush1.bf16.msra.mxu0 0
        %5020 = vmatprep.subr.bf16.mxu0 0
        %5021 = vmatpush1.bf16.msra.mxu0 0
        %5022 = vmatprep.subr.bf16.mxu0 0
        %5023 = vmatpush1.bf16.msra.mxu0 0
        %5024 = vmatprep.subr.bf16.mxu0 0
        %5025 = vmatpush1.bf16.msra.mxu0 0
        %5026 = vmatprep.subr.bf16.mxu0 0
        %5027 = vmatpush1.bf16.msra.mxu0 0
        %5028 = vmatprep.subr.bf16.mxu0 0
        %5029 = vmatpush1.bf16.msra.mxu0 0
        %5030 = vmatprep.subr.bf16.mxu0 0
        %5031 = vmatpush1.bf16.msra.mxu0 0
        %5032 = vmatprep.subr.bf16.mxu0 0
        %5033 = vmatpush1.bf16.msra.mxu0 0
        %5034 = vmatprep.subr.bf16.mxu0 0
        %5035 = vmatpush1.bf16.msra.mxu0 0
        %5036 = vmatprep.subr.bf16.mxu0 0
        %5037 = vmatpush1.bf16.msra.mxu0 0
        %5038 = vmatprep.subr.bf16.mxu0 0
        %5039 = vmatpush1.bf16.msra.mxu0 0
        %5040 = vmatprep.subr.bf16.mxu0 0
        %5041 = vmatpush1.bf16.msra.mxu0 0
        %5042 = vmatprep.mubr.bf16.mxu0 0
        %5043 = vmatmul.mubr.bf16.gmra.mrb[0].mxu0 %v5002
        %v5044 = vpop.f32.mrb[0].mxu0
        %v5045 = vadd.f32 0.0, %v5044
        %v5046 = vpop.f32.mrb[0].mxu0
        %v5047 = vpop.f32.mrb[0].mxu0
        %v5048 = vadd.f32 0.0, %v5047
        %v5049 = vpop.f32.mrb[0].mxu0
        %5050 = vmatprep.mubr.bf16.mxu0 0
        %5051 = vmatmul.mubr.bf16.gmra.mrb[0].mxu0 %v5005
        %v5052 = vpop.f32.mrb[0].mxu0
        %v5053 = vadd.f32 0.0, %v5052
        %v5054 = vpop.f32.mrb[0].mxu0
        %v5055 = vpop.f32.mrb[0].mxu0
        %v5056 = vpop.f32.mrb[0].mxu0
        %5057 = vdwg.mxu0
        %v5058 = vadd.f32 %v4980, %v5045
        %v5059 = vadd.f32 %v4981, %v5048
        %v5060 = vadd.f32 %v4982, %v5053
        %v5061 = vld [vmem:[%s15] sm:$0x1]
        %v5063 = vlaneseq
        %v5064 = vshrl.u32 %v5063, 7
        %v5065 = vsub.s32 0, %v5064
        %v5066 = vrot.slane %v5061, %v5065
        %v5068 = vadd.f32 %v5058, %v5066
        %v5069 = vadd.f32 %v5059, %v5066
        %v5070 = vadd.f32 %v5060, %v5066
        %v5071 = vmax.f32 %v5068, 0.0
        %v5072 = vmax.f32 %v5069, 0.0
        %v5073 = vmax.f32 %v5070, 0.0
        %5074 = vst [vmem:[#allocation2] sm:$0xff] %v5071
        %5075 = vst [vmem:[#allocation2 + $0x8] sm:$0xff] %v5072
        %5076 = vst [vmem:[#allocation2 + $0x10] sm:$0x3f] %v5073
        %v5077 = vld [vmem:[#allocation2] sm:$0x3]
        %v5078 = vld [vmem:[#allocation2 + $0x6] sm:$0x3]
        %v5079 = vmax.f32 %v5077, %v5078
        %v5080 = vsel %vm3461, %v5079, -inf
        %v5081 = vrot.slane %v5080, 4
        %v5082 = vmax.f32 %v5080, %v5081
        %v5083 = vrot.slane %v5082, 2
        %v5084 = vmax.f32 %v5082, %v5083
        %v5085 = vrot.slane %v5084, 1
        %v5086 = vmax.f32 %v5084, %v5085
        %5087 = vst [vmem:[#allocation7 + $0x5] sm:$0x1] %v5086
        %v5088 = vld [vmem:[#allocation2 + $0x2] sm:$0x3]
        %v5089 = vld [vmem:[#allocation2 + $0x8] sm:$0x3]
        %v5090 = vmax.f32 %v5088, %v5089
        %v5091 = vsel %vm3461, %v5090, -inf
        %v5092 = vrot.slane %v5091, 4
        %v5093 = vmax.f32 %v5091, %v5092
        %v5094 = vrot.slane %v5093, 2
        %v5095 = vmax.f32 %v5093, %v5094
        %v5096 = vrot.slane %v5095, 1
        %v5097 = vmax.f32 %v5095, %v5096
        %5098 = vst [vmem:[#allocation7 + $0x6] sm:$0x1] %v5097
        %v5099 = vld [vmem:[#allocation2 + $0xc] sm:$0x3]
        %v5100 = vld [vmem:[#allocation2 + $0x12] sm:$0x3]
        %v5101 = vmax.f32 %v5099, %v5100
        %v5102 = vsel %vm3461, %v5101, -inf
        %v5103 = vrot.slane %v5102, 4
        %v5104 = vmax.f32 %v5102, %v5103
        %v5105 = vrot.slane %v5104, 2
        %v5106 = vmax.f32 %v5104, %v5105
        %v5107 = vrot.slane %v5106, 1
        %v5108 = vmax.f32 %v5106, %v5107
        %5109 = vst [vmem:[#allocation7 + $0x9] sm:$0x1] %v5108
        %v5110 = vld [vmem:[#allocation2 + $0xe] sm:$0x3]
        %v5111 = vld [vmem:[#allocation2 + $0x14] sm:$0x3]
        %v5112 = vmax.f32 %v5110, %v5111
        %v5113 = vsel %vm3461, %v5112, -inf
        %v5114 = vrot.slane %v5113, 4
        %v5115 = vmax.f32 %v5113, %v5114
        %v5116 = vrot.slane %v5115, 2
        %v5117 = vmax.f32 %v5115, %v5116
        %v5118 = vrot.slane %v5117, 1
        %v5119 = vmax.f32 %v5117, %v5118
        %5120 = vst [vmem:[#allocation7 + $0xa] sm:$0x1] %v5119
        %v5121 = vld [vmem:[#allocation7] sm:$0x3f]
        %v5122 = vpack.c.bf16 %v5121, %v5121
        %v5123 = vld [vmem:[%s7] sm:$0xf]
        %v5124 = vld [vmem:[%s7 + $0x4] sm:$0xf]
        %v5125 = vld [vmem:[%s7 + $0x8] sm:$0xf]
        %v5126 = vld [vmem:[%s7 + $0xc] sm:$0xf]
        %v5127 = vld [vmem:[%s7 + $0x10] sm:$0xf]
        %v5128 = vld [vmem:[%s7 + $0x14] sm:$0xf]
        %v5129 = vld [vmem:[#allocation7 + $0x1] sm:$0x3f]
        %v5130 = vpack.c.bf16 %v5129, %v5129
        %s5131 = scalar_lea.vmem %s7, 24
        %v5132 = vld [vmem:[%s5131] sm:$0xf]
        %v5133 = vld [vmem:[%s5131 + $0x4] sm:$0xf]
        %v5134 = vld [vmem:[%s5131 + $0x8] sm:$0xf]
        %v5135 = vld [vmem:[%s5131 + $0xc] sm:$0xf]
        %v5136 = vld [vmem:[%s5131 + $0x10] sm:$0xf]
        %v5137 = vld [vmem:[%s5131 + $0x14] sm:$0xf]
        %v5144 = vunpack.c.l.b16 %v5132
        %v5145 = vunpack.c.l.b16 %v5133
        %v5146 = vunpack.c.l.b16 %v5134
        %v5147 = vunpack.c.l.b16 %v5135
        %v5148 = vunpack.c.l.b16 %v5136
        %v5149 = vunpack.c.l.b16 %v5137
        %v5150 = vpack.c.b16 %v5145, %v5144
        %v5151 = vpack.c.b16 %v5147, %v5146
        %v5152 = vpack.c.b16 %v5149, %v5148
        %vm5156 = vcmask 392192
        %v5158 = vsel %vm5156, %v5130, 0
        %5160 = vmatprep.subr.bf16.mxu0 0
        %5161 = vmatpush1.bf16.msra.mxu0 %v5150
        %5162 = vmatprep.subr.bf16.mxu0 0
        %5163 = vmatpush1.bf16.msra.mxu0 %v5151
        %5164 = vmatprep.subr.bf16.mxu0 0
        %5165 = vmatpush1.bf16.msra.mxu0 %v5152
        %5166 = vmatprep.subr.bf16.mxu0 0
        %5167 = vmatpush1.bf16.msra.mxu0 0
        %5168 = vmatprep.subr.bf16.mxu0 0
        %5169 = vmatpush1.bf16.msra.mxu0 0
        %5170 = vmatprep.subr.bf16.mxu0 0
        %5171 = vmatpush1.bf16.msra.mxu0 0
        %5172 = vmatprep.subr.bf16.mxu0 0
        %5173 = vmatpush1.bf16.msra.mxu0 0
        %5174 = vmatprep.subr.bf16.mxu0 0
        %5175 = vmatpush1.bf16.msra.mxu0 0
        %5176 = vmatprep.subr.bf16.mxu0 0
        %5177 = vmatpush1.bf16.msra.mxu0 0
        %5178 = vmatprep.subr.bf16.mxu0 0
        %5179 = vmatpush1.bf16.msra.mxu0 0
        %5180 = vmatprep.subr.bf16.mxu0 0
        %5181 = vmatpush1.bf16.msra.mxu0 0
        %5182 = vmatprep.subr.bf16.mxu0 0
        %5183 = vmatpush1.bf16.msra.mxu0 0
        %5184 = vmatprep.subr.bf16.mxu0 0
        %5185 = vmatpush1.bf16.msra.mxu0 0
        %5186 = vmatprep.subr.bf16.mxu0 0
        %5187 = vmatpush1.bf16.msra.mxu0 0
        %5188 = vmatprep.subr.bf16.mxu0 0
        %5189 = vmatpush1.bf16.msra.mxu0 0
        %5190 = vmatprep.subr.bf16.mxu0 0
        %5191 = vmatpush1.bf16.msra.mxu0 0
        %5192 = vmatprep.mubr.bf16.mxu0 0
        %5193 = vmatmul.mubr.bf16.gmra.mrb[0].mxu0 %v5158
        %v5194 = vpop.f32.mrb[0].mxu0
        %v5195 = vadd.f32 0.0, %v5194
        %v5196 = vpop.f32.mrb[0].mxu0
        %v5197 = vpop.f32.mrb[0].mxu0
        %v5198 = vpop.f32.mrb[0].mxu0
        %5199 = vdwg.mxu0
        %v5206 = vunpack.c.l.b16 %v5123
        %v5207 = vunpack.c.l.b16 %v5124
        %v5208 = vunpack.c.l.b16 %v5125
        %v5209 = vunpack.c.l.b16 %v5126
        %v5210 = vunpack.c.l.b16 %v5127
        %v5211 = vunpack.c.l.b16 %v5128
        %v5212 = vpack.c.b16 %v5207, %v5206
        %v5213 = vpack.c.b16 %v5209, %v5208
        %v5214 = vpack.c.b16 %v5211, %v5210
        %v5219 = vsel %vm5156, %v5122, 0
        %5221 = vmatprep.subr.bf16.mxu0 0
        %5222 = vmatpush1.bf16.msra.mxu0 %v5212
        %5223 = vmatprep.subr.bf16.mxu0 0
        %5224 = vmatpush1.bf16.msra.mxu0 %v5213
        %5225 = vmatprep.subr.bf16.mxu0 0
        %5226 = vmatpush1.bf16.msra.mxu0 %v5214
        %5227 = vmatprep.subr.bf16.mxu0 0
        %5228 = vmatpush1.bf16.msra.mxu0 0
        %5229 = vmatprep.subr.bf16.mxu0 0
        %5230 = vmatpush1.bf16.msra.mxu0 0
        %5231 = vmatprep.subr.bf16.mxu0 0
        %5232 = vmatpush1.bf16.msra.mxu0 0
        %5233 = vmatprep.subr.bf16.mxu0 0
        %5234 = vmatpush1.bf16.msra.mxu0 0
        %5235 = vmatprep.subr.bf16.mxu0 0
        %5236 = vmatpush1.bf16.msra.mxu0 0
        %5237 = vmatprep.subr.bf16.mxu0 0
        %5238 = vmatpush1.bf16.msra.mxu0 0
        %5239 = vmatprep.subr.bf16.mxu0 0
        %5240 = vmatpush1.bf16.msra.mxu0 0
        %5241 = vmatprep.subr.bf16.mxu0 0
        %5242 = vmatpush1.bf16.msra.mxu0 0
        %5243 = vmatprep.subr.bf16.mxu0 0
        %5244 = vmatpush1.bf16.msra.mxu0 0
        %5245 = vmatprep.subr.bf16.mxu0 0
        %5246 = vmatpush1.bf16.msra.mxu0 0
        %5247 = vmatprep.subr.bf16.mxu0 0
        %5248 = vmatpush1.bf16.msra.mxu0 0
        %5249 = vmatprep.subr.bf16.mxu0 0
        %5250 = vmatpush1.bf16.msra.mxu0 0
        %5251 = vmatprep.subr.bf16.mxu0 0
        %5252 = vmatpush1.bf16.msra.mxu0 0
        %5253 = vmatprep.mubr.bf16.mxu0 0
        %5254 = vmatmul.mubr.bf16.gmra.mrb[0].mxu0 %v5219
        %v5255 = vpop.f32.mrb[0].mxu0
        %v5256 = vadd.f32 %v5195, %v5255
        %v5257 = vpop.f32.mrb[0].mxu0
        %v5258 = vpop.f32.mrb[0].mxu0
        %v5259 = vpop.f32.mrb[0].mxu0
        %5260 = vdwg.mxu0
        %v5261 = vld [vmem:[#allocation7 + $0x2] sm:$0x3f]
        %v5262 = vpack.c.bf16 %v5261, %v5261
        %s5263 = scalar_lea.vmem %s7, 48
        %v5264 = vld [vmem:[%s5263] sm:$0xf]
        %v5265 = vld [vmem:[%s5263 + $0x4] sm:$0xf]
        %v5266 = vld [vmem:[%s5263 + $0x8] sm:$0xf]
        %v5267 = vld [vmem:[%s5263 + $0xc] sm:$0xf]
        %v5268 = vld [vmem:[%s5263 + $0x10] sm:$0xf]
        %v5269 = vld [vmem:[%s5263 + $0x14] sm:$0xf]
        %v5276 = vunpack.c.l.b16 %v5264
        %v5277 = vunpack.c.l.b16 %v5265
        %v5278 = vunpack.c.l.b16 %v5266
        %v5279 = vunpack.c.l.b16 %v5267
        %v5280 = vunpack.c.l.b16 %v5268
        %v5281 = vunpack.c.l.b16 %v5269
        %v5282 = vpack.c.b16 %v5277, %v5276
        %v5283 = vpack.c.b16 %v5279, %v5278
        %v5284 = vpack.c.b16 %v5281, %v5280
        %v5289 = vsel %vm5156, %v5262, 0
        %5291 = vmatprep.subr.bf16.mxu0 0
        %5292 = vmatpush1.bf16.msra.mxu0 %v5282
        %5293 = vmatprep.subr.bf16.mxu0 0
        %5294 = vmatpush1.bf16.msra.mxu0 %v5283
        %5295 = vmatprep.subr.bf16.mxu0 0
        %5296 = vmatpush1.bf16.msra.mxu0 %v5284
        %5297 = vmatprep.subr.bf16.mxu0 0
        %5298 = vmatpush1.bf16.msra.mxu0 0
        %5299 = vmatprep.subr.bf16.mxu0 0
        %5300 = vmatpush1.bf16.msra.mxu0 0
        %5301 = vmatprep.subr.bf16.mxu0 0
        %5302 = vmatpush1.bf16.msra.mxu0 0
        %5303 = vmatprep.subr.bf16.mxu0 0
        %5304 = vmatpush1.bf16.msra.mxu0 0
        %5305 = vmatprep.subr.bf16.mxu0 0
        %5306 = vmatpush1.bf16.msra.mxu0 0
        %5307 = vmatprep.subr.bf16.mxu0 0
        %5308 = vmatpush1.bf16.msra.mxu0 0
        %5309 = vmatprep.subr.bf16.mxu0 0
        %5310 = vmatpush1.bf16.msra.mxu0 0
        %5311 = vmatprep.subr.bf16.mxu0 0
        %5312 = vmatpush1.bf16.msra.mxu0 0
        %5313 = vmatprep.subr.bf16.mxu0 0
        %5314 = vmatpush1.bf16.msra.mxu0 0
        %5315 = vmatprep.subr.bf16.mxu0 0
        %5316 = vmatpush1.bf16.msra.mxu0 0
        %5317 = vmatprep.subr.bf16.mxu0 0
        %5318 = vmatpush1.bf16.msra.mxu0 0
        %5319 = vmatprep.subr.bf16.mxu0 0
        %5320 = vmatpush1.bf16.msra.mxu0 0
        %5321 = vmatprep.subr.bf16.mxu0 0
        %5322 = vmatpush1.bf16.msra.mxu0 0
        %5323 = vmatprep.mubr.bf16.mxu0 0
        %5324 = vmatmul.mubr.bf16.gmra.mrb[0].mxu0 %v5289
        %v5325 = vpop.f32.mrb[0].mxu0
        %v5326 = vadd.f32 0.0, %v5325
        %v5327 = vpop.f32.mrb[0].mxu0
        %v5328 = vpop.f32.mrb[0].mxu0
        %v5329 = vpop.f32.mrb[0].mxu0
        %5330 = vdwg.mxu0
        %v5331 = vadd.f32 %v5256, %v5326
        %v5332 = vld [vmem:[#allocation7 + $0x4] sm:$0x3f]
        %v5333 = vpack.c.bf16 %v5332, %v5332
        %s5334 = scalar_lea.vmem %s7, 72
        %v5335 = vld [vmem:[%s5334] sm:$0xf]
        %v5336 = vld [vmem:[%s5334 + $0x4] sm:$0xf]
        %v5337 = vld [vmem:[%s5334 + $0x8] sm:$0xf]
        %v5338 = vld [vmem:[%s5334 + $0xc] sm:$0xf]
        %v5339 = vld [vmem:[%s5334 + $0x10] sm:$0xf]
        %v5340 = vld [vmem:[%s5334 + $0x14] sm:$0xf]
        %v5347 = vunpack.c.l.b16 %v5335
        %v5348 = vunpack.c.l.b16 %v5336
        %v5349 = vunpack.c.l.b16 %v5337
        %v5350 = vunpack.c.l.b16 %v5338
        %v5351 = vunpack.c.l.b16 %v5339
        %v5352 = vunpack.c.l.b16 %v5340
        %v5353 = vpack.c.b16 %v5348, %v5347
        %v5354 = vpack.c.b16 %v5350, %v5349
        %v5355 = vpack.c.b16 %v5352, %v5351
        %v5360 = vsel %vm5156, %v5333, 0
        %5362 = vmatprep.subr.bf16.mxu0 0
        %5363 = vmatpush1.bf16.msra.mxu0 %v5353
        %5364 = vmatprep.subr.bf16.mxu0 0
        %5365 = vmatpush1.bf16.msra.mxu0 %v5354
        %5366 = vmatprep.subr.bf16.mxu0 0
        %5367 = vmatpush1.bf16.msra.mxu0 %v5355
        %5368 = vmatprep.subr.bf16.mxu0 0
        %5369 = vmatpush1.bf16.msra.mxu0 0
        %5370 = vmatprep.subr.bf16.mxu0 0
        %5371 = vmatpush1.bf16.msra.mxu0 0
        %5372 = vmatprep.subr.bf16.mxu0 0
        %5373 = vmatpush1.bf16.msra.mxu0 0
        %5374 = vmatprep.subr.bf16.mxu0 0
        %5375 = vmatpush1.bf16.msra.mxu0 0
        %5376 = vmatprep.subr.bf16.mxu0 0
        %5377 = vmatpush1.bf16.msra.mxu0 0
        %5378 = vmatprep.subr.bf16.mxu0 0
        %5379 = vmatpush1.bf16.msra.mxu0 0
        %5380 = vmatprep.subr.bf16.mxu0 0
        %5381 = vmatpush1.bf16.msra.mxu0 0
        %5382 = vmatprep.subr.bf16.mxu0 0
        %5383 = vmatpush1.bf16.msra.mxu0 0
        %5384 = vmatprep.subr.bf16.mxu0 0
        %5385 = vmatpush1.bf16.msra.mxu0 0
        %5386 = vmatprep.subr.bf16.mxu0 0
        %5387 = vmatpush1.bf16.msra.mxu0 0
        %5388 = vmatprep.subr.bf16.mxu0 0
        %5389 = vmatpush1.bf16.msra.mxu0 0
        %5390 = vmatprep.subr.bf16.mxu0 0
        %5391 = vmatpush1.bf16.msra.mxu0 0
        %5392 = vmatprep.subr.bf16.mxu0 0
        %5393 = vmatpush1.bf16.msra.mxu0 0
        %5394 = vmatprep.mubr.bf16.mxu0 0
        %5395 = vmatmul.mubr.bf16.gmra.mrb[0].mxu0 %v5360
        %v5396 = vpop.f32.mrb[0].mxu0
        %v5397 = vadd.f32 0.0, %v5396
        %v5398 = vpop.f32.mrb[0].mxu0
        %v5399 = vpop.f32.mrb[0].mxu0
        %v5400 = vpop.f32.mrb[0].mxu0
        %5401 = vdwg.mxu0
        %v5402 = vadd.f32 %v5331, %v5397
        %v5403 = vld [vmem:[#allocation7 + $0x5] sm:$0x3f]
        %v5404 = vpack.c.bf16 %v5403, %v5403
        %s5405 = scalar_lea.vmem %s7, 96
        %v5406 = vld [vmem:[%s5405] sm:$0xf]
        %v5407 = vld [vmem:[%s5405 + $0x4] sm:$0xf]
        %v5408 = vld [vmem:[%s5405 + $0x8] sm:$0xf]
        %v5409 = vld [vmem:[%s5405 + $0xc] sm:$0xf]
        %v5410 = vld [vmem:[%s5405 + $0x10] sm:$0xf]
        %v5411 = vld [vmem:[%s5405 + $0x14] sm:$0xf]
        %v5418 = vunpack.c.l.b16 %v5406
        %v5419 = vunpack.c.l.b16 %v5407
        %v5420 = vunpack.c.l.b16 %v5408
        %v5421 = vunpack.c.l.b16 %v5409
        %v5422 = vunpack.c.l.b16 %v5410
        %v5423 = vunpack.c.l.b16 %v5411
        %v5424 = vpack.c.b16 %v5419, %v5418
        %v5425 = vpack.c.b16 %v5421, %v5420
        %v5426 = vpack.c.b16 %v5423, %v5422
        %v5431 = vsel %vm5156, %v5404, 0
        %5433 = vmatprep.subr.bf16.mxu0 0
        %5434 = vmatpush1.bf16.msra.mxu0 %v5424
        %5435 = vmatprep.subr.bf16.mxu0 0
        %5436 = vmatpush1.bf16.msra.mxu0 %v5425
        %5437 = vmatprep.subr.bf16.mxu0 0
        %5438 = vmatpush1.bf16.msra.mxu0 %v5426
        %5439 = vmatprep.subr.bf16.mxu0 0
        %5440 = vmatpush1.bf16.msra.mxu0 0
        %5441 = vmatprep.subr.bf16.mxu0 0
        %5442 = vmatpush1.bf16.msra.mxu0 0
        %5443 = vmatprep.subr.bf16.mxu0 0
        %5444 = vmatpush1.bf16.msra.mxu0 0
        %5445 = vmatprep.subr.bf16.mxu0 0
        %5446 = vmatpush1.bf16.msra.mxu0 0
        %5447 = vmatprep.subr.bf16.mxu0 0
        %5448 = vmatpush1.bf16.msra.mxu0 0
        %5449 = vmatprep.subr.bf16.mxu0 0
        %5450 = vmatpush1.bf16.msra.mxu0 0
        %5451 = vmatprep.subr.bf16.mxu0 0
        %5452 = vmatpush1.bf16.msra.mxu0 0
        %5453 = vmatprep.subr.bf16.mxu0 0
        %5454 = vmatpush1.bf16.msra.mxu0 0
        %5455 = vmatprep.subr.bf16.mxu0 0
        %5456 = vmatpush1.bf16.msra.mxu0 0
        %5457 = vmatprep.subr.bf16.mxu0 0
        %5458 = vmatpush1.bf16.msra.mxu0 0
        %5459 = vmatprep.subr.bf16.mxu0 0
        %5460 = vmatpush1.bf16.msra.mxu0 0
        %5461 = vmatprep.subr.bf16.mxu0 0
        %5462 = vmatpush1.bf16.msra.mxu0 0
        %5463 = vmatprep.subr.bf16.mxu0 0
        %5464 = vmatpush1.bf16.msra.mxu0 0
        %5465 = vmatprep.mubr.bf16.mxu0 0
        %5466 = vmatmul.mubr.bf16.gmra.mrb[0].mxu0 %v5431
        %v5467 = vpop.f32.mrb[0].mxu0
        %v5468 = vadd.f32 0.0, %v5467
        %v5469 = vpop.f32.mrb[0].mxu0
        %v5470 = vpop.f32.mrb[0].mxu0
        %v5471 = vpop.f32.mrb[0].mxu0
        %5472 = vdwg.mxu0
        %v5473 = vadd.f32 %v5402, %v5468
        %v5474 = vld [vmem:[#allocation7 + $0x6] sm:$0x3f]
        %v5475 = vpack.c.bf16 %v5474, %v5474
        %s5476 = scalar_lea.vmem %s7, 120
        %v5477 = vld [vmem:[%s5476] sm:$0xf]
        %v5478 = vld [vmem:[%s5476 + $0x4] sm:$0xf]
        %v5479 = vld [vmem:[%s5476 + $0x8] sm:$0xf]
        %v5480 = vld [vmem:[%s5476 + $0xc] sm:$0xf]
        %v5481 = vld [vmem:[%s5476 + $0x10] sm:$0xf]
        %v5482 = vld [vmem:[%s5476 + $0x14] sm:$0xf]
        %v5489 = vunpack.c.l.b16 %v5477
        %v5490 = vunpack.c.l.b16 %v5478
        %v5491 = vunpack.c.l.b16 %v5479
        %v5492 = vunpack.c.l.b16 %v5480
        %v5493 = vunpack.c.l.b16 %v5481
        %v5494 = vunpack.c.l.b16 %v5482
        %v5495 = vpack.c.b16 %v5490, %v5489
        %v5496 = vpack.c.b16 %v5492, %v5491
        %v5497 = vpack.c.b16 %v5494, %v5493
        %v5502 = vsel %vm5156, %v5475, 0
        %5504 = vmatprep.subr.bf16.mxu0 0
        %5505 = vmatpush1.bf16.msra.mxu0 %v5495
        %5506 = vmatprep.subr.bf16.mxu0 0
        %5507 = vmatpush1.bf16.msra.mxu0 %v5496
        %5508 = vmatprep.subr.bf16.mxu0 0
        %5509 = vmatpush1.bf16.msra.mxu0 %v5497
        %5510 = vmatprep.subr.bf16.mxu0 0
        %5511 = vmatpush1.bf16.msra.mxu0 0
        %5512 = vmatprep.subr.bf16.mxu0 0
        %5513 = vmatpush1.bf16.msra.mxu0 0
        %5514 = vmatprep.subr.bf16.mxu0 0
        %5515 = vmatpush1.bf16.msra.mxu0 0
        %5516 = vmatprep.subr.bf16.mxu0 0
        %5517 = vmatpush1.bf16.msra.mxu0 0
        %5518 = vmatprep.subr.bf16.mxu0 0
        %5519 = vmatpush1.bf16.msra.mxu0 0
        %5520 = vmatprep.subr.bf16.mxu0 0
        %5521 = vmatpush1.bf16.msra.mxu0 0
        %5522 = vmatprep.subr.bf16.mxu0 0
        %5523 = vmatpush1.bf16.msra.mxu0 0
        %5524 = vmatprep.subr.bf16.mxu0 0
        %5525 = vmatpush1.bf16.msra.mxu0 0
        %5526 = vmatprep.subr.bf16.mxu0 0
        %5527 = vmatpush1.bf16.msra.mxu0 0
        %5528 = vmatprep.subr.bf16.mxu0 0
        %5529 = vmatpush1.bf16.msra.mxu0 0
        %5530 = vmatprep.subr.bf16.mxu0 0
        %5531 = vmatpush1.bf16.msra.mxu0 0
        %5532 = vmatprep.subr.bf16.mxu0 0
        %5533 = vmatpush1.bf16.msra.mxu0 0
        %5534 = vmatprep.subr.bf16.mxu0 0
        %5535 = vmatpush1.bf16.msra.mxu0 0
        %5536 = vmatprep.mubr.bf16.mxu0 0
        %5537 = vmatmul.mubr.bf16.gmra.mrb[0].mxu0 %v5502
        %v5538 = vpop.f32.mrb[0].mxu0
        %v5539 = vadd.f32 0.0, %v5538
        %v5540 = vpop.f32.mrb[0].mxu0
        %v5541 = vpop.f32.mrb[0].mxu0
        %v5542 = vpop.f32.mrb[0].mxu0
        %5543 = vdwg.mxu0
        %v5544 = vadd.f32 %v5473, %v5539
        %v5545 = vld [vmem:[#allocation7 + $0x8] sm:$0x3f]
        %v5546 = vpack.c.bf16 %v5545, %v5545
        %s5547 = scalar_lea.vmem %s7, 144
        %v5548 = vld [vmem:[%s5547] sm:$0xf]
        %v5549 = vld [vmem:[%s5547 + $0x4] sm:$0xf]
        %v5550 = vld [vmem:[%s5547 + $0x8] sm:$0xf]
        %v5551 = vld [vmem:[%s5547 + $0xc] sm:$0xf]
        %v5552 = vld [vmem:[%s5547 + $0x10] sm:$0xf]
        %v5553 = vld [vmem:[%s5547 + $0x14] sm:$0xf]
        %v5560 = vunpack.c.l.b16 %v5548
        %v5561 = vunpack.c.l.b16 %v5549
        %v5562 = vunpack.c.l.b16 %v5550
        %v5563 = vunpack.c.l.b16 %v5551
        %v5564 = vunpack.c.l.b16 %v5552
        %v5565 = vunpack.c.l.b16 %v5553
        %v5566 = vpack.c.b16 %v5561, %v5560
        %v5567 = vpack.c.b16 %v5563, %v5562
        %v5568 = vpack.c.b16 %v5565, %v5564
        %v5573 = vsel %vm5156, %v5546, 0
        %5575 = vmatprep.subr.bf16.mxu0 0
        %5576 = vmatpush1.bf16.msra.mxu0 %v5566
        %5577 = vmatprep.subr.bf16.mxu0 0
        %5578 = vmatpush1.bf16.msra.mxu0 %v5567
        %5579 = vmatprep.subr.bf16.mxu0 0
        %5580 = vmatpush1.bf16.msra.mxu0 %v5568
        %5581 = vmatprep.subr.bf16.mxu0 0
        %5582 = vmatpush1.bf16.msra.mxu0 0
        %5583 = vmatprep.subr.bf16.mxu0 0
        %5584 = vmatpush1.bf16.msra.mxu0 0
        %5585 = vmatprep.subr.bf16.mxu0 0
        %5586 = vmatpush1.bf16.msra.mxu0 0
        %5587 = vmatprep.subr.bf16.mxu0 0
        %5588 = vmatpush1.bf16.msra.mxu0 0
        %5589 = vmatprep.subr.bf16.mxu0 0
        %5590 = vmatpush1.bf16.msra.mxu0 0
        %5591 = vmatprep.subr.bf16.mxu0 0
        %5592 = vmatpush1.bf16.msra.mxu0 0
        %5593 = vmatprep.subr.bf16.mxu0 0
        %5594 = vmatpush1.bf16.msra.mxu0 0
        %5595 = vmatprep.subr.bf16.mxu0 0
        %5596 = vmatpush1.bf16.msra.mxu0 0
        %5597 = vmatprep.subr.bf16.mxu0 0
        %5598 = vmatpush1.bf16.msra.mxu0 0
        %5599 = vmatprep.subr.bf16.mxu0 0
        %5600 = vmatpush1.bf16.msra.mxu0 0
        %5601 = vmatprep.subr.bf16.mxu0 0
        %5602 = vmatpush1.bf16.msra.mxu0 0
        %5603 = vmatprep.subr.bf16.mxu0 0
        %5604 = vmatpush1.bf16.msra.mxu0 0
        %5605 = vmatprep.subr.bf16.mxu0 0
        %5606 = vmatpush1.bf16.msra.mxu0 0
        %5607 = vmatprep.mubr.bf16.mxu0 0
        %5608 = vmatmul.mubr.bf16.gmra.mrb[0].mxu0 %v5573
        %v5609 = vpop.f32.mrb[0].mxu0
        %v5610 = vadd.f32 0.0, %v5609
        %v5611 = vpop.f32.mrb[0].mxu0
        %v5612 = vpop.f32.mrb[0].mxu0
        %v5613 = vpop.f32.mrb[0].mxu0
        %5614 = vdwg.mxu0
        %v5615 = vadd.f32 %v5544, %v5610
        %v5616 = vld [vmem:[#allocation7 + $0x9] sm:$0x3f]
        %v5617 = vpack.c.bf16 %v5616, %v5616
        %s5618 = scalar_lea.vmem %s7, 168
        %v5619 = vld [vmem:[%s5618] sm:$0xf]
        %v5620 = vld [vmem:[%s5618 + $0x4] sm:$0xf]
        %v5621 = vld [vmem:[%s5618 + $0x8] sm:$0xf]
        %v5622 = vld [vmem:[%s5618 + $0xc] sm:$0xf]
        %v5623 = vld [vmem:[%s5618 + $0x10] sm:$0xf]
        %v5624 = vld [vmem:[%s5618 + $0x14] sm:$0xf]
        %v5631 = vunpack.c.l.b16 %v5619
        %v5632 = vunpack.c.l.b16 %v5620
        %v5633 = vunpack.c.l.b16 %v5621
        %v5634 = vunpack.c.l.b16 %v5622
        %v5635 = vunpack.c.l.b16 %v5623
        %v5636 = vunpack.c.l.b16 %v5624
        %v5637 = vpack.c.b16 %v5632, %v5631
        %v5638 = vpack.c.b16 %v5634, %v5633
        %v5639 = vpack.c.b16 %v5636, %v5635
        %v5644 = vsel %vm5156, %v5617, 0
        %5646 = vmatprep.subr.bf16.mxu0 0
        %5647 = vmatpush1.bf16.msra.mxu0 %v5637
        %5648 = vmatprep.subr.bf16.mxu0 0
        %5649 = vmatpush1.bf16.msra.mxu0 %v5638
        %5650 = vmatprep.subr.bf16.mxu0 0
        %5651 = vmatpush1.bf16.msra.mxu0 %v5639
        %5652 = vmatprep.subr.bf16.mxu0 0
        %5653 = vmatpush1.bf16.msra.mxu0 0
        %5654 = vmatprep.subr.bf16.mxu0 0
        %5655 = vmatpush1.bf16.msra.mxu0 0
        %5656 = vmatprep.subr.bf16.mxu0 0
        %5657 = vmatpush1.bf16.msra.mxu0 0
        %5658 = vmatprep.subr.bf16.mxu0 0
        %5659 = vmatpush1.bf16.msra.mxu0 0
        %5660 = vmatprep.subr.bf16.mxu0 0
        %5661 = vmatpush1.bf16.msra.mxu0 0
        %5662 = vmatprep.subr.bf16.mxu0 0
        %5663 = vmatpush1.bf16.msra.mxu0 0
        %5664 = vmatprep.subr.bf16.mxu0 0
        %5665 = vmatpush1.bf16.msra.mxu0 0
        %5666 = vmatprep.subr.bf16.mxu0 0
        %5667 = vmatpush1.bf16.msra.mxu0 0
        %5668 = vmatprep.subr.bf16.mxu0 0
        %5669 = vmatpush1.bf16.msra.mxu0 0
        %5670 = vmatprep.subr.bf16.mxu0 0
        %5671 = vmatpush1.bf16.msra.mxu0 0
        %5672 = vmatprep.subr.bf16.mxu0 0
        %5673 = vmatpush1.bf16.msra.mxu0 0
        %5674 = vmatprep.subr.bf16.mxu0 0
        %5675 = vmatpush1.bf16.msra.mxu0 0
        %5676 = vmatprep.subr.bf16.mxu0 0
        %5677 = vmatpush1.bf16.msra.mxu0 0
        %5678 = vmatprep.mubr.bf16.mxu0 0
        %5679 = vmatmul.mubr.bf16.gmra.mrb[0].mxu0 %v5644
        %v5680 = vpop.f32.mrb[0].mxu0
        %v5681 = vadd.f32 0.0, %v5680
        %v5682 = vpop.f32.mrb[0].mxu0
        %v5683 = vpop.f32.mrb[0].mxu0
        %v5684 = vpop.f32.mrb[0].mxu0
        %5685 = vdwg.mxu0
        %v5686 = vadd.f32 %v5615, %v5681
        %v5687 = vld [vmem:[#allocation7 + $0xa] sm:$0x3f]
        %v5688 = vpack.c.bf16 %v5687, %v5687
        %s5689 = scalar_lea.vmem %s7, 192
        %v5690 = vld [vmem:[%s5689] sm:$0xf]
        %v5691 = vld [vmem:[%s5689 + $0x4] sm:$0xf]
        %v5692 = vld [vmem:[%s5689 + $0x8] sm:$0xf]
        %v5693 = vld [vmem:[%s5689 + $0xc] sm:$0xf]
        %v5694 = vld [vmem:[%s5689 + $0x10] sm:$0xf]
        %v5695 = vld [vmem:[%s5689 + $0x14] sm:$0xf]
        %v5702 = vunpack.c.l.b16 %v5690
        %v5703 = vunpack.c.l.b16 %v5691
        %v5704 = vunpack.c.l.b16 %v5692
        %v5705 = vunpack.c.l.b16 %v5693
        %v5706 = vunpack.c.l.b16 %v5694
        %v5707 = vunpack.c.l.b16 %v5695
        %v5708 = vpack.c.b16 %v5703, %v5702
        %v5709 = vpack.c.b16 %v5705, %v5704
        %v5710 = vpack.c.b16 %v5707, %v5706
        %v5715 = vsel %vm5156, %v5688, 0
        %5717 = vmatprep.subr.bf16.mxu0 0
        %5718 = vmatpush1.bf16.msra.mxu0 %v5708
        %5719 = vmatprep.subr.bf16.mxu0 0
        %5720 = vmatpush1.bf16.msra.mxu0 %v5709
        %5721 = vmatprep.subr.bf16.mxu0 0
        %5722 = vmatpush1.bf16.msra.mxu0 %v5710
        %5723 = vmatprep.subr.bf16.mxu0 0
        %5724 = vmatpush1.bf16.msra.mxu0 0
        %5725 = vmatprep.subr.bf16.mxu0 0
        %5726 = vmatpush1.bf16.msra.mxu0 0
        %5727 = vmatprep.subr.bf16.mxu0 0
        %5728 = vmatpush1.bf16.msra.mxu0 0
        %5729 = vmatprep.subr.bf16.mxu0 0
        %5730 = vmatpush1.bf16.msra.mxu0 0
        %5731 = vmatprep.subr.bf16.mxu0 0
        %5732 = vmatpush1.bf16.msra.mxu0 0
        %5733 = vmatprep.subr.bf16.mxu0 0
        %5734 = vmatpush1.bf16.msra.mxu0 0
        %5735 = vmatprep.subr.bf16.mxu0 0
        %5736 = vmatpush1.bf16.msra.mxu0 0
        %5737 = vmatprep.subr.bf16.mxu0 0
        %5738 = vmatpush1.bf16.msra.mxu0 0
        %5739 = vmatprep.subr.bf16.mxu0 0
        %5740 = vmatpush1.bf16.msra.mxu0 0
        %5741 = vmatprep.subr.bf16.mxu0 0
        %5742 = vmatpush1.bf16.msra.mxu0 0
        %5743 = vmatprep.subr.bf16.mxu0 0
        %5744 = vmatpush1.bf16.msra.mxu0 0
        %5745 = vmatprep.subr.bf16.mxu0 0
        %5746 = vmatpush1.bf16.msra.mxu0 0
        %5747 = vmatprep.subr.bf16.mxu0 0
        %5748 = vmatpush1.bf16.msra.mxu0 0
        %5749 = vmatprep.mubr.bf16.mxu0 0
        %5750 = vmatmul.mubr.bf16.gmra.mrb[0].mxu0 %v5715
        %v5751 = vpop.f32.mrb[0].mxu0
        %v5752 = vadd.f32 0.0, %v5751
        %v5753 = vpop.f32.mrb[0].mxu0
        %v5754 = vpop.f32.mrb[0].mxu0
        %v5755 = vpop.f32.mrb[0].mxu0
        %5756 = vdwg.mxu0
        %v5757 = vadd.f32 %v5686, %v5752
        %v5758 = vld [vmem:[%s16] sm:$0x1]
        %v5760 = vlaneseq
        %v5761 = vshrl.u32 %v5760, 7
        %v5762 = vsub.s32 0, %v5761
        %v5763 = vrot.slane %v5758, %v5762
        %v5765 = vadd.f32 %v5757, %v5763
        %v5766 = vmax.f32 %v5765, 0.0
        %5767 = vst [vmem:[#allocation2] sm:$0x3f] %v5766
        %v5768 = vld [vmem:[#allocation2] sm:$0x3]
        %5769 = vst [vmem:[#allocation8 + $0x5] sm:$0x3] %v5768
        %v5770 = vld [vmem:[#allocation2 + $0x4] sm:$0x3]
        %5771 = vst [vmem:[#allocation8 + $0x9] sm:$0x3] %v5770
        %v5772 = vld [vmem:[#allocation8] sm:$0x3f]
        %v5773 = vpack.c.bf16 %v5772, %v5772
        %v5774 = vld [vmem:[%s8] sm:$0xf]
        %v5775 = vld [vmem:[%s8 + $0x4] sm:$0xf]
        %v5776 = vld [vmem:[%s8 + $0x8] sm:$0xf]
        %v5777 = vld [vmem:[%s8 + $0xc] sm:$0xf]
        %v5778 = vld [vmem:[#allocation8 + $0x1] sm:$0x3f]
        %v5779 = vpack.c.bf16 %v5778, %v5778
        %s5780 = scalar_lea.vmem %s8, 16
        %v5781 = vld [vmem:[%s5780] sm:$0xf]
        %v5782 = vld [vmem:[%s5780 + $0x4] sm:$0xf]
        %v5783 = vld [vmem:[%s5780 + $0x8] sm:$0xf]
        %v5784 = vld [vmem:[%s5780 + $0xc] sm:$0xf]
        %v5789 = vunpack.c.l.b16 %v5781
        %v5790 = vunpack.c.l.b16 %v5782
        %v5791 = vunpack.c.l.b16 %v5783
        %v5792 = vunpack.c.l.b16 %v5784
        %v5793 = vpack.c.b16 %v5790, %v5789
        %v5794 = vpack.c.b16 %v5792, %v5791
        %v5798 = vsel %vm3666, %v5779, 0
        %5800 = vmatprep.subr.bf16.mxu0 0
        %5801 = vmatpush1.bf16.msra.mxu0 %v5793
        %5802 = vmatprep.subr.bf16.mxu0 0
        %5803 = vmatpush1.bf16.msra.mxu0 %v5794
        %5804 = vmatprep.subr.bf16.mxu0 0
        %5805 = vmatpush1.bf16.msra.mxu0 0
        %5806 = vmatprep.subr.bf16.mxu0 0
        %5807 = vmatpush1.bf16.msra.mxu0 0
        %5808 = vmatprep.subr.bf16.mxu0 0
        %5809 = vmatpush1.bf16.msra.mxu0 0
        %5810 = vmatprep.subr.bf16.mxu0 0
        %5811 = vmatpush1.bf16.msra.mxu0 0
        %5812 = vmatprep.subr.bf16.mxu0 0
        %5813 = vmatpush1.bf16.msra.mxu0 0
        %5814 = vmatprep.subr.bf16.mxu0 0
        %5815 = vmatpush1.bf16.msra.mxu0 0
        %5816 = vmatprep.subr.bf16.mxu0 0
        %5817 = vmatpush1.bf16.msra.mxu0 0
        %5818 = vmatprep.subr.bf16.mxu0 0
        %5819 = vmatpush1.bf16.msra.mxu0 0
        %5820 = vmatprep.subr.bf16.mxu0 0
        %5821 = vmatpush1.bf16.msra.mxu0 0
        %5822 = vmatprep.subr.bf16.mxu0 0
        %5823 = vmatpush1.bf16.msra.mxu0 0
        %5824 = vmatprep.subr.bf16.mxu0 0
        %5825 = vmatpush1.bf16.msra.mxu0 0
        %5826 = vmatprep.subr.bf16.mxu0 0
        %5827 = vmatpush1.bf16.msra.mxu0 0
        %5828 = vmatprep.subr.bf16.mxu0 0
        %5829 = vmatpush1.bf16.msra.mxu0 0
        %5830 = vmatprep.subr.bf16.mxu0 0
        %5831 = vmatpush1.bf16.msra.mxu0 0
        %5832 = vmatprep.mubr.bf16.mxu0 0
        %5833 = vmatmul.mubr.bf16.gmra.mrb[0].mxu0 %v5798
        %v5834 = vpop.f32.mrb[0].mxu0
        %v5835 = vadd.f32 0.0, %v5834
        %v5836 = vpop.f32.mrb[0].mxu0
        %v5837 = vpop.f32.mrb[0].mxu0
        %v5838 = vpop.f32.mrb[0].mxu0
        %5839 = vdwg.mxu0
        %v5844 = vunpack.c.l.b16 %v5774
        %v5845 = vunpack.c.l.b16 %v5775
        %v5846 = vunpack.c.l.b16 %v5776
        %v5847 = vunpack.c.l.b16 %v5777
        %v5848 = vpack.c.b16 %v5845, %v5844
        %v5849 = vpack.c.b16 %v5847, %v5846
        %v5853 = vsel %vm3666, %v5773, 0
        %5855 = vmatprep.subr.bf16.mxu0 0
        %5856 = vmatpush1.bf16.msra.mxu0 %v5848
        %5857 = vmatprep.subr.bf16.mxu0 0
        %5858 = vmatpush1.bf16.msra.mxu0 %v5849
        %5859 = vmatprep.subr.bf16.mxu0 0
        %5860 = vmatpush1.bf16.msra.mxu0 0
        %5861 = vmatprep.subr.bf16.mxu0 0
        %5862 = vmatpush1.bf16.msra.mxu0 0
        %5863 = vmatprep.subr.bf16.mxu0 0
        %5864 = vmatpush1.bf16.msra.mxu0 0
        %5865 = vmatprep.subr.bf16.mxu0 0
        %5866 = vmatpush1.bf16.msra.mxu0 0
        %5867 = vmatprep.subr.bf16.mxu0 0
        %5868 = vmatpush1.bf16.msra.mxu0 0
        %5869 = vmatprep.subr.bf16.mxu0 0
        %5870 = vmatpush1.bf16.msra.mxu0 0
        %5871 = vmatprep.subr.bf16.mxu0 0
        %5872 = vmatpush1.bf16.msra.mxu0 0
        %5873 = vmatprep.subr.bf16.mxu0 0
        %5874 = vmatpush1.bf16.msra.mxu0 0
        %5875 = vmatprep.subr.bf16.mxu0 0
        %5876 = vmatpush1.bf16.msra.mxu0 0
        %5877 = vmatprep.subr.bf16.mxu0 0
        %5878 = vmatpush1.bf16.msra.mxu0 0
        %5879 = vmatprep.subr.bf16.mxu0 0
        %5880 = vmatpush1.bf16.msra.mxu0 0
        %5881 = vmatprep.subr.bf16.mxu0 0
        %5882 = vmatpush1.bf16.msra.mxu0 0
        %5883 = vmatprep.subr.bf16.mxu0 0
        %5884 = vmatpush1.bf16.msra.mxu0 0
        %5885 = vmatprep.subr.bf16.mxu0 0
        %5886 = vmatpush1.bf16.msra.mxu0 0
        %5887 = vmatprep.mubr.bf16.mxu0 0
        %5888 = vmatmul.mubr.bf16.gmra.mrb[0].mxu0 %v5853
        %v5889 = vpop.f32.mrb[0].mxu0
        %v5890 = vadd.f32 %v5835, %v5889
        %v5891 = vpop.f32.mrb[0].mxu0
        %v5892 = vpop.f32.mrb[0].mxu0
        %v5893 = vpop.f32.mrb[0].mxu0
        %5894 = vdwg.mxu0
        %v5895 = vld [vmem:[#allocation8 + $0x2] sm:$0x3f]
        %v5896 = vpack.c.bf16 %v5895, %v5895
        %s5897 = scalar_lea.vmem %s8, 32
        %v5898 = vld [vmem:[%s5897] sm:$0xf]
        %v5899 = vld [vmem:[%s5897 + $0x4] sm:$0xf]
        %v5900 = vld [vmem:[%s5897 + $0x8] sm:$0xf]
        %v5901 = vld [vmem:[%s5897 + $0xc] sm:$0xf]
        %v5906 = vunpack.c.l.b16 %v5898
        %v5907 = vunpack.c.l.b16 %v5899
        %v5908 = vunpack.c.l.b16 %v5900
        %v5909 = vunpack.c.l.b16 %v5901
        %v5910 = vpack.c.b16 %v5907, %v5906
        %v5911 = vpack.c.b16 %v5909, %v5908
        %v5915 = vsel %vm3666, %v5896, 0
        %5917 = vmatprep.subr.bf16.mxu0 0
        %5918 = vmatpush1.bf16.msra.mxu0 %v5910
        %5919 = vmatprep.subr.bf16.mxu0 0
        %5920 = vmatpush1.bf16.msra.mxu0 %v5911
        %5921 = vmatprep.subr.bf16.mxu0 0
        %5922 = vmatpush1.bf16.msra.mxu0 0
        %5923 = vmatprep.subr.bf16.mxu0 0
        %5924 = vmatpush1.bf16.msra.mxu0 0
        %5925 = vmatprep.subr.bf16.mxu0 0
        %5926 = vmatpush1.bf16.msra.mxu0 0
        %5927 = vmatprep.subr.bf16.mxu0 0
        %5928 = vmatpush1.bf16.msra.mxu0 0
        %5929 = vmatprep.subr.bf16.mxu0 0
        %5930 = vmatpush1.bf16.msra.mxu0 0
        %5931 = vmatprep.subr.bf16.mxu0 0
        %5932 = vmatpush1.bf16.msra.mxu0 0
        %5933 = vmatprep.subr.bf16.mxu0 0
        %5934 = vmatpush1.bf16.msra.mxu0 0
        %5935 = vmatprep.subr.bf16.mxu0 0
        %5936 = vmatpush1.bf16.msra.mxu0 0
        %5937 = vmatprep.subr.bf16.mxu0 0
        %5938 = vmatpush1.bf16.msra.mxu0 0
        %5939 = vmatprep.subr.bf16.mxu0 0
        %5940 = vmatpush1.bf16.msra.mxu0 0
        %5941 = vmatprep.subr.bf16.mxu0 0
        %5942 = vmatpush1.bf16.msra.mxu0 0
        %5943 = vmatprep.subr.bf16.mxu0 0
        %5944 = vmatpush1.bf16.msra.mxu0 0
        %5945 = vmatprep.subr.bf16.mxu0 0
        %5946 = vmatpush1.bf16.msra.mxu0 0
        %5947 = vmatprep.subr.bf16.mxu0 0
        %5948 = vmatpush1.bf16.msra.mxu0 0
        %5949 = vmatprep.mubr.bf16.mxu0 0
        %5950 = vmatmul.mubr.bf16.gmra.mrb[0].mxu0 %v5915
        %v5951 = vpop.f32.mrb[0].mxu0
        %v5952 = vadd.f32 0.0, %v5951
        %v5953 = vpop.f32.mrb[0].mxu0
        %v5954 = vpop.f32.mrb[0].mxu0
        %v5955 = vpop.f32.mrb[0].mxu0
        %5956 = vdwg.mxu0
        %v5957 = vadd.f32 %v5890, %v5952
        %v5958 = vld [vmem:[#allocation8 + $0x4] sm:$0x3f]
        %v5959 = vpack.c.bf16 %v5958, %v5958
        %s5960 = scalar_lea.vmem %s8, 48
        %v5961 = vld [vmem:[%s5960] sm:$0xf]
        %v5962 = vld [vmem:[%s5960 + $0x4] sm:$0xf]
        %v5963 = vld [vmem:[%s5960 + $0x8] sm:$0xf]
        %v5964 = vld [vmem:[%s5960 + $0xc] sm:$0xf]
        %v5969 = vunpack.c.l.b16 %v5961
        %v5970 = vunpack.c.l.b16 %v5962
        %v5971 = vunpack.c.l.b16 %v5963
        %v5972 = vunpack.c.l.b16 %v5964
        %v5973 = vpack.c.b16 %v5970, %v5969
        %v5974 = vpack.c.b16 %v5972, %v5971
        %v5978 = vsel %vm3666, %v5959, 0
        %5980 = vmatprep.subr.bf16.mxu0 0
        %5981 = vmatpush1.bf16.msra.mxu0 %v5973
        %5982 = vmatprep.subr.bf16.mxu0 0
        %5983 = vmatpush1.bf16.msra.mxu0 %v5974
        %5984 = vmatprep.subr.bf16.mxu0 0
        %5985 = vmatpush1.bf16.msra.mxu0 0
        %5986 = vmatprep.subr.bf16.mxu0 0
        %5987 = vmatpush1.bf16.msra.mxu0 0
        %5988 = vmatprep.subr.bf16.mxu0 0
        %5989 = vmatpush1.bf16.msra.mxu0 0
        %5990 = vmatprep.subr.bf16.mxu0 0
        %5991 = vmatpush1.bf16.msra.mxu0 0
        %5992 = vmatprep.subr.bf16.mxu0 0
        %5993 = vmatpush1.bf16.msra.mxu0 0
        %5994 = vmatprep.subr.bf16.mxu0 0
        %5995 = vmatpush1.bf16.msra.mxu0 0
        %5996 = vmatprep.subr.bf16.mxu0 0
        %5997 = vmatpush1.bf16.msra.mxu0 0
        %5998 = vmatprep.subr.bf16.mxu0 0
        %5999 = vmatpush1.bf16.msra.mxu0 0
        %6000 = vmatprep.subr.bf16.mxu0 0
        %6001 = vmatpush1.bf16.msra.mxu0 0
        %6002 = vmatprep.subr.bf16.mxu0 0
        %6003 = vmatpush1.bf16.msra.mxu0 0
        %6004 = vmatprep.subr.bf16.mxu0 0
        %6005 = vmatpush1.bf16.msra.mxu0 0
        %6006 = vmatprep.subr.bf16.mxu0 0
        %6007 = vmatpush1.bf16.msra.mxu0 0
        %6008 = vmatprep.subr.bf16.mxu0 0
        %6009 = vmatpush1.bf16.msra.mxu0 0
        %6010 = vmatprep.subr.bf16.mxu0 0
        %6011 = vmatpush1.bf16.msra.mxu0 0
        %6012 = vmatprep.mubr.bf16.mxu0 0
        %6013 = vmatmul.mubr.bf16.gmra.mrb[0].mxu0 %v5978
        %v6014 = vpop.f32.mrb[0].mxu0
        %v6015 = vadd.f32 0.0, %v6014
        %v6016 = vpop.f32.mrb[0].mxu0
        %v6017 = vpop.f32.mrb[0].mxu0
        %v6018 = vpop.f32.mrb[0].mxu0
        %6019 = vdwg.mxu0
        %v6020 = vadd.f32 %v5957, %v6015
        %v6021 = vld [vmem:[#allocation8 + $0x5] sm:$0x3f]
        %v6022 = vpack.c.bf16 %v6021, %v6021
        %s6023 = scalar_lea.vmem %s8, 64
        %v6024 = vld [vmem:[%s6023] sm:$0xf]
        %v6025 = vld [vmem:[%s6023 + $0x4] sm:$0xf]
        %v6026 = vld [vmem:[%s6023 + $0x8] sm:$0xf]
        %v6027 = vld [vmem:[%s6023 + $0xc] sm:$0xf]
        %v6032 = vunpack.c.l.b16 %v6024
        %v6033 = vunpack.c.l.b16 %v6025
        %v6034 = vunpack.c.l.b16 %v6026
        %v6035 = vunpack.c.l.b16 %v6027
        %v6036 = vpack.c.b16 %v6033, %v6032
        %v6037 = vpack.c.b16 %v6035, %v6034
        %v6041 = vsel %vm3666, %v6022, 0
        %6043 = vmatprep.subr.bf16.mxu0 0
        %6044 = vmatpush1.bf16.msra.mxu0 %v6036
        %6045 = vmatprep.subr.bf16.mxu0 0
        %6046 = vmatpush1.bf16.msra.mxu0 %v6037
        %6047 = vmatprep.subr.bf16.mxu0 0
        %6048 = vmatpush1.bf16.msra.mxu0 0
        %6049 = vmatprep.subr.bf16.mxu0 0
        %6050 = vmatpush1.bf16.msra.mxu0 0
        %6051 = vmatprep.subr.bf16.mxu0 0
        %6052 = vmatpush1.bf16.msra.mxu0 0
        %6053 = vmatprep.subr.bf16.mxu0 0
        %6054 = vmatpush1.bf16.msra.mxu0 0
        %6055 = vmatprep.subr.bf16.mxu0 0
        %6056 = vmatpush1.bf16.msra.mxu0 0
        %6057 = vmatprep.subr.bf16.mxu0 0
        %6058 = vmatpush1.bf16.msra.mxu0 0
        %6059 = vmatprep.subr.bf16.mxu0 0
        %6060 = vmatpush1.bf16.msra.mxu0 0
        %6061 = vmatprep.subr.bf16.mxu0 0
        %6062 = vmatpush1.bf16.msra.mxu0 0
        %6063 = vmatprep.subr.bf16.mxu0 0
        %6064 = vmatpush1.bf16.msra.mxu0 0
        %6065 = vmatprep.subr.bf16.mxu0 0
        %6066 = vmatpush1.bf16.msra.mxu0 0
        %6067 = vmatprep.subr.bf16.mxu0 0
        %6068 = vmatpush1.bf16.msra.mxu0 0
        %6069 = vmatprep.subr.bf16.mxu0 0
        %6070 = vmatpush1.bf16.msra.mxu0 0
        %6071 = vmatprep.subr.bf16.mxu0 0
        %6072 = vmatpush1.bf16.msra.mxu0 0
        %6073 = vmatprep.subr.bf16.mxu0 0
        %6074 = vmatpush1.bf16.msra.mxu0 0
        %6075 = vmatprep.mubr.bf16.mxu0 0
        %6076 = vmatmul.mubr.bf16.gmra.mrb[0].mxu0 %v6041
        %v6077 = vpop.f32.mrb[0].mxu0
        %v6078 = vadd.f32 0.0, %v6077
        %v6079 = vpop.f32.mrb[0].mxu0
        %v6080 = vpop.f32.mrb[0].mxu0
        %v6081 = vpop.f32.mrb[0].mxu0
        %6082 = vdwg.mxu0
        %v6083 = vadd.f32 %v6020, %v6078
        %v6084 = vld [vmem:[#allocation8 + $0x6] sm:$0x3f]
        %v6085 = vpack.c.bf16 %v6084, %v6084
        %s6086 = scalar_lea.vmem %s8, 80
        %v6087 = vld [vmem:[%s6086] sm:$0xf]
        %v6088 = vld [vmem:[%s6086 + $0x4] sm:$0xf]
        %v6089 = vld [vmem:[%s6086 + $0x8] sm:$0xf]
        %v6090 = vld [vmem:[%s6086 + $0xc] sm:$0xf]
        %v6095 = vunpack.c.l.b16 %v6087
        %v6096 = vunpack.c.l.b16 %v6088
        %v6097 = vunpack.c.l.b16 %v6089
        %v6098 = vunpack.c.l.b16 %v6090
        %v6099 = vpack.c.b16 %v6096, %v6095
        %v6100 = vpack.c.b16 %v6098, %v6097
        %v6104 = vsel %vm3666, %v6085, 0
        %6106 = vmatprep.subr.bf16.mxu0 0
        %6107 = vmatpush1.bf16.msra.mxu0 %v6099
        %6108 = vmatprep.subr.bf16.mxu0 0
        %6109 = vmatpush1.bf16.msra.mxu0 %v6100
        %6110 = vmatprep.subr.bf16.mxu0 0
        %6111 = vmatpush1.bf16.msra.mxu0 0
        %6112 = vmatprep.subr.bf16.mxu0 0
        %6113 = vmatpush1.bf16.msra.mxu0 0
        %6114 = vmatprep.subr.bf16.mxu0 0
        %6115 = vmatpush1.bf16.msra.mxu0 0
        %6116 = vmatprep.subr.bf16.mxu0 0
        %6117 = vmatpush1.bf16.msra.mxu0 0
        %6118 = vmatprep.subr.bf16.mxu0 0
        %6119 = vmatpush1.bf16.msra.mxu0 0
        %6120 = vmatprep.subr.bf16.mxu0 0
        %6121 = vmatpush1.bf16.msra.mxu0 0
        %6122 = vmatprep.subr.bf16.mxu0 0
        %6123 = vmatpush1.bf16.msra.mxu0 0
        %6124 = vmatprep.subr.bf16.mxu0 0
        %6125 = vmatpush1.bf16.msra.mxu0 0
        %6126 = vmatprep.subr.bf16.mxu0 0
        %6127 = vmatpush1.bf16.msra.mxu0 0
        %6128 = vmatprep.subr.bf16.mxu0 0
        %6129 = vmatpush1.bf16.msra.mxu0 0
        %6130 = vmatprep.subr.bf16.mxu0 0
        %6131 = vmatpush1.bf16.msra.mxu0 0
        %6132 = vmatprep.subr.bf16.mxu0 0
        %6133 = vmatpush1.bf16.msra.mxu0 0
        %6134 = vmatprep.subr.bf16.mxu0 0
        %6135 = vmatpush1.bf16.msra.mxu0 0
        %6136 = vmatprep.subr.bf16.mxu0 0
        %6137 = vmatpush1.bf16.msra.mxu0 0
        %6138 = vmatprep.mubr.bf16.mxu0 0
        %6139 = vmatmul.mubr.bf16.gmra.mrb[0].mxu0 %v6104
        %v6140 = vpop.f32.mrb[0].mxu0
        %v6141 = vadd.f32 0.0, %v6140
        %v6142 = vpop.f32.mrb[0].mxu0
        %v6143 = vpop.f32.mrb[0].mxu0
        %v6144 = vpop.f32.mrb[0].mxu0
        %6145 = vdwg.mxu0
        %v6146 = vadd.f32 %v6083, %v6141
        %v6147 = vld [vmem:[#allocation8 + $0x8] sm:$0x3f]
        %v6148 = vpack.c.bf16 %v6147, %v6147
        %s6149 = scalar_lea.vmem %s8, 96
        %v6150 = vld [vmem:[%s6149] sm:$0xf]
        %v6151 = vld [vmem:[%s6149 + $0x4] sm:$0xf]
        %v6152 = vld [vmem:[%s6149 + $0x8] sm:$0xf]
        %v6153 = vld [vmem:[%s6149 + $0xc] sm:$0xf]
        %v6158 = vunpack.c.l.b16 %v6150
        %v6159 = vunpack.c.l.b16 %v6151
        %v6160 = vunpack.c.l.b16 %v6152
        %v6161 = vunpack.c.l.b16 %v6153
        %v6162 = vpack.c.b16 %v6159, %v6158
        %v6163 = vpack.c.b16 %v6161, %v6160
        %v6167 = vsel %vm3666, %v6148, 0
        %6169 = vmatprep.subr.bf16.mxu0 0
        %6170 = vmatpush1.bf16.msra.mxu0 %v6162
        %6171 = vmatprep.subr.bf16.mxu0 0
        %6172 = vmatpush1.bf16.msra.mxu0 %v6163
        %6173 = vmatprep.subr.bf16.mxu0 0
        %6174 = vmatpush1.bf16.msra.mxu0 0
        %6175 = vmatprep.subr.bf16.mxu0 0
        %6176 = vmatpush1.bf16.msra.mxu0 0
        %6177 = vmatprep.subr.bf16.mxu0 0
        %6178 = vmatpush1.bf16.msra.mxu0 0
        %6179 = vmatprep.subr.bf16.mxu0 0
        %6180 = vmatpush1.bf16.msra.mxu0 0
        %6181 = vmatprep.subr.bf16.mxu0 0
        %6182 = vmatpush1.bf16.msra.mxu0 0
        %6183 = vmatprep.subr.bf16.mxu0 0
        %6184 = vmatpush1.bf16.msra.mxu0 0
        %6185 = vmatprep.subr.bf16.mxu0 0
        %6186 = vmatpush1.bf16.msra.mxu0 0
        %6187 = vmatprep.subr.bf16.mxu0 0
        %6188 = vmatpush1.bf16.msra.mxu0 0
        %6189 = vmatprep.subr.bf16.mxu0 0
        %6190 = vmatpush1.bf16.msra.mxu0 0
        %6191 = vmatprep.subr.bf16.mxu0 0
        %6192 = vmatpush1.bf16.msra.mxu0 0
        %6193 = vmatprep.subr.bf16.mxu0 0
        %6194 = vmatpush1.bf16.msra.mxu0 0
        %6195 = vmatprep.subr.bf16.mxu0 0
        %6196 = vmatpush1.bf16.msra.mxu0 0
        %6197 = vmatprep.subr.bf16.mxu0 0
        %6198 = vmatpush1.bf16.msra.mxu0 0
        %6199 = vmatprep.subr.bf16.mxu0 0
        %6200 = vmatpush1.bf16.msra.mxu0 0
        %6201 = vmatprep.mubr.bf16.mxu0 0
        %6202 = vmatmul.mubr.bf16.gmra.mrb[0].mxu0 %v6167
        %v6203 = vpop.f32.mrb[0].mxu0
        %v6204 = vadd.f32 0.0, %v6203
        %v6205 = vpop.f32.mrb[0].mxu0
        %v6206 = vpop.f32.mrb[0].mxu0
        %v6207 = vpop.f32.mrb[0].mxu0
        %6208 = vdwg.mxu0
        %v6209 = vadd.f32 %v6146, %v6204
        %v6210 = vld [vmem:[#allocation8 + $0x9] sm:$0x3f]
        %v6211 = vpack.c.bf16 %v6210, %v6210
        %s6212 = scalar_lea.vmem %s8, 112
        %v6213 = vld [vmem:[%s6212] sm:$0xf]
        %v6214 = vld [vmem:[%s6212 + $0x4] sm:$0xf]
        %v6215 = vld [vmem:[%s6212 + $0x8] sm:$0xf]
        %v6216 = vld [vmem:[%s6212 + $0xc] sm:$0xf]
        %v6221 = vunpack.c.l.b16 %v6213
        %v6222 = vunpack.c.l.b16 %v6214
        %v6223 = vunpack.c.l.b16 %v6215
        %v6224 = vunpack.c.l.b16 %v6216
        %v6225 = vpack.c.b16 %v6222, %v6221
        %v6226 = vpack.c.b16 %v6224, %v6223
        %v6230 = vsel %vm3666, %v6211, 0
        %6232 = vmatprep.subr.bf16.mxu0 0
        %6233 = vmatpush1.bf16.msra.mxu0 %v6225
        %6234 = vmatprep.subr.bf16.mxu0 0
        %6235 = vmatpush1.bf16.msra.mxu0 %v6226
        %6236 = vmatprep.subr.bf16.mxu0 0
        %6237 = vmatpush1.bf16.msra.mxu0 0
        %6238 = vmatprep.subr.bf16.mxu0 0
        %6239 = vmatpush1.bf16.msra.mxu0 0
        %6240 = vmatprep.subr.bf16.mxu0 0
        %6241 = vmatpush1.bf16.msra.mxu0 0
        %6242 = vmatprep.subr.bf16.mxu0 0
        %6243 = vmatpush1.bf16.msra.mxu0 0
        %6244 = vmatprep.subr.bf16.mxu0 0
        %6245 = vmatpush1.bf16.msra.mxu0 0
        %6246 = vmatprep.subr.bf16.mxu0 0
        %6247 = vmatpush1.bf16.msra.mxu0 0
        %6248 = vmatprep.subr.bf16.mxu0 0
        %6249 = vmatpush1.bf16.msra.mxu0 0
        %6250 = vmatprep.subr.bf16.mxu0 0
        %6251 = vmatpush1.bf16.msra.mxu0 0
        %6252 = vmatprep.subr.bf16.mxu0 0
        %6253 = vmatpush1.bf16.msra.mxu0 0
        %6254 = vmatprep.subr.bf16.mxu0 0
        %6255 = vmatpush1.bf16.msra.mxu0 0
        %6256 = vmatprep.subr.bf16.mxu0 0
        %6257 = vmatpush1.bf16.msra.mxu0 0
        %6258 = vmatprep.subr.bf16.mxu0 0
        %6259 = vmatpush1.bf16.msra.mxu0 0
        %6260 = vmatprep.subr.bf16.mxu0 0
        %6261 = vmatpush1.bf16.msra.mxu0 0
        %6262 = vmatprep.subr.bf16.mxu0 0
        %6263 = vmatpush1.bf16.msra.mxu0 0
        %6264 = vmatprep.mubr.bf16.mxu0 0
        %6265 = vmatmul.mubr.bf16.gmra.mrb[0].mxu0 %v6230
        %v6266 = vpop.f32.mrb[0].mxu0
        %v6267 = vadd.f32 0.0, %v6266
        %v6268 = vpop.f32.mrb[0].mxu0
        %v6269 = vpop.f32.mrb[0].mxu0
        %v6270 = vpop.f32.mrb[0].mxu0
        %6271 = vdwg.mxu0
        %v6272 = vadd.f32 %v6209, %v6267
        %v6273 = vld [vmem:[#allocation8 + $0xa] sm:$0x3f]
        %v6274 = vpack.c.bf16 %v6273, %v6273
        %s6275 = scalar_lea.vmem %s8, 128
        %v6276 = vld [vmem:[%s6275] sm:$0xf]
        %v6277 = vld [vmem:[%s6275 + $0x4] sm:$0xf]
        %v6278 = vld [vmem:[%s6275 + $0x8] sm:$0xf]
        %v6279 = vld [vmem:[%s6275 + $0xc] sm:$0xf]
        %v6284 = vunpack.c.l.b16 %v6276
        %v6285 = vunpack.c.l.b16 %v6277
        %v6286 = vunpack.c.l.b16 %v6278
        %v6287 = vunpack.c.l.b16 %v6279
        %v6288 = vpack.c.b16 %v6285, %v6284
        %v6289 = vpack.c.b16 %v6287, %v6286
        %v6293 = vsel %vm3666, %v6274, 0
        %6295 = vmatprep.subr.bf16.mxu0 0
        %6296 = vmatpush1.bf16.msra.mxu0 %v6288
        %6297 = vmatprep.subr.bf16.mxu0 0
        %6298 = vmatpush1.bf16.msra.mxu0 %v6289
        %6299 = vmatprep.subr.bf16.mxu0 0
        %6300 = vmatpush1.bf16.msra.mxu0 0
        %6301 = vmatprep.subr.bf16.mxu0 0
        %6302 = vmatpush1.bf16.msra.mxu0 0
        %6303 = vmatprep.subr.bf16.mxu0 0
        %6304 = vmatpush1.bf16.msra.mxu0 0
        %6305 = vmatprep.subr.bf16.mxu0 0
        %6306 = vmatpush1.bf16.msra.mxu0 0
        %6307 = vmatprep.subr.bf16.mxu0 0
        %6308 = vmatpush1.bf16.msra.mxu0 0
        %6309 = vmatprep.subr.bf16.mxu0 0
        %6310 = vmatpush1.bf16.msra.mxu0 0
        %6311 = vmatprep.subr.bf16.mxu0 0
        %6312 = vmatpush1.bf16.msra.mxu0 0
        %6313 = vmatprep.subr.bf16.mxu0 0
        %6314 = vmatpush1.bf16.msra.mxu0 0
        %6315 = vmatprep.subr.bf16.mxu0 0
        %6316 = vmatpush1.bf16.msra.mxu0 0
        %6317 = vmatprep.subr.bf16.mxu0 0
        %6318 = vmatpush1.bf16.msra.mxu0 0
        %6319 = vmatprep.subr.bf16.mxu0 0
        %6320 = vmatpush1.bf16.msra.mxu0 0
        %6321 = vmatprep.subr.bf16.mxu0 0
        %6322 = vmatpush1.bf16.msra.mxu0 0
        %6323 = vmatprep.subr.bf16.mxu0 0
        %6324 = vmatpush1.bf16.msra.mxu0 0
        %6325 = vmatprep.subr.bf16.mxu0 0
        %6326 = vmatpush1.bf16.msra.mxu0 0
        %6327 = vmatprep.mubr.bf16.mxu0 0
        %6328 = vmatmul.mubr.bf16.gmra.mrb[0].mxu0 %v6293
        %v6329 = vpop.f32.mrb[0].mxu0
        %v6330 = vadd.f32 0.0, %v6329
        %v6331 = vpop.f32.mrb[0].mxu0
        %v6332 = vpop.f32.mrb[0].mxu0
        %v6333 = vpop.f32.mrb[0].mxu0
        %6334 = vdwg.mxu0
        %v6335 = vadd.f32 %v6272, %v6330
        %v6336 = vld [vmem:[%s17] sm:$0x1]
        %v6338 = vlaneseq
        %v6339 = vshrl.u32 %v6338, 7
        %v6340 = vsub.s32 0, %v6339
        %v6341 = vrot.slane %v6336, %v6340
        %v6343 = vadd.f32 %v6335, %v6341
        %v6344 = vmax.f32 %v6343, 0.0
        %6345 = vst [vmem:[#allocation2] sm:$0x3f] %v6344
        %v6346 = vld [vmem:[#allocation2] sm:$0x3]
        %v6347 = vld [vmem:[#allocation2 + $0x4] sm:$0x3]
        %v6348 = vmax.f32 %v6346, %v6347
        %v6349 = vsel %vm3461, %v6348, -inf
        %v6350 = vrot.slane %v6349, 4
        %v6351 = vmax.f32 %v6349, %v6350
        %v6352 = vrot.slane %v6351, 2
        %v6353 = vmax.f32 %v6351, %v6352
        %v6354 = vrot.slane %v6353, 1
        %v6355 = vmax.f32 %v6353, %v6354
        %6356 = vst [vmem:[#allocation9 + $0x4] sm:$0x1] %v6355
        %v6357 = vld [vmem:[#allocation9] sm:$0x1]
        %v6358 = vpack.c.bf16 %v6357, %v6357
        %v6359 = vld [vmem:[%s9] sm:$0xf]
        %v6360 = vld [vmem:[%s9 + $0x4] sm:$0xf]
        %v6361 = vld [vmem:[%s9 + $0x8] sm:$0xf]
        %v6362 = vld [vmem:[%s9 + $0xc] sm:$0xf]
        %v6363 = vld [vmem:[%s9 + $0x10] sm:$0xf]
        %v6364 = vld [vmem:[%s9 + $0x14] sm:$0xf]
        %v6365 = vld [vmem:[%s9 + $0x18] sm:$0xf]
        %v6366 = vld [vmem:[%s9 + $0x1c] sm:$0xf]
        %v6367 = vld [vmem:[#allocation9 + $0x1] sm:$0x1]
        %v6368 = vpack.c.bf16 %v6367, %v6367
        %s6369 = scalar_lea.vmem %s9, 32
        %v6370 = vld [vmem:[%s6369] sm:$0xf]
        %v6371 = vld [vmem:[%s6369 + $0x4] sm:$0xf]
        %v6372 = vld [vmem:[%s6369 + $0x8] sm:$0xf]
        %v6373 = vld [vmem:[%s6369 + $0xc] sm:$0xf]
        %v6374 = vld [vmem:[%s6369 + $0x10] sm:$0xf]
        %v6375 = vld [vmem:[%s6369 + $0x14] sm:$0xf]
        %v6376 = vld [vmem:[%s6369 + $0x18] sm:$0xf]
        %v6377 = vld [vmem:[%s6369 + $0x1c] sm:$0xf]
        %v6386 = vunpack.c.l.b16 %v6370
        %v6387 = vunpack.c.l.b16 %v6371
        %v6388 = vunpack.c.l.b16 %v6372
        %v6389 = vunpack.c.l.b16 %v6373
        %v6390 = vunpack.c.l.b16 %v6374
        %v6391 = vunpack.c.l.b16 %v6375
        %v6392 = vunpack.c.l.b16 %v6376
        %v6393 = vunpack.c.l.b16 %v6377
        %v6394 = vpack.c.b16 %v6387, %v6386
        %v6395 = vpack.c.b16 %v6389, %v6388
        %v6396 = vpack.c.b16 %v6391, %v6390
        %v6397 = vpack.c.b16 %v6393, %v6392
        %v6403 = vsel %vm1067, %v6368, 0
        %6405 = vmatprep.subr.bf16.mxu0 0
        %6406 = vmatpush1.bf16.msra.mxu0 %v6394
        %6407 = vmatprep.subr.bf16.mxu0 0
        %6408 = vmatpush1.bf16.msra.mxu0 %v6395
        %6409 = vmatprep.subr.bf16.mxu0 0
        %6410 = vmatpush1.bf16.msra.mxu0 %v6396
        %6411 = vmatprep.subr.bf16.mxu0 0
        %6412 = vmatpush1.bf16.msra.mxu0 %v6397
        %6413 = vmatprep.subr.bf16.mxu0 0
        %6414 = vmatpush1.bf16.msra.mxu0 0
        %6415 = vmatprep.subr.bf16.mxu0 0
        %6416 = vmatpush1.bf16.msra.mxu0 0
        %6417 = vmatprep.subr.bf16.mxu0 0
        %6418 = vmatpush1.bf16.msra.mxu0 0
        %6419 = vmatprep.subr.bf16.mxu0 0
        %6420 = vmatpush1.bf16.msra.mxu0 0
        %6421 = vmatprep.subr.bf16.mxu0 0
        %6422 = vmatpush1.bf16.msra.mxu0 0
        %6423 = vmatprep.subr.bf16.mxu0 0
        %6424 = vmatpush1.bf16.msra.mxu0 0
        %6425 = vmatprep.subr.bf16.mxu0 0
        %6426 = vmatpush1.bf16.msra.mxu0 0
        %6427 = vmatprep.subr.bf16.mxu0 0
        %6428 = vmatpush1.bf16.msra.mxu0 0
        %6429 = vmatprep.subr.bf16.mxu0 0
        %6430 = vmatpush1.bf16.msra.mxu0 0
        %6431 = vmatprep.subr.bf16.mxu0 0
        %6432 = vmatpush1.bf16.msra.mxu0 0
        %6433 = vmatprep.subr.bf16.mxu0 0
        %6434 = vmatpush1.bf16.msra.mxu0 0
        %6435 = vmatprep.subr.bf16.mxu0 0
        %6436 = vmatpush1.bf16.msra.mxu0 0
        %6437 = vmatprep.mubr.bf16.mxu0 0
        %6438 = vmatmul.mubr.bf16.gmra.mrb[0].mxu0 %v6403
        %v6439 = vpop.f32.mrb[0].mxu0
        %v6440 = vadd.f32 0.0, %v6439
        %v6441 = vpop.f32.mrb[0].mxu0
        %v6442 = vpop.f32.mrb[0].mxu0
        %v6443 = vpop.f32.mrb[0].mxu0
        %6444 = vdwg.mxu0
        %v6453 = vunpack.c.l.b16 %v6359
        %v6454 = vunpack.c.l.b16 %v6360
        %v6455 = vunpack.c.l.b16 %v6361
        %v6456 = vunpack.c.l.b16 %v6362
        %v6457 = vunpack.c.l.b16 %v6363
        %v6458 = vunpack.c.l.b16 %v6364
        %v6459 = vunpack.c.l.b16 %v6365
        %v6460 = vunpack.c.l.b16 %v6366
        %v6461 = vpack.c.b16 %v6454, %v6453
        %v6462 = vpack.c.b16 %v6456, %v6455
        %v6463 = vpack.c.b16 %v6458, %v6457
        %v6464 = vpack.c.b16 %v6460, %v6459
        %v6470 = vsel %vm1067, %v6358, 0
        %6472 = vmatprep.subr.bf16.mxu0 0
        %6473 = vmatpush1.bf16.msra.mxu0 %v6461
        %6474 = vmatprep.subr.bf16.mxu0 0
        %6475 = vmatpush1.bf16.msra.mxu0 %v6462
        %6476 = vmatprep.subr.bf16.mxu0 0
        %6477 = vmatpush1.bf16.msra.mxu0 %v6463
        %6478 = vmatprep.subr.bf16.mxu0 0
        %6479 = vmatpush1.bf16.msra.mxu0 %v6464
        %6480 = vmatprep.subr.bf16.mxu0 0
        %6481 = vmatpush1.bf16.msra.mxu0 0
        %6482 = vmatprep.subr.bf16.mxu0 0
        %6483 = vmatpush1.bf16.msra.mxu0 0
        %6484 = vmatprep.subr.bf16.mxu0 0
        %6485 = vmatpush1.bf16.msra.mxu0 0
        %6486 = vmatprep.subr.bf16.mxu0 0
        %6487 = vmatpush1.bf16.msra.mxu0 0
        %6488 = vmatprep.subr.bf16.mxu0 0
        %6489 = vmatpush1.bf16.msra.mxu0 0
        %6490 = vmatprep.subr.bf16.mxu0 0
        %6491 = vmatpush1.bf16.msra.mxu0 0
        %6492 = vmatprep.subr.bf16.mxu0 0
        %6493 = vmatpush1.bf16.msra.mxu0 0
        %6494 = vmatprep.subr.bf16.mxu0 0
        %6495 = vmatpush1.bf16.msra.mxu0 0
        %6496 = vmatprep.subr.bf16.mxu0 0
        %6497 = vmatpush1.bf16.msra.mxu0 0
        %6498 = vmatprep.subr.bf16.mxu0 0
        %6499 = vmatpush1.bf16.msra.mxu0 0
        %6500 = vmatprep.subr.bf16.mxu0 0
        %6501 = vmatpush1.bf16.msra.mxu0 0
        %6502 = vmatprep.subr.bf16.mxu0 0
        %6503 = vmatpush1.bf16.msra.mxu0 0
        %6504 = vmatprep.mubr.bf16.mxu0 0
        %6505 = vmatmul.mubr.bf16.gmra.mrb[0].mxu0 %v6470
        %v6506 = vpop.f32.mrb[0].mxu0
        %v6507 = vadd.f32 %v6440, %v6506
        %v6508 = vpop.f32.mrb[0].mxu0
        %v6509 = vpop.f32.mrb[0].mxu0
        %v6510 = vpop.f32.mrb[0].mxu0
        %6511 = vdwg.mxu0
        %v6512 = vld [vmem:[#allocation9 + $0x2] sm:$0x1]
        %v6513 = vpack.c.bf16 %v6512, %v6512
        %s6514 = scalar_lea.vmem %s9, 64
        %v6515 = vld [vmem:[%s6514] sm:$0xf]
        %v6516 = vld [vmem:[%s6514 + $0x4] sm:$0xf]
        %v6517 = vld [vmem:[%s6514 + $0x8] sm:$0xf]
        %v6518 = vld [vmem:[%s6514 + $0xc] sm:$0xf]
        %v6519 = vld [vmem:[%s6514 + $0x10] sm:$0xf]
        %v6520 = vld [vmem:[%s6514 + $0x14] sm:$0xf]
        %v6521 = vld [vmem:[%s6514 + $0x18] sm:$0xf]
        %v6522 = vld [vmem:[%s6514 + $0x1c] sm:$0xf]
        %v6531 = vunpack.c.l.b16 %v6515
        %v6532 = vunpack.c.l.b16 %v6516
        %v6533 = vunpack.c.l.b16 %v6517
        %v6534 = vunpack.c.l.b16 %v6518
        %v6535 = vunpack.c.l.b16 %v6519
        %v6536 = vunpack.c.l.b16 %v6520
        %v6537 = vunpack.c.l.b16 %v6521
        %v6538 = vunpack.c.l.b16 %v6522
        %v6539 = vpack.c.b16 %v6532, %v6531
        %v6540 = vpack.c.b16 %v6534, %v6533
        %v6541 = vpack.c.b16 %v6536, %v6535
        %v6542 = vpack.c.b16 %v6538, %v6537
        %v6548 = vsel %vm1067, %v6513, 0
        %6550 = vmatprep.subr.bf16.mxu0 0
        %6551 = vmatpush1.bf16.msra.mxu0 %v6539
        %6552 = vmatprep.subr.bf16.mxu0 0
        %6553 = vmatpush1.bf16.msra.mxu0 %v6540
        %6554 = vmatprep.subr.bf16.mxu0 0
        %6555 = vmatpush1.bf16.msra.mxu0 %v6541
        %6556 = vmatprep.subr.bf16.mxu0 0
        %6557 = vmatpush1.bf16.msra.mxu0 %v6542
        %6558 = vmatprep.subr.bf16.mxu0 0
        %6559 = vmatpush1.bf16.msra.mxu0 0
        %6560 = vmatprep.subr.bf16.mxu0 0
        %6561 = vmatpush1.bf16.msra.mxu0 0
        %6562 = vmatprep.subr.bf16.mxu0 0
        %6563 = vmatpush1.bf16.msra.mxu0 0
        %6564 = vmatprep.subr.bf16.mxu0 0
        %6565 = vmatpush1.bf16.msra.mxu0 0
        %6566 = vmatprep.subr.bf16.mxu0 0
        %6567 = vmatpush1.bf16.msra.mxu0 0
        %6568 = vmatprep.subr.bf16.mxu0 0
        %6569 = vmatpush1.bf16.msra.mxu0 0
        %6570 = vmatprep.subr.bf16.mxu0 0
        %6571 = vmatpush1.bf16.msra.mxu0 0
        %6572 = vmatprep.subr.bf16.mxu0 0
        %6573 = vmatpush1.bf16.msra.mxu0 0
        %6574 = vmatprep.subr.bf16.mxu0 0
        %6575 = vmatpush1.bf16.msra.mxu0 0
        %6576 = vmatprep.subr.bf16.mxu0 0
        %6577 = vmatpush1.bf16.msra.mxu0 0
        %6578 = vmatprep.subr.bf16.mxu0 0
        %6579 = vmatpush1.bf16.msra.mxu0 0
        %6580 = vmatprep.subr.bf16.mxu0 0
        %6581 = vmatpush1.bf16.msra.mxu0 0
        %6582 = vmatprep.mubr.bf16.mxu0 0
        %6583 = vmatmul.mubr.bf16.gmra.mrb[0].mxu0 %v6548
        %v6584 = vpop.f32.mrb[0].mxu0
        %v6585 = vadd.f32 0.0, %v6584
        %v6586 = vpop.f32.mrb[0].mxu0
        %v6587 = vpop.f32.mrb[0].mxu0
        %v6588 = vpop.f32.mrb[0].mxu0
        %6589 = vdwg.mxu0
        %v6590 = vadd.f32 %v6507, %v6585
        %v6591 = vld [vmem:[#allocation9 + $0x3] sm:$0x1]
        %v6592 = vpack.c.bf16 %v6591, %v6591
        %s6593 = scalar_lea.vmem %s9, 96
        %v6594 = vld [vmem:[%s6593] sm:$0xf]
        %v6595 = vld [vmem:[%s6593 + $0x4] sm:$0xf]
        %v6596 = vld [vmem:[%s6593 + $0x8] sm:$0xf]
        %v6597 = vld [vmem:[%s6593 + $0xc] sm:$0xf]
        %v6598 = vld [vmem:[%s6593 + $0x10] sm:$0xf]
        %v6599 = vld [vmem:[%s6593 + $0x14] sm:$0xf]
        %v6600 = vld [vmem:[%s6593 + $0x18] sm:$0xf]
        %v6601 = vld [vmem:[%s6593 + $0x1c] sm:$0xf]
        %v6610 = vunpack.c.l.b16 %v6594
        %v6611 = vunpack.c.l.b16 %v6595
        %v6612 = vunpack.c.l.b16 %v6596
        %v6613 = vunpack.c.l.b16 %v6597
        %v6614 = vunpack.c.l.b16 %v6598
        %v6615 = vunpack.c.l.b16 %v6599
        %v6616 = vunpack.c.l.b16 %v6600
        %v6617 = vunpack.c.l.b16 %v6601
        %v6618 = vpack.c.b16 %v6611, %v6610
        %v6619 = vpack.c.b16 %v6613, %v6612
        %v6620 = vpack.c.b16 %v6615, %v6614
        %v6621 = vpack.c.b16 %v6617, %v6616
        %v6627 = vsel %vm1067, %v6592, 0
        %6629 = vmatprep.subr.bf16.mxu0 0
        %6630 = vmatpush1.bf16.msra.mxu0 %v6618
        %6631 = vmatprep.subr.bf16.mxu0 0
        %6632 = vmatpush1.bf16.msra.mxu0 %v6619
        %6633 = vmatprep.subr.bf16.mxu0 0
        %6634 = vmatpush1.bf16.msra.mxu0 %v6620
        %6635 = vmatprep.subr.bf16.mxu0 0
        %6636 = vmatpush1.bf16.msra.mxu0 %v6621
        %6637 = vmatprep.subr.bf16.mxu0 0
        %6638 = vmatpush1.bf16.msra.mxu0 0
        %6639 = vmatprep.subr.bf16.mxu0 0
        %6640 = vmatpush1.bf16.msra.mxu0 0
        %6641 = vmatprep.subr.bf16.mxu0 0
        %6642 = vmatpush1.bf16.msra.mxu0 0
        %6643 = vmatprep.subr.bf16.mxu0 0
        %6644 = vmatpush1.bf16.msra.mxu0 0
        %6645 = vmatprep.subr.bf16.mxu0 0
        %6646 = vmatpush1.bf16.msra.mxu0 0
        %6647 = vmatprep.subr.bf16.mxu0 0
        %6648 = vmatpush1.bf16.msra.mxu0 0
        %6649 = vmatprep.subr.bf16.mxu0 0
        %6650 = vmatpush1.bf16.msra.mxu0 0
        %6651 = vmatprep.subr.bf16.mxu0 0
        %6652 = vmatpush1.bf16.msra.mxu0 0
        %6653 = vmatprep.subr.bf16.mxu0 0
        %6654 = vmatpush1.bf16.msra.mxu0 0
        %6655 = vmatprep.subr.bf16.mxu0 0
        %6656 = vmatpush1.bf16.msra.mxu0 0
        %6657 = vmatprep.subr.bf16.mxu0 0
        %6658 = vmatpush1.bf16.msra.mxu0 0
        %6659 = vmatprep.subr.bf16.mxu0 0
        %6660 = vmatpush1.bf16.msra.mxu0 0
        %6661 = vmatprep.mubr.bf16.mxu0 0
        %6662 = vmatmul.mubr.bf16.gmra.mrb[0].mxu0 %v6627
        %v6663 = vpop.f32.mrb[0].mxu0
        %v6664 = vadd.f32 0.0, %v6663
        %v6665 = vpop.f32.mrb[0].mxu0
        %v6666 = vpop.f32.mrb[0].mxu0
        %v6667 = vpop.f32.mrb[0].mxu0
        %6668 = vdwg.mxu0
        %v6669 = vadd.f32 %v6590, %v6664
        %v6670 = vld [vmem:[#allocation9 + $0x4] sm:$0x1]
        %v6671 = vpack.c.bf16 %v6670, %v6670
        %s6672 = scalar_lea.vmem %s9, 128
        %v6673 = vld [vmem:[%s6672] sm:$0xf]
        %v6674 = vld [vmem:[%s6672 + $0x4] sm:$0xf]
        %v6675 = vld [vmem:[%s6672 + $0x8] sm:$0xf]
        %v6676 = vld [vmem:[%s6672 + $0xc] sm:$0xf]
        %v6677 = vld [vmem:[%s6672 + $0x10] sm:$0xf]
        %v6678 = vld [vmem:[%s6672 + $0x14] sm:$0xf]
        %v6679 = vld [vmem:[%s6672 + $0x18] sm:$0xf]
        %v6680 = vld [vmem:[%s6672 + $0x1c] sm:$0xf]
        %v6689 = vunpack.c.l.b16 %v6673
        %v6690 = vunpack.c.l.b16 %v6674
        %v6691 = vunpack.c.l.b16 %v6675
        %v6692 = vunpack.c.l.b16 %v6676
        %v6693 = vunpack.c.l.b16 %v6677
        %v6694 = vunpack.c.l.b16 %v6678
        %v6695 = vunpack.c.l.b16 %v6679
        %v6696 = vunpack.c.l.b16 %v6680
        %v6697 = vpack.c.b16 %v6690, %v6689
        %v6698 = vpack.c.b16 %v6692, %v6691
        %v6699 = vpack.c.b16 %v6694, %v6693
        %v6700 = vpack.c.b16 %v6696, %v6695
        %v6706 = vsel %vm1067, %v6671, 0
        %6708 = vmatprep.subr.bf16.mxu0 0
        %6709 = vmatpush1.bf16.msra.mxu0 %v6697
        %6710 = vmatprep.subr.bf16.mxu0 0
        %6711 = vmatpush1.bf16.msra.mxu0 %v6698
        %6712 = vmatprep.subr.bf16.mxu0 0
        %6713 = vmatpush1.bf16.msra.mxu0 %v6699
        %6714 = vmatprep.subr.bf16.mxu0 0
        %6715 = vmatpush1.bf16.msra.mxu0 %v6700
        %6716 = vmatprep.subr.bf16.mxu0 0
        %6717 = vmatpush1.bf16.msra.mxu0 0
        %6718 = vmatprep.subr.bf16.mxu0 0
        %6719 = vmatpush1.bf16.msra.mxu0 0
        %6720 = vmatprep.subr.bf16.mxu0 0
        %6721 = vmatpush1.bf16.msra.mxu0 0
        %6722 = vmatprep.subr.bf16.mxu0 0
        %6723 = vmatpush1.bf16.msra.mxu0 0
        %6724 = vmatprep.subr.bf16.mxu0 0
        %6725 = vmatpush1.bf16.msra.mxu0 0
        %6726 = vmatprep.subr.bf16.mxu0 0
        %6727 = vmatpush1.bf16.msra.mxu0 0
        %6728 = vmatprep.subr.bf16.mxu0 0
        %6729 = vmatpush1.bf16.msra.mxu0 0
        %6730 = vmatprep.subr.bf16.mxu0 0
        %6731 = vmatpush1.bf16.msra.mxu0 0
        %6732 = vmatprep.subr.bf16.mxu0 0
        %6733 = vmatpush1.bf16.msra.mxu0 0
        %6734 = vmatprep.subr.bf16.mxu0 0
        %6735 = vmatpush1.bf16.msra.mxu0 0
        %6736 = vmatprep.subr.bf16.mxu0 0
        %6737 = vmatpush1.bf16.msra.mxu0 0
        %6738 = vmatprep.subr.bf16.mxu0 0
        %6739 = vmatpush1.bf16.msra.mxu0 0
        %6740 = vmatprep.mubr.bf16.mxu0 0
        %6741 = vmatmul.mubr.bf16.gmra.mrb[0].mxu0 %v6706
        %v6742 = vpop.f32.mrb[0].mxu0
        %v6743 = vadd.f32 0.0, %v6742
        %v6744 = vpop.f32.mrb[0].mxu0
        %v6745 = vpop.f32.mrb[0].mxu0
        %v6746 = vpop.f32.mrb[0].mxu0
        %6747 = vdwg.mxu0
        %v6748 = vadd.f32 %v6669, %v6743
        %v6749 = vld [vmem:[#allocation9 + $0x5] sm:$0x1]
        %v6750 = vpack.c.bf16 %v6749, %v6749
        %s6751 = scalar_lea.vmem %s9, 160
        %v6752 = vld [vmem:[%s6751] sm:$0xf]
        %v6753 = vld [vmem:[%s6751 + $0x4] sm:$0xf]
        %v6754 = vld [vmem:[%s6751 + $0x8] sm:$0xf]
        %v6755 = vld [vmem:[%s6751 + $0xc] sm:$0xf]
        %v6756 = vld [vmem:[%s6751 + $0x10] sm:$0xf]
        %v6757 = vld [vmem:[%s6751 + $0x14] sm:$0xf]
        %v6758 = vld [vmem:[%s6751 + $0x18] sm:$0xf]
        %v6759 = vld [vmem:[%s6751 + $0x1c] sm:$0xf]
        %v6768 = vunpack.c.l.b16 %v6752
        %v6769 = vunpack.c.l.b16 %v6753
        %v6770 = vunpack.c.l.b16 %v6754
        %v6771 = vunpack.c.l.b16 %v6755
        %v6772 = vunpack.c.l.b16 %v6756
        %v6773 = vunpack.c.l.b16 %v6757
        %v6774 = vunpack.c.l.b16 %v6758
        %v6775 = vunpack.c.l.b16 %v6759
        %v6776 = vpack.c.b16 %v6769, %v6768
        %v6777 = vpack.c.b16 %v6771, %v6770
        %v6778 = vpack.c.b16 %v6773, %v6772
        %v6779 = vpack.c.b16 %v6775, %v6774
        %v6785 = vsel %vm1067, %v6750, 0
        %6787 = vmatprep.subr.bf16.mxu0 0
        %6788 = vmatpush1.bf16.msra.mxu0 %v6776
        %6789 = vmatprep.subr.bf16.mxu0 0
        %6790 = vmatpush1.bf16.msra.mxu0 %v6777
        %6791 = vmatprep.subr.bf16.mxu0 0
        %6792 = vmatpush1.bf16.msra.mxu0 %v6778
        %6793 = vmatprep.subr.bf16.mxu0 0
        %6794 = vmatpush1.bf16.msra.mxu0 %v6779
        %6795 = vmatprep.subr.bf16.mxu0 0
        %6796 = vmatpush1.bf16.msra.mxu0 0
        %6797 = vmatprep.subr.bf16.mxu0 0
        %6798 = vmatpush1.bf16.msra.mxu0 0
        %6799 = vmatprep.subr.bf16.mxu0 0
        %6800 = vmatpush1.bf16.msra.mxu0 0
        %6801 = vmatprep.subr.bf16.mxu0 0
        %6802 = vmatpush1.bf16.msra.mxu0 0
        %6803 = vmatprep.subr.bf16.mxu0 0
        %6804 = vmatpush1.bf16.msra.mxu0 0
        %6805 = vmatprep.subr.bf16.mxu0 0
        %6806 = vmatpush1.bf16.msra.mxu0 0
        %6807 = vmatprep.subr.bf16.mxu0 0
        %6808 = vmatpush1.bf16.msra.mxu0 0
        %6809 = vmatprep.subr.bf16.mxu0 0
        %6810 = vmatpush1.bf16.msra.mxu0 0
        %6811 = vmatprep.subr.bf16.mxu0 0
        %6812 = vmatpush1.bf16.msra.mxu0 0
        %6813 = vmatprep.subr.bf16.mxu0 0
        %6814 = vmatpush1.bf16.msra.mxu0 0
        %6815 = vmatprep.subr.bf16.mxu0 0
        %6816 = vmatpush1.bf16.msra.mxu0 0
        %6817 = vmatprep.subr.bf16.mxu0 0
        %6818 = vmatpush1.bf16.msra.mxu0 0
        %6819 = vmatprep.mubr.bf16.mxu0 0
        %6820 = vmatmul.mubr.bf16.gmra.mrb[0].mxu0 %v6785
        %v6821 = vpop.f32.mrb[0].mxu0
        %v6822 = vadd.f32 0.0, %v6821
        %v6823 = vpop.f32.mrb[0].mxu0
        %v6824 = vpop.f32.mrb[0].mxu0
        %v6825 = vpop.f32.mrb[0].mxu0
        %6826 = vdwg.mxu0
        %v6827 = vadd.f32 %v6748, %v6822
        %v6828 = vld [vmem:[#allocation9 + $0x6] sm:$0x1]
        %v6829 = vpack.c.bf16 %v6828, %v6828
        %s6830 = scalar_lea.vmem %s9, 192
        %v6831 = vld [vmem:[%s6830] sm:$0xf]
        %v6832 = vld [vmem:[%s6830 + $0x4] sm:$0xf]
        %v6833 = vld [vmem:[%s6830 + $0x8] sm:$0xf]
        %v6834 = vld [vmem:[%s6830 + $0xc] sm:$0xf]
        %v6835 = vld [vmem:[%s6830 + $0x10] sm:$0xf]
        %v6836 = vld [vmem:[%s6830 + $0x14] sm:$0xf]
        %v6837 = vld [vmem:[%s6830 + $0x18] sm:$0xf]
        %v6838 = vld [vmem:[%s6830 + $0x1c] sm:$0xf]
        %v6847 = vunpack.c.l.b16 %v6831
        %v6848 = vunpack.c.l.b16 %v6832
        %v6849 = vunpack.c.l.b16 %v6833
        %v6850 = vunpack.c.l.b16 %v6834
        %v6851 = vunpack.c.l.b16 %v6835
        %v6852 = vunpack.c.l.b16 %v6836
        %v6853 = vunpack.c.l.b16 %v6837
        %v6854 = vunpack.c.l.b16 %v6838
        %v6855 = vpack.c.b16 %v6848, %v6847
        %v6856 = vpack.c.b16 %v6850, %v6849
        %v6857 = vpack.c.b16 %v6852, %v6851
        %v6858 = vpack.c.b16 %v6854, %v6853
        %v6864 = vsel %vm1067, %v6829, 0
        %6866 = vmatprep.subr.bf16.mxu0 0
        %6867 = vmatpush1.bf16.msra.mxu0 %v6855
        %6868 = vmatprep.subr.bf16.mxu0 0
        %6869 = vmatpush1.bf16.msra.mxu0 %v6856
        %6870 = vmatprep.subr.bf16.mxu0 0
        %6871 = vmatpush1.bf16.msra.mxu0 %v6857
        %6872 = vmatprep.subr.bf16.mxu0 0
        %6873 = vmatpush1.bf16.msra.mxu0 %v6858
        %6874 = vmatprep.subr.bf16.mxu0 0
        %6875 = vmatpush1.bf16.msra.mxu0 0
        %6876 = vmatprep.subr.bf16.mxu0 0
        %6877 = vmatpush1.bf16.msra.mxu0 0
        %6878 = vmatprep.subr.bf16.mxu0 0
        %6879 = vmatpush1.bf16.msra.mxu0 0
        %6880 = vmatprep.subr.bf16.mxu0 0
        %6881 = vmatpush1.bf16.msra.mxu0 0
        %6882 = vmatprep.subr.bf16.mxu0 0
        %6883 = vmatpush1.bf16.msra.mxu0 0
        %6884 = vmatprep.subr.bf16.mxu0 0
        %6885 = vmatpush1.bf16.msra.mxu0 0
        %6886 = vmatprep.subr.bf16.mxu0 0
        %6887 = vmatpush1.bf16.msra.mxu0 0
        %6888 = vmatprep.subr.bf16.mxu0 0
        %6889 = vmatpush1.bf16.msra.mxu0 0
        %6890 = vmatprep.subr.bf16.mxu0 0
        %6891 = vmatpush1.bf16.msra.mxu0 0
        %6892 = vmatprep.subr.bf16.mxu0 0
        %6893 = vmatpush1.bf16.msra.mxu0 0
        %6894 = vmatprep.subr.bf16.mxu0 0
        %6895 = vmatpush1.bf16.msra.mxu0 0
        %6896 = vmatprep.subr.bf16.mxu0 0
        %6897 = vmatpush1.bf16.msra.mxu0 0
        %6898 = vmatprep.mubr.bf16.mxu0 0
        %6899 = vmatmul.mubr.bf16.gmra.mrb[0].mxu0 %v6864
        %v6900 = vpop.f32.mrb[0].mxu0
        %v6901 = vadd.f32 0.0, %v6900
        %v6902 = vpop.f32.mrb[0].mxu0
        %v6903 = vpop.f32.mrb[0].mxu0
        %v6904 = vpop.f32.mrb[0].mxu0
        %6905 = vdwg.mxu0
        %v6906 = vadd.f32 %v6827, %v6901
        %v6907 = vld [vmem:[#allocation9 + $0x7] sm:$0x1]
        %v6908 = vpack.c.bf16 %v6907, %v6907
        %s6909 = scalar_lea.vmem %s9, 224
        %v6910 = vld [vmem:[%s6909] sm:$0xf]
        %v6911 = vld [vmem:[%s6909 + $0x4] sm:$0xf]
        %v6912 = vld [vmem:[%s6909 + $0x8] sm:$0xf]
        %v6913 = vld [vmem:[%s6909 + $0xc] sm:$0xf]
        %v6914 = vld [vmem:[%s6909 + $0x10] sm:$0xf]
        %v6915 = vld [vmem:[%s6909 + $0x14] sm:$0xf]
        %v6916 = vld [vmem:[%s6909 + $0x18] sm:$0xf]
        %v6917 = vld [vmem:[%s6909 + $0x1c] sm:$0xf]
        %v6926 = vunpack.c.l.b16 %v6910
        %v6927 = vunpack.c.l.b16 %v6911
        %v6928 = vunpack.c.l.b16 %v6912
        %v6929 = vunpack.c.l.b16 %v6913
        %v6930 = vunpack.c.l.b16 %v6914
        %v6931 = vunpack.c.l.b16 %v6915
        %v6932 = vunpack.c.l.b16 %v6916
        %v6933 = vunpack.c.l.b16 %v6917
        %v6934 = vpack.c.b16 %v6927, %v6926
        %v6935 = vpack.c.b16 %v6929, %v6928
        %v6936 = vpack.c.b16 %v6931, %v6930
        %v6937 = vpack.c.b16 %v6933, %v6932
        %v6943 = vsel %vm1067, %v6908, 0
        %6945 = vmatprep.subr.bf16.mxu0 0
        %6946 = vmatpush1.bf16.msra.mxu0 %v6934
        %6947 = vmatprep.subr.bf16.mxu0 0
        %6948 = vmatpush1.bf16.msra.mxu0 %v6935
        %6949 = vmatprep.subr.bf16.mxu0 0
        %6950 = vmatpush1.bf16.msra.mxu0 %v6936
        %6951 = vmatprep.subr.bf16.mxu0 0
        %6952 = vmatpush1.bf16.msra.mxu0 %v6937
        %6953 = vmatprep.subr.bf16.mxu0 0
        %6954 = vmatpush1.bf16.msra.mxu0 0
        %6955 = vmatprep.subr.bf16.mxu0 0
        %6956 = vmatpush1.bf16.msra.mxu0 0
        %6957 = vmatprep.subr.bf16.mxu0 0
        %6958 = vmatpush1.bf16.msra.mxu0 0
        %6959 = vmatprep.subr.bf16.mxu0 0
        %6960 = vmatpush1.bf16.msra.mxu0 0
        %6961 = vmatprep.subr.bf16.mxu0 0
        %6962 = vmatpush1.bf16.msra.mxu0 0
        %6963 = vmatprep.subr.bf16.mxu0 0
        %6964 = vmatpush1.bf16.msra.mxu0 0
        %6965 = vmatprep.subr.bf16.mxu0 0
        %6966 = vmatpush1.bf16.msra.mxu0 0
        %6967 = vmatprep.subr.bf16.mxu0 0
        %6968 = vmatpush1.bf16.msra.mxu0 0
        %6969 = vmatprep.subr.bf16.mxu0 0
        %6970 = vmatpush1.bf16.msra.mxu0 0
        %6971 = vmatprep.subr.bf16.mxu0 0
        %6972 = vmatpush1.bf16.msra.mxu0 0
        %6973 = vmatprep.subr.bf16.mxu0 0
        %6974 = vmatpush1.bf16.msra.mxu0 0
        %6975 = vmatprep.subr.bf16.mxu0 0
        %6976 = vmatpush1.bf16.msra.mxu0 0
        %6977 = vmatprep.mubr.bf16.mxu0 0
        %6978 = vmatmul.mubr.bf16.gmra.mrb[0].mxu0 %v6943
        %v6979 = vpop.f32.mrb[0].mxu0
        %v6980 = vadd.f32 0.0, %v6979
        %v6981 = vpop.f32.mrb[0].mxu0
        %v6982 = vpop.f32.mrb[0].mxu0
        %v6983 = vpop.f32.mrb[0].mxu0
        %6984 = vdwg.mxu0
        %v6985 = vadd.f32 %v6906, %v6980
        %v6986 = vld [vmem:[#allocation9 + $0x8] sm:$0x1]
        %v6987 = vpack.c.bf16 %v6986, %v6986
        %s6988 = scalar_lea.vmem %s9, 256
        %v6989 = vld [vmem:[%s6988] sm:$0xf]
        %v6990 = vld [vmem:[%s6988 + $0x4] sm:$0xf]
        %v6991 = vld [vmem:[%s6988 + $0x8] sm:$0xf]
        %v6992 = vld [vmem:[%s6988 + $0xc] sm:$0xf]
        %v6993 = vld [vmem:[%s6988 + $0x10] sm:$0xf]
        %v6994 = vld [vmem:[%s6988 + $0x14] sm:$0xf]
        %v6995 = vld [vmem:[%s6988 + $0x18] sm:$0xf]
        %v6996 = vld [vmem:[%s6988 + $0x1c] sm:$0xf]
        %v7005 = vunpack.c.l.b16 %v6989
        %v7006 = vunpack.c.l.b16 %v6990
        %v7007 = vunpack.c.l.b16 %v6991
        %v7008 = vunpack.c.l.b16 %v6992
        %v7009 = vunpack.c.l.b16 %v6993
        %v7010 = vunpack.c.l.b16 %v6994
        %v7011 = vunpack.c.l.b16 %v6995
        %v7012 = vunpack.c.l.b16 %v6996
        %v7013 = vpack.c.b16 %v7006, %v7005
        %v7014 = vpack.c.b16 %v7008, %v7007
        %v7015 = vpack.c.b16 %v7010, %v7009
        %v7016 = vpack.c.b16 %v7012, %v7011
        %v7022 = vsel %vm1067, %v6987, 0
        %7024 = vmatprep.subr.bf16.mxu0 0
        %7025 = vmatpush1.bf16.msra.mxu0 %v7013
        %7026 = vmatprep.subr.bf16.mxu0 0
        %7027 = vmatpush1.bf16.msra.mxu0 %v7014
        %7028 = vmatprep.subr.bf16.mxu0 0
        %7029 = vmatpush1.bf16.msra.mxu0 %v7015
        %7030 = vmatprep.subr.bf16.mxu0 0
        %7031 = vmatpush1.bf16.msra.mxu0 %v7016
        %7032 = vmatprep.subr.bf16.mxu0 0
        %7033 = vmatpush1.bf16.msra.mxu0 0
        %7034 = vmatprep.subr.bf16.mxu0 0
        %7035 = vmatpush1.bf16.msra.mxu0 0
        %7036 = vmatprep.subr.bf16.mxu0 0
        %7037 = vmatpush1.bf16.msra.mxu0 0
        %7038 = vmatprep.subr.bf16.mxu0 0
        %7039 = vmatpush1.bf16.msra.mxu0 0
        %7040 = vmatprep.subr.bf16.mxu0 0
        %7041 = vmatpush1.bf16.msra.mxu0 0
        %7042 = vmatprep.subr.bf16.mxu0 0
        %7043 = vmatpush1.bf16.msra.mxu0 0
        %7044 = vmatprep.subr.bf16.mxu0 0
        %7045 = vmatpush1.bf16.msra.mxu0 0
        %7046 = vmatprep.subr.bf16.mxu0 0
        %7047 = vmatpush1.bf16.msra.mxu0 0
        %7048 = vmatprep.subr.bf16.mxu0 0
        %7049 = vmatpush1.bf16.msra.mxu0 0
        %7050 = vmatprep.subr.bf16.mxu0 0
        %7051 = vmatpush1.bf16.msra.mxu0 0
        %7052 = vmatprep.subr.bf16.mxu0 0
        %7053 = vmatpush1.bf16.msra.mxu0 0
        %7054 = vmatprep.subr.bf16.mxu0 0
        %7055 = vmatpush1.bf16.msra.mxu0 0
        %7056 = vmatprep.mubr.bf16.mxu0 0
        %7057 = vmatmul.mubr.bf16.gmra.mrb[0].mxu0 %v7022
        %v7058 = vpop.f32.mrb[0].mxu0
        %v7059 = vadd.f32 0.0, %v7058
        %v7060 = vpop.f32.mrb[0].mxu0
        %v7061 = vpop.f32.mrb[0].mxu0
        %v7062 = vpop.f32.mrb[0].mxu0
        %7063 = vdwg.mxu0
        %v7064 = vadd.f32 %v6985, %v7059
        %v7065 = vld [vmem:[%s18] sm:$0x1]
        %v7066 = vadd.f32 %v7064, %v7065
        %v7067 = vmax.f32 %v7066, 0.0
        %7068 = vst [vmem:[#allocation2] sm:$0x1] %v7067
        %v7069 = vld [vmem:[#allocation2] sm:$0x1]
        %7070 = vst [vmem:[#allocation10 + $0x4] sm:$0x1] %v7069
        %v7071 = vld [vmem:[#allocation10] sm:$0x1f]
        %v7072 = vpack.c.bf16 %v7071, %v7071
        %v7073 = vld [vmem:[%s10] sm:$0xf]
        %v7074 = vld [vmem:[%s10 + $0x4] sm:$0xf]
        %v7075 = vld [vmem:[%s10 + $0x8] sm:$0xf]
        %v7076 = vld [vmem:[%s10 + $0xc] sm:$0xf]
        %v7077 = vld [vmem:[%s10 + $0x10] sm:$0xf]
        %v7078 = vld [vmem:[#allocation10 + $0x1] sm:$0x1f]
        %v7079 = vpack.c.bf16 %v7078, %v7078
        %s7080 = scalar_lea.vmem %s10, 20
        %v7081 = vld [vmem:[%s7080] sm:$0xf]
        %v7082 = vld [vmem:[%s7080 + $0x4] sm:$0xf]
        %v7083 = vld [vmem:[%s7080 + $0x8] sm:$0xf]
        %v7084 = vld [vmem:[%s7080 + $0xc] sm:$0xf]
        %v7085 = vld [vmem:[%s7080 + $0x10] sm:$0xf]
        %v7091 = vunpack.c.l.b16 %v7081
        %v7092 = vunpack.c.l.b16 %v7082
        %v7093 = vunpack.c.l.b16 %v7083
        %v7094 = vunpack.c.l.b16 %v7084
        %v7095 = vunpack.c.l.b16 %v7085
        %v7096 = vpack.c.b16 %v7092, %v7091
        %v7097 = vpack.c.b16 %v7094, %v7093
        %v7098 = vpack.c.b16 %v7095, %v7095
        %vm7101 = vcmask 326656
        %v7103 = vsel %vm7101, %v7079, 0
        %v7106 = vsel %vm4397, %v7098, 0
        %7108 = vmatprep.subr.bf16.mxu0 0
        %7109 = vmatpush1.bf16.msra.mxu0 %v7096
        %7110 = vmatprep.subr.bf16.mxu0 0
        %7111 = vmatpush1.bf16.msra.mxu0 %v7097
        %7112 = vmatprep.subr.bf16.mxu0 0
        %7113 = vmatpush1.bf16.msra.mxu0 %v7106
        %7114 = vmatprep.subr.bf16.mxu0 0
        %7115 = vmatpush1.bf16.msra.mxu0 0
        %7116 = vmatprep.subr.bf16.mxu0 0
        %7117 = vmatpush1.bf16.msra.mxu0 0
        %7118 = vmatprep.subr.bf16.mxu0 0
        %7119 = vmatpush1.bf16.msra.mxu0 0
        %7120 = vmatprep.subr.bf16.mxu0 0
        %7121 = vmatpush1.bf16.msra.mxu0 0
        %7122 = vmatprep.subr.bf16.mxu0 0
        %7123 = vmatpush1.bf16.msra.mxu0 0
        %7124 = vmatprep.subr.bf16.mxu0 0
        %7125 = vmatpush1.bf16.msra.mxu0 0
        %7126 = vmatprep.subr.bf16.mxu0 0
        %7127 = vmatpush1.bf16.msra.mxu0 0
        %7128 = vmatprep.subr.bf16.mxu0 0
        %7129 = vmatpush1.bf16.msra.mxu0 0
        %7130 = vmatprep.subr.bf16.mxu0 0
        %7131 = vmatpush1.bf16.msra.mxu0 0
        %7132 = vmatprep.subr.bf16.mxu0 0
        %7133 = vmatpush1.bf16.msra.mxu0 0
        %7134 = vmatprep.subr.bf16.mxu0 0
        %7135 = vmatpush1.bf16.msra.mxu0 0
        %7136 = vmatprep.subr.bf16.mxu0 0
        %7137 = vmatpush1.bf16.msra.mxu0 0
        %7138 = vmatprep.subr.bf16.mxu0 0
        %7139 = vmatpush1.bf16.msra.mxu0 0
        %7140 = vmatprep.mubr.bf16.mxu0 0
        %7141 = vmatmul.mubr.bf16.gmra.mrb[0].mxu0 %v7103
        %v7142 = vpop.f32.mrb[0].mxu0
        %v7143 = vadd.f32 0.0, %v7142
        %v7144 = vpop.f32.mrb[0].mxu0
        %v7145 = vpop.f32.mrb[0].mxu0
        %v7146 = vpop.f32.mrb[0].mxu0
        %7147 = vdwg.mxu0
        %v7153 = vunpack.c.l.b16 %v7073
        %v7154 = vunpack.c.l.b16 %v7074
        %v7155 = vunpack.c.l.b16 %v7075
        %v7156 = vunpack.c.l.b16 %v7076
        %v7157 = vunpack.c.l.b16 %v7077
        %v7158 = vpack.c.b16 %v7154, %v7153
        %v7159 = vpack.c.b16 %v7156, %v7155
        %v7160 = vpack.c.b16 %v7157, %v7157
        %v7164 = vsel %vm7101, %v7072, 0
        %v7167 = vsel %vm4397, %v7160, 0
        %7169 = vmatprep.subr.bf16.mxu0 0
        %7170 = vmatpush1.bf16.msra.mxu0 %v7158
        %7171 = vmatprep.subr.bf16.mxu0 0
        %7172 = vmatpush1.bf16.msra.mxu0 %v7159
        %7173 = vmatprep.subr.bf16.mxu0 0
        %7174 = vmatpush1.bf16.msra.mxu0 %v7167
        %7175 = vmatprep.subr.bf16.mxu0 0
        %7176 = vmatpush1.bf16.msra.mxu0 0
        %7177 = vmatprep.subr.bf16.mxu0 0
        %7178 = vmatpush1.bf16.msra.mxu0 0
        %7179 = vmatprep.subr.bf16.mxu0 0
        %7180 = vmatpush1.bf16.msra.mxu0 0
        %7181 = vmatprep.subr.bf16.mxu0 0
        %7182 = vmatpush1.bf16.msra.mxu0 0
        %7183 = vmatprep.subr.bf16.mxu0 0
        %7184 = vmatpush1.bf16.msra.mxu0 0
        %7185 = vmatprep.subr.bf16.mxu0 0
        %7186 = vmatpush1.bf16.msra.mxu0 0
        %7187 = vmatprep.subr.bf16.mxu0 0
        %7188 = vmatpush1.bf16.msra.mxu0 0
        %7189 = vmatprep.subr.bf16.mxu0 0
        %7190 = vmatpush1.bf16.msra.mxu0 0
        %7191 = vmatprep.subr.bf16.mxu0 0
        %7192 = vmatpush1.bf16.msra.mxu0 0
        %7193 = vmatprep.subr.bf16.mxu0 0
        %7194 = vmatpush1.bf16.msra.mxu0 0
        %7195 = vmatprep.subr.bf16.mxu0 0
        %7196 = vmatpush1.bf16.msra.mxu0 0
        %7197 = vmatprep.subr.bf16.mxu0 0
        %7198 = vmatpush1.bf16.msra.mxu0 0
        %7199 = vmatprep.subr.bf16.mxu0 0
        %7200 = vmatpush1.bf16.msra.mxu0 0
        %7201 = vmatprep.mubr.bf16.mxu0 0
        %7202 = vmatmul.mubr.bf16.gmra.mrb[0].mxu0 %v7164
        %v7203 = vpop.f32.mrb[0].mxu0
        %v7204 = vadd.f32 %v7143, %v7203
        %v7205 = vpop.f32.mrb[0].mxu0
        %v7206 = vpop.f32.mrb[0].mxu0
        %v7207 = vpop.f32.mrb[0].mxu0
        %7208 = vdwg.mxu0
        %v7209 = vld [vmem:[#allocation10 + $0x3] sm:$0x1f]
        %v7210 = vpack.c.bf16 %v7209, %v7209
        %s7211 = scalar_lea.vmem %s10, 40
        %v7212 = vld [vmem:[%s7211] sm:$0xf]
        %v7213 = vld [vmem:[%s7211 + $0x4] sm:$0xf]
        %v7214 = vld [vmem:[%s7211 + $0x8] sm:$0xf]
        %v7215 = vld [vmem:[%s7211 + $0xc] sm:$0xf]
        %v7216 = vld [vmem:[%s7211 + $0x10] sm:$0xf]
        %v7222 = vunpack.c.l.b16 %v7212
        %v7223 = vunpack.c.l.b16 %v7213
        %v7224 = vunpack.c.l.b16 %v7214
        %v7225 = vunpack.c.l.b16 %v7215
        %v7226 = vunpack.c.l.b16 %v7216
        %v7227 = vpack.c.b16 %v7223, %v7222
        %v7228 = vpack.c.b16 %v7225, %v7224
        %v7229 = vpack.c.b16 %v7226, %v7226
        %v7233 = vsel %vm7101, %v7210, 0
        %v7236 = vsel %vm4397, %v7229, 0
        %7238 = vmatprep.subr.bf16.mxu0 0
        %7239 = vmatpush1.bf16.msra.mxu0 %v7227
        %7240 = vmatprep.subr.bf16.mxu0 0
        %7241 = vmatpush1.bf16.msra.mxu0 %v7228
        %7242 = vmatprep.subr.bf16.mxu0 0
        %7243 = vmatpush1.bf16.msra.mxu0 %v7236
        %7244 = vmatprep.subr.bf16.mxu0 0
        %7245 = vmatpush1.bf16.msra.mxu0 0
        %7246 = vmatprep.subr.bf16.mxu0 0
        %7247 = vmatpush1.bf16.msra.mxu0 0
        %7248 = vmatprep.subr.bf16.mxu0 0
        %7249 = vmatpush1.bf16.msra.mxu0 0
        %7250 = vmatprep.subr.bf16.mxu0 0
        %7251 = vmatpush1.bf16.msra.mxu0 0
        %7252 = vmatprep.subr.bf16.mxu0 0
        %7253 = vmatpush1.bf16.msra.mxu0 0
        %7254 = vmatprep.subr.bf16.mxu0 0
        %7255 = vmatpush1.bf16.msra.mxu0 0
        %7256 = vmatprep.subr.bf16.mxu0 0
        %7257 = vmatpush1.bf16.msra.mxu0 0
        %7258 = vmatprep.subr.bf16.mxu0 0
        %7259 = vmatpush1.bf16.msra.mxu0 0
        %7260 = vmatprep.subr.bf16.mxu0 0
        %7261 = vmatpush1.bf16.msra.mxu0 0
        %7262 = vmatprep.subr.bf16.mxu0 0
        %7263 = vmatpush1.bf16.msra.mxu0 0
        %7264 = vmatprep.subr.bf16.mxu0 0
        %7265 = vmatpush1.bf16.msra.mxu0 0
        %7266 = vmatprep.subr.bf16.mxu0 0
        %7267 = vmatpush1.bf16.msra.mxu0 0
        %7268 = vmatprep.subr.bf16.mxu0 0
        %7269 = vmatpush1.bf16.msra.mxu0 0
        %7270 = vmatprep.mubr.bf16.mxu0 0
        %7271 = vmatmul.mubr.bf16.gmra.mrb[0].mxu0 %v7233
        %v7272 = vpop.f32.mrb[0].mxu0
        %v7273 = vadd.f32 0.0, %v7272
        %v7274 = vpop.f32.mrb[0].mxu0
        %v7275 = vpop.f32.mrb[0].mxu0
        %v7276 = vpop.f32.mrb[0].mxu0
        %7277 = vdwg.mxu0
        %v7278 = vadd.f32 %v7204, %v7273
        %v7279 = vld [vmem:[#allocation10 + $0x4] sm:$0x1f]
        %v7280 = vpack.c.bf16 %v7279, %v7279
        %s7281 = scalar_lea.vmem %s10, 60
        %v7282 = vld [vmem:[%s7281] sm:$0xf]
        %v7283 = vld [vmem:[%s7281 + $0x4] sm:$0xf]
        %v7284 = vld [vmem:[%s7281 + $0x8] sm:$0xf]
        %v7285 = vld [vmem:[%s7281 + $0xc] sm:$0xf]
        %v7286 = vld [vmem:[%s7281 + $0x10] sm:$0xf]
        %v7292 = vunpack.c.l.b16 %v7282
        %v7293 = vunpack.c.l.b16 %v7283
        %v7294 = vunpack.c.l.b16 %v7284
        %v7295 = vunpack.c.l.b16 %v7285
        %v7296 = vunpack.c.l.b16 %v7286
        %v7297 = vpack.c.b16 %v7293, %v7292
        %v7298 = vpack.c.b16 %v7295, %v7294
        %v7299 = vpack.c.b16 %v7296, %v7296
        %v7303 = vsel %vm7101, %v7280, 0
        %v7306 = vsel %vm4397, %v7299, 0
        %7308 = vmatprep.subr.bf16.mxu0 0
        %7309 = vmatpush1.bf16.msra.mxu0 %v7297
        %7310 = vmatprep.subr.bf16.mxu0 0
        %7311 = vmatpush1.bf16.msra.mxu0 %v7298
        %7312 = vmatprep.subr.bf16.mxu0 0
        %7313 = vmatpush1.bf16.msra.mxu0 %v7306
        %7314 = vmatprep.subr.bf16.mxu0 0
        %7315 = vmatpush1.bf16.msra.mxu0 0
        %7316 = vmatprep.subr.bf16.mxu0 0
        %7317 = vmatpush1.bf16.msra.mxu0 0
        %7318 = vmatprep.subr.bf16.mxu0 0
        %7319 = vmatpush1.bf16.msra.mxu0 0
        %7320 = vmatprep.subr.bf16.mxu0 0
        %7321 = vmatpush1.bf16.msra.mxu0 0
        %7322 = vmatprep.subr.bf16.mxu0 0
        %7323 = vmatpush1.bf16.msra.mxu0 0
        %7324 = vmatprep.subr.bf16.mxu0 0
        %7325 = vmatpush1.bf16.msra.mxu0 0
        %7326 = vmatprep.subr.bf16.mxu0 0
        %7327 = vmatpush1.bf16.msra.mxu0 0
        %7328 = vmatprep.subr.bf16.mxu0 0
        %7329 = vmatpush1.bf16.msra.mxu0 0
        %7330 = vmatprep.subr.bf16.mxu0 0
        %7331 = vmatpush1.bf16.msra.mxu0 0
        %7332 = vmatprep.subr.bf16.mxu0 0
        %7333 = vmatpush1.bf16.msra.mxu0 0
        %7334 = vmatprep.subr.bf16.mxu0 0
        %7335 = vmatpush1.bf16.msra.mxu0 0
        %7336 = vmatprep.subr.bf16.mxu0 0
        %7337 = vmatpush1.bf16.msra.mxu0 0
        %7338 = vmatprep.subr.bf16.mxu0 0
        %7339 = vmatpush1.bf16.msra.mxu0 0
        %7340 = vmatprep.mubr.bf16.mxu0 0
        %7341 = vmatmul.mubr.bf16.gmra.mrb[0].mxu0 %v7303
        %v7342 = vpop.f32.mrb[0].mxu0
        %v7343 = vadd.f32 0.0, %v7342
        %v7344 = vpop.f32.mrb[0].mxu0
        %v7345 = vpop.f32.mrb[0].mxu0
        %v7346 = vpop.f32.mrb[0].mxu0
        %7347 = vdwg.mxu0
        %v7348 = vadd.f32 %v7278, %v7343
        %v7349 = vld [vmem:[%s19] sm:$0x1]
        %v7351 = vlaneseq
        %v7352 = vshrl.u32 %v7351, 7
        %v7353 = vsub.s32 0, %v7352
        %v7354 = vrot.slane %v7349, %v7353
        %v7356 = vadd.f32 %v7348, %v7354
        %v7357 = vmax.f32 %v7356, 0.0
        %7358 = vst [vmem:[#allocation2] sm:$0x1f] %v7357
        %v7359 = vld [vmem:[#allocation2] sm:$0x3]
        %v7360 = vld [vmem:[#allocation2 + $0x3] sm:$0x3]
        %v7361 = vmax.f32 %v7359, %v7360
        %v7362 = vsel %vm3461, %v7361, -inf
        %v7363 = vrot.slane %v7362, 4
        %v7364 = vmax.f32 %v7362, %v7363
        %v7365 = vrot.slane %v7364, 2
        %v7366 = vmax.f32 %v7364, %v7365
        %v7367 = vrot.slane %v7366, 1
        %v7368 = vmax.f32 %v7366, %v7367
        %v7369 = vld [vmem:[%s750] sm:$0x1]
        %v7370 = vadd.f32 %v7368, %v7369
        %v7371 = vpack.c.bf16 %v7370, %v7370
        %v7372 = vld [vmem:[%s20] sm:$0xf]
        %v7373 = vld [vmem:[%s20 + $0x4] sm:$0xf]
        %v7374 = vld [vmem:[%s20 + $0x8] sm:$0xf]
        %v7375 = vld [vmem:[%s20 + $0xc] sm:$0xf]
        %v7376 = vld [vmem:[%s20 + $0x10] sm:$0xf]
        %v7377 = vld [vmem:[%s20 + $0x14] sm:$0xf]
        %v7378 = vld [vmem:[%s20 + $0x18] sm:$0xf]
        %v7379 = vld [vmem:[%s20 + $0x1c] sm:$0xf]
        %v7380 = vld [vmem:[%s20 + $0x20] sm:$0xf]
        %v7381 = vld [vmem:[%s20 + $0x24] sm:$0xf]
        %v7382 = vld [vmem:[%s20 + $0x28] sm:$0xf]
        %v7383 = vld [vmem:[%s20 + $0x2c] sm:$0xf]
        %v7384 = vld [vmem:[%s20 + $0x30] sm:$0xf]
        %v7385 = vld [vmem:[%s20 + $0x34] sm:$0xf]
        %v7386 = vld [vmem:[%s20 + $0x38] sm:$0xf]
        %v7387 = vld [vmem:[%s20 + $0x3c] sm:$0xf]
        %v7388 = vld [vmem:[%s21] sm:$0x1]
        %v7405 = vunpack.c.l.b16 %v7372
        %v7406 = vunpack.c.l.b16 %v7373
        %v7407 = vunpack.c.l.b16 %v7374
        %v7408 = vunpack.c.l.b16 %v7375
        %v7409 = vunpack.c.l.b16 %v7376
        %v7410 = vunpack.c.l.b16 %v7377
        %v7411 = vunpack.c.l.b16 %v7378
        %v7412 = vunpack.c.l.b16 %v7379
        %v7413 = vunpack.c.l.b16 %v7380
        %v7414 = vunpack.c.l.b16 %v7381
        %v7415 = vunpack.c.l.b16 %v7382
        %v7416 = vunpack.c.l.b16 %v7383
        %v7417 = vunpack.c.l.b16 %v7384
        %v7418 = vunpack.c.l.b16 %v7385
        %v7419 = vunpack.c.l.b16 %v7386
        %v7420 = vunpack.c.l.b16 %v7387
        %v7421 = vpack.c.b16 %v7406, %v7405
        %v7422 = vpack.c.b16 %v7408, %v7407
        %v7423 = vpack.c.b16 %v7410, %v7409
        %v7424 = vpack.c.b16 %v7412, %v7411
        %v7425 = vpack.c.b16 %v7414, %v7413
        %v7426 = vpack.c.b16 %v7416, %v7415
        %v7427 = vpack.c.b16 %v7418, %v7417
        %v7428 = vpack.c.b16 %v7420, %v7419
        %7437 = vmatprep.subr.bf16.mxu0 0
        %7438 = vmatpush1.bf16.msra.mxu0 %v7421
        %7439 = vmatprep.subr.bf16.mxu0 0
        %7440 = vmatpush1.bf16.msra.mxu0 %v7422
        %7441 = vmatprep.subr.bf16.mxu0 0
        %7442 = vmatpush1.bf16.msra.mxu0 %v7423
        %7443 = vmatprep.subr.bf16.mxu0 0
        %7444 = vmatpush1.bf16.msra.mxu0 %v7424
        %7445 = vmatprep.subr.bf16.mxu0 0
        %7446 = vmatpush1.bf16.msra.mxu0 %v7425
        %7447 = vmatprep.subr.bf16.mxu0 0
        %7448 = vmatpush1.bf16.msra.mxu0 %v7426
        %7449 = vmatprep.subr.bf16.mxu0 0
        %7450 = vmatpush1.bf16.msra.mxu0 %v7427
        %7451 = vmatprep.subr.bf16.mxu0 0
        %7452 = vmatpush1.bf16.msra.mxu0 %v7428
        %7453 = vmatprep.subr.bf16.mxu0 0
        %7454 = vmatpush1.bf16.msra.mxu0 0
        %7455 = vmatprep.subr.bf16.mxu0 0
        %7456 = vmatpush1.bf16.msra.mxu0 0
        %7457 = vmatprep.subr.bf16.mxu0 0
        %7458 = vmatpush1.bf16.msra.mxu0 0
        %7459 = vmatprep.subr.bf16.mxu0 0
        %7460 = vmatpush1.bf16.msra.mxu0 0
        %7461 = vmatprep.subr.bf16.mxu0 0
        %7462 = vmatpush1.bf16.msra.mxu0 0
        %7463 = vmatprep.subr.bf16.mxu0 0
        %7464 = vmatpush1.bf16.msra.mxu0 0
        %7465 = vmatprep.subr.bf16.mxu0 0
        %7466 = vmatpush1.bf16.msra.mxu0 0
        %7467 = vmatprep.subr.bf16.mxu0 0
        %7468 = vmatpush1.bf16.msra.mxu0 0
        %7469 = vmatprep.mubr.bf16.mxu0 0
        %7470 = vmatmul.mubr.bf16.gmra.mrb[0].mxu0 %v7371
        %v7471 = vpop.f32.mrb[0].mxu0
        %v7472 = vadd.f32 %v7388, %v7471
        %v7473 = vpop.f32.mrb[0].mxu0
        %v7474 = vpop.f32.mrb[0].mxu0
        %v7475 = vpop.f32.mrb[0].mxu0
        %7476 = vdwg.mxu0
        %v7477 = vmax.f32 %v7472, 0.0
        %v7478 = vpack.c.bf16 %v7477, %v7477
        %v7479 = vld [vmem:[%s22] sm:$0xf]
        %v7480 = vld [vmem:[%s22 + $0x4] sm:$0xf]
        %v7481 = vld [vmem:[%s22 + $0x8] sm:$0xf]
        %v7482 = vld [vmem:[%s22 + $0xc] sm:$0xf]
        %v7483 = vld [vmem:[%s22 + $0x10] sm:$0xf]
        %v7484 = vld [vmem:[%s22 + $0x14] sm:$0xf]
        %v7485 = vld [vmem:[%s22 + $0x18] sm:$0xf]
        %v7486 = vld [vmem:[%s22 + $0x1c] sm:$0xf]
        %v7487 = vld [vmem:[%s22 + $0x20] sm:$0xf]
        %v7488 = vld [vmem:[%s22 + $0x24] sm:$0xf]
        %v7489 = vld [vmem:[%s22 + $0x28] sm:$0xf]
        %v7490 = vld [vmem:[%s22 + $0x2c] sm:$0xf]
        %v7491 = vld [vmem:[%s22 + $0x30] sm:$0xf]
        %v7492 = vld [vmem:[%s22 + $0x34] sm:$0xf]
        %v7493 = vld [vmem:[%s22 + $0x38] sm:$0xf]
        %v7494 = vld [vmem:[%s22 + $0x3c] sm:$0xf]
        %v7495 = vld [vmem:[%s23] sm:$0x1]
        %v7512 = vunpack.c.l.b16 %v7479
        %v7513 = vunpack.c.l.b16 %v7480
        %v7514 = vunpack.c.l.b16 %v7481
        %v7515 = vunpack.c.l.b16 %v7482
        %v7516 = vunpack.c.l.b16 %v7483
        %v7517 = vunpack.c.l.b16 %v7484
        %v7518 = vunpack.c.l.b16 %v7485
        %v7519 = vunpack.c.l.b16 %v7486
        %v7520 = vunpack.c.l.b16 %v7487
        %v7521 = vunpack.c.l.b16 %v7488
        %v7522 = vunpack.c.l.b16 %v7489
        %v7523 = vunpack.c.l.b16 %v7490
        %v7524 = vunpack.c.l.b16 %v7491
        %v7525 = vunpack.c.l.b16 %v7492
        %v7526 = vunpack.c.l.b16 %v7493
        %v7527 = vunpack.c.l.b16 %v7494
        %v7528 = vpack.c.b16 %v7513, %v7512
        %v7529 = vpack.c.b16 %v7515, %v7514
        %v7530 = vpack.c.b16 %v7517, %v7516
        %v7531 = vpack.c.b16 %v7519, %v7518
        %v7532 = vpack.c.b16 %v7521, %v7520
        %v7533 = vpack.c.b16 %v7523, %v7522
        %v7534 = vpack.c.b16 %v7525, %v7524
        %v7535 = vpack.c.b16 %v7527, %v7526
        %7544 = vmatprep.subr.bf16.mxu0 0
        %7545 = vmatpush1.bf16.msra.mxu0 %v7528
        %7546 = vmatprep.subr.bf16.mxu0 0
        %7547 = vmatpush1.bf16.msra.mxu0 %v7529
        %7548 = vmatprep.subr.bf16.mxu0 0
        %7549 = vmatpush1.bf16.msra.mxu0 %v7530
        %7550 = vmatprep.subr.bf16.mxu0 0
        %7551 = vmatpush1.bf16.msra.mxu0 %v7531
        %7552 = vmatprep.subr.bf16.mxu0 0
        %7553 = vmatpush1.bf16.msra.mxu0 %v7532
        %7554 = vmatprep.subr.bf16.mxu0 0
        %7555 = vmatpush1.bf16.msra.mxu0 %v7533
        %7556 = vmatprep.subr.bf16.mxu0 0
        %7557 = vmatpush1.bf16.msra.mxu0 %v7534
        %7558 = vmatprep.subr.bf16.mxu0 0
        %7559 = vmatpush1.bf16.msra.mxu0 %v7535
        %7560 = vmatprep.subr.bf16.mxu0 0
        %7561 = vmatpush1.bf16.msra.mxu0 0
        %7562 = vmatprep.subr.bf16.mxu0 0
        %7563 = vmatpush1.bf16.msra.mxu0 0
        %7564 = vmatprep.subr.bf16.mxu0 0
        %7565 = vmatpush1.bf16.msra.mxu0 0
        %7566 = vmatprep.subr.bf16.mxu0 0
        %7567 = vmatpush1.bf16.msra.mxu0 0
        %7568 = vmatprep.subr.bf16.mxu0 0
        %7569 = vmatpush1.bf16.msra.mxu0 0
        %7570 = vmatprep.subr.bf16.mxu0 0
        %7571 = vmatpush1.bf16.msra.mxu0 0
        %7572 = vmatprep.subr.bf16.mxu0 0
        %7573 = vmatpush1.bf16.msra.mxu0 0
        %7574 = vmatprep.subr.bf16.mxu0 0
        %7575 = vmatpush1.bf16.msra.mxu0 0
        %7576 = vmatprep.mubr.bf16.mxu0 0
        %7577 = vmatmul.mubr.bf16.gmra.mrb[0].mxu0 %v7478
        %v7578 = vpop.f32.mrb[0].mxu0
        %v7579 = vadd.f32 %v7495, %v7578
        %v7580 = vpop.f32.mrb[0].mxu0
        %v7581 = vpop.f32.mrb[0].mxu0
        %v7582 = vpop.f32.mrb[0].mxu0
        %7583 = vdwg.mxu0
        %7584 = vst [vmem:[%s741] sm:$0x1] %v7579
        %s7585 = sand.u32 %s560, 1
        %s7586 = scalar_lea.sflag [#allocation12], %s7585
        %s7587 = sand.u32 %s560, 1
        %s7588 = scalar_lea.vmem [#allocation11], %s7587
        // Predicated region
        $region117: #{forward.1} parent=115 // pred_check
          %p7589 = pneg %p570
        $region118: #{forward.1} parent=115 // pred_check_branch
          %7591 = sbr.rel (%p7589) target = $region120
        $region119: #{forward.1} parent=115 // pred_region
          %s7593 = ssub.s32 16, 16
          %7594 = vsyncadd %s7586, %s7593
          %s7595 = smul.addr %s38, 16
          %s7596 = scalar_lea.hbm %s24, %s7595
          %s7598 = sshll.u32 %s7588, 4
          %s7599 = int_to_ptr.vmem [resolvable:$true] %s7598
          %7601 = dma.vmem_to_hbm [thread:$0]  %s7599, 16, %s7596, %s7586
        $region120: #{forward.1} parent=115 // pred_fallthru
          _
      $region116: #{forward.1} parent=5 // pred_fallthru
        _
      %p7602 = scmp.le.s32.totalorder 2, %s33
      // Predicated region
      $region121: #{forward.1} parent=5 // pred_check
        %p7603 = pneg %p7602
      $region122: #{forward.1} parent=5 // pred_check_branch
        %7605 = sbr.rel (%p7603) target = $region124
      $region123: #{forward.1} parent=5 // pred_region
        %s7606 = ssub.s32 %s33, 2
        // Predicated region
        $region125: #{forward.1} parent=123 // pred_check
          %p7607 = pneg %p576
        $region126: #{forward.1} parent=123 // pred_check_branch
          %7609 = sbr.rel (%p7607) target = $region128
        $region127: #{forward.1} parent=123 // pred_region
          %s7610 = sand.u32 %s561, 1
          %s7611 = scalar_lea.sflag [#allocation12], %s7610
          %s7612 = sand.u32 %s561, 1
          %s7613 = scalar_lea.vmem [#allocation11], %s7612
          %7614 = dma.done %s7611, 16
        $region128: #{forward.1} parent=123 // pred_fallthru
          _
      $region124: #{forward.1} parent=5 // pred_fallthru
        _
    $region6: #{forward.1} parent=1 // loop_footer
      %s37 = sadd.s32 1, %s33
    $region7: #{forward.1} parent=1 // loop_footer_branch
      %32 = sbr.rel target = $region3
    $region8: #{forward.1} parent=1 // loop_exit
      _
    %7615 = vsyncpa [#allocation12], 1
    %s7616 = scalar_lea.sflag [#allocation12], 1
    %7617 = vsyncpa %s7616, 1

</llo_original>
